<compile_context>
chip_gen: v5e
topology: v5e:2x2
jax: 0.10.0
libtpu: 0.0.40
codegen_flags: <defaults>
</compile_context>

<pallas_src>
import jax
import jax.numpy as jnp
import numpy as np
from jax.experimental import pallas as pl
from jax.experimental.pallas import tpu as pltpu

# Model dims (from the PyTorch module)
D_IN = 90000
N1, N2, N3 = 250, 100, 10

# Padded dims for TPU lane alignment
K_PAD = 90112                   # 90000 padded up; 90112 = 704 * 128
N1P = 256                       # 250 padded
N2P = 128                       # 100 padded
# N3 = 10 kept unpadded (full-dim block; padding would corrupt the softmax)


def _select_tiling():
    """Pick K tile + scoped-VMEM limit per chip generation.

    Double-buffered W1 tile is the VMEM driver:
      TK=11264 -> ~23 MiB (fits v7x's 64 MiB physical VMEM with headroom)
      TK=22528 -> ~46 MiB (fine on v5e/v6e's 128 MiB physical VMEM)
    """
    tk, vmem_limit = 11264, 36 * 1024 * 1024          # safe default (v7x)
    try:
        info = pltpu.get_tpu_info()
        vmem_bytes = getattr(info, "vmem_capacity_bytes", 0)
        if vmem_bytes >= 96 * 1024 * 1024:            # v5e / v6e
            tk, vmem_limit = 22528, 56 * 1024 * 1024
    except Exception:
        pass
    return tk, vmem_limit


TK, VMEM_LIMIT = _select_tiling()
assert K_PAD % TK == 0


def mlp_kernel(x_ref, w1_ref, b1_ref, w2_ref, b2_ref, w3_ref, b3_ref,
               o_ref, acc_ref):
    k = pl.program_id(0)

    @pl.when(k == 0)
    def _():
        acc_ref[...] = jnp.zeros_like(acc_ref)

    # x is streamed unpadded: the last block's columns >= D_IN are undefined
    # after the boundary DMA, so mask them to exact zeros.  W1's padded rows
    # (>= D_IN) are exact zeros, so the tail contributes exactly 0.
    col = jax.lax.broadcasted_iota(jnp.int32, x_ref.shape, 1) + k * TK
    x_tile = jnp.where(col < D_IN, x_ref[...], 0.0)

    # linear1 partial accumulation (f32 accumulator resident across the grid).
    acc_ref[...] += jnp.dot(x_tile, w1_ref[...],
                            preferred_element_type=jnp.float32)

    @pl.when(k == pl.num_programs(0) - 1)
    def _():
        # relu(linear1)
        h1 = jnp.maximum(acc_ref[...] + b1_ref[...], 0.0)
        # relu(linear2)
        h2 = jnp.maximum(
            jnp.dot(h1, w2_ref[...], preferred_element_type=jnp.float32)
            + b2_ref[...], 0.0)
        # linear3
        logits = (jnp.dot(h2, w3_ref[...], preferred_element_type=jnp.float32)
                  + b3_ref[...])
        # log_softmax over dim=1
        m = jnp.max(logits, axis=-1, keepdims=True)
        s = logits - m
        lse = jnp.log(jnp.sum(jnp.exp(s), axis=-1, keepdims=True))
        o_ref[...] = (s - lse).astype(o_ref.dtype)


def prepare_padded_params(w1, b1, w2, b2, w3, b3):
    """Pad weights/biases ONCE (call at init time, not per forward pass)."""
    w1_p = jnp.pad(w1, ((0, K_PAD - D_IN), (0, N1P - N1)))
    b1_p = jnp.pad(b1, ((0, N1P - N1),)).reshape(1, N1P)
    w2_p = jnp.pad(w2, ((0, N1P - N1), (0, N2P - N2)))
    b2_p = jnp.pad(b2, ((0, N2P - N2),)).reshape(1, N2P)
    w3_p = jnp.pad(w3, ((0, N2P - N2), (0, 0)))
    b3_p = b3.reshape(1, N3)
    params = (w1_p, b1_p, w2_p, b2_p, w3_p, b3_p)
    return tuple(jax.block_until_ready(p) for p in params)


@jax.jit
def mlp_forward(x, params):
    """x: (B, 90000) f32.  params: output of prepare_padded_params.  -> (B, 10)."""
    w1_p, b1_p, w2_p, b2_p, w3_p, b3_p = params
    B = x.shape[0]

    grid = (K_PAD // TK,)
    cost = pl.CostEstimate(
        flops=2 * B * K_PAD * N1P + 2 * B * N1P * N2P + 2 * B * N2P * N3,
        transcendentals=B * N3,
        bytes_accessed=K_PAD * N1P * 4 + B * D_IN * 4 + B * N3 * 4,
    )
    return pl.pallas_call(
        mlp_kernel,
        out_shape=jax.ShapeDtypeStruct((B, N3), jnp.float32),
        grid_spec=pltpu.PrefetchScalarGridSpec(
            num_scalar_prefetch=0,
            grid=grid,
            in_specs=[
                pl.BlockSpec((B, TK), lambda k: (0, k)),      # x (streamed)
                pl.BlockSpec((TK, N1P), lambda k: (k, 0)),    # W1 (streamed)
                pl.BlockSpec((1, N1P), lambda k: (0, 0)),     # b1
                pl.BlockSpec((N1P, N2P), lambda k: (0, 0)),   # W2
                pl.BlockSpec((1, N2P), lambda k: (0, 0)),     # b2
                pl.BlockSpec((N2P, N3), lambda k: (0, 0)),    # W3
                pl.BlockSpec((1, N3), lambda k: (0, 0)),      # b3
            ],
            out_specs=pl.BlockSpec((B, N3), lambda k: (0, 0)),
            scratch_shapes=[pltpu.VMEM((B, N1P), jnp.float32)],
        ),
        compiler_params=pltpu.CompilerParams(
            dimension_semantics=("arbitrary",),
            vmem_limit_bytes=VMEM_LIMIT),
        cost_estimate=cost,
    )(x, w1_p, b1_p, w2_p, b2_p, w3_p, b3_p)


def _init_linear(key, fan_in, fan_out):
    # Mimic torch nn.Linear default init: U(-1/sqrt(fan_in), 1/sqrt(fan_in)).
    kw, kb = jax.random.split(key)
    bound = 1.0 / np.sqrt(fan_in)
    w = jax.random.uniform(kw, (fan_in, fan_out), jnp.float32, -bound, bound)
    b = jax.random.uniform(kb, (fan_out,), jnp.float32, -bound, bound)
    return w, b


def _reference(x, w1, b1, w2, b2, w3, b3):
    h1 = jnp.maximum(x @ w1 + b1, 0.0)
    h2 = jnp.maximum(h1 @ w2 + b2, 0.0)
    logits = h2 @ w3 + b3
    return jax.nn.log_softmax(logits, axis=1)


if __name__ == "__main__":
    key = jax.random.PRNGKey(0)
    kx, k1, k2, k3 = jax.random.split(key, 4)

    B = 8  # small batch; feature dims are fixed by the module definition
    x = jax.random.normal(kx, (B, D_IN), jnp.float32)
    w1, b1 = _init_linear(k1, D_IN, N1)
    w2, b2 = _init_linear(k2, N1, N2)
    w3, b3 = _init_linear(k3, N2, N3)

    # Padding hoisted out of the per-call path (done once here).
    params = prepare_padded_params(w1, b1, w2, b2, w3, b3)

    out = mlp_forward(x, params)
    out = jax.block_until_ready(out)

    ref = jax.block_until_ready(_reference(x, w1, b1, w2, b2, w3, b3))
    assert out.shape == (B, N3)
    np.testing.assert_allclose(np.asarray(out), np.asarray(ref),
                               rtol=1e-4, atol=1e-4)
    print("KERNEL_OK")
</pallas_src>

<mosaic_0001>
module attributes {stable_mosaic.version = 11 : i64} {
  func.func @mlp_kernel(%arg0: i32, %arg1: memref<8x11264xf32, #tpu.memory_space<vmem>>, %arg2: memref<11264x256xf32, #tpu.memory_space<vmem>>, %arg3: memref<1x256xf32, #tpu.memory_space<vmem>>, %arg4: memref<256x128xf32, #tpu.memory_space<vmem>>, %arg5: memref<1x128xf32, #tpu.memory_space<vmem>>, %arg6: memref<128x10xf32, #tpu.memory_space<vmem>>, %arg7: memref<1x10xf32, #tpu.memory_space<vmem>>, %arg8: memref<8x10xf32, #tpu.memory_space<vmem>>, %arg9: memref<8x256xf32, #tpu.memory_space<vmem>>) attributes {dimension_semantics = [#tpu.dimension_semantics<arbitrary>], iteration_bounds = array<i64: 8>, scalar_prefetch = 0 : i64, scratch_operands = 1 : i64, tpu.core_type = #tpu.core_type<tc>, window_params = [{transform_indices = @transform_0, window_bounds = array<i64: 8, 11264>}, {transform_indices = @transform_1, window_bounds = array<i64: 11264, 256>}, {pipeline_mode = #tpu.pipeline_mode<synchronous>, transform_indices = @transform_2, window_bounds = array<i64: 1, 256>}, {pipeline_mode = #tpu.pipeline_mode<synchronous>, transform_indices = @transform_3, window_bounds = array<i64: 256, 128>}, {pipeline_mode = #tpu.pipeline_mode<synchronous>, transform_indices = @transform_4, window_bounds = array<i64: 1, 128>}, {pipeline_mode = #tpu.pipeline_mode<synchronous>, transform_indices = @transform_5, window_bounds = array<i64: 128, 10>}, {pipeline_mode = #tpu.pipeline_mode<synchronous>, transform_indices = @transform_6, window_bounds = array<i64: 1, 10>}, {pipeline_mode = #tpu.pipeline_mode<synchronous>, transform_indices = @transform_7, window_bounds = array<i64: 8, 10>}]} {
    %c0_i32 = arith.constant 0 : i32
    %0 = arith.cmpi eq, %arg0, %c0_i32 : i32
    %1 = arith.extui %0 : i1 to i32
    %c0_i32_0 = arith.constant 0 : i32
    %2 = arith.cmpi ne, %1, %c0_i32_0 : i32
    scf.if %2 {
      %cst_10 = arith.constant 0.000000e+00 : f32
      %20 = vector.broadcast %cst_10 : f32 to vector<8x256xf32>
      %c0_11 = arith.constant 0 : index
      %c0_12 = arith.constant 0 : index
      %21 = vector.load %arg9[%c0_11, %c0_12] : memref<8x256xf32, #tpu.memory_space<vmem>>, vector<8x256xf32>
      tpu.vector_store %arg9[%c0_11, %c0_12], %20 {strides = array<i32>} : memref<8x256xf32, #tpu.memory_space<vmem>>, vector<8x256xf32>,
    } else {
    }
    %3 = tpu.iota {dimensions = array<i32: 1>} : vector<8x11264xi32>
    %c11264_i32 = arith.constant 11264 : i32
    %4 = arith.muli %arg0, %c11264_i32 : i32
    %5 = vector.broadcast %4 : i32 to vector<8x11264xi32>
    %6 = arith.addi %3, %5 : vector<8x11264xi32>
    %c90000_i32 = arith.constant 90000 : i32
    %7 = vector.broadcast %c90000_i32 : i32 to vector<8x11264xi32>
    %8 = arith.cmpi slt, %6, %7 : vector<8x11264xi32>
    %c0 = arith.constant 0 : index
    %c0_1 = arith.constant 0 : index
    %9 = vector.load %arg1[%c0, %c0_1] : memref<8x11264xf32, #tpu.memory_space<vmem>>, vector<8x11264xf32>
    %cst = arith.constant 0.000000e+00 : f32
    %10 = vector.broadcast %cst : f32 to vector<8x11264xf32>
    %11 = arith.select %8, %9, %10 : vector<8x11264xi1>, vector<8x11264xf32>
    %c0_2 = arith.constant 0 : index
    %c0_3 = arith.constant 0 : index
    %12 = vector.load %arg9[%c0_2, %c0_3] : memref<8x256xf32, #tpu.memory_space<vmem>>, vector<8x256xf32>
    %c0_4 = arith.constant 0 : index
    %c0_5 = arith.constant 0 : index
    %13 = vector.load %arg2[%c0_4, %c0_5] : memref<11264x256xf32, #tpu.memory_space<vmem>>, vector<11264x256xf32>
    %cst_6 = arith.constant dense<0.000000e+00> : vector<8x256xf32>
    %14 = tpu.matmul %11, %13, %cst_6 {dimension_numbers = #tpu.dot_dimension_numbers<[1], [0], [0], [1], [0, 0, 1, 1], [], []>} : vector<8x11264xf32>, vector<11264x256xf32>, vector<8x256xf32> -> vector<8x256xf32>
    %15 = arith.addf %12, %14 : vector<8x256xf32>
    %c0_7 = arith.constant 0 : index
    %c0_8 = arith.constant 0 : index
    %16 = vector.load %arg9[%c0_7, %c0_8] : memref<8x256xf32, #tpu.memory_space<vmem>>, vector<8x256xf32>
    tpu.vector_store %arg9[%c0_7, %c0_8], %15 {strides = array<i32>} : memref<8x256xf32, #tpu.memory_space<vmem>>, vector<8x256xf32>,
    %c7_i32 = arith.constant 7 : i32
    %17 = arith.cmpi eq, %arg0, %c7_i32 : i32
    %18 = arith.extui %17 : i1 to i32
    %c0_i32_9 = arith.constant 0 : i32
    %19 = arith.cmpi ne, %18, %c0_i32_9 : i32
    scf.if %19 {
      %c0_10 = arith.constant 0 : index
      %c0_11 = arith.constant 0 : index
      %20 = vector.load %arg9[%c0_10, %c0_11] : memref<8x256xf32, #tpu.memory_space<vmem>>, vector<8x256xf32>
      %c0_12 = arith.constant 0 : index
      %c0_13 = arith.constant 0 : index
      %21 = vector.load %arg3[%c0_12, %c0_13] : memref<1x256xf32, #tpu.memory_space<vmem>>, vector<1x256xf32>
      %22 = vector.broadcast %21 : vector<1x256xf32> to vector<8x256xf32>
      %23 = arith.addf %20, %22 : vector<8x256xf32>
      %cst_14 = arith.constant 0.000000e+00 : f32
      %24 = vector.broadcast %cst_14 : f32 to vector<8x256xf32>
      %25 = arith.maximumf %23, %24 : vector<8x256xf32>
      %c0_15 = arith.constant 0 : index
      %c0_16 = arith.constant 0 : index
      %26 = vector.load %arg4[%c0_15, %c0_16] : memref<256x128xf32, #tpu.memory_space<vmem>>, vector<256x128xf32>
      %cst_17 = arith.constant dense<0.000000e+00> : vector<8x128xf32>
      %27 = tpu.matmul %25, %26, %cst_17 {dimension_numbers = #tpu.dot_dimension_numbers<[1], [0], [0], [1], [0, 0, 1, 1], [], []>} : vector<8x256xf32>, vector<256x128xf32>, vector<8x128xf32> -> vector<8x128xf32>
      %c0_18 = arith.constant 0 : index
      %c0_19 = arith.constant 0 : index
      %28 = vector.load %arg5[%c0_18, %c0_19] : memref<1x128xf32, #tpu.memory_space<vmem>>, vector<1x128xf32>
      %29 = vector.broadcast %28 : vector<1x128xf32> to vector<8x128xf32>
      %30 = arith.addf %27, %29 : vector<8x128xf32>
      %cst_20 = arith.constant 0.000000e+00 : f32
      %31 = vector.broadcast %cst_20 : f32 to vector<8x128xf32>
      %32 = arith.maximumf %30, %31 : vector<8x128xf32>
      %c0_21 = arith.constant 0 : index
      %c0_22 = arith.constant 0 : index
      %33 = vector.load %arg6[%c0_21, %c0_22] : memref<128x10xf32, #tpu.memory_space<vmem>>, vector<128x10xf32>
      %cst_23 = arith.constant dense<0.000000e+00> : vector<8x10xf32>
      %34 = tpu.matmul %32, %33, %cst_23 {dimension_numbers = #tpu.dot_dimension_numbers<[1], [0], [0], [1], [0, 0, 1, 1], [], []>} : vector<8x128xf32>, vector<128x10xf32>, vector<8x10xf32> -> vector<8x10xf32>
      %c0_24 = arith.constant 0 : index
      %c0_25 = arith.constant 0 : index
      %35 = vector.load %arg7[%c0_24, %c0_25] : memref<1x10xf32, #tpu.memory_space<vmem>>, vector<1x10xf32>
      %36 = vector.broadcast %35 : vector<1x10xf32> to vector<8x10xf32>
      %37 = arith.addf %34, %36 : vector<8x10xf32>
      %cst_26 = arith.constant dense<0xFF800000> : vector<8xf32>
      %38 = vector.multi_reduction <maximumf>, %37, %cst_26 [1] : vector<8x10xf32> to vector<8xf32>
      %39 = vector.shape_cast %38 : vector<8xf32> to vector<8x1xf32>
      %40 = vector.broadcast %39 : vector<8x1xf32> to vector<8x10xf32>
      %41 = arith.subf %37, %40 : vector<8x10xf32>
      %42 = math.exp %41 : vector<8x10xf32>
      %cst_27 = arith.constant dense<0.000000e+00> : vector<8xf32>
      %43 = vector.multi_reduction <add>, %42, %cst_27 [1] : vector<8x10xf32> to vector<8xf32>
      %44 = vector.shape_cast %43 : vector<8xf32> to vector<8x1xf32>
      %45 = math.log %44 : vector<8x1xf32>
      %46 = vector.broadcast %45 : vector<8x1xf32> to vector<8x10xf32>
      %47 = arith.subf %41, %46 : vector<8x10xf32>
      %c0_28 = arith.constant 0 : index
      %c0_29 = arith.constant 0 : index
      %48 = vector.load %arg8[%c0_28, %c0_29] : memref<8x10xf32, #tpu.memory_space<vmem>>, vector<8x10xf32>
      tpu.vector_store %arg8[%c0_28, %c0_29], %47 {strides = array<i32>} : memref<8x10xf32, #tpu.memory_space<vmem>>, vector<8x10xf32>,
    } else {
    }
    return
  }
  func.func @transform_0(%arg0: i32) -> (i32, i32) {
    %c0_i32 = arith.constant 0 : i32
    %c0_i32_0 = arith.constant 0 : i32
    return %c0_i32, %arg0 : i32, i32
  }
  func.func @transform_1(%arg0: i32) -> (i32, i32) {
    %c0_i32 = arith.constant 0 : i32
    %c0_i32_0 = arith.constant 0 : i32
    return %arg0, %c0_i32 : i32, i32
  }
  func.func @transform_2(%arg0: i32) -> (i32, i32) {
    %c0_i32 = arith.constant 0 : i32
    %c0_i32_0 = arith.constant 0 : i32
    %c0_i32_1 = arith.constant 0 : i32
    return %c0_i32, %c0_i32_0 : i32, i32
  }
  func.func @transform_3(%arg0: i32) -> (i32, i32) {
    %c0_i32 = arith.constant 0 : i32
    %c0_i32_0 = arith.constant 0 : i32
    %c0_i32_1 = arith.constant 0 : i32
    return %c0_i32, %c0_i32_0 : i32, i32
  }
  func.func @transform_4(%arg0: i32) -> (i32, i32) {
    %c0_i32 = arith.constant 0 : i32
    %c0_i32_0 = arith.constant 0 : i32
    %c0_i32_1 = arith.constant 0 : i32
    return %c0_i32, %c0_i32_0 : i32, i32
  }
  func.func @transform_5(%arg0: i32) -> (i32, i32) {
    %c0_i32 = arith.constant 0 : i32
    %c0_i32_0 = arith.constant 0 : i32
    %c0_i32_1 = arith.constant 0 : i32
    return %c0_i32, %c0_i32_0 : i32, i32
  }
  func.func @transform_6(%arg0: i32) -> (i32, i32) {
    %c0_i32 = arith.constant 0 : i32
    %c0_i32_0 = arith.constant 0 : i32
    %c0_i32_1 = arith.constant 0 : i32
    return %c0_i32, %c0_i32_0 : i32, i32
  }
  func.func @transform_7(%arg0: i32) -> (i32, i32) {
    %c0_i32 = arith.constant 0 : i32
    %c0_i32_0 = arith.constant 0 : i32
    %c0_i32_1 = arith.constant 0 : i32
    return %c0_i32, %c0_i32_0 : i32, i32
  }
}

</mosaic_0001>

<llo_original>
// kernel: mlp_forward.1
$region0: #{mlp_forward.1}
  #allocation0 [shape = 'u32[]', space=smem, size = 0x4, offset = 0x4, fixed_abs, tag = 'smem constant byte address 0x4 - core index']
  #allocation1 [shape = 'u32[72,128]{1,0:T(1,128)}', space=vmem, size = 0x9000, scoped, tag = 'internal scratch']
  #allocation2 [shape = 'f32[8,256]{1,0:T(8,128)}', space=vmem, size = 0x2000, scoped, tag = 'scratch operand']
  %s0 = inlined_call_operand.hbm [shape: f32[8,90000], index: 0, kind: input, shape index: {}]
  %s1 = inlined_call_operand.hbm [shape: f32[90112,256], index: 1, kind: input, shape index: {}]
  %s2 = inlined_call_operand.hbm [shape: f32[1,256], index: 2, kind: input, shape index: {}]
  %s3 = inlined_call_operand.hbm [shape: f32[256,128], index: 3, kind: input, shape index: {}]
  %s4 = inlined_call_operand.hbm [shape: f32[1,128], index: 4, kind: input, shape index: {}]
  %s5 = inlined_call_operand.vmem [shape: f32[128,10], index: 5, kind: input, shape index: {}]
  %s6 = inlined_call_operand.hbm [shape: f32[1,10], index: 6, kind: input, shape index: {}]
  %s7 = inlined_call_operand.hbm [shape: f32[8,10], index: 7, kind: output, shape index: {}]
  %s8 = sld [smem:[#allocation0]]
  $region93: #{mlp_forward.1} parent=0
    _
  %s10 = ssub.s32 1, %s8
  %s11 = scalar_select 0, %s10, %s8
  $region1: #{mlp_forward.1} parent=0
    #allocation3 [shape = 'u8[720896]{0}', space=vmem, size = 0xb0000, scoped, tag = 'input window, operand 0']
    #allocation4 [shape = 's32[2]{0}', space=sflag, size = 0x8, scoped, tag = 'scoped memory for mlp_forward.1']
    #allocation5 [shape = 's32[2]{0}', space=sflag, size = 0x8, scoped, tag = 'scoped memory for mlp_forward.1']
    #allocation6 [shape = 'u8[23068672]{0}', space=vmem, size = 0x1600000, scoped, tag = 'input window, operand 1']
    #allocation7 [shape = 's32[2]{0}', space=sflag, size = 0x8, scoped, tag = 'scoped memory for mlp_forward.1']
    #allocation8 [shape = 'u8[1024]{0}', space=vmem, size = 0x400, scoped, tag = 'input window, operand 2, single buffered']
    #allocation9 [shape = 'u8[131072]{0}', space=vmem, size = 0x20000, scoped, tag = 'input window, operand 3, single buffered']
    #allocation10 [shape = 's32[1]{0}', space=sflag, size = 0x4, scoped, tag = 'scoped memory for mlp_forward.1']
    #allocation11 [shape = 'u8[512]{0}', space=vmem, size = 0x400, scoped, tag = 'input window, operand 4, single buffered']
    #allocation12 [shape = 'u8[512]{0}', space=vmem, size = 0x400, scoped, tag = 'input window, operand 6, single buffered']
    #allocation13 [shape = 's32[1]{0}', space=sflag, size = 0x4, scoped, tag = 'scoped memory for mlp_forward.1']
    #allocation14 [shape = 'u8[4096]{0}', space=vmem, size = 0x1000, scoped, tag = 'output window, operand 0, single buffered']
    %12 = vsyncpa [#allocation4], 0
    %s13 = scalar_lea.sflag [#allocation4], 1
    %14 = vsyncpa %s13, 0
    %15 = vsyncpa [#allocation7], 0
    %s16 = scalar_lea.sflag [#allocation7], 1
    %17 = vsyncpa %s16, 0
    %18 = vsyncpa [#allocation10], 0
    %19 = vsyncpa [#allocation13], 0
    %20 = vsyncpa [#allocation5], 0
    loop: start=0, step=1, limit=10
    $region2: #{mlp_forward.1} parent=1 // loop_pre_header
      _
    $region3: #{mlp_forward.1} parent=1 // loop_header
      %s22 = sphi 0, %s26
      %p23 = scmp.ge.s32.totalorder %s22, 10
      %s32 = sphi 0, %s34
      %s35 = sphi 0, %s32
      %s36 = sphi 0, %s35
      %s52 = sphi 0, %s36
      %s58 = sphi 0, %s60
      %s61 = sphi 0, %s58
      %s62 = sphi 0, %s61
      %s78 = sphi 0, %s62
      %s82 = sphi 0, %s82
      %s84 = sphi 0, %s82
      %s85 = sphi 0, %s84
      %s99 = sphi 0, %s85
      %s103 = sphi 0, %s103
      %s105 = sphi 0, %s103
      %s106 = sphi 0, %s105
      %s120 = sphi 0, %s106
      %s124 = sphi 0, %s124
      %s126 = sphi 0, %s124
      %s127 = sphi 0, %s126
      %s141 = sphi 0, %s127
      %s145 = sphi 0, %s145
      %s147 = sphi 0, %s145
      %s148 = sphi 0, %s147
      %s162 = sphi 0, %s148
      %s166 = sphi 0, %s166
      %s168 = sphi 0, %s166
      %s169 = sphi 0, %s168
      %s183 = sphi 0, %s169
      %s187 = sphi 0, %s187
      %s189 = sphi 0, %s187
      %s190 = sphi 0, %s189
      %s204 = sphi 0, %s190
    $region4: #{mlp_forward.1} parent=1 // loop_header_branch
      %25 = sbr.rel (%p23) target = $region8
    $region5: #{mlp_forward.1} parent=1 // loop_body
      %s27 = ssub.s32 %s22, 1
      %s28 = ssub.s32 %s22, 2
      %s29 = sadd.s32 %s22, 1
      %s30 = ssub.s32 %s22, %s29
      %p31 = scmp.eq.s32.totalorder %s30, 0
      %s33 = sadd.s32 %s32, 1
      %s34 = scalar_select %p31, %s32, %s33
      %p37 = pneg %p31
      %p38 = scmp.eq.s32.totalorder %s22, 7
      %p39 = por %p37, %p38
      %p40 = scmp.ne.s32.totalorder %s32, %s35
      %p41 = scmp.eq.s32.totalorder %s22, 0
      %p42 = por %p40, %p41
      %p43 = scmp.ne.s32.totalorder %s32, %s35
      %p44 = scmp.eq.s32.totalorder %s27, 7
      %p45 = por %p43, %p44
      %p46 = scmp.ne.s32.totalorder %s35, %s36
      %p47 = scmp.eq.s32.totalorder %s27, 0
      %p48 = por %p46, %p47
      %p49 = scmp.ne.s32.totalorder %s35, %s36
      %p50 = scmp.eq.s32.totalorder %s28, 7
      %p51 = por %p49, %p50
      %p53 = scmp.ne.s32.totalorder %s36, %s52
      %p54 = scmp.eq.s32.totalorder %s28, 0
      %p55 = por %p53, %p54
      %s56 = ssub.s32 %s22, %s29
      %p57 = scmp.eq.s32.totalorder %s56, 0
      %s59 = sadd.s32 %s58, 1
      %s60 = scalar_select %p57, %s58, %s59
      %p63 = pneg %p57
      %p64 = scmp.eq.s32.totalorder %s22, 7
      %p65 = por %p63, %p64
      %p66 = scmp.ne.s32.totalorder %s58, %s61
      %p67 = scmp.eq.s32.totalorder %s22, 0
      %p68 = por %p66, %p67
      %p69 = scmp.ne.s32.totalorder %s58, %s61
      %p70 = scmp.eq.s32.totalorder %s27, 7
      %p71 = por %p69, %p70
      %p72 = scmp.ne.s32.totalorder %s61, %s62
      %p73 = scmp.eq.s32.totalorder %s27, 0
      %p74 = por %p72, %p73
      %p75 = scmp.ne.s32.totalorder %s61, %s62
      %p76 = scmp.eq.s32.totalorder %s28, 7
      %p77 = por %p75, %p76
      %p79 = scmp.ne.s32.totalorder %s62, %s78
      %p80 = scmp.eq.s32.totalorder %s28, 0
      %p81 = por %p79, %p80
      %s83 = sadd.s32 %s82, 1
      %p86 = scmp.eq.s32.totalorder %s22, 7
      %p87 = scmp.ne.s32.totalorder %s82, %s84
      %p88 = scmp.eq.s32.totalorder %s22, 0
      %p89 = por %p87, %p88
      %p90 = scmp.ne.s32.totalorder %s82, %s84
      %p91 = scmp.eq.s32.totalorder %s27, 7
      %p92 = por %p90, %p91
      %p93 = scmp.ne.s32.totalorder %s84, %s85
      %p94 = scmp.eq.s32.totalorder %s27, 0
      %p95 = por %p93, %p94
      %p96 = scmp.ne.s32.totalorder %s84, %s85
      %p97 = scmp.eq.s32.totalorder %s28, 7
      %p98 = por %p96, %p97
      %p100 = scmp.ne.s32.totalorder %s85, %s99
      %p101 = scmp.eq.s32.totalorder %s28, 0
      %p102 = por %p100, %p101
      %s104 = sadd.s32 %s103, 1
      %p107 = scmp.eq.s32.totalorder %s22, 7
      %p108 = scmp.ne.s32.totalorder %s103, %s105
      %p109 = scmp.eq.s32.totalorder %s22, 0
      %p110 = por %p108, %p109
      %p111 = scmp.ne.s32.totalorder %s103, %s105
      %p112 = scmp.eq.s32.totalorder %s27, 7
      %p113 = por %p111, %p112
      %p114 = scmp.ne.s32.totalorder %s105, %s106
      %p115 = scmp.eq.s32.totalorder %s27, 0
      %p116 = por %p114, %p115
      %p117 = scmp.ne.s32.totalorder %s105, %s106
      %p118 = scmp.eq.s32.totalorder %s28, 7
      %p119 = por %p117, %p118
      %p121 = scmp.ne.s32.totalorder %s106, %s120
      %p122 = scmp.eq.s32.totalorder %s28, 0
      %p123 = por %p121, %p122
      %s125 = sadd.s32 %s124, 1
      %p128 = scmp.eq.s32.totalorder %s22, 7
      %p129 = scmp.ne.s32.totalorder %s124, %s126
      %p130 = scmp.eq.s32.totalorder %s22, 0
      %p131 = por %p129, %p130
      %p132 = scmp.ne.s32.totalorder %s124, %s126
      %p133 = scmp.eq.s32.totalorder %s27, 7
      %p134 = por %p132, %p133
      %p135 = scmp.ne.s32.totalorder %s126, %s127
      %p136 = scmp.eq.s32.totalorder %s27, 0
      %p137 = por %p135, %p136
      %p138 = scmp.ne.s32.totalorder %s126, %s127
      %p139 = scmp.eq.s32.totalorder %s28, 7
      %p140 = por %p138, %p139
      %p142 = scmp.ne.s32.totalorder %s127, %s141
      %p143 = scmp.eq.s32.totalorder %s28, 0
      %p144 = por %p142, %p143
      %s146 = sadd.s32 %s145, 1
      %p149 = scmp.eq.s32.totalorder %s22, 7
      %p150 = scmp.ne.s32.totalorder %s145, %s147
      %p151 = scmp.eq.s32.totalorder %s22, 0
      %p152 = por %p150, %p151
      %p153 = scmp.ne.s32.totalorder %s145, %s147
      %p154 = scmp.eq.s32.totalorder %s27, 7
      %p155 = por %p153, %p154
      %p156 = scmp.ne.s32.totalorder %s147, %s148
      %p157 = scmp.eq.s32.totalorder %s27, 0
      %p158 = por %p156, %p157
      %p159 = scmp.ne.s32.totalorder %s147, %s148
      %p160 = scmp.eq.s32.totalorder %s28, 7
      %p161 = por %p159, %p160
      %p163 = scmp.ne.s32.totalorder %s148, %s162
      %p164 = scmp.eq.s32.totalorder %s28, 0
      %p165 = por %p163, %p164
      %s167 = sadd.s32 %s166, 1
      %p170 = scmp.eq.s32.totalorder %s22, 7
      %p171 = scmp.ne.s32.totalorder %s166, %s168
      %p172 = scmp.eq.s32.totalorder %s22, 0
      %p173 = por %p171, %p172
      %p174 = scmp.ne.s32.totalorder %s166, %s168
      %p175 = scmp.eq.s32.totalorder %s27, 7
      %p176 = por %p174, %p175
      %p177 = scmp.ne.s32.totalorder %s168, %s169
      %p178 = scmp.eq.s32.totalorder %s27, 0
      %p179 = por %p177, %p178
      %p180 = scmp.ne.s32.totalorder %s168, %s169
      %p181 = scmp.eq.s32.totalorder %s28, 7
      %p182 = por %p180, %p181
      %p184 = scmp.ne.s32.totalorder %s169, %s183
      %p185 = scmp.eq.s32.totalorder %s28, 0
      %p186 = por %p184, %p185
      %s188 = sadd.s32 %s187, 1
      %p191 = scmp.eq.s32.totalorder %s22, 7
      %p192 = scmp.ne.s32.totalorder %s187, %s189
      %p193 = scmp.eq.s32.totalorder %s22, 0
      %p194 = por %p192, %p193
      %p195 = scmp.ne.s32.totalorder %s187, %s189
      %p196 = scmp.eq.s32.totalorder %s27, 7
      %p197 = por %p195, %p196
      %p198 = scmp.ne.s32.totalorder %s189, %s190
      %p199 = scmp.eq.s32.totalorder %s27, 0
      %p200 = por %p198, %p199
      %p201 = scmp.ne.s32.totalorder %s189, %s190
      %p202 = scmp.eq.s32.totalorder %s28, 7
      %p203 = por %p201, %p202
      %p205 = scmp.ne.s32.totalorder %s190, %s204
      %p206 = scmp.eq.s32.totalorder %s28, 0
      %p207 = por %p205, %p206
      %p208 = scmp.le.s32.totalorder 1, %s22
      %p209 = scmp.lt.s32.totalorder %s22, 9
      %p210 = pnand %p208, %p209
      %p211 = pneg %p210
      // Predicated region
      $region9: #{mlp_forward.1} parent=5 // pred_check
        _
      $region10: #{mlp_forward.1} parent=5 // pred_check_branch
        %213 = sbr.rel (%p210) target = $region12
      $region11: #{mlp_forward.1} parent=5 // pred_region
        %s214 = ssub.s32 %s22, 1
        // Predicated region
        $region13: #{mlp_forward.1} parent=11 // pred_check
          %p215 = pneg %p95
        $region14: #{mlp_forward.1} parent=11 // pred_check_branch
          %217 = sbr.rel (%p215) target = $region16
        $region15: #{mlp_forward.1} parent=11 // pred_region
          %219 = vsyncadd [#allocation7], 0
          %s221 = sshll.u32 %s2, 4
          %s222 = int_to_ptr.hbm [resolvable:$true] %s221
          %s223 = sshll.u32 [#allocation8], 4
          %s224 = int_to_ptr.vmem [resolvable:$true] %s223
          %226 = dma.hbm_to_vmem [thread:$0]  %s222, 32, %s224, [#allocation7]
        $region16: #{mlp_forward.1} parent=11 // pred_fallthru
          _
        // Predicated region
        $region17: #{mlp_forward.1} parent=11 // pred_check
          %p227 = pneg %p116
        $region18: #{mlp_forward.1} parent=11 // pred_check_branch
          %229 = sbr.rel (%p227) target = $region20
        $region19: #{mlp_forward.1} parent=11 // pred_region
          %231 = vsyncadd [#allocation10], 0
          %s232 = sshll.u32 %s3, 4
          %s233 = int_to_ptr.hbm [resolvable:$true] %s232
          %s234 = sshll.u32 [#allocation9], 4
          %s235 = int_to_ptr.vmem [resolvable:$true] %s234
          %240 = dma.hbm_to_vmem [thread:$0]  %s233, 4096, %s235, [#allocation10], 128, 128, 8
        $region20: #{mlp_forward.1} parent=11 // pred_fallthru
          _
        // Predicated region
        $region21: #{mlp_forward.1} parent=11 // pred_check
          %p241 = pneg %p137
        $region22: #{mlp_forward.1} parent=11 // pred_check_branch
          %243 = sbr.rel (%p241) target = $region24
        $region23: #{mlp_forward.1} parent=11 // pred_region
          %245 = vsyncadd [#allocation10], 0
          %s247 = sshll.u32 %s4, 4
          %s248 = int_to_ptr.hbm [resolvable:$true] %s247
          %s249 = sshll.u32 [#allocation11], 4
          %s250 = int_to_ptr.vmem [resolvable:$true] %s249
          %252 = dma.hbm_to_vmem [thread:$0]  %s248, 16, %s250, [#allocation10]
        $region24: #{mlp_forward.1} parent=11 // pred_fallthru
          _
        // Predicated region
        $region25: #{mlp_forward.1} parent=11 // pred_check
          %p253 = pneg %p158
        $region26: #{mlp_forward.1} parent=11 // pred_check_branch
          %255 = sbr.rel (%p253) target = $region28
        $region27: #{mlp_forward.1} parent=11 // pred_region
          _
        $region28: #{mlp_forward.1} parent=11 // pred_fallthru
          _
        // Predicated region
        $region29: #{mlp_forward.1} parent=11 // pred_check
          %p256 = pneg %p179
        $region30: #{mlp_forward.1} parent=11 // pred_check_branch
          %258 = sbr.rel (%p256) target = $region32
        $region31: #{mlp_forward.1} parent=11 // pred_region
          %260 = vsyncadd [#allocation13], 0
          %s262 = sshll.u32 %s6, 4
          %s263 = int_to_ptr.hbm [resolvable:$true] %s262
          %s264 = sshll.u32 [#allocation12], 4
          %s265 = int_to_ptr.vmem [resolvable:$true] %s264
          %267 = dma.hbm_to_vmem [thread:$0]  %s263, 16, %s265, [#allocation13]
        $region32: #{mlp_forward.1} parent=11 // pred_fallthru
          _
      $region12: #{mlp_forward.1} parent=5 // pred_fallthru
        _
      %p268 = scmp.lt.s32.totalorder %s22, 8
      // Predicated region
      $region33: #{mlp_forward.1} parent=5 // pred_check
        %p269 = pneg %p268
      $region34: #{mlp_forward.1} parent=5 // pred_check_branch
        %271 = sbr.rel (%p269) target = $region36
      $region35: #{mlp_forward.1} parent=5 // pred_region
        // Predicated region
        $region37: #{mlp_forward.1} parent=35 // pred_check
          %p272 = pneg %p42
        $region38: #{mlp_forward.1} parent=35 // pred_check_branch
          %274 = sbr.rel (%p272) target = $region40
        $region39: #{mlp_forward.1} parent=35 // pred_region
          %s275 = sand.u32 %s32, 1
          %s276 = scalar_lea.sflag [#allocation4], %s275
          %s277 = sand.u32 %s32, 1
          %s278 = smul.addr %s277, 704
          %s279 = scalar_lea.vmem [#allocation3], %s278
          %s280 = smul.u32 88, %s22
          %282 = vsyncadd %s276, 0
          %s283 = smul.addr %s280, 8
          %s284 = scalar_lea.hbm %s0, %s283
          %s286 = sshll.u32 %s284, 4
          %s287 = int_to_ptr.hbm [resolvable:$true] %s286
          %s288 = sshll.u32 %s279, 4
          %s289 = int_to_ptr.vmem [resolvable:$true] %s288
          %291 = dma.hbm_to_vmem [thread:$0]  %s287, 11264, %s289, %s276
        $region40: #{mlp_forward.1} parent=35 // pred_fallthru
          _
        // Predicated region
        $region41: #{mlp_forward.1} parent=35 // pred_check
          %p292 = pneg %p68
        $region42: #{mlp_forward.1} parent=35 // pred_check_branch
          %294 = sbr.rel (%p292) target = $region44
        $region43: #{mlp_forward.1} parent=35 // pred_region
          %s295 = sand.u32 %s22, 1
          %s296 = scalar_lea.sflag [#allocation7], %s295
          %s297 = sand.u32 %s58, 1
          %s298 = smul.addr %s297, 22528
          %s299 = scalar_lea.vmem [#allocation6], %s298
          %s300 = smul.u32 1408, %s22
          %302 = vsyncadd %s296, 0
          %s303 = smul.addr %s300, 2
          %s304 = smul.addr %s303, 8
          %s305 = scalar_lea.hbm %s1, %s304
          %s306 = sshll.u32 %s305, 4
          %s307 = int_to_ptr.hbm [resolvable:$true] %s306
          %s308 = sshll.u32 %s299, 4
          %s309 = int_to_ptr.vmem [resolvable:$true] %s308
          %314 = dma.hbm_to_vmem [thread:$0]  %s307, 360448, %s309, %s296, 256, 256, 16
        $region44: #{mlp_forward.1} parent=35 // pred_fallthru
          _
      $region36: #{mlp_forward.1} parent=5 // pred_fallthru
        _
      %p315 = scmp.le.s32.totalorder 1, %s22
      %p316 = scmp.lt.s32.totalorder %s22, 9
      %p317 = pnand %p315, %p316
      %p318 = pneg %p317
      // Predicated region
      $region45: #{mlp_forward.1} parent=5 // pred_check
        _
      $region46: #{mlp_forward.1} parent=5 // pred_check_branch
        %320 = sbr.rel (%p317) target = $region48
      $region47: #{mlp_forward.1} parent=5 // pred_region
        %s321 = ssub.s32 %s22, 1
        %s322 = sand.u32 %s35, 1
        %s323 = scalar_lea.sflag [#allocation4], %s322
        %s324 = sand.u32 %s35, 1
        %s325 = smul.addr %s324, 704
        %s326 = scalar_lea.vmem [#allocation3], %s325
        // Predicated region
        $region49: #{mlp_forward.1} parent=47 // pred_check
          %p327 = pneg %p48
        $region50: #{mlp_forward.1} parent=47 // pred_check_branch
          %329 = sbr.rel (%p327) target = $region52
        $region51: #{mlp_forward.1} parent=47 // pred_region
          %331 = dma.done %s323, 11264
        $region52: #{mlp_forward.1} parent=47 // pred_fallthru
          _
        %s332 = sand.u32 %s27, 1
        %s333 = scalar_lea.sflag [#allocation7], %s332
        %s334 = sand.u32 %s61, 1
        %s335 = smul.addr %s334, 22528
        %s336 = scalar_lea.vmem [#allocation6], %s335
        // Predicated region
        $region53: #{mlp_forward.1} parent=47 // pred_check
          %p337 = pneg %p74
        $region54: #{mlp_forward.1} parent=47 // pred_check_branch
          %339 = sbr.rel (%p337) target = $region56
        $region55: #{mlp_forward.1} parent=47 // pred_region
          %341 = dma.done %s333, 360448
        $region56: #{mlp_forward.1} parent=47 // pred_fallthru
          _
        // Predicated region
        $region57: #{mlp_forward.1} parent=47 // pred_check
          %p342 = pneg %p95
        $region58: #{mlp_forward.1} parent=47 // pred_check_branch
          %344 = sbr.rel (%p342) target = $region60
        $region59: #{mlp_forward.1} parent=47 // pred_region
          %346 = dma.done [#allocation7], 32
        $region60: #{mlp_forward.1} parent=47 // pred_fallthru
          _
        // Predicated region
        $region61: #{mlp_forward.1} parent=47 // pred_check
          %p347 = pneg %p116
        $region62: #{mlp_forward.1} parent=47 // pred_check_branch
          %349 = sbr.rel (%p347) target = $region64
        $region63: #{mlp_forward.1} parent=47 // pred_region
          %351 = dma.done [#allocation10], 4096
        $region64: #{mlp_forward.1} parent=47 // pred_fallthru
          _
        // Predicated region
        $region65: #{mlp_forward.1} parent=47 // pred_check
          %p352 = pneg %p137
        $region66: #{mlp_forward.1} parent=47 // pred_check_branch
          %354 = sbr.rel (%p352) target = $region68
        $region67: #{mlp_forward.1} parent=47 // pred_region
          %356 = dma.done [#allocation10], 16
        $region68: #{mlp_forward.1} parent=47 // pred_fallthru
          _
        // Predicated region
        $region69: #{mlp_forward.1} parent=47 // pred_check
          %p357 = pneg %p179
        $region70: #{mlp_forward.1} parent=47 // pred_check_branch
          %359 = sbr.rel (%p357) target = $region72
        $region71: #{mlp_forward.1} parent=47 // pred_region
          %361 = dma.done [#allocation13], 16
        $region72: #{mlp_forward.1} parent=47 // pred_fallthru
          _
        %s362 = sand.u32 %s35, 1
        %s363 = scalar_lea.sflag [#allocation4], %s362
        %s364 = sand.u32 %s35, 1
        %s365 = smul.addr %s364, 704
        %s366 = scalar_lea.vmem [#allocation3], %s365
        %p367 = pneg %p48
        %p368 = pneg %p45
        %s369 = sand.u32 %s27, 1
        %s370 = scalar_lea.sflag [#allocation7], %s369
        %s371 = sand.u32 %s61, 1
        %s372 = smul.addr %s371, 22528
        %s373 = scalar_lea.vmem [#allocation6], %s372
        %p374 = pneg %p74
        %p375 = pneg %p71
        %p376 = pneg %p95
        %p377 = pneg %p92
        %p378 = pneg %p116
        %p379 = pneg %p113
        %p380 = pneg %p137
        %p381 = pneg %p134
        %p382 = pneg %p158
        %p383 = pneg %p155
        %p384 = pneg %p179
        %p385 = pneg %p176
        %p386 = pneg %p200
        %p387 = pneg %p197
        %s388 = smul.u32 88, %s27
        %s389 = smul.u32 1408, %s27
        %p390 = scmp.eq.s32.totalorder %s27, 0
        // Predicated region
        $region73: #{mlp_forward.1} parent=47 // pred_check
          %p391 = pneg %p390
        $region74: #{mlp_forward.1} parent=47 // pred_check_branch
          %393 = sbr.rel (%p391) target = $region76
        $region75: #{mlp_forward.1} parent=47 // pred_region
          %394 = vst [vmem:[#allocation2] sm:$0xff] 0.0
          %395 = vst [vmem:[#allocation2 + $0x8] sm:$0xff] 0.0
        $region76: #{mlp_forward.1} parent=47 // pred_fallthru
          _
        %v396 = vlaneseq
        %v397 = vand.u32 %v396, 127
        %v398 = vadd.s32 %v397, 128
        %v399 = vadd.s32 %v397, 256
        %v400 = vadd.s32 %v397, 384
        %v401 = vadd.s32 %v397, 512
        %v402 = vadd.s32 %v397, 640
        %v403 = vadd.s32 %v397, 768
        %v404 = vadd.s32 %v397, 896
        %v405 = vadd.s32 %v397, 1024
        %v406 = vadd.s32 %v397, 1152
        %v407 = vadd.s32 %v397, 1280
        %v408 = vadd.s32 %v397, 1408
        %v409 = vadd.s32 %v397, 1536
        %v410 = vadd.s32 %v397, 1664
        %v411 = vadd.s32 %v397, 1792
        %v412 = vadd.s32 %v397, 1920
        %v413 = vadd.s32 %v397, 2048
        %v414 = vadd.s32 %v397, 2176
        %v415 = vadd.s32 %v397, 2304
        %v416 = vadd.s32 %v397, 2432
        %v417 = vadd.s32 %v397, 2560
        %v418 = vadd.s32 %v397, 2688
        %v419 = vadd.s32 %v397, 2816
        %v420 = vadd.s32 %v397, 2944
        %v421 = vadd.s32 %v397, 3072
        %v422 = vadd.s32 %v397, 3200
        %v423 = vadd.s32 %v397, 3328
        %v424 = vadd.s32 %v397, 3456
        %v425 = vadd.s32 %v397, 3584
        %v426 = vadd.s32 %v397, 3712
        %v427 = vadd.s32 %v397, 3840
        %v428 = vadd.s32 %v397, 3968
        %v429 = vadd.s32 %v397, 4096
        %v430 = vadd.s32 %v397, 4224
        %v431 = vadd.s32 %v397, 4352
        %v432 = vadd.s32 %v397, 4480
        %v433 = vadd.s32 %v397, 4608
        %v434 = vadd.s32 %v397, 4736
        %v435 = vadd.s32 %v397, 4864
        %v436 = vadd.s32 %v397, 4992
        %v437 = vadd.s32 %v397, 5120
        %v438 = vadd.s32 %v397, 5248
        %v439 = vadd.s32 %v397, 5376
        %v440 = vadd.s32 %v397, 5504
        %v441 = vadd.s32 %v397, 5632
        %v442 = vadd.s32 %v397, 5760
        %v443 = vadd.s32 %v397, 5888
        %v444 = vadd.s32 %v397, 6016
        %v445 = vadd.s32 %v397, 6144
        %v446 = vadd.s32 %v397, 6272
        %v447 = vadd.s32 %v397, 6400
        %v448 = vadd.s32 %v397, 6528
        %v449 = vadd.s32 %v397, 6656
        %v450 = vadd.s32 %v397, 6784
        %v451 = vadd.s32 %v397, 6912
        %v452 = vadd.s32 %v397, 7040
        %v453 = vadd.s32 %v397, 7168
        %v454 = vadd.s32 %v397, 7296
        %v455 = vadd.s32 %v397, 7424
        %v456 = vadd.s32 %v397, 7552
        %v457 = vadd.s32 %v397, 7680
        %v458 = vadd.s32 %v397, 7808
        %v459 = vadd.s32 %v397, 7936
        %v460 = vadd.s32 %v397, 8064
        %v461 = vadd.s32 %v397, 8192
        %v462 = vadd.s32 %v397, 8320
        %v463 = vadd.s32 %v397, 8448
        %v464 = vadd.s32 %v397, 8576
        %v465 = vadd.s32 %v397, 8704
        %v466 = vadd.s32 %v397, 8832
        %v467 = vadd.s32 %v397, 8960
        %v468 = vadd.s32 %v397, 9088
        %v469 = vadd.s32 %v397, 9216
        %v470 = vadd.s32 %v397, 9344
        %v471 = vadd.s32 %v397, 9472
        %v472 = vadd.s32 %v397, 9600
        %v473 = vadd.s32 %v397, 9728
        %v474 = vadd.s32 %v397, 9856
        %v475 = vadd.s32 %v397, 9984
        %v476 = vadd.s32 %v397, 10112
        %v477 = vadd.s32 %v397, 10240
        %v478 = vadd.s32 %v397, 10368
        %v479 = vadd.s32 %v397, 10496
        %v480 = vadd.s32 %v397, 10624
        %v481 = vadd.s32 %v397, 10752
        %v482 = vadd.s32 %v397, 10880
        %v483 = vadd.s32 %v397, 11008
        %v484 = vadd.s32 %v397, 11136
        %s485 = smul.u32 %s27, 11264
        %v486 = vstv %s485
        %v487 = vadd.s32 %v397, %v486
        %v488 = vadd.s32 %v398, %v486
        %v489 = vadd.s32 %v399, %v486
        %v490 = vadd.s32 %v400, %v486
        %v491 = vadd.s32 %v401, %v486
        %v492 = vadd.s32 %v402, %v486
        %v493 = vadd.s32 %v403, %v486
        %v494 = vadd.s32 %v404, %v486
        %v495 = vadd.s32 %v405, %v486
        %v496 = vadd.s32 %v406, %v486
        %v497 = vadd.s32 %v407, %v486
        %v498 = vadd.s32 %v408, %v486
        %v499 = vadd.s32 %v409, %v486
        %v500 = vadd.s32 %v410, %v486
        %v501 = vadd.s32 %v411, %v486
        %v502 = vadd.s32 %v412, %v486
        %v503 = vadd.s32 %v413, %v486
        %v504 = vadd.s32 %v414, %v486
        %v505 = vadd.s32 %v415, %v486
        %v506 = vadd.s32 %v416, %v486
        %v507 = vadd.s32 %v417, %v486
        %v508 = vadd.s32 %v418, %v486
        %v509 = vadd.s32 %v419, %v486
        %v510 = vadd.s32 %v420, %v486
        %v511 = vadd.s32 %v421, %v486
        %v512 = vadd.s32 %v422, %v486
        %v513 = vadd.s32 %v423, %v486
        %v514 = vadd.s32 %v424, %v486
        %v515 = vadd.s32 %v425, %v486
        %v516 = vadd.s32 %v426, %v486
        %v517 = vadd.s32 %v427, %v486
        %v518 = vadd.s32 %v428, %v486
        %v519 = vadd.s32 %v429, %v486
        %v520 = vadd.s32 %v430, %v486
        %v521 = vadd.s32 %v431, %v486
        %v522 = vadd.s32 %v432, %v486
        %v523 = vadd.s32 %v433, %v486
        %v524 = vadd.s32 %v434, %v486
        %v525 = vadd.s32 %v435, %v486
        %v526 = vadd.s32 %v436, %v486
        %v527 = vadd.s32 %v437, %v486
        %v528 = vadd.s32 %v438, %v486
        %v529 = vadd.s32 %v439, %v486
        %v530 = vadd.s32 %v440, %v486
        %v531 = vadd.s32 %v441, %v486
        %v532 = vadd.s32 %v442, %v486
        %v533 = vadd.s32 %v443, %v486
        %v534 = vadd.s32 %v444, %v486
        %v535 = vadd.s32 %v445, %v486
        %v536 = vadd.s32 %v446, %v486
        %v537 = vadd.s32 %v447, %v486
        %v538 = vadd.s32 %v448, %v486
        %v539 = vadd.s32 %v449, %v486
        %v540 = vadd.s32 %v450, %v486
        %v541 = vadd.s32 %v451, %v486
        %v542 = vadd.s32 %v452, %v486
        %v543 = vadd.s32 %v453, %v486
        %v544 = vadd.s32 %v454, %v486
        %v545 = vadd.s32 %v455, %v486
        %v546 = vadd.s32 %v456, %v486
        %v547 = vadd.s32 %v457, %v486
        %v548 = vadd.s32 %v458, %v486
        %v549 = vadd.s32 %v459, %v486
        %v550 = vadd.s32 %v460, %v486
        %v551 = vadd.s32 %v461, %v486
        %v552 = vadd.s32 %v462, %v486
        %v553 = vadd.s32 %v463, %v486
        %v554 = vadd.s32 %v464, %v486
        %v555 = vadd.s32 %v465, %v486
        %v556 = vadd.s32 %v466, %v486
        %v557 = vadd.s32 %v467, %v486
        %v558 = vadd.s32 %v468, %v486
        %v559 = vadd.s32 %v469, %v486
        %v560 = vadd.s32 %v470, %v486
        %v561 = vadd.s32 %v471, %v486
        %v562 = vadd.s32 %v472, %v486
        %v563 = vadd.s32 %v473, %v486
        %v564 = vadd.s32 %v474, %v486
        %v565 = vadd.s32 %v475, %v486
        %v566 = vadd.s32 %v476, %v486
        %v567 = vadd.s32 %v477, %v486
        %v568 = vadd.s32 %v478, %v486
        %v569 = vadd.s32 %v479, %v486
        %v570 = vadd.s32 %v480, %v486
        %v571 = vadd.s32 %v481, %v486
        %v572 = vadd.s32 %v482, %v486
        %v573 = vadd.s32 %v483, %v486
        %v574 = vadd.s32 %v484, %v486
        %vm575 = vcmp.lt.s32.totalorder %v487, 90000
        %vm576 = vcmp.lt.s32.totalorder %v488, 90000
        %vm577 = vcmp.lt.s32.totalorder %v489, 90000
        %vm578 = vcmp.lt.s32.totalorder %v490, 90000
        %vm579 = vcmp.lt.s32.totalorder %v491, 90000
        %vm580 = vcmp.lt.s32.totalorder %v492, 90000
        %vm581 = vcmp.lt.s32.totalorder %v493, 90000
        %vm582 = vcmp.lt.s32.totalorder %v494, 90000
        %vm583 = vcmp.lt.s32.totalorder %v495, 90000
        %vm584 = vcmp.lt.s32.totalorder %v496, 90000
        %vm585 = vcmp.lt.s32.totalorder %v497, 90000
        %vm586 = vcmp.lt.s32.totalorder %v498, 90000
        %vm587 = vcmp.lt.s32.totalorder %v499, 90000
        %vm588 = vcmp.lt.s32.totalorder %v500, 90000
        %vm589 = vcmp.lt.s32.totalorder %v501, 90000
        %vm590 = vcmp.lt.s32.totalorder %v502, 90000
        %vm591 = vcmp.lt.s32.totalorder %v503, 90000
        %vm592 = vcmp.lt.s32.totalorder %v504, 90000
        %vm593 = vcmp.lt.s32.totalorder %v505, 90000
        %vm594 = vcmp.lt.s32.totalorder %v506, 90000
        %vm595 = vcmp.lt.s32.totalorder %v507, 90000
        %vm596 = vcmp.lt.s32.totalorder %v508, 90000
        %vm597 = vcmp.lt.s32.totalorder %v509, 90000
        %vm598 = vcmp.lt.s32.totalorder %v510, 90000
        %vm599 = vcmp.lt.s32.totalorder %v511, 90000
        %vm600 = vcmp.lt.s32.totalorder %v512, 90000
        %vm601 = vcmp.lt.s32.totalorder %v513, 90000
        %vm602 = vcmp.lt.s32.totalorder %v514, 90000
        %vm603 = vcmp.lt.s32.totalorder %v515, 90000
        %vm604 = vcmp.lt.s32.totalorder %v516, 90000
        %vm605 = vcmp.lt.s32.totalorder %v517, 90000
        %vm606 = vcmp.lt.s32.totalorder %v518, 90000
        %vm607 = vcmp.lt.s32.totalorder %v519, 90000
        %vm608 = vcmp.lt.s32.totalorder %v520, 90000
        %vm609 = vcmp.lt.s32.totalorder %v521, 90000
        %vm610 = vcmp.lt.s32.totalorder %v522, 90000
        %vm611 = vcmp.lt.s32.totalorder %v523, 90000
        %vm612 = vcmp.lt.s32.totalorder %v524, 90000
        %vm613 = vcmp.lt.s32.totalorder %v525, 90000
        %vm614 = vcmp.lt.s32.totalorder %v526, 90000
        %vm615 = vcmp.lt.s32.totalorder %v527, 90000
        %vm616 = vcmp.lt.s32.totalorder %v528, 90000
        %vm617 = vcmp.lt.s32.totalorder %v529, 90000
        %vm618 = vcmp.lt.s32.totalorder %v530, 90000
        %vm619 = vcmp.lt.s32.totalorder %v531, 90000
        %vm620 = vcmp.lt.s32.totalorder %v532, 90000
        %vm621 = vcmp.lt.s32.totalorder %v533, 90000
        %vm622 = vcmp.lt.s32.totalorder %v534, 90000
        %vm623 = vcmp.lt.s32.totalorder %v535, 90000
        %vm624 = vcmp.lt.s32.totalorder %v536, 90000
        %vm625 = vcmp.lt.s32.totalorder %v537, 90000
        %vm626 = vcmp.lt.s32.totalorder %v538, 90000
        %vm627 = vcmp.lt.s32.totalorder %v539, 90000
        %vm628 = vcmp.lt.s32.totalorder %v540, 90000
        %vm629 = vcmp.lt.s32.totalorder %v541, 90000
        %vm630 = vcmp.lt.s32.totalorder %v542, 90000
        %vm631 = vcmp.lt.s32.totalorder %v543, 90000
        %vm632 = vcmp.lt.s32.totalorder %v544, 90000
        %vm633 = vcmp.lt.s32.totalorder %v545, 90000
        %vm634 = vcmp.lt.s32.totalorder %v546, 90000
        %vm635 = vcmp.lt.s32.totalorder %v547, 90000
        %vm636 = vcmp.lt.s32.totalorder %v548, 90000
        %vm637 = vcmp.lt.s32.totalorder %v549, 90000
        %vm638 = vcmp.lt.s32.totalorder %v550, 90000
        %vm639 = vcmp.lt.s32.totalorder %v551, 90000
        %vm640 = vcmp.lt.s32.totalorder %v552, 90000
        %vm641 = vcmp.lt.s32.totalorder %v553, 90000
        %vm642 = vcmp.lt.s32.totalorder %v554, 90000
        %vm643 = vcmp.lt.s32.totalorder %v555, 90000
        %vm644 = vcmp.lt.s32.totalorder %v556, 90000
        %vm645 = vcmp.lt.s32.totalorder %v557, 90000
        %vm646 = vcmp.lt.s32.totalorder %v558, 90000
        %vm647 = vcmp.lt.s32.totalorder %v559, 90000
        %vm648 = vcmp.lt.s32.totalorder %v560, 90000
        %vm649 = vcmp.lt.s32.totalorder %v561, 90000
        %vm650 = vcmp.lt.s32.totalorder %v562, 90000
        %vm651 = vcmp.lt.s32.totalorder %v563, 90000
        %vm652 = vcmp.lt.s32.totalorder %v564, 90000
        %vm653 = vcmp.lt.s32.totalorder %v565, 90000
        %vm654 = vcmp.lt.s32.totalorder %v566, 90000
        %vm655 = vcmp.lt.s32.totalorder %v567, 90000
        %vm656 = vcmp.lt.s32.totalorder %v568, 90000
        %vm657 = vcmp.lt.s32.totalorder %v569, 90000
        %vm658 = vcmp.lt.s32.totalorder %v570, 90000
        %vm659 = vcmp.lt.s32.totalorder %v571, 90000
        %vm660 = vcmp.lt.s32.totalorder %v572, 90000
        %vm661 = vcmp.lt.s32.totalorder %v573, 90000
        %vm662 = vcmp.lt.s32.totalorder %v574, 90000
        %v663 = vld [vmem:[%s326] sm:$0xff]
        %v664 = vld [vmem:[%s326 + $0x8] sm:$0xff]
        %v665 = vld [vmem:[%s326 + $0x10] sm:$0xff]
        %v666 = vld [vmem:[%s326 + $0x18] sm:$0xff]
        %v667 = vld [vmem:[%s326 + $0x20] sm:$0xff]
        %v668 = vld [vmem:[%s326 + $0x28] sm:$0xff]
        %v669 = vld [vmem:[%s326 + $0x30] sm:$0xff]
        %v670 = vld [vmem:[%s326 + $0x38] sm:$0xff]
        %v671 = vld [vmem:[%s326 + $0x40] sm:$0xff]
        %v672 = vld [vmem:[%s326 + $0x48] sm:$0xff]
        %v673 = vld [vmem:[%s326 + $0x50] sm:$0xff]
        %v674 = vld [vmem:[%s326 + $0x58] sm:$0xff]
        %v675 = vld [vmem:[%s326 + $0x60] sm:$0xff]
        %v676 = vld [vmem:[%s326 + $0x68] sm:$0xff]
        %v677 = vld [vmem:[%s326 + $0x70] sm:$0xff]
        %v678 = vld [vmem:[%s326 + $0x78] sm:$0xff]
        %v679 = vld [vmem:[%s326 + $0x80] sm:$0xff]
        %v680 = vld [vmem:[%s326 + $0x88] sm:$0xff]
        %v681 = vld [vmem:[%s326 + $0x90] sm:$0xff]
        %v682 = vld [vmem:[%s326 + $0x98] sm:$0xff]
        %v683 = vld [vmem:[%s326 + $0xa0] sm:$0xff]
        %v684 = vld [vmem:[%s326 + $0xa8] sm:$0xff]
        %v685 = vld [vmem:[%s326 + $0xb0] sm:$0xff]
        %v686 = vld [vmem:[%s326 + $0xb8] sm:$0xff]
        %v687 = vld [vmem:[%s326 + $0xc0] sm:$0xff]
        %v688 = vld [vmem:[%s326 + $0xc8] sm:$0xff]
        %v689 = vld [vmem:[%s326 + $0xd0] sm:$0xff]
        %v690 = vld [vmem:[%s326 + $0xd8] sm:$0xff]
        %v691 = vld [vmem:[%s326 + $0xe0] sm:$0xff]
        %v692 = vld [vmem:[%s326 + $0xe8] sm:$0xff]
        %v693 = vld [vmem:[%s326 + $0xf0] sm:$0xff]
        %v694 = vld [vmem:[%s326 + $0xf8] sm:$0xff]
        %v695 = vld [vmem:[%s326 + $0x100] sm:$0xff]
        %v696 = vld [vmem:[%s326 + $0x108] sm:$0xff]
        %v697 = vld [vmem:[%s326 + $0x110] sm:$0xff]
        %v698 = vld [vmem:[%s326 + $0x118] sm:$0xff]
        %v699 = vld [vmem:[%s326 + $0x120] sm:$0xff]
        %v700 = vld [vmem:[%s326 + $0x128] sm:$0xff]
        %v701 = vld [vmem:[%s326 + $0x130] sm:$0xff]
        %v702 = vld [vmem:[%s326 + $0x138] sm:$0xff]
        %v703 = vld [vmem:[%s326 + $0x140] sm:$0xff]
        %v704 = vld [vmem:[%s326 + $0x148] sm:$0xff]
        %v705 = vld [vmem:[%s326 + $0x150] sm:$0xff]
        %v706 = vld [vmem:[%s326 + $0x158] sm:$0xff]
        %v707 = vld [vmem:[%s326 + $0x160] sm:$0xff]
        %v708 = vld [vmem:[%s326 + $0x168] sm:$0xff]
        %v709 = vld [vmem:[%s326 + $0x170] sm:$0xff]
        %v710 = vld [vmem:[%s326 + $0x178] sm:$0xff]
        %v711 = vld [vmem:[%s326 + $0x180] sm:$0xff]
        %v712 = vld [vmem:[%s326 + $0x188] sm:$0xff]
        %v713 = vld [vmem:[%s326 + $0x190] sm:$0xff]
        %v714 = vld [vmem:[%s326 + $0x198] sm:$0xff]
        %v715 = vld [vmem:[%s326 + $0x1a0] sm:$0xff]
        %v716 = vld [vmem:[%s326 + $0x1a8] sm:$0xff]
        %v717 = vld [vmem:[%s326 + $0x1b0] sm:$0xff]
        %v718 = vld [vmem:[%s326 + $0x1b8] sm:$0xff]
        %v719 = vld [vmem:[%s326 + $0x1c0] sm:$0xff]
        %v720 = vld [vmem:[%s326 + $0x1c8] sm:$0xff]
        %v721 = vld [vmem:[%s326 + $0x1d0] sm:$0xff]
        %v722 = vld [vmem:[%s326 + $0x1d8] sm:$0xff]
        %v723 = vld [vmem:[%s326 + $0x1e0] sm:$0xff]
        %v724 = vld [vmem:[%s326 + $0x1e8] sm:$0xff]
        %v725 = vld [vmem:[%s326 + $0x1f0] sm:$0xff]
        %v726 = vld [vmem:[%s326 + $0x1f8] sm:$0xff]
        %v727 = vld [vmem:[%s326 + $0x200] sm:$0xff]
        %v728 = vld [vmem:[%s326 + $0x208] sm:$0xff]
        %v729 = vld [vmem:[%s326 + $0x210] sm:$0xff]
        %v730 = vld [vmem:[%s326 + $0x218] sm:$0xff]
        %v731 = vld [vmem:[%s326 + $0x220] sm:$0xff]
        %v732 = vld [vmem:[%s326 + $0x228] sm:$0xff]
        %v733 = vld [vmem:[%s326 + $0x230] sm:$0xff]
        %v734 = vld [vmem:[%s326 + $0x238] sm:$0xff]
        %v735 = vld [vmem:[%s326 + $0x240] sm:$0xff]
        %v736 = vld [vmem:[%s326 + $0x248] sm:$0xff]
        %v737 = vld [vmem:[%s326 + $0x250] sm:$0xff]
        %v738 = vld [vmem:[%s326 + $0x258] sm:$0xff]
        %v739 = vld [vmem:[%s326 + $0x260] sm:$0xff]
        %v740 = vld [vmem:[%s326 + $0x268] sm:$0xff]
        %v741 = vld [vmem:[%s326 + $0x270] sm:$0xff]
        %v742 = vld [vmem:[%s326 + $0x278] sm:$0xff]
        %v743 = vld [vmem:[%s326 + $0x280] sm:$0xff]
        %v744 = vld [vmem:[%s326 + $0x288] sm:$0xff]
        %v745 = vld [vmem:[%s326 + $0x290] sm:$0xff]
        %v746 = vld [vmem:[%s326 + $0x298] sm:$0xff]
        %v747 = vld [vmem:[%s326 + $0x2a0] sm:$0xff]
        %v748 = vld [vmem:[%s326 + $0x2a8] sm:$0xff]
        %v749 = vld [vmem:[%s326 + $0x2b0] sm:$0xff]
        %v750 = vld [vmem:[%s326 + $0x2b8] sm:$0xff]
        %v751 = vsel %vm575, %v663, 0.0
        %v752 = vsel %vm576, %v664, 0.0
        %v753 = vsel %vm577, %v665, 0.0
        %v754 = vsel %vm578, %v666, 0.0
        %v755 = vsel %vm579, %v667, 0.0
        %v756 = vsel %vm580, %v668, 0.0
        %v757 = vsel %vm581, %v669, 0.0
        %v758 = vsel %vm582, %v670, 0.0
        %v759 = vsel %vm583, %v671, 0.0
        %v760 = vsel %vm584, %v672, 0.0
        %v761 = vsel %vm585, %v673, 0.0
        %v762 = vsel %vm586, %v674, 0.0
        %v763 = vsel %vm587, %v675, 0.0
        %v764 = vsel %vm588, %v676, 0.0
        %v765 = vsel %vm589, %v677, 0.0
        %v766 = vsel %vm590, %v678, 0.0
        %v767 = vsel %vm591, %v679, 0.0
        %v768 = vsel %vm592, %v680, 0.0
        %v769 = vsel %vm593, %v681, 0.0
        %v770 = vsel %vm594, %v682, 0.0
        %v771 = vsel %vm595, %v683, 0.0
        %v772 = vsel %vm596, %v684, 0.0
        %v773 = vsel %vm597, %v685, 0.0
        %v774 = vsel %vm598, %v686, 0.0
        %v775 = vsel %vm599, %v687, 0.0
        %v776 = vsel %vm600, %v688, 0.0
        %v777 = vsel %vm601, %v689, 0.0
        %v778 = vsel %vm602, %v690, 0.0
        %v779 = vsel %vm603, %v691, 0.0
        %v780 = vsel %vm604, %v692, 0.0
        %v781 = vsel %vm605, %v693, 0.0
        %v782 = vsel %vm606, %v694, 0.0
        %v783 = vsel %vm607, %v695, 0.0
        %v784 = vsel %vm608, %v696, 0.0
        %v785 = vsel %vm609, %v697, 0.0
        %v786 = vsel %vm610, %v698, 0.0
        %v787 = vsel %vm611, %v699, 0.0
        %v788 = vsel %vm612, %v700, 0.0
        %v789 = vsel %vm613, %v701, 0.0
        %v790 = vsel %vm614, %v702, 0.0
        %v791 = vsel %vm615, %v703, 0.0
        %v792 = vsel %vm616, %v704, 0.0
        %v793 = vsel %vm617, %v705, 0.0
        %v794 = vsel %vm618, %v706, 0.0
        %v795 = vsel %vm619, %v707, 0.0
        %v796 = vsel %vm620, %v708, 0.0
        %v797 = vsel %vm621, %v709, 0.0
        %v798 = vsel %vm622, %v710, 0.0
        %v799 = vsel %vm623, %v711, 0.0
        %v800 = vsel %vm624, %v712, 0.0
        %v801 = vsel %vm625, %v713, 0.0
        %v802 = vsel %vm626, %v714, 0.0
        %v803 = vsel %vm627, %v715, 0.0
        %v804 = vsel %vm628, %v716, 0.0
        %v805 = vsel %vm629, %v717, 0.0
        %v806 = vsel %vm630, %v718, 0.0
        %v807 = vsel %vm631, %v719, 0.0
        %v808 = vsel %vm632, %v720, 0.0
        %v809 = vsel %vm633, %v721, 0.0
        %v810 = vsel %vm634, %v722, 0.0
        %v811 = vsel %vm635, %v723, 0.0
        %v812 = vsel %vm636, %v724, 0.0
        %v813 = vsel %vm637, %v725, 0.0
        %v814 = vsel %vm638, %v726, 0.0
        %v815 = vsel %vm639, %v727, 0.0
        %v816 = vsel %vm640, %v728, 0.0
        %v817 = vsel %vm641, %v729, 0.0
        %v818 = vsel %vm642, %v730, 0.0
        %v819 = vsel %vm643, %v731, 0.0
        %v820 = vsel %vm644, %v732, 0.0
        %v821 = vsel %vm645, %v733, 0.0
        %v822 = vsel %vm646, %v734, 0.0
        %v823 = vsel %vm647, %v735, 0.0
        %v824 = vsel %vm648, %v736, 0.0
        %v825 = vsel %vm649, %v737, 0.0
        %v826 = vsel %vm650, %v738, 0.0
        %v827 = vsel %vm651, %v739, 0.0
        %v828 = vsel %vm652, %v740, 0.0
        %v829 = vsel %vm653, %v741, 0.0
        %v830 = vsel %vm654, %v742, 0.0
        %v831 = vsel %vm655, %v743, 0.0
        %v832 = vsel %vm656, %v744, 0.0
        %v833 = vsel %vm657, %v745, 0.0
        %v834 = vsel %vm658, %v746, 0.0
        %v835 = vsel %vm659, %v747, 0.0
        %v836 = vsel %vm660, %v748, 0.0
        %v837 = vsel %vm661, %v749, 0.0
        %v838 = vsel %vm662, %v750, 0.0
        %v839 = vld [vmem:[#allocation2] sm:$0xff]
        %v840 = vld [vmem:[#allocation2 + $0x8] sm:$0xff]
        %v841 = vld [vmem:[%s336] sm:$0xff]
        %v842 = vld [vmem:[%s336 + $0x8] sm:$0xff]
        %v843 = vld [vmem:[%s336 + $0x10] sm:$0xff]
        %v844 = vld [vmem:[%s336 + $0x18] sm:$0xff]
        %v845 = vld [vmem:[%s336 + $0x20] sm:$0xff]
        %v846 = vld [vmem:[%s336 + $0x28] sm:$0xff]
        %v847 = vld [vmem:[%s336 + $0x30] sm:$0xff]
        %v848 = vld [vmem:[%s336 + $0x38] sm:$0xff]
        %v849 = vld [vmem:[%s336 + $0x40] sm:$0xff]
        %v850 = vld [vmem:[%s336 + $0x48] sm:$0xff]
        %v851 = vld [vmem:[%s336 + $0x50] sm:$0xff]
        %v852 = vld [vmem:[%s336 + $0x58] sm:$0xff]
        %v853 = vld [vmem:[%s336 + $0x60] sm:$0xff]
        %v854 = vld [vmem:[%s336 + $0x68] sm:$0xff]
        %v855 = vld [vmem:[%s336 + $0x70] sm:$0xff]
        %v856 = vld [vmem:[%s336 + $0x78] sm:$0xff]
        %v857 = vld [vmem:[%s336 + $0x80] sm:$0xff]
        %v858 = vld [vmem:[%s336 + $0x88] sm:$0xff]
        %v859 = vld [vmem:[%s336 + $0x90] sm:$0xff]
        %v860 = vld [vmem:[%s336 + $0x98] sm:$0xff]
        %v861 = vld [vmem:[%s336 + $0xa0] sm:$0xff]
        %v862 = vld [vmem:[%s336 + $0xa8] sm:$0xff]
        %v863 = vld [vmem:[%s336 + $0xb0] sm:$0xff]
        %v864 = vld [vmem:[%s336 + $0xb8] sm:$0xff]
        %v865 = vld [vmem:[%s336 + $0xc0] sm:$0xff]
        %v866 = vld [vmem:[%s336 + $0xc8] sm:$0xff]
        %v867 = vld [vmem:[%s336 + $0xd0] sm:$0xff]
        %v868 = vld [vmem:[%s336 + $0xd8] sm:$0xff]
        %v869 = vld [vmem:[%s336 + $0xe0] sm:$0xff]
        %v870 = vld [vmem:[%s336 + $0xe8] sm:$0xff]
        %v871 = vld [vmem:[%s336 + $0xf0] sm:$0xff]
        %v872 = vld [vmem:[%s336 + $0xf8] sm:$0xff]
        %v873 = vld [vmem:[%s336 + $0x100] sm:$0xff]
        %v874 = vld [vmem:[%s336 + $0x108] sm:$0xff]
        %v875 = vld [vmem:[%s336 + $0x110] sm:$0xff]
        %v876 = vld [vmem:[%s336 + $0x118] sm:$0xff]
        %v877 = vld [vmem:[%s336 + $0x120] sm:$0xff]
        %v878 = vld [vmem:[%s336 + $0x128] sm:$0xff]
        %v879 = vld [vmem:[%s336 + $0x130] sm:$0xff]
        %v880 = vld [vmem:[%s336 + $0x138] sm:$0xff]
        %v881 = vld [vmem:[%s336 + $0x140] sm:$0xff]
        %v882 = vld [vmem:[%s336 + $0x148] sm:$0xff]
        %v883 = vld [vmem:[%s336 + $0x150] sm:$0xff]
        %v884 = vld [vmem:[%s336 + $0x158] sm:$0xff]
        %v885 = vld [vmem:[%s336 + $0x160] sm:$0xff]
        %v886 = vld [vmem:[%s336 + $0x168] sm:$0xff]
        %v887 = vld [vmem:[%s336 + $0x170] sm:$0xff]
        %v888 = vld [vmem:[%s336 + $0x178] sm:$0xff]
        %v889 = vld [vmem:[%s336 + $0x180] sm:$0xff]
        %v890 = vld [vmem:[%s336 + $0x188] sm:$0xff]
        %v891 = vld [vmem:[%s336 + $0x190] sm:$0xff]
        %v892 = vld [vmem:[%s336 + $0x198] sm:$0xff]
        %v893 = vld [vmem:[%s336 + $0x1a0] sm:$0xff]
        %v894 = vld [vmem:[%s336 + $0x1a8] sm:$0xff]
        %v895 = vld [vmem:[%s336 + $0x1b0] sm:$0xff]
        %v896 = vld [vmem:[%s336 + $0x1b8] sm:$0xff]
        %v897 = vld [vmem:[%s336 + $0x1c0] sm:$0xff]
        %v898 = vld [vmem:[%s336 + $0x1c8] sm:$0xff]
        %v899 = vld [vmem:[%s336 + $0x1d0] sm:$0xff]
        %v900 = vld [vmem:[%s336 + $0x1d8] sm:$0xff]
        %v901 = vld [vmem:[%s336 + $0x1e0] sm:$0xff]
        %v902 = vld [vmem:[%s336 + $0x1e8] sm:$0xff]
        %v903 = vld [vmem:[%s336 + $0x1f0] sm:$0xff]
        %v904 = vld [vmem:[%s336 + $0x1f8] sm:$0xff]
        %v905 = vld [vmem:[%s336 + $0x200] sm:$0xff]
        %v906 = vld [vmem:[%s336 + $0x208] sm:$0xff]
        %v907 = vld [vmem:[%s336 + $0x210] sm:$0xff]
        %v908 = vld [vmem:[%s336 + $0x218] sm:$0xff]
        %v909 = vld [vmem:[%s336 + $0x220] sm:$0xff]
        %v910 = vld [vmem:[%s336 + $0x228] sm:$0xff]
        %v911 = vld [vmem:[%s336 + $0x230] sm:$0xff]
        %v912 = vld [vmem:[%s336 + $0x238] sm:$0xff]
        %v913 = vld [vmem:[%s336 + $0x240] sm:$0xff]
        %v914 = vld [vmem:[%s336 + $0x248] sm:$0xff]
        %v915 = vld [vmem:[%s336 + $0x250] sm:$0xff]
        %v916 = vld [vmem:[%s336 + $0x258] sm:$0xff]
        %v917 = vld [vmem:[%s336 + $0x260] sm:$0xff]
        %v918 = vld [vmem:[%s336 + $0x268] sm:$0xff]
        %v919 = vld [vmem:[%s336 + $0x270] sm:$0xff]
        %v920 = vld [vmem:[%s336 + $0x278] sm:$0xff]
        %v921 = vld [vmem:[%s336 + $0x280] sm:$0xff]
        %v922 = vld [vmem:[%s336 + $0x288] sm:$0xff]
        %v923 = vld [vmem:[%s336 + $0x290] sm:$0xff]
        %v924 = vld [vmem:[%s336 + $0x298] sm:$0xff]
        %v925 = vld [vmem:[%s336 + $0x2a0] sm:$0xff]
        %v926 = vld [vmem:[%s336 + $0x2a8] sm:$0xff]
        %v927 = vld [vmem:[%s336 + $0x2b0] sm:$0xff]
        %v928 = vld [vmem:[%s336 + $0x2b8] sm:$0xff]
        %v929 = vld [vmem:[%s336 + $0x2c0] sm:$0xff]
        %v930 = vld [vmem:[%s336 + $0x2c8] sm:$0xff]
        %v931 = vld [vmem:[%s336 + $0x2d0] sm:$0xff]
        %v932 = vld [vmem:[%s336 + $0x2d8] sm:$0xff]
        %v933 = vld [vmem:[%s336 + $0x2e0] sm:$0xff]
        %v934 = vld [vmem:[%s336 + $0x2e8] sm:$0xff]
        %v935 = vld [vmem:[%s336 + $0x2f0] sm:$0xff]
        %v936 = vld [vmem:[%s336 + $0x2f8] sm:$0xff]
        %v937 = vld [vmem:[%s336 + $0x300] sm:$0xff]
        %v938 = vld [vmem:[%s336 + $0x308] sm:$0xff]
        %v939 = vld [vmem:[%s336 + $0x310] sm:$0xff]
        %v940 = vld [vmem:[%s336 + $0x318] sm:$0xff]
        %v941 = vld [vmem:[%s336 + $0x320] sm:$0xff]
        %v942 = vld [vmem:[%s336 + $0x328] sm:$0xff]
        %v943 = vld [vmem:[%s336 + $0x330] sm:$0xff]
        %v944 = vld [vmem:[%s336 + $0x338] sm:$0xff]
        %v945 = vld [vmem:[%s336 + $0x340] sm:$0xff]
        %v946 = vld [vmem:[%s336 + $0x348] sm:$0xff]
        %v947 = vld [vmem:[%s336 + $0x350] sm:$0xff]
        %v948 = vld [vmem:[%s336 + $0x358] sm:$0xff]
        %v949 = vld [vmem:[%s336 + $0x360] sm:$0xff]
        %v950 = vld [vmem:[%s336 + $0x368] sm:$0xff]
        %v951 = vld [vmem:[%s336 + $0x370] sm:$0xff]
        %v952 = vld [vmem:[%s336 + $0x378] sm:$0xff]
        %v953 = vld [vmem:[%s336 + $0x380] sm:$0xff]
        %v954 = vld [vmem:[%s336 + $0x388] sm:$0xff]
        %v955 = vld [vmem:[%s336 + $0x390] sm:$0xff]
        %v956 = vld [vmem:[%s336 + $0x398] sm:$0xff]
        %v957 = vld [vmem:[%s336 + $0x3a0] sm:$0xff]
        %v958 = vld [vmem:[%s336 + $0x3a8] sm:$0xff]
        %v959 = vld [vmem:[%s336 + $0x3b0] sm:$0xff]
        %v960 = vld [vmem:[%s336 + $0x3b8] sm:$0xff]
        %v961 = vld [vmem:[%s336 + $0x3c0] sm:$0xff]
        %v962 = vld [vmem:[%s336 + $0x3c8] sm:$0xff]
        %v963 = vld [vmem:[%s336 + $0x3d0] sm:$0xff]
        %v964 = vld [vmem:[%s336 + $0x3d8] sm:$0xff]
        %v965 = vld [vmem:[%s336 + $0x3e0] sm:$0xff]
        %v966 = vld [vmem:[%s336 + $0x3e8] sm:$0xff]
        %v967 = vld [vmem:[%s336 + $0x3f0] sm:$0xff]
        %v968 = vld [vmem:[%s336 + $0x3f8] sm:$0xff]
        %v969 = vld [vmem:[%s336 + $0x400] sm:$0xff]
        %v970 = vld [vmem:[%s336 + $0x408] sm:$0xff]
        %v971 = vld [vmem:[%s336 + $0x410] sm:$0xff]
        %v972 = vld [vmem:[%s336 + $0x418] sm:$0xff]
        %v973 = vld [vmem:[%s336 + $0x420] sm:$0xff]
        %v974 = vld [vmem:[%s336 + $0x428] sm:$0xff]
        %v975 = vld [vmem:[%s336 + $0x430] sm:$0xff]
        %v976 = vld [vmem:[%s336 + $0x438] sm:$0xff]
        %v977 = vld [vmem:[%s336 + $0x440] sm:$0xff]
        %v978 = vld [vmem:[%s336 + $0x448] sm:$0xff]
        %v979 = vld [vmem:[%s336 + $0x450] sm:$0xff]
        %v980 = vld [vmem:[%s336 + $0x458] sm:$0xff]
        %v981 = vld [vmem:[%s336 + $0x460] sm:$0xff]
        %v982 = vld [vmem:[%s336 + $0x468] sm:$0xff]
        %v983 = vld [vmem:[%s336 + $0x470] sm:$0xff]
        %v984 = vld [vmem:[%s336 + $0x478] sm:$0xff]
        %v985 = vld [vmem:[%s336 + $0x480] sm:$0xff]
        %v986 = vld [vmem:[%s336 + $0x488] sm:$0xff]
        %v987 = vld [vmem:[%s336 + $0x490] sm:$0xff]
        %v988 = vld [vmem:[%s336 + $0x498] sm:$0xff]
        %v989 = vld [vmem:[%s336 + $0x4a0] sm:$0xff]
        %v990 = vld [vmem:[%s336 + $0x4a8] sm:$0xff]
        %v991 = vld [vmem:[%s336 + $0x4b0] sm:$0xff]
        %v992 = vld [vmem:[%s336 + $0x4b8] sm:$0xff]
        %v993 = vld [vmem:[%s336 + $0x4c0] sm:$0xff]
        %v994 = vld [vmem:[%s336 + $0x4c8] sm:$0xff]
        %v995 = vld [vmem:[%s336 + $0x4d0] sm:$0xff]
        %v996 = vld [vmem:[%s336 + $0x4d8] sm:$0xff]
        %v997 = vld [vmem:[%s336 + $0x4e0] sm:$0xff]
        %v998 = vld [vmem:[%s336 + $0x4e8] sm:$0xff]
        %v999 = vld [vmem:[%s336 + $0x4f0] sm:$0xff]
        %v1000 = vld [vmem:[%s336 + $0x4f8] sm:$0xff]
        %v1001 = vld [vmem:[%s336 + $0x500] sm:$0xff]
        %v1002 = vld [vmem:[%s336 + $0x508] sm:$0xff]
        %v1003 = vld [vmem:[%s336 + $0x510] sm:$0xff]
        %v1004 = vld [vmem:[%s336 + $0x518] sm:$0xff]
        %v1005 = vld [vmem:[%s336 + $0x520] sm:$0xff]
        %v1006 = vld [vmem:[%s336 + $0x528] sm:$0xff]
        %v1007 = vld [vmem:[%s336 + $0x530] sm:$0xff]
        %v1008 = vld [vmem:[%s336 + $0x538] sm:$0xff]
        %v1009 = vld [vmem:[%s336 + $0x540] sm:$0xff]
        %v1010 = vld [vmem:[%s336 + $0x548] sm:$0xff]
        %v1011 = vld [vmem:[%s336 + $0x550] sm:$0xff]
        %v1012 = vld [vmem:[%s336 + $0x558] sm:$0xff]
        %v1013 = vld [vmem:[%s336 + $0x560] sm:$0xff]
        %v1014 = vld [vmem:[%s336 + $0x568] sm:$0xff]
        %v1015 = vld [vmem:[%s336 + $0x570] sm:$0xff]
        %v1016 = vld [vmem:[%s336 + $0x578] sm:$0xff]
        %v1017 = vld [vmem:[%s336 + $0x580] sm:$0xff]
        %v1018 = vld [vmem:[%s336 + $0x588] sm:$0xff]
        %v1019 = vld [vmem:[%s336 + $0x590] sm:$0xff]
        %v1020 = vld [vmem:[%s336 + $0x598] sm:$0xff]
        %v1021 = vld [vmem:[%s336 + $0x5a0] sm:$0xff]
        %v1022 = vld [vmem:[%s336 + $0x5a8] sm:$0xff]
        %v1023 = vld [vmem:[%s336 + $0x5b0] sm:$0xff]
        %v1024 = vld [vmem:[%s336 + $0x5b8] sm:$0xff]
        %v1025 = vld [vmem:[%s336 + $0x5c0] sm:$0xff]
        %v1026 = vld [vmem:[%s336 + $0x5c8] sm:$0xff]
        %v1027 = vld [vmem:[%s336 + $0x5d0] sm:$0xff]
        %v1028 = vld [vmem:[%s336 + $0x5d8] sm:$0xff]
        %v1029 = vld [vmem:[%s336 + $0x5e0] sm:$0xff]
        %v1030 = vld [vmem:[%s336 + $0x5e8] sm:$0xff]
        %v1031 = vld [vmem:[%s336 + $0x5f0] sm:$0xff]
        %v1032 = vld [vmem:[%s336 + $0x5f8] sm:$0xff]
        %v1033 = vld [vmem:[%s336 + $0x600] sm:$0xff]
        %v1034 = vld [vmem:[%s336 + $0x608] sm:$0xff]
        %v1035 = vld [vmem:[%s336 + $0x610] sm:$0xff]
        %v1036 = vld [vmem:[%s336 + $0x618] sm:$0xff]
        %v1037 = vld [vmem:[%s336 + $0x620] sm:$0xff]
        %v1038 = vld [vmem:[%s336 + $0x628] sm:$0xff]
        %v1039 = vld [vmem:[%s336 + $0x630] sm:$0xff]
        %v1040 = vld [vmem:[%s336 + $0x638] sm:$0xff]
        %v1041 = vld [vmem:[%s336 + $0x640] sm:$0xff]
        %v1042 = vld [vmem:[%s336 + $0x648] sm:$0xff]
        %v1043 = vld [vmem:[%s336 + $0x650] sm:$0xff]
        %v1044 = vld [vmem:[%s336 + $0x658] sm:$0xff]
        %v1045 = vld [vmem:[%s336 + $0x660] sm:$0xff]
        %v1046 = vld [vmem:[%s336 + $0x668] sm:$0xff]
        %v1047 = vld [vmem:[%s336 + $0x670] sm:$0xff]
        %v1048 = vld [vmem:[%s336 + $0x678] sm:$0xff]
        %v1049 = vld [vmem:[%s336 + $0x680] sm:$0xff]
        %v1050 = vld [vmem:[%s336 + $0x688] sm:$0xff]
        %v1051 = vld [vmem:[%s336 + $0x690] sm:$0xff]
        %v1052 = vld [vmem:[%s336 + $0x698] sm:$0xff]
        %v1053 = vld [vmem:[%s336 + $0x6a0] sm:$0xff]
        %v1054 = vld [vmem:[%s336 + $0x6a8] sm:$0xff]
        %v1055 = vld [vmem:[%s336 + $0x6b0] sm:$0xff]
        %v1056 = vld [vmem:[%s336 + $0x6b8] sm:$0xff]
        %v1057 = vld [vmem:[%s336 + $0x6c0] sm:$0xff]
        %v1058 = vld [vmem:[%s336 + $0x6c8] sm:$0xff]
        %v1059 = vld [vmem:[%s336 + $0x6d0] sm:$0xff]
        %v1060 = vld [vmem:[%s336 + $0x6d8] sm:$0xff]
        %v1061 = vld [vmem:[%s336 + $0x6e0] sm:$0xff]
        %v1062 = vld [vmem:[%s336 + $0x6e8] sm:$0xff]
        %v1063 = vld [vmem:[%s336 + $0x6f0] sm:$0xff]
        %v1064 = vld [vmem:[%s336 + $0x6f8] sm:$0xff]
        %v1065 = vld [vmem:[%s336 + $0x700] sm:$0xff]
        %v1066 = vld [vmem:[%s336 + $0x708] sm:$0xff]
        %v1067 = vld [vmem:[%s336 + $0x710] sm:$0xff]
        %v1068 = vld [vmem:[%s336 + $0x718] sm:$0xff]
        %v1069 = vld [vmem:[%s336 + $0x720] sm:$0xff]
        %v1070 = vld [vmem:[%s336 + $0x728] sm:$0xff]
        %v1071 = vld [vmem:[%s336 + $0x730] sm:$0xff]
        %v1072 = vld [vmem:[%s336 + $0x738] sm:$0xff]
        %v1073 = vld [vmem:[%s336 + $0x740] sm:$0xff]
        %v1074 = vld [vmem:[%s336 + $0x748] sm:$0xff]
        %v1075 = vld [vmem:[%s336 + $0x750] sm:$0xff]
        %v1076 = vld [vmem:[%s336 + $0x758] sm:$0xff]
        %v1077 = vld [vmem:[%s336 + $0x760] sm:$0xff]
        %v1078 = vld [vmem:[%s336 + $0x768] sm:$0xff]
        %v1079 = vld [vmem:[%s336 + $0x770] sm:$0xff]
        %v1080 = vld [vmem:[%s336 + $0x778] sm:$0xff]
        %v1081 = vld [vmem:[%s336 + $0x780] sm:$0xff]
        %v1082 = vld [vmem:[%s336 + $0x788] sm:$0xff]
        %v1083 = vld [vmem:[%s336 + $0x790] sm:$0xff]
        %v1084 = vld [vmem:[%s336 + $0x798] sm:$0xff]
        %v1085 = vld [vmem:[%s336 + $0x7a0] sm:$0xff]
        %v1086 = vld [vmem:[%s336 + $0x7a8] sm:$0xff]
        %v1087 = vld [vmem:[%s336 + $0x7b0] sm:$0xff]
        %v1088 = vld [vmem:[%s336 + $0x7b8] sm:$0xff]
        %v1089 = vld [vmem:[%s336 + $0x7c0] sm:$0xff]
        %v1090 = vld [vmem:[%s336 + $0x7c8] sm:$0xff]
        %v1091 = vld [vmem:[%s336 + $0x7d0] sm:$0xff]
        %v1092 = vld [vmem:[%s336 + $0x7d8] sm:$0xff]
        %v1093 = vld [vmem:[%s336 + $0x7e0] sm:$0xff]
        %v1094 = vld [vmem:[%s336 + $0x7e8] sm:$0xff]
        %v1095 = vld [vmem:[%s336 + $0x7f0] sm:$0xff]
        %v1096 = vld [vmem:[%s336 + $0x7f8] sm:$0xff]
        %v1097 = vld [vmem:[%s336 + $0x800] sm:$0xff]
        %v1098 = vld [vmem:[%s336 + $0x808] sm:$0xff]
        %v1099 = vld [vmem:[%s336 + $0x810] sm:$0xff]
        %v1100 = vld [vmem:[%s336 + $0x818] sm:$0xff]
        %v1101 = vld [vmem:[%s336 + $0x820] sm:$0xff]
        %v1102 = vld [vmem:[%s336 + $0x828] sm:$0xff]
        %v1103 = vld [vmem:[%s336 + $0x830] sm:$0xff]
        %v1104 = vld [vmem:[%s336 + $0x838] sm:$0xff]
        %v1105 = vld [vmem:[%s336 + $0x840] sm:$0xff]
        %v1106 = vld [vmem:[%s336 + $0x848] sm:$0xff]
        %v1107 = vld [vmem:[%s336 + $0x850] sm:$0xff]
        %v1108 = vld [vmem:[%s336 + $0x858] sm:$0xff]
        %v1109 = vld [vmem:[%s336 + $0x860] sm:$0xff]
        %v1110 = vld [vmem:[%s336 + $0x868] sm:$0xff]
        %v1111 = vld [vmem:[%s336 + $0x870] sm:$0xff]
        %v1112 = vld [vmem:[%s336 + $0x878] sm:$0xff]
        %v1113 = vld [vmem:[%s336 + $0x880] sm:$0xff]
        %v1114 = vld [vmem:[%s336 + $0x888] sm:$0xff]
        %v1115 = vld [vmem:[%s336 + $0x890] sm:$0xff]
        %v1116 = vld [vmem:[%s336 + $0x898] sm:$0xff]
        %v1117 = vld [vmem:[%s336 + $0x8a0] sm:$0xff]
        %v1118 = vld [vmem:[%s336 + $0x8a8] sm:$0xff]
        %v1119 = vld [vmem:[%s336 + $0x8b0] sm:$0xff]
        %v1120 = vld [vmem:[%s336 + $0x8b8] sm:$0xff]
        %v1121 = vld [vmem:[%s336 + $0x8c0] sm:$0xff]
        %v1122 = vld [vmem:[%s336 + $0x8c8] sm:$0xff]
        %v1123 = vld [vmem:[%s336 + $0x8d0] sm:$0xff]
        %v1124 = vld [vmem:[%s336 + $0x8d8] sm:$0xff]
        %v1125 = vld [vmem:[%s336 + $0x8e0] sm:$0xff]
        %v1126 = vld [vmem:[%s336 + $0x8e8] sm:$0xff]
        %v1127 = vld [vmem:[%s336 + $0x8f0] sm:$0xff]
        %v1128 = vld [vmem:[%s336 + $0x8f8] sm:$0xff]
        %v1129 = vld [vmem:[%s336 + $0x900] sm:$0xff]
        %v1130 = vld [vmem:[%s336 + $0x908] sm:$0xff]
        %v1131 = vld [vmem:[%s336 + $0x910] sm:$0xff]
        %v1132 = vld [vmem:[%s336 + $0x918] sm:$0xff]
        %v1133 = vld [vmem:[%s336 + $0x920] sm:$0xff]
        %v1134 = vld [vmem:[%s336 + $0x928] sm:$0xff]
        %v1135 = vld [vmem:[%s336 + $0x930] sm:$0xff]
        %v1136 = vld [vmem:[%s336 + $0x938] sm:$0xff]
        %v1137 = vld [vmem:[%s336 + $0x940] sm:$0xff]
        %v1138 = vld [vmem:[%s336 + $0x948] sm:$0xff]
        %v1139 = vld [vmem:[%s336 + $0x950] sm:$0xff]
        %v1140 = vld [vmem:[%s336 + $0x958] sm:$0xff]
        %v1141 = vld [vmem:[%s336 + $0x960] sm:$0xff]
        %v1142 = vld [vmem:[%s336 + $0x968] sm:$0xff]
        %v1143 = vld [vmem:[%s336 + $0x970] sm:$0xff]
        %v1144 = vld [vmem:[%s336 + $0x978] sm:$0xff]
        %v1145 = vld [vmem:[%s336 + $0x980] sm:$0xff]
        %v1146 = vld [vmem:[%s336 + $0x988] sm:$0xff]
        %v1147 = vld [vmem:[%s336 + $0x990] sm:$0xff]
        %v1148 = vld [vmem:[%s336 + $0x998] sm:$0xff]
        %v1149 = vld [vmem:[%s336 + $0x9a0] sm:$0xff]
        %v1150 = vld [vmem:[%s336 + $0x9a8] sm:$0xff]
        %v1151 = vld [vmem:[%s336 + $0x9b0] sm:$0xff]
        %v1152 = vld [vmem:[%s336 + $0x9b8] sm:$0xff]
        %v1153 = vld [vmem:[%s336 + $0x9c0] sm:$0xff]
        %v1154 = vld [vmem:[%s336 + $0x9c8] sm:$0xff]
        %v1155 = vld [vmem:[%s336 + $0x9d0] sm:$0xff]
        %v1156 = vld [vmem:[%s336 + $0x9d8] sm:$0xff]
        %v1157 = vld [vmem:[%s336 + $0x9e0] sm:$0xff]
        %v1158 = vld [vmem:[%s336 + $0x9e8] sm:$0xff]
        %v1159 = vld [vmem:[%s336 + $0x9f0] sm:$0xff]
        %v1160 = vld [vmem:[%s336 + $0x9f8] sm:$0xff]
        %v1161 = vld [vmem:[%s336 + $0xa00] sm:$0xff]
        %v1162 = vld [vmem:[%s336 + $0xa08] sm:$0xff]
        %v1163 = vld [vmem:[%s336 + $0xa10] sm:$0xff]
        %v1164 = vld [vmem:[%s336 + $0xa18] sm:$0xff]
        %v1165 = vld [vmem:[%s336 + $0xa20] sm:$0xff]
        %v1166 = vld [vmem:[%s336 + $0xa28] sm:$0xff]
        %v1167 = vld [vmem:[%s336 + $0xa30] sm:$0xff]
        %v1168 = vld [vmem:[%s336 + $0xa38] sm:$0xff]
        %v1169 = vld [vmem:[%s336 + $0xa40] sm:$0xff]
        %v1170 = vld [vmem:[%s336 + $0xa48] sm:$0xff]
        %v1171 = vld [vmem:[%s336 + $0xa50] sm:$0xff]
        %v1172 = vld [vmem:[%s336 + $0xa58] sm:$0xff]
        %v1173 = vld [vmem:[%s336 + $0xa60] sm:$0xff]
        %v1174 = vld [vmem:[%s336 + $0xa68] sm:$0xff]
        %v1175 = vld [vmem:[%s336 + $0xa70] sm:$0xff]
        %v1176 = vld [vmem:[%s336 + $0xa78] sm:$0xff]
        %v1177 = vld [vmem:[%s336 + $0xa80] sm:$0xff]
        %v1178 = vld [vmem:[%s336 + $0xa88] sm:$0xff]
        %v1179 = vld [vmem:[%s336 + $0xa90] sm:$0xff]
        %v1180 = vld [vmem:[%s336 + $0xa98] sm:$0xff]
        %v1181 = vld [vmem:[%s336 + $0xaa0] sm:$0xff]
        %v1182 = vld [vmem:[%s336 + $0xaa8] sm:$0xff]
        %v1183 = vld [vmem:[%s336 + $0xab0] sm:$0xff]
        %v1184 = vld [vmem:[%s336 + $0xab8] sm:$0xff]
        %v1185 = vld [vmem:[%s336 + $0xac0] sm:$0xff]
        %v1186 = vld [vmem:[%s336 + $0xac8] sm:$0xff]
        %v1187 = vld [vmem:[%s336 + $0xad0] sm:$0xff]
        %v1188 = vld [vmem:[%s336 + $0xad8] sm:$0xff]
        %v1189 = vld [vmem:[%s336 + $0xae0] sm:$0xff]
        %v1190 = vld [vmem:[%s336 + $0xae8] sm:$0xff]
        %v1191 = vld [vmem:[%s336 + $0xaf0] sm:$0xff]
        %v1192 = vld [vmem:[%s336 + $0xaf8] sm:$0xff]
        %v1193 = vld [vmem:[%s336 + $0xb00] sm:$0xff]
        %v1194 = vld [vmem:[%s336 + $0xb08] sm:$0xff]
        %v1195 = vld [vmem:[%s336 + $0xb10] sm:$0xff]
        %v1196 = vld [vmem:[%s336 + $0xb18] sm:$0xff]
        %v1197 = vld [vmem:[%s336 + $0xb20] sm:$0xff]
        %v1198 = vld [vmem:[%s336 + $0xb28] sm:$0xff]
        %v1199 = vld [vmem:[%s336 + $0xb30] sm:$0xff]
        %v1200 = vld [vmem:[%s336 + $0xb38] sm:$0xff]
        %v1201 = vld [vmem:[%s336 + $0xb40] sm:$0xff]
        %v1202 = vld [vmem:[%s336 + $0xb48] sm:$0xff]
        %v1203 = vld [vmem:[%s336 + $0xb50] sm:$0xff]
        %v1204 = vld [vmem:[%s336 + $0xb58] sm:$0xff]
        %v1205 = vld [vmem:[%s336 + $0xb60] sm:$0xff]
        %v1206 = vld [vmem:[%s336 + $0xb68] sm:$0xff]
        %v1207 = vld [vmem:[%s336 + $0xb70] sm:$0xff]
        %v1208 = vld [vmem:[%s336 + $0xb78] sm:$0xff]
        %v1209 = vld [vmem:[%s336 + $0xb80] sm:$0xff]
        %v1210 = vld [vmem:[%s336 + $0xb88] sm:$0xff]
        %v1211 = vld [vmem:[%s336 + $0xb90] sm:$0xff]
        %v1212 = vld [vmem:[%s336 + $0xb98] sm:$0xff]
        %v1213 = vld [vmem:[%s336 + $0xba0] sm:$0xff]
        %v1214 = vld [vmem:[%s336 + $0xba8] sm:$0xff]
        %v1215 = vld [vmem:[%s336 + $0xbb0] sm:$0xff]
        %v1216 = vld [vmem:[%s336 + $0xbb8] sm:$0xff]
        %v1217 = vld [vmem:[%s336 + $0xbc0] sm:$0xff]
        %v1218 = vld [vmem:[%s336 + $0xbc8] sm:$0xff]
        %v1219 = vld [vmem:[%s336 + $0xbd0] sm:$0xff]
        %v1220 = vld [vmem:[%s336 + $0xbd8] sm:$0xff]
        %v1221 = vld [vmem:[%s336 + $0xbe0] sm:$0xff]
        %v1222 = vld [vmem:[%s336 + $0xbe8] sm:$0xff]
        %v1223 = vld [vmem:[%s336 + $0xbf0] sm:$0xff]
        %v1224 = vld [vmem:[%s336 + $0xbf8] sm:$0xff]
        %v1225 = vld [vmem:[%s336 + $0xc00] sm:$0xff]
        %v1226 = vld [vmem:[%s336 + $0xc08] sm:$0xff]
        %v1227 = vld [vmem:[%s336 + $0xc10] sm:$0xff]
        %v1228 = vld [vmem:[%s336 + $0xc18] sm:$0xff]
        %v1229 = vld [vmem:[%s336 + $0xc20] sm:$0xff]
        %v1230 = vld [vmem:[%s336 + $0xc28] sm:$0xff]
        %v1231 = vld [vmem:[%s336 + $0xc30] sm:$0xff]
        %v1232 = vld [vmem:[%s336 + $0xc38] sm:$0xff]
        %v1233 = vld [vmem:[%s336 + $0xc40] sm:$0xff]
        %v1234 = vld [vmem:[%s336 + $0xc48] sm:$0xff]
        %v1235 = vld [vmem:[%s336 + $0xc50] sm:$0xff]
        %v1236 = vld [vmem:[%s336 + $0xc58] sm:$0xff]
        %v1237 = vld [vmem:[%s336 + $0xc60] sm:$0xff]
        %v1238 = vld [vmem:[%s336 + $0xc68] sm:$0xff]
        %v1239 = vld [vmem:[%s336 + $0xc70] sm:$0xff]
        %v1240 = vld [vmem:[%s336 + $0xc78] sm:$0xff]
        %v1241 = vld [vmem:[%s336 + $0xc80] sm:$0xff]
        %v1242 = vld [vmem:[%s336 + $0xc88] sm:$0xff]
        %v1243 = vld [vmem:[%s336 + $0xc90] sm:$0xff]
        %v1244 = vld [vmem:[%s336 + $0xc98] sm:$0xff]
        %v1245 = vld [vmem:[%s336 + $0xca0] sm:$0xff]
        %v1246 = vld [vmem:[%s336 + $0xca8] sm:$0xff]
        %v1247 = vld [vmem:[%s336 + $0xcb0] sm:$0xff]
        %v1248 = vld [vmem:[%s336 + $0xcb8] sm:$0xff]
        %v1249 = vld [vmem:[%s336 + $0xcc0] sm:$0xff]
        %v1250 = vld [vmem:[%s336 + $0xcc8] sm:$0xff]
        %v1251 = vld [vmem:[%s336 + $0xcd0] sm:$0xff]
        %v1252 = vld [vmem:[%s336 + $0xcd8] sm:$0xff]
        %v1253 = vld [vmem:[%s336 + $0xce0] sm:$0xff]
        %v1254 = vld [vmem:[%s336 + $0xce8] sm:$0xff]
        %v1255 = vld [vmem:[%s336 + $0xcf0] sm:$0xff]
        %v1256 = vld [vmem:[%s336 + $0xcf8] sm:$0xff]
        %v1257 = vld [vmem:[%s336 + $0xd00] sm:$0xff]
        %v1258 = vld [vmem:[%s336 + $0xd08] sm:$0xff]
        %v1259 = vld [vmem:[%s336 + $0xd10] sm:$0xff]
        %v1260 = vld [vmem:[%s336 + $0xd18] sm:$0xff]
        %v1261 = vld [vmem:[%s336 + $0xd20] sm:$0xff]
        %v1262 = vld [vmem:[%s336 + $0xd28] sm:$0xff]
        %v1263 = vld [vmem:[%s336 + $0xd30] sm:$0xff]
        %v1264 = vld [vmem:[%s336 + $0xd38] sm:$0xff]
        %v1265 = vld [vmem:[%s336 + $0xd40] sm:$0xff]
        %v1266 = vld [vmem:[%s336 + $0xd48] sm:$0xff]
        %v1267 = vld [vmem:[%s336 + $0xd50] sm:$0xff]
        %v1268 = vld [vmem:[%s336 + $0xd58] sm:$0xff]
        %v1269 = vld [vmem:[%s336 + $0xd60] sm:$0xff]
        %v1270 = vld [vmem:[%s336 + $0xd68] sm:$0xff]
        %v1271 = vld [vmem:[%s336 + $0xd70] sm:$0xff]
        %v1272 = vld [vmem:[%s336 + $0xd78] sm:$0xff]
        %v1273 = vld [vmem:[%s336 + $0xd80] sm:$0xff]
        %v1274 = vld [vmem:[%s336 + $0xd88] sm:$0xff]
        %v1275 = vld [vmem:[%s336 + $0xd90] sm:$0xff]
        %v1276 = vld [vmem:[%s336 + $0xd98] sm:$0xff]
        %v1277 = vld [vmem:[%s336 + $0xda0] sm:$0xff]
        %v1278 = vld [vmem:[%s336 + $0xda8] sm:$0xff]
        %v1279 = vld [vmem:[%s336 + $0xdb0] sm:$0xff]
        %v1280 = vld [vmem:[%s336 + $0xdb8] sm:$0xff]
        %v1281 = vld [vmem:[%s336 + $0xdc0] sm:$0xff]
        %v1282 = vld [vmem:[%s336 + $0xdc8] sm:$0xff]
        %v1283 = vld [vmem:[%s336 + $0xdd0] sm:$0xff]
        %v1284 = vld [vmem:[%s336 + $0xdd8] sm:$0xff]
        %v1285 = vld [vmem:[%s336 + $0xde0] sm:$0xff]
        %v1286 = vld [vmem:[%s336 + $0xde8] sm:$0xff]
        %v1287 = vld [vmem:[%s336 + $0xdf0] sm:$0xff]
        %v1288 = vld [vmem:[%s336 + $0xdf8] sm:$0xff]
        %v1289 = vld [vmem:[%s336 + $0xe00] sm:$0xff]
        %v1290 = vld [vmem:[%s336 + $0xe08] sm:$0xff]
        %v1291 = vld [vmem:[%s336 + $0xe10] sm:$0xff]
        %v1292 = vld [vmem:[%s336 + $0xe18] sm:$0xff]
        %v1293 = vld [vmem:[%s336 + $0xe20] sm:$0xff]
        %v1294 = vld [vmem:[%s336 + $0xe28] sm:$0xff]
        %v1295 = vld [vmem:[%s336 + $0xe30] sm:$0xff]
        %v1296 = vld [vmem:[%s336 + $0xe38] sm:$0xff]
        %v1297 = vld [vmem:[%s336 + $0xe40] sm:$0xff]
        %v1298 = vld [vmem:[%s336 + $0xe48] sm:$0xff]
        %v1299 = vld [vmem:[%s336 + $0xe50] sm:$0xff]
        %v1300 = vld [vmem:[%s336 + $0xe58] sm:$0xff]
        %v1301 = vld [vmem:[%s336 + $0xe60] sm:$0xff]
        %v1302 = vld [vmem:[%s336 + $0xe68] sm:$0xff]
        %v1303 = vld [vmem:[%s336 + $0xe70] sm:$0xff]
        %v1304 = vld [vmem:[%s336 + $0xe78] sm:$0xff]
        %v1305 = vld [vmem:[%s336 + $0xe80] sm:$0xff]
        %v1306 = vld [vmem:[%s336 + $0xe88] sm:$0xff]
        %v1307 = vld [vmem:[%s336 + $0xe90] sm:$0xff]
        %v1308 = vld [vmem:[%s336 + $0xe98] sm:$0xff]
        %v1309 = vld [vmem:[%s336 + $0xea0] sm:$0xff]
        %v1310 = vld [vmem:[%s336 + $0xea8] sm:$0xff]
        %v1311 = vld [vmem:[%s336 + $0xeb0] sm:$0xff]
        %v1312 = vld [vmem:[%s336 + $0xeb8] sm:$0xff]
        %v1313 = vld [vmem:[%s336 + $0xec0] sm:$0xff]
        %v1314 = vld [vmem:[%s336 + $0xec8] sm:$0xff]
        %v1315 = vld [vmem:[%s336 + $0xed0] sm:$0xff]
        %v1316 = vld [vmem:[%s336 + $0xed8] sm:$0xff]
        %v1317 = vld [vmem:[%s336 + $0xee0] sm:$0xff]
        %v1318 = vld [vmem:[%s336 + $0xee8] sm:$0xff]
        %v1319 = vld [vmem:[%s336 + $0xef0] sm:$0xff]
        %v1320 = vld [vmem:[%s336 + $0xef8] sm:$0xff]
        %v1321 = vld [vmem:[%s336 + $0xf00] sm:$0xff]
        %v1322 = vld [vmem:[%s336 + $0xf08] sm:$0xff]
        %v1323 = vld [vmem:[%s336 + $0xf10] sm:$0xff]
        %v1324 = vld [vmem:[%s336 + $0xf18] sm:$0xff]
        %v1325 = vld [vmem:[%s336 + $0xf20] sm:$0xff]
        %v1326 = vld [vmem:[%s336 + $0xf28] sm:$0xff]
        %v1327 = vld [vmem:[%s336 + $0xf30] sm:$0xff]
        %v1328 = vld [vmem:[%s336 + $0xf38] sm:$0xff]
        %v1329 = vld [vmem:[%s336 + $0xf40] sm:$0xff]
        %v1330 = vld [vmem:[%s336 + $0xf48] sm:$0xff]
        %v1331 = vld [vmem:[%s336 + $0xf50] sm:$0xff]
        %v1332 = vld [vmem:[%s336 + $0xf58] sm:$0xff]
        %v1333 = vld [vmem:[%s336 + $0xf60] sm:$0xff]
        %v1334 = vld [vmem:[%s336 + $0xf68] sm:$0xff]
        %v1335 = vld [vmem:[%s336 + $0xf70] sm:$0xff]
        %v1336 = vld [vmem:[%s336 + $0xf78] sm:$0xff]
        %v1337 = vld [vmem:[%s336 + $0xf80] sm:$0xff]
        %v1338 = vld [vmem:[%s336 + $0xf88] sm:$0xff]
        %v1339 = vld [vmem:[%s336 + $0xf90] sm:$0xff]
        %v1340 = vld [vmem:[%s336 + $0xf98] sm:$0xff]
        %v1341 = vld [vmem:[%s336 + $0xfa0] sm:$0xff]
        %v1342 = vld [vmem:[%s336 + $0xfa8] sm:$0xff]
        %v1343 = vld [vmem:[%s336 + $0xfb0] sm:$0xff]
        %v1344 = vld [vmem:[%s336 + $0xfb8] sm:$0xff]
        %v1345 = vld [vmem:[%s336 + $0xfc0] sm:$0xff]
        %v1346 = vld [vmem:[%s336 + $0xfc8] sm:$0xff]
        %v1347 = vld [vmem:[%s336 + $0xfd0] sm:$0xff]
        %v1348 = vld [vmem:[%s336 + $0xfd8] sm:$0xff]
        %v1349 = vld [vmem:[%s336 + $0xfe0] sm:$0xff]
        %v1350 = vld [vmem:[%s336 + $0xfe8] sm:$0xff]
        %v1351 = vld [vmem:[%s336 + $0xff0] sm:$0xff]
        %v1352 = vld [vmem:[%s336 + $0xff8] sm:$0xff]
        %v1353 = vld [vmem:[%s336 + $0x1000] sm:$0xff]
        %v1354 = vld [vmem:[%s336 + $0x1008] sm:$0xff]
        %v1355 = vld [vmem:[%s336 + $0x1010] sm:$0xff]
        %v1356 = vld [vmem:[%s336 + $0x1018] sm:$0xff]
        %v1357 = vld [vmem:[%s336 + $0x1020] sm:$0xff]
        %v1358 = vld [vmem:[%s336 + $0x1028] sm:$0xff]
        %v1359 = vld [vmem:[%s336 + $0x1030] sm:$0xff]
        %v1360 = vld [vmem:[%s336 + $0x1038] sm:$0xff]
        %v1361 = vld [vmem:[%s336 + $0x1040] sm:$0xff]
        %v1362 = vld [vmem:[%s336 + $0x1048] sm:$0xff]
        %v1363 = vld [vmem:[%s336 + $0x1050] sm:$0xff]
        %v1364 = vld [vmem:[%s336 + $0x1058] sm:$0xff]
        %v1365 = vld [vmem:[%s336 + $0x1060] sm:$0xff]
        %v1366 = vld [vmem:[%s336 + $0x1068] sm:$0xff]
        %v1367 = vld [vmem:[%s336 + $0x1070] sm:$0xff]
        %v1368 = vld [vmem:[%s336 + $0x1078] sm:$0xff]
        %v1369 = vld [vmem:[%s336 + $0x1080] sm:$0xff]
        %v1370 = vld [vmem:[%s336 + $0x1088] sm:$0xff]
        %v1371 = vld [vmem:[%s336 + $0x1090] sm:$0xff]
        %v1372 = vld [vmem:[%s336 + $0x1098] sm:$0xff]
        %v1373 = vld [vmem:[%s336 + $0x10a0] sm:$0xff]
        %v1374 = vld [vmem:[%s336 + $0x10a8] sm:$0xff]
        %v1375 = vld [vmem:[%s336 + $0x10b0] sm:$0xff]
        %v1376 = vld [vmem:[%s336 + $0x10b8] sm:$0xff]
        %v1377 = vld [vmem:[%s336 + $0x10c0] sm:$0xff]
        %v1378 = vld [vmem:[%s336 + $0x10c8] sm:$0xff]
        %v1379 = vld [vmem:[%s336 + $0x10d0] sm:$0xff]
        %v1380 = vld [vmem:[%s336 + $0x10d8] sm:$0xff]
        %v1381 = vld [vmem:[%s336 + $0x10e0] sm:$0xff]
        %v1382 = vld [vmem:[%s336 + $0x10e8] sm:$0xff]
        %v1383 = vld [vmem:[%s336 + $0x10f0] sm:$0xff]
        %v1384 = vld [vmem:[%s336 + $0x10f8] sm:$0xff]
        %v1385 = vld [vmem:[%s336 + $0x1100] sm:$0xff]
        %v1386 = vld [vmem:[%s336 + $0x1108] sm:$0xff]
        %v1387 = vld [vmem:[%s336 + $0x1110] sm:$0xff]
        %v1388 = vld [vmem:[%s336 + $0x1118] sm:$0xff]
        %v1389 = vld [vmem:[%s336 + $0x1120] sm:$0xff]
        %v1390 = vld [vmem:[%s336 + $0x1128] sm:$0xff]
        %v1391 = vld [vmem:[%s336 + $0x1130] sm:$0xff]
        %v1392 = vld [vmem:[%s336 + $0x1138] sm:$0xff]
        %v1393 = vld [vmem:[%s336 + $0x1140] sm:$0xff]
        %v1394 = vld [vmem:[%s336 + $0x1148] sm:$0xff]
        %v1395 = vld [vmem:[%s336 + $0x1150] sm:$0xff]
        %v1396 = vld [vmem:[%s336 + $0x1158] sm:$0xff]
        %v1397 = vld [vmem:[%s336 + $0x1160] sm:$0xff]
        %v1398 = vld [vmem:[%s336 + $0x1168] sm:$0xff]
        %v1399 = vld [vmem:[%s336 + $0x1170] sm:$0xff]
        %v1400 = vld [vmem:[%s336 + $0x1178] sm:$0xff]
        %v1401 = vld [vmem:[%s336 + $0x1180] sm:$0xff]
        %v1402 = vld [vmem:[%s336 + $0x1188] sm:$0xff]
        %v1403 = vld [vmem:[%s336 + $0x1190] sm:$0xff]
        %v1404 = vld [vmem:[%s336 + $0x1198] sm:$0xff]
        %v1405 = vld [vmem:[%s336 + $0x11a0] sm:$0xff]
        %v1406 = vld [vmem:[%s336 + $0x11a8] sm:$0xff]
        %v1407 = vld [vmem:[%s336 + $0x11b0] sm:$0xff]
        %v1408 = vld [vmem:[%s336 + $0x11b8] sm:$0xff]
        %v1409 = vld [vmem:[%s336 + $0x11c0] sm:$0xff]
        %v1410 = vld [vmem:[%s336 + $0x11c8] sm:$0xff]
        %v1411 = vld [vmem:[%s336 + $0x11d0] sm:$0xff]
        %v1412 = vld [vmem:[%s336 + $0x11d8] sm:$0xff]
        %v1413 = vld [vmem:[%s336 + $0x11e0] sm:$0xff]
        %v1414 = vld [vmem:[%s336 + $0x11e8] sm:$0xff]
        %v1415 = vld [vmem:[%s336 + $0x11f0] sm:$0xff]
        %v1416 = vld [vmem:[%s336 + $0x11f8] sm:$0xff]
        %v1417 = vld [vmem:[%s336 + $0x1200] sm:$0xff]
        %v1418 = vld [vmem:[%s336 + $0x1208] sm:$0xff]
        %v1419 = vld [vmem:[%s336 + $0x1210] sm:$0xff]
        %v1420 = vld [vmem:[%s336 + $0x1218] sm:$0xff]
        %v1421 = vld [vmem:[%s336 + $0x1220] sm:$0xff]
        %v1422 = vld [vmem:[%s336 + $0x1228] sm:$0xff]
        %v1423 = vld [vmem:[%s336 + $0x1230] sm:$0xff]
        %v1424 = vld [vmem:[%s336 + $0x1238] sm:$0xff]
        %v1425 = vld [vmem:[%s336 + $0x1240] sm:$0xff]
        %v1426 = vld [vmem:[%s336 + $0x1248] sm:$0xff]
        %v1427 = vld [vmem:[%s336 + $0x1250] sm:$0xff]
        %v1428 = vld [vmem:[%s336 + $0x1258] sm:$0xff]
        %v1429 = vld [vmem:[%s336 + $0x1260] sm:$0xff]
        %v1430 = vld [vmem:[%s336 + $0x1268] sm:$0xff]
        %v1431 = vld [vmem:[%s336 + $0x1270] sm:$0xff]
        %v1432 = vld [vmem:[%s336 + $0x1278] sm:$0xff]
        %v1433 = vld [vmem:[%s336 + $0x1280] sm:$0xff]
        %v1434 = vld [vmem:[%s336 + $0x1288] sm:$0xff]
        %v1435 = vld [vmem:[%s336 + $0x1290] sm:$0xff]
        %v1436 = vld [vmem:[%s336 + $0x1298] sm:$0xff]
        %v1437 = vld [vmem:[%s336 + $0x12a0] sm:$0xff]
        %v1438 = vld [vmem:[%s336 + $0x12a8] sm:$0xff]
        %v1439 = vld [vmem:[%s336 + $0x12b0] sm:$0xff]
        %v1440 = vld [vmem:[%s336 + $0x12b8] sm:$0xff]
        %v1441 = vld [vmem:[%s336 + $0x12c0] sm:$0xff]
        %v1442 = vld [vmem:[%s336 + $0x12c8] sm:$0xff]
        %v1443 = vld [vmem:[%s336 + $0x12d0] sm:$0xff]
        %v1444 = vld [vmem:[%s336 + $0x12d8] sm:$0xff]
        %v1445 = vld [vmem:[%s336 + $0x12e0] sm:$0xff]
        %v1446 = vld [vmem:[%s336 + $0x12e8] sm:$0xff]
        %v1447 = vld [vmem:[%s336 + $0x12f0] sm:$0xff]
        %v1448 = vld [vmem:[%s336 + $0x12f8] sm:$0xff]
        %v1449 = vld [vmem:[%s336 + $0x1300] sm:$0xff]
        %v1450 = vld [vmem:[%s336 + $0x1308] sm:$0xff]
        %v1451 = vld [vmem:[%s336 + $0x1310] sm:$0xff]
        %v1452 = vld [vmem:[%s336 + $0x1318] sm:$0xff]
        %v1453 = vld [vmem:[%s336 + $0x1320] sm:$0xff]
        %v1454 = vld [vmem:[%s336 + $0x1328] sm:$0xff]
        %v1455 = vld [vmem:[%s336 + $0x1330] sm:$0xff]
        %v1456 = vld [vmem:[%s336 + $0x1338] sm:$0xff]
        %v1457 = vld [vmem:[%s336 + $0x1340] sm:$0xff]
        %v1458 = vld [vmem:[%s336 + $0x1348] sm:$0xff]
        %v1459 = vld [vmem:[%s336 + $0x1350] sm:$0xff]
        %v1460 = vld [vmem:[%s336 + $0x1358] sm:$0xff]
        %v1461 = vld [vmem:[%s336 + $0x1360] sm:$0xff]
        %v1462 = vld [vmem:[%s336 + $0x1368] sm:$0xff]
        %v1463 = vld [vmem:[%s336 + $0x1370] sm:$0xff]
        %v1464 = vld [vmem:[%s336 + $0x1378] sm:$0xff]
        %v1465 = vld [vmem:[%s336 + $0x1380] sm:$0xff]
        %v1466 = vld [vmem:[%s336 + $0x1388] sm:$0xff]
        %v1467 = vld [vmem:[%s336 + $0x1390] sm:$0xff]
        %v1468 = vld [vmem:[%s336 + $0x1398] sm:$0xff]
        %v1469 = vld [vmem:[%s336 + $0x13a0] sm:$0xff]
        %v1470 = vld [vmem:[%s336 + $0x13a8] sm:$0xff]
        %v1471 = vld [vmem:[%s336 + $0x13b0] sm:$0xff]
        %v1472 = vld [vmem:[%s336 + $0x13b8] sm:$0xff]
        %v1473 = vld [vmem:[%s336 + $0x13c0] sm:$0xff]
        %v1474 = vld [vmem:[%s336 + $0x13c8] sm:$0xff]
        %v1475 = vld [vmem:[%s336 + $0x13d0] sm:$0xff]
        %v1476 = vld [vmem:[%s336 + $0x13d8] sm:$0xff]
        %v1477 = vld [vmem:[%s336 + $0x13e0] sm:$0xff]
        %v1478 = vld [vmem:[%s336 + $0x13e8] sm:$0xff]
        %v1479 = vld [vmem:[%s336 + $0x13f0] sm:$0xff]
        %v1480 = vld [vmem:[%s336 + $0x13f8] sm:$0xff]
        %v1481 = vld [vmem:[%s336 + $0x1400] sm:$0xff]
        %v1482 = vld [vmem:[%s336 + $0x1408] sm:$0xff]
        %v1483 = vld [vmem:[%s336 + $0x1410] sm:$0xff]
        %v1484 = vld [vmem:[%s336 + $0x1418] sm:$0xff]
        %v1485 = vld [vmem:[%s336 + $0x1420] sm:$0xff]
        %v1486 = vld [vmem:[%s336 + $0x1428] sm:$0xff]
        %v1487 = vld [vmem:[%s336 + $0x1430] sm:$0xff]
        %v1488 = vld [vmem:[%s336 + $0x1438] sm:$0xff]
        %v1489 = vld [vmem:[%s336 + $0x1440] sm:$0xff]
        %v1490 = vld [vmem:[%s336 + $0x1448] sm:$0xff]
        %v1491 = vld [vmem:[%s336 + $0x1450] sm:$0xff]
        %v1492 = vld [vmem:[%s336 + $0x1458] sm:$0xff]
        %v1493 = vld [vmem:[%s336 + $0x1460] sm:$0xff]
        %v1494 = vld [vmem:[%s336 + $0x1468] sm:$0xff]
        %v1495 = vld [vmem:[%s336 + $0x1470] sm:$0xff]
        %v1496 = vld [vmem:[%s336 + $0x1478] sm:$0xff]
        %v1497 = vld [vmem:[%s336 + $0x1480] sm:$0xff]
        %v1498 = vld [vmem:[%s336 + $0x1488] sm:$0xff]
        %v1499 = vld [vmem:[%s336 + $0x1490] sm:$0xff]
        %v1500 = vld [vmem:[%s336 + $0x1498] sm:$0xff]
        %v1501 = vld [vmem:[%s336 + $0x14a0] sm:$0xff]
        %v1502 = vld [vmem:[%s336 + $0x14a8] sm:$0xff]
        %v1503 = vld [vmem:[%s336 + $0x14b0] sm:$0xff]
        %v1504 = vld [vmem:[%s336 + $0x14b8] sm:$0xff]
        %v1505 = vld [vmem:[%s336 + $0x14c0] sm:$0xff]
        %v1506 = vld [vmem:[%s336 + $0x14c8] sm:$0xff]
        %v1507 = vld [vmem:[%s336 + $0x14d0] sm:$0xff]
        %v1508 = vld [vmem:[%s336 + $0x14d8] sm:$0xff]
        %v1509 = vld [vmem:[%s336 + $0x14e0] sm:$0xff]
        %v1510 = vld [vmem:[%s336 + $0x14e8] sm:$0xff]
        %v1511 = vld [vmem:[%s336 + $0x14f0] sm:$0xff]
        %v1512 = vld [vmem:[%s336 + $0x14f8] sm:$0xff]
        %v1513 = vld [vmem:[%s336 + $0x1500] sm:$0xff]
        %v1514 = vld [vmem:[%s336 + $0x1508] sm:$0xff]
        %v1515 = vld [vmem:[%s336 + $0x1510] sm:$0xff]
        %v1516 = vld [vmem:[%s336 + $0x1518] sm:$0xff]
        %v1517 = vld [vmem:[%s336 + $0x1520] sm:$0xff]
        %v1518 = vld [vmem:[%s336 + $0x1528] sm:$0xff]
        %v1519 = vld [vmem:[%s336 + $0x1530] sm:$0xff]
        %v1520 = vld [vmem:[%s336 + $0x1538] sm:$0xff]
        %v1521 = vld [vmem:[%s336 + $0x1540] sm:$0xff]
        %v1522 = vld [vmem:[%s336 + $0x1548] sm:$0xff]
        %v1523 = vld [vmem:[%s336 + $0x1550] sm:$0xff]
        %v1524 = vld [vmem:[%s336 + $0x1558] sm:$0xff]
        %v1525 = vld [vmem:[%s336 + $0x1560] sm:$0xff]
        %v1526 = vld [vmem:[%s336 + $0x1568] sm:$0xff]
        %v1527 = vld [vmem:[%s336 + $0x1570] sm:$0xff]
        %v1528 = vld [vmem:[%s336 + $0x1578] sm:$0xff]
        %v1529 = vld [vmem:[%s336 + $0x1580] sm:$0xff]
        %v1530 = vld [vmem:[%s336 + $0x1588] sm:$0xff]
        %v1531 = vld [vmem:[%s336 + $0x1590] sm:$0xff]
        %v1532 = vld [vmem:[%s336 + $0x1598] sm:$0xff]
        %v1533 = vld [vmem:[%s336 + $0x15a0] sm:$0xff]
        %v1534 = vld [vmem:[%s336 + $0x15a8] sm:$0xff]
        %v1535 = vld [vmem:[%s336 + $0x15b0] sm:$0xff]
        %v1536 = vld [vmem:[%s336 + $0x15b8] sm:$0xff]
        %v1537 = vld [vmem:[%s336 + $0x15c0] sm:$0xff]
        %v1538 = vld [vmem:[%s336 + $0x15c8] sm:$0xff]
        %v1539 = vld [vmem:[%s336 + $0x15d0] sm:$0xff]
        %v1540 = vld [vmem:[%s336 + $0x15d8] sm:$0xff]
        %v1541 = vld [vmem:[%s336 + $0x15e0] sm:$0xff]
        %v1542 = vld [vmem:[%s336 + $0x15e8] sm:$0xff]
        %v1543 = vld [vmem:[%s336 + $0x15f0] sm:$0xff]
        %v1544 = vld [vmem:[%s336 + $0x15f8] sm:$0xff]
        %v1545 = vld [vmem:[%s336 + $0x1600] sm:$0xff]
        %v1546 = vld [vmem:[%s336 + $0x1608] sm:$0xff]
        %v1547 = vld [vmem:[%s336 + $0x1610] sm:$0xff]
        %v1548 = vld [vmem:[%s336 + $0x1618] sm:$0xff]
        %v1549 = vld [vmem:[%s336 + $0x1620] sm:$0xff]
        %v1550 = vld [vmem:[%s336 + $0x1628] sm:$0xff]
        %v1551 = vld [vmem:[%s336 + $0x1630] sm:$0xff]
        %v1552 = vld [vmem:[%s336 + $0x1638] sm:$0xff]
        %v1553 = vld [vmem:[%s336 + $0x1640] sm:$0xff]
        %v1554 = vld [vmem:[%s336 + $0x1648] sm:$0xff]
        %v1555 = vld [vmem:[%s336 + $0x1650] sm:$0xff]
        %v1556 = vld [vmem:[%s336 + $0x1658] sm:$0xff]
        %v1557 = vld [vmem:[%s336 + $0x1660] sm:$0xff]
        %v1558 = vld [vmem:[%s336 + $0x1668] sm:$0xff]
        %v1559 = vld [vmem:[%s336 + $0x1670] sm:$0xff]
        %v1560 = vld [vmem:[%s336 + $0x1678] sm:$0xff]
        %v1561 = vld [vmem:[%s336 + $0x1680] sm:$0xff]
        %v1562 = vld [vmem:[%s336 + $0x1688] sm:$0xff]
        %v1563 = vld [vmem:[%s336 + $0x1690] sm:$0xff]
        %v1564 = vld [vmem:[%s336 + $0x1698] sm:$0xff]
        %v1565 = vld [vmem:[%s336 + $0x16a0] sm:$0xff]
        %v1566 = vld [vmem:[%s336 + $0x16a8] sm:$0xff]
        %v1567 = vld [vmem:[%s336 + $0x16b0] sm:$0xff]
        %v1568 = vld [vmem:[%s336 + $0x16b8] sm:$0xff]
        %v1569 = vld [vmem:[%s336 + $0x16c0] sm:$0xff]
        %v1570 = vld [vmem:[%s336 + $0x16c8] sm:$0xff]
        %v1571 = vld [vmem:[%s336 + $0x16d0] sm:$0xff]
        %v1572 = vld [vmem:[%s336 + $0x16d8] sm:$0xff]
        %v1573 = vld [vmem:[%s336 + $0x16e0] sm:$0xff]
        %v1574 = vld [vmem:[%s336 + $0x16e8] sm:$0xff]
        %v1575 = vld [vmem:[%s336 + $0x16f0] sm:$0xff]
        %v1576 = vld [vmem:[%s336 + $0x16f8] sm:$0xff]
        %v1577 = vld [vmem:[%s336 + $0x1700] sm:$0xff]
        %v1578 = vld [vmem:[%s336 + $0x1708] sm:$0xff]
        %v1579 = vld [vmem:[%s336 + $0x1710] sm:$0xff]
        %v1580 = vld [vmem:[%s336 + $0x1718] sm:$0xff]
        %v1581 = vld [vmem:[%s336 + $0x1720] sm:$0xff]
        %v1582 = vld [vmem:[%s336 + $0x1728] sm:$0xff]
        %v1583 = vld [vmem:[%s336 + $0x1730] sm:$0xff]
        %v1584 = vld [vmem:[%s336 + $0x1738] sm:$0xff]
        %v1585 = vld [vmem:[%s336 + $0x1740] sm:$0xff]
        %v1586 = vld [vmem:[%s336 + $0x1748] sm:$0xff]
        %v1587 = vld [vmem:[%s336 + $0x1750] sm:$0xff]
        %v1588 = vld [vmem:[%s336 + $0x1758] sm:$0xff]
        %v1589 = vld [vmem:[%s336 + $0x1760] sm:$0xff]
        %v1590 = vld [vmem:[%s336 + $0x1768] sm:$0xff]
        %v1591 = vld [vmem:[%s336 + $0x1770] sm:$0xff]
        %v1592 = vld [vmem:[%s336 + $0x1778] sm:$0xff]
        %v1593 = vld [vmem:[%s336 + $0x1780] sm:$0xff]
        %v1594 = vld [vmem:[%s336 + $0x1788] sm:$0xff]
        %v1595 = vld [vmem:[%s336 + $0x1790] sm:$0xff]
        %v1596 = vld [vmem:[%s336 + $0x1798] sm:$0xff]
        %v1597 = vld [vmem:[%s336 + $0x17a0] sm:$0xff]
        %v1598 = vld [vmem:[%s336 + $0x17a8] sm:$0xff]
        %v1599 = vld [vmem:[%s336 + $0x17b0] sm:$0xff]
        %v1600 = vld [vmem:[%s336 + $0x17b8] sm:$0xff]
        %v1601 = vld [vmem:[%s336 + $0x17c0] sm:$0xff]
        %v1602 = vld [vmem:[%s336 + $0x17c8] sm:$0xff]
        %v1603 = vld [vmem:[%s336 + $0x17d0] sm:$0xff]
        %v1604 = vld [vmem:[%s336 + $0x17d8] sm:$0xff]
        %v1605 = vld [vmem:[%s336 + $0x17e0] sm:$0xff]
        %v1606 = vld [vmem:[%s336 + $0x17e8] sm:$0xff]
        %v1607 = vld [vmem:[%s336 + $0x17f0] sm:$0xff]
        %v1608 = vld [vmem:[%s336 + $0x17f8] sm:$0xff]
        %v1609 = vld [vmem:[%s336 + $0x1800] sm:$0xff]
        %v1610 = vld [vmem:[%s336 + $0x1808] sm:$0xff]
        %v1611 = vld [vmem:[%s336 + $0x1810] sm:$0xff]
        %v1612 = vld [vmem:[%s336 + $0x1818] sm:$0xff]
        %v1613 = vld [vmem:[%s336 + $0x1820] sm:$0xff]
        %v1614 = vld [vmem:[%s336 + $0x1828] sm:$0xff]
        %v1615 = vld [vmem:[%s336 + $0x1830] sm:$0xff]
        %v1616 = vld [vmem:[%s336 + $0x1838] sm:$0xff]
        %v1617 = vld [vmem:[%s336 + $0x1840] sm:$0xff]
        %v1618 = vld [vmem:[%s336 + $0x1848] sm:$0xff]
        %v1619 = vld [vmem:[%s336 + $0x1850] sm:$0xff]
        %v1620 = vld [vmem:[%s336 + $0x1858] sm:$0xff]
        %v1621 = vld [vmem:[%s336 + $0x1860] sm:$0xff]
        %v1622 = vld [vmem:[%s336 + $0x1868] sm:$0xff]
        %v1623 = vld [vmem:[%s336 + $0x1870] sm:$0xff]
        %v1624 = vld [vmem:[%s336 + $0x1878] sm:$0xff]
        %v1625 = vld [vmem:[%s336 + $0x1880] sm:$0xff]
        %v1626 = vld [vmem:[%s336 + $0x1888] sm:$0xff]
        %v1627 = vld [vmem:[%s336 + $0x1890] sm:$0xff]
        %v1628 = vld [vmem:[%s336 + $0x1898] sm:$0xff]
        %v1629 = vld [vmem:[%s336 + $0x18a0] sm:$0xff]
        %v1630 = vld [vmem:[%s336 + $0x18a8] sm:$0xff]
        %v1631 = vld [vmem:[%s336 + $0x18b0] sm:$0xff]
        %v1632 = vld [vmem:[%s336 + $0x18b8] sm:$0xff]
        %v1633 = vld [vmem:[%s336 + $0x18c0] sm:$0xff]
        %v1634 = vld [vmem:[%s336 + $0x18c8] sm:$0xff]
        %v1635 = vld [vmem:[%s336 + $0x18d0] sm:$0xff]
        %v1636 = vld [vmem:[%s336 + $0x18d8] sm:$0xff]
        %v1637 = vld [vmem:[%s336 + $0x18e0] sm:$0xff]
        %v1638 = vld [vmem:[%s336 + $0x18e8] sm:$0xff]
        %v1639 = vld [vmem:[%s336 + $0x18f0] sm:$0xff]
        %v1640 = vld [vmem:[%s336 + $0x18f8] sm:$0xff]
        %v1641 = vld [vmem:[%s336 + $0x1900] sm:$0xff]
        %v1642 = vld [vmem:[%s336 + $0x1908] sm:$0xff]
        %v1643 = vld [vmem:[%s336 + $0x1910] sm:$0xff]
        %v1644 = vld [vmem:[%s336 + $0x1918] sm:$0xff]
        %v1645 = vld [vmem:[%s336 + $0x1920] sm:$0xff]
        %v1646 = vld [vmem:[%s336 + $0x1928] sm:$0xff]
        %v1647 = vld [vmem:[%s336 + $0x1930] sm:$0xff]
        %v1648 = vld [vmem:[%s336 + $0x1938] sm:$0xff]
        %v1649 = vld [vmem:[%s336 + $0x1940] sm:$0xff]
        %v1650 = vld [vmem:[%s336 + $0x1948] sm:$0xff]
        %v1651 = vld [vmem:[%s336 + $0x1950] sm:$0xff]
        %v1652 = vld [vmem:[%s336 + $0x1958] sm:$0xff]
        %v1653 = vld [vmem:[%s336 + $0x1960] sm:$0xff]
        %v1654 = vld [vmem:[%s336 + $0x1968] sm:$0xff]
        %v1655 = vld [vmem:[%s336 + $0x1970] sm:$0xff]
        %v1656 = vld [vmem:[%s336 + $0x1978] sm:$0xff]
        %v1657 = vld [vmem:[%s336 + $0x1980] sm:$0xff]
        %v1658 = vld [vmem:[%s336 + $0x1988] sm:$0xff]
        %v1659 = vld [vmem:[%s336 + $0x1990] sm:$0xff]
        %v1660 = vld [vmem:[%s336 + $0x1998] sm:$0xff]
        %v1661 = vld [vmem:[%s336 + $0x19a0] sm:$0xff]
        %v1662 = vld [vmem:[%s336 + $0x19a8] sm:$0xff]
        %v1663 = vld [vmem:[%s336 + $0x19b0] sm:$0xff]
        %v1664 = vld [vmem:[%s336 + $0x19b8] sm:$0xff]
        %v1665 = vld [vmem:[%s336 + $0x19c0] sm:$0xff]
        %v1666 = vld [vmem:[%s336 + $0x19c8] sm:$0xff]
        %v1667 = vld [vmem:[%s336 + $0x19d0] sm:$0xff]
        %v1668 = vld [vmem:[%s336 + $0x19d8] sm:$0xff]
        %v1669 = vld [vmem:[%s336 + $0x19e0] sm:$0xff]
        %v1670 = vld [vmem:[%s336 + $0x19e8] sm:$0xff]
        %v1671 = vld [vmem:[%s336 + $0x19f0] sm:$0xff]
        %v1672 = vld [vmem:[%s336 + $0x19f8] sm:$0xff]
        %v1673 = vld [vmem:[%s336 + $0x1a00] sm:$0xff]
        %v1674 = vld [vmem:[%s336 + $0x1a08] sm:$0xff]
        %v1675 = vld [vmem:[%s336 + $0x1a10] sm:$0xff]
        %v1676 = vld [vmem:[%s336 + $0x1a18] sm:$0xff]
        %v1677 = vld [vmem:[%s336 + $0x1a20] sm:$0xff]
        %v1678 = vld [vmem:[%s336 + $0x1a28] sm:$0xff]
        %v1679 = vld [vmem:[%s336 + $0x1a30] sm:$0xff]
        %v1680 = vld [vmem:[%s336 + $0x1a38] sm:$0xff]
        %v1681 = vld [vmem:[%s336 + $0x1a40] sm:$0xff]
        %v1682 = vld [vmem:[%s336 + $0x1a48] sm:$0xff]
        %v1683 = vld [vmem:[%s336 + $0x1a50] sm:$0xff]
        %v1684 = vld [vmem:[%s336 + $0x1a58] sm:$0xff]
        %v1685 = vld [vmem:[%s336 + $0x1a60] sm:$0xff]
        %v1686 = vld [vmem:[%s336 + $0x1a68] sm:$0xff]
        %v1687 = vld [vmem:[%s336 + $0x1a70] sm:$0xff]
        %v1688 = vld [vmem:[%s336 + $0x1a78] sm:$0xff]
        %v1689 = vld [vmem:[%s336 + $0x1a80] sm:$0xff]
        %v1690 = vld [vmem:[%s336 + $0x1a88] sm:$0xff]
        %v1691 = vld [vmem:[%s336 + $0x1a90] sm:$0xff]
        %v1692 = vld [vmem:[%s336 + $0x1a98] sm:$0xff]
        %v1693 = vld [vmem:[%s336 + $0x1aa0] sm:$0xff]
        %v1694 = vld [vmem:[%s336 + $0x1aa8] sm:$0xff]
        %v1695 = vld [vmem:[%s336 + $0x1ab0] sm:$0xff]
        %v1696 = vld [vmem:[%s336 + $0x1ab8] sm:$0xff]
        %v1697 = vld [vmem:[%s336 + $0x1ac0] sm:$0xff]
        %v1698 = vld [vmem:[%s336 + $0x1ac8] sm:$0xff]
        %v1699 = vld [vmem:[%s336 + $0x1ad0] sm:$0xff]
        %v1700 = vld [vmem:[%s336 + $0x1ad8] sm:$0xff]
        %v1701 = vld [vmem:[%s336 + $0x1ae0] sm:$0xff]
        %v1702 = vld [vmem:[%s336 + $0x1ae8] sm:$0xff]
        %v1703 = vld [vmem:[%s336 + $0x1af0] sm:$0xff]
        %v1704 = vld [vmem:[%s336 + $0x1af8] sm:$0xff]
        %v1705 = vld [vmem:[%s336 + $0x1b00] sm:$0xff]
        %v1706 = vld [vmem:[%s336 + $0x1b08] sm:$0xff]
        %v1707 = vld [vmem:[%s336 + $0x1b10] sm:$0xff]
        %v1708 = vld [vmem:[%s336 + $0x1b18] sm:$0xff]
        %v1709 = vld [vmem:[%s336 + $0x1b20] sm:$0xff]
        %v1710 = vld [vmem:[%s336 + $0x1b28] sm:$0xff]
        %v1711 = vld [vmem:[%s336 + $0x1b30] sm:$0xff]
        %v1712 = vld [vmem:[%s336 + $0x1b38] sm:$0xff]
        %v1713 = vld [vmem:[%s336 + $0x1b40] sm:$0xff]
        %v1714 = vld [vmem:[%s336 + $0x1b48] sm:$0xff]
        %v1715 = vld [vmem:[%s336 + $0x1b50] sm:$0xff]
        %v1716 = vld [vmem:[%s336 + $0x1b58] sm:$0xff]
        %v1717 = vld [vmem:[%s336 + $0x1b60] sm:$0xff]
        %v1718 = vld [vmem:[%s336 + $0x1b68] sm:$0xff]
        %v1719 = vld [vmem:[%s336 + $0x1b70] sm:$0xff]
        %v1720 = vld [vmem:[%s336 + $0x1b78] sm:$0xff]
        %v1721 = vld [vmem:[%s336 + $0x1b80] sm:$0xff]
        %v1722 = vld [vmem:[%s336 + $0x1b88] sm:$0xff]
        %v1723 = vld [vmem:[%s336 + $0x1b90] sm:$0xff]
        %v1724 = vld [vmem:[%s336 + $0x1b98] sm:$0xff]
        %v1725 = vld [vmem:[%s336 + $0x1ba0] sm:$0xff]
        %v1726 = vld [vmem:[%s336 + $0x1ba8] sm:$0xff]
        %v1727 = vld [vmem:[%s336 + $0x1bb0] sm:$0xff]
        %v1728 = vld [vmem:[%s336 + $0x1bb8] sm:$0xff]
        %v1729 = vld [vmem:[%s336 + $0x1bc0] sm:$0xff]
        %v1730 = vld [vmem:[%s336 + $0x1bc8] sm:$0xff]
        %v1731 = vld [vmem:[%s336 + $0x1bd0] sm:$0xff]
        %v1732 = vld [vmem:[%s336 + $0x1bd8] sm:$0xff]
        %v1733 = vld [vmem:[%s336 + $0x1be0] sm:$0xff]
        %v1734 = vld [vmem:[%s336 + $0x1be8] sm:$0xff]
        %v1735 = vld [vmem:[%s336 + $0x1bf0] sm:$0xff]
        %v1736 = vld [vmem:[%s336 + $0x1bf8] sm:$0xff]
        %v1737 = vld [vmem:[%s336 + $0x1c00] sm:$0xff]
        %v1738 = vld [vmem:[%s336 + $0x1c08] sm:$0xff]
        %v1739 = vld [vmem:[%s336 + $0x1c10] sm:$0xff]
        %v1740 = vld [vmem:[%s336 + $0x1c18] sm:$0xff]
        %v1741 = vld [vmem:[%s336 + $0x1c20] sm:$0xff]
        %v1742 = vld [vmem:[%s336 + $0x1c28] sm:$0xff]
        %v1743 = vld [vmem:[%s336 + $0x1c30] sm:$0xff]
        %v1744 = vld [vmem:[%s336 + $0x1c38] sm:$0xff]
        %v1745 = vld [vmem:[%s336 + $0x1c40] sm:$0xff]
        %v1746 = vld [vmem:[%s336 + $0x1c48] sm:$0xff]
        %v1747 = vld [vmem:[%s336 + $0x1c50] sm:$0xff]
        %v1748 = vld [vmem:[%s336 + $0x1c58] sm:$0xff]
        %v1749 = vld [vmem:[%s336 + $0x1c60] sm:$0xff]
        %v1750 = vld [vmem:[%s336 + $0x1c68] sm:$0xff]
        %v1751 = vld [vmem:[%s336 + $0x1c70] sm:$0xff]
        %v1752 = vld [vmem:[%s336 + $0x1c78] sm:$0xff]
        %v1753 = vld [vmem:[%s336 + $0x1c80] sm:$0xff]
        %v1754 = vld [vmem:[%s336 + $0x1c88] sm:$0xff]
        %v1755 = vld [vmem:[%s336 + $0x1c90] sm:$0xff]
        %v1756 = vld [vmem:[%s336 + $0x1c98] sm:$0xff]
        %v1757 = vld [vmem:[%s336 + $0x1ca0] sm:$0xff]
        %v1758 = vld [vmem:[%s336 + $0x1ca8] sm:$0xff]
        %v1759 = vld [vmem:[%s336 + $0x1cb0] sm:$0xff]
        %v1760 = vld [vmem:[%s336 + $0x1cb8] sm:$0xff]
        %v1761 = vld [vmem:[%s336 + $0x1cc0] sm:$0xff]
        %v1762 = vld [vmem:[%s336 + $0x1cc8] sm:$0xff]
        %v1763 = vld [vmem:[%s336 + $0x1cd0] sm:$0xff]
        %v1764 = vld [vmem:[%s336 + $0x1cd8] sm:$0xff]
        %v1765 = vld [vmem:[%s336 + $0x1ce0] sm:$0xff]
        %v1766 = vld [vmem:[%s336 + $0x1ce8] sm:$0xff]
        %v1767 = vld [vmem:[%s336 + $0x1cf0] sm:$0xff]
        %v1768 = vld [vmem:[%s336 + $0x1cf8] sm:$0xff]
        %v1769 = vld [vmem:[%s336 + $0x1d00] sm:$0xff]
        %v1770 = vld [vmem:[%s336 + $0x1d08] sm:$0xff]
        %v1771 = vld [vmem:[%s336 + $0x1d10] sm:$0xff]
        %v1772 = vld [vmem:[%s336 + $0x1d18] sm:$0xff]
        %v1773 = vld [vmem:[%s336 + $0x1d20] sm:$0xff]
        %v1774 = vld [vmem:[%s336 + $0x1d28] sm:$0xff]
        %v1775 = vld [vmem:[%s336 + $0x1d30] sm:$0xff]
        %v1776 = vld [vmem:[%s336 + $0x1d38] sm:$0xff]
        %v1777 = vld [vmem:[%s336 + $0x1d40] sm:$0xff]
        %v1778 = vld [vmem:[%s336 + $0x1d48] sm:$0xff]
        %v1779 = vld [vmem:[%s336 + $0x1d50] sm:$0xff]
        %v1780 = vld [vmem:[%s336 + $0x1d58] sm:$0xff]
        %v1781 = vld [vmem:[%s336 + $0x1d60] sm:$0xff]
        %v1782 = vld [vmem:[%s336 + $0x1d68] sm:$0xff]
        %v1783 = vld [vmem:[%s336 + $0x1d70] sm:$0xff]
        %v1784 = vld [vmem:[%s336 + $0x1d78] sm:$0xff]
        %v1785 = vld [vmem:[%s336 + $0x1d80] sm:$0xff]
        %v1786 = vld [vmem:[%s336 + $0x1d88] sm:$0xff]
        %v1787 = vld [vmem:[%s336 + $0x1d90] sm:$0xff]
        %v1788 = vld [vmem:[%s336 + $0x1d98] sm:$0xff]
        %v1789 = vld [vmem:[%s336 + $0x1da0] sm:$0xff]
        %v1790 = vld [vmem:[%s336 + $0x1da8] sm:$0xff]
        %v1791 = vld [vmem:[%s336 + $0x1db0] sm:$0xff]
        %v1792 = vld [vmem:[%s336 + $0x1db8] sm:$0xff]
        %v1793 = vld [vmem:[%s336 + $0x1dc0] sm:$0xff]
        %v1794 = vld [vmem:[%s336 + $0x1dc8] sm:$0xff]
        %v1795 = vld [vmem:[%s336 + $0x1dd0] sm:$0xff]
        %v1796 = vld [vmem:[%s336 + $0x1dd8] sm:$0xff]
        %v1797 = vld [vmem:[%s336 + $0x1de0] sm:$0xff]
        %v1798 = vld [vmem:[%s336 + $0x1de8] sm:$0xff]
        %v1799 = vld [vmem:[%s336 + $0x1df0] sm:$0xff]
        %v1800 = vld [vmem:[%s336 + $0x1df8] sm:$0xff]
        %v1801 = vld [vmem:[%s336 + $0x1e00] sm:$0xff]
        %v1802 = vld [vmem:[%s336 + $0x1e08] sm:$0xff]
        %v1803 = vld [vmem:[%s336 + $0x1e10] sm:$0xff]
        %v1804 = vld [vmem:[%s336 + $0x1e18] sm:$0xff]
        %v1805 = vld [vmem:[%s336 + $0x1e20] sm:$0xff]
        %v1806 = vld [vmem:[%s336 + $0x1e28] sm:$0xff]
        %v1807 = vld [vmem:[%s336 + $0x1e30] sm:$0xff]
        %v1808 = vld [vmem:[%s336 + $0x1e38] sm:$0xff]
        %v1809 = vld [vmem:[%s336 + $0x1e40] sm:$0xff]
        %v1810 = vld [vmem:[%s336 + $0x1e48] sm:$0xff]
        %v1811 = vld [vmem:[%s336 + $0x1e50] sm:$0xff]
        %v1812 = vld [vmem:[%s336 + $0x1e58] sm:$0xff]
        %v1813 = vld [vmem:[%s336 + $0x1e60] sm:$0xff]
        %v1814 = vld [vmem:[%s336 + $0x1e68] sm:$0xff]
        %v1815 = vld [vmem:[%s336 + $0x1e70] sm:$0xff]
        %v1816 = vld [vmem:[%s336 + $0x1e78] sm:$0xff]
        %v1817 = vld [vmem:[%s336 + $0x1e80] sm:$0xff]
        %v1818 = vld [vmem:[%s336 + $0x1e88] sm:$0xff]
        %v1819 = vld [vmem:[%s336 + $0x1e90] sm:$0xff]
        %v1820 = vld [vmem:[%s336 + $0x1e98] sm:$0xff]
        %v1821 = vld [vmem:[%s336 + $0x1ea0] sm:$0xff]
        %v1822 = vld [vmem:[%s336 + $0x1ea8] sm:$0xff]
        %v1823 = vld [vmem:[%s336 + $0x1eb0] sm:$0xff]
        %v1824 = vld [vmem:[%s336 + $0x1eb8] sm:$0xff]
        %v1825 = vld [vmem:[%s336 + $0x1ec0] sm:$0xff]
        %v1826 = vld [vmem:[%s336 + $0x1ec8] sm:$0xff]
        %v1827 = vld [vmem:[%s336 + $0x1ed0] sm:$0xff]
        %v1828 = vld [vmem:[%s336 + $0x1ed8] sm:$0xff]
        %v1829 = vld [vmem:[%s336 + $0x1ee0] sm:$0xff]
        %v1830 = vld [vmem:[%s336 + $0x1ee8] sm:$0xff]
        %v1831 = vld [vmem:[%s336 + $0x1ef0] sm:$0xff]
        %v1832 = vld [vmem:[%s336 + $0x1ef8] sm:$0xff]
        %v1833 = vld [vmem:[%s336 + $0x1f00] sm:$0xff]
        %v1834 = vld [vmem:[%s336 + $0x1f08] sm:$0xff]
        %v1835 = vld [vmem:[%s336 + $0x1f10] sm:$0xff]
        %v1836 = vld [vmem:[%s336 + $0x1f18] sm:$0xff]
        %v1837 = vld [vmem:[%s336 + $0x1f20] sm:$0xff]
        %v1838 = vld [vmem:[%s336 + $0x1f28] sm:$0xff]
        %v1839 = vld [vmem:[%s336 + $0x1f30] sm:$0xff]
        %v1840 = vld [vmem:[%s336 + $0x1f38] sm:$0xff]
        %v1841 = vld [vmem:[%s336 + $0x1f40] sm:$0xff]
        %v1842 = vld [vmem:[%s336 + $0x1f48] sm:$0xff]
        %v1843 = vld [vmem:[%s336 + $0x1f50] sm:$0xff]
        %v1844 = vld [vmem:[%s336 + $0x1f58] sm:$0xff]
        %v1845 = vld [vmem:[%s336 + $0x1f60] sm:$0xff]
        %v1846 = vld [vmem:[%s336 + $0x1f68] sm:$0xff]
        %v1847 = vld [vmem:[%s336 + $0x1f70] sm:$0xff]
        %v1848 = vld [vmem:[%s336 + $0x1f78] sm:$0xff]
        %v1849 = vld [vmem:[%s336 + $0x1f80] sm:$0xff]
        %v1850 = vld [vmem:[%s336 + $0x1f88] sm:$0xff]
        %v1851 = vld [vmem:[%s336 + $0x1f90] sm:$0xff]
        %v1852 = vld [vmem:[%s336 + $0x1f98] sm:$0xff]
        %v1853 = vld [vmem:[%s336 + $0x1fa0] sm:$0xff]
        %v1854 = vld [vmem:[%s336 + $0x1fa8] sm:$0xff]
        %v1855 = vld [vmem:[%s336 + $0x1fb0] sm:$0xff]
        %v1856 = vld [vmem:[%s336 + $0x1fb8] sm:$0xff]
        %v1857 = vld [vmem:[%s336 + $0x1fc0] sm:$0xff]
        %v1858 = vld [vmem:[%s336 + $0x1fc8] sm:$0xff]
        %v1859 = vld [vmem:[%s336 + $0x1fd0] sm:$0xff]
        %v1860 = vld [vmem:[%s336 + $0x1fd8] sm:$0xff]
        %v1861 = vld [vmem:[%s336 + $0x1fe0] sm:$0xff]
        %v1862 = vld [vmem:[%s336 + $0x1fe8] sm:$0xff]
        %v1863 = vld [vmem:[%s336 + $0x1ff0] sm:$0xff]
        %v1864 = vld [vmem:[%s336 + $0x1ff8] sm:$0xff]
        %v1865 = vld [vmem:[%s336 + $0x2000] sm:$0xff]
        %v1866 = vld [vmem:[%s336 + $0x2008] sm:$0xff]
        %v1867 = vld [vmem:[%s336 + $0x2010] sm:$0xff]
        %v1868 = vld [vmem:[%s336 + $0x2018] sm:$0xff]
        %v1869 = vld [vmem:[%s336 + $0x2020] sm:$0xff]
        %v1870 = vld [vmem:[%s336 + $0x2028] sm:$0xff]
        %v1871 = vld [vmem:[%s336 + $0x2030] sm:$0xff]
        %v1872 = vld [vmem:[%s336 + $0x2038] sm:$0xff]
        %v1873 = vld [vmem:[%s336 + $0x2040] sm:$0xff]
        %v1874 = vld [vmem:[%s336 + $0x2048] sm:$0xff]
        %v1875 = vld [vmem:[%s336 + $0x2050] sm:$0xff]
        %v1876 = vld [vmem:[%s336 + $0x2058] sm:$0xff]
        %v1877 = vld [vmem:[%s336 + $0x2060] sm:$0xff]
        %v1878 = vld [vmem:[%s336 + $0x2068] sm:$0xff]
        %v1879 = vld [vmem:[%s336 + $0x2070] sm:$0xff]
        %v1880 = vld [vmem:[%s336 + $0x2078] sm:$0xff]
        %v1881 = vld [vmem:[%s336 + $0x2080] sm:$0xff]
        %v1882 = vld [vmem:[%s336 + $0x2088] sm:$0xff]
        %v1883 = vld [vmem:[%s336 + $0x2090] sm:$0xff]
        %v1884 = vld [vmem:[%s336 + $0x2098] sm:$0xff]
        %v1885 = vld [vmem:[%s336 + $0x20a0] sm:$0xff]
        %v1886 = vld [vmem:[%s336 + $0x20a8] sm:$0xff]
        %v1887 = vld [vmem:[%s336 + $0x20b0] sm:$0xff]
        %v1888 = vld [vmem:[%s336 + $0x20b8] sm:$0xff]
        %v1889 = vld [vmem:[%s336 + $0x20c0] sm:$0xff]
        %v1890 = vld [vmem:[%s336 + $0x20c8] sm:$0xff]
        %v1891 = vld [vmem:[%s336 + $0x20d0] sm:$0xff]
        %v1892 = vld [vmem:[%s336 + $0x20d8] sm:$0xff]
        %v1893 = vld [vmem:[%s336 + $0x20e0] sm:$0xff]
        %v1894 = vld [vmem:[%s336 + $0x20e8] sm:$0xff]
        %v1895 = vld [vmem:[%s336 + $0x20f0] sm:$0xff]
        %v1896 = vld [vmem:[%s336 + $0x20f8] sm:$0xff]
        %v1897 = vld [vmem:[%s336 + $0x2100] sm:$0xff]
        %v1898 = vld [vmem:[%s336 + $0x2108] sm:$0xff]
        %v1899 = vld [vmem:[%s336 + $0x2110] sm:$0xff]
        %v1900 = vld [vmem:[%s336 + $0x2118] sm:$0xff]
        %v1901 = vld [vmem:[%s336 + $0x2120] sm:$0xff]
        %v1902 = vld [vmem:[%s336 + $0x2128] sm:$0xff]
        %v1903 = vld [vmem:[%s336 + $0x2130] sm:$0xff]
        %v1904 = vld [vmem:[%s336 + $0x2138] sm:$0xff]
        %v1905 = vld [vmem:[%s336 + $0x2140] sm:$0xff]
        %v1906 = vld [vmem:[%s336 + $0x2148] sm:$0xff]
        %v1907 = vld [vmem:[%s336 + $0x2150] sm:$0xff]
        %v1908 = vld [vmem:[%s336 + $0x2158] sm:$0xff]
        %v1909 = vld [vmem:[%s336 + $0x2160] sm:$0xff]
        %v1910 = vld [vmem:[%s336 + $0x2168] sm:$0xff]
        %v1911 = vld [vmem:[%s336 + $0x2170] sm:$0xff]
        %v1912 = vld [vmem:[%s336 + $0x2178] sm:$0xff]
        %v1913 = vld [vmem:[%s336 + $0x2180] sm:$0xff]
        %v1914 = vld [vmem:[%s336 + $0x2188] sm:$0xff]
        %v1915 = vld [vmem:[%s336 + $0x2190] sm:$0xff]
        %v1916 = vld [vmem:[%s336 + $0x2198] sm:$0xff]
        %v1917 = vld [vmem:[%s336 + $0x21a0] sm:$0xff]
        %v1918 = vld [vmem:[%s336 + $0x21a8] sm:$0xff]
        %v1919 = vld [vmem:[%s336 + $0x21b0] sm:$0xff]
        %v1920 = vld [vmem:[%s336 + $0x21b8] sm:$0xff]
        %v1921 = vld [vmem:[%s336 + $0x21c0] sm:$0xff]
        %v1922 = vld [vmem:[%s336 + $0x21c8] sm:$0xff]
        %v1923 = vld [vmem:[%s336 + $0x21d0] sm:$0xff]
        %v1924 = vld [vmem:[%s336 + $0x21d8] sm:$0xff]
        %v1925 = vld [vmem:[%s336 + $0x21e0] sm:$0xff]
        %v1926 = vld [vmem:[%s336 + $0x21e8] sm:$0xff]
        %v1927 = vld [vmem:[%s336 + $0x21f0] sm:$0xff]
        %v1928 = vld [vmem:[%s336 + $0x21f8] sm:$0xff]
        %v1929 = vld [vmem:[%s336 + $0x2200] sm:$0xff]
        %v1930 = vld [vmem:[%s336 + $0x2208] sm:$0xff]
        %v1931 = vld [vmem:[%s336 + $0x2210] sm:$0xff]
        %v1932 = vld [vmem:[%s336 + $0x2218] sm:$0xff]
        %v1933 = vld [vmem:[%s336 + $0x2220] sm:$0xff]
        %v1934 = vld [vmem:[%s336 + $0x2228] sm:$0xff]
        %v1935 = vld [vmem:[%s336 + $0x2230] sm:$0xff]
        %v1936 = vld [vmem:[%s336 + $0x2238] sm:$0xff]
        %v1937 = vld [vmem:[%s336 + $0x2240] sm:$0xff]
        %v1938 = vld [vmem:[%s336 + $0x2248] sm:$0xff]
        %v1939 = vld [vmem:[%s336 + $0x2250] sm:$0xff]
        %v1940 = vld [vmem:[%s336 + $0x2258] sm:$0xff]
        %v1941 = vld [vmem:[%s336 + $0x2260] sm:$0xff]
        %v1942 = vld [vmem:[%s336 + $0x2268] sm:$0xff]
        %v1943 = vld [vmem:[%s336 + $0x2270] sm:$0xff]
        %v1944 = vld [vmem:[%s336 + $0x2278] sm:$0xff]
        %v1945 = vld [vmem:[%s336 + $0x2280] sm:$0xff]
        %v1946 = vld [vmem:[%s336 + $0x2288] sm:$0xff]
        %v1947 = vld [vmem:[%s336 + $0x2290] sm:$0xff]
        %v1948 = vld [vmem:[%s336 + $0x2298] sm:$0xff]
        %v1949 = vld [vmem:[%s336 + $0x22a0] sm:$0xff]
        %v1950 = vld [vmem:[%s336 + $0x22a8] sm:$0xff]
        %v1951 = vld [vmem:[%s336 + $0x22b0] sm:$0xff]
        %v1952 = vld [vmem:[%s336 + $0x22b8] sm:$0xff]
        %v1953 = vld [vmem:[%s336 + $0x22c0] sm:$0xff]
        %v1954 = vld [vmem:[%s336 + $0x22c8] sm:$0xff]
        %v1955 = vld [vmem:[%s336 + $0x22d0] sm:$0xff]
        %v1956 = vld [vmem:[%s336 + $0x22d8] sm:$0xff]
        %v1957 = vld [vmem:[%s336 + $0x22e0] sm:$0xff]
        %v1958 = vld [vmem:[%s336 + $0x22e8] sm:$0xff]
        %v1959 = vld [vmem:[%s336 + $0x22f0] sm:$0xff]
        %v1960 = vld [vmem:[%s336 + $0x22f8] sm:$0xff]
        %v1961 = vld [vmem:[%s336 + $0x2300] sm:$0xff]
        %v1962 = vld [vmem:[%s336 + $0x2308] sm:$0xff]
        %v1963 = vld [vmem:[%s336 + $0x2310] sm:$0xff]
        %v1964 = vld [vmem:[%s336 + $0x2318] sm:$0xff]
        %v1965 = vld [vmem:[%s336 + $0x2320] sm:$0xff]
        %v1966 = vld [vmem:[%s336 + $0x2328] sm:$0xff]
        %v1967 = vld [vmem:[%s336 + $0x2330] sm:$0xff]
        %v1968 = vld [vmem:[%s336 + $0x2338] sm:$0xff]
        %v1969 = vld [vmem:[%s336 + $0x2340] sm:$0xff]
        %v1970 = vld [vmem:[%s336 + $0x2348] sm:$0xff]
        %v1971 = vld [vmem:[%s336 + $0x2350] sm:$0xff]
        %v1972 = vld [vmem:[%s336 + $0x2358] sm:$0xff]
        %v1973 = vld [vmem:[%s336 + $0x2360] sm:$0xff]
        %v1974 = vld [vmem:[%s336 + $0x2368] sm:$0xff]
        %v1975 = vld [vmem:[%s336 + $0x2370] sm:$0xff]
        %v1976 = vld [vmem:[%s336 + $0x2378] sm:$0xff]
        %v1977 = vld [vmem:[%s336 + $0x2380] sm:$0xff]
        %v1978 = vld [vmem:[%s336 + $0x2388] sm:$0xff]
        %v1979 = vld [vmem:[%s336 + $0x2390] sm:$0xff]
        %v1980 = vld [vmem:[%s336 + $0x2398] sm:$0xff]
        %v1981 = vld [vmem:[%s336 + $0x23a0] sm:$0xff]
        %v1982 = vld [vmem:[%s336 + $0x23a8] sm:$0xff]
        %v1983 = vld [vmem:[%s336 + $0x23b0] sm:$0xff]
        %v1984 = vld [vmem:[%s336 + $0x23b8] sm:$0xff]
        %v1985 = vld [vmem:[%s336 + $0x23c0] sm:$0xff]
        %v1986 = vld [vmem:[%s336 + $0x23c8] sm:$0xff]
        %v1987 = vld [vmem:[%s336 + $0x23d0] sm:$0xff]
        %v1988 = vld [vmem:[%s336 + $0x23d8] sm:$0xff]
        %v1989 = vld [vmem:[%s336 + $0x23e0] sm:$0xff]
        %v1990 = vld [vmem:[%s336 + $0x23e8] sm:$0xff]
        %v1991 = vld [vmem:[%s336 + $0x23f0] sm:$0xff]
        %v1992 = vld [vmem:[%s336 + $0x23f8] sm:$0xff]
        %v1993 = vld [vmem:[%s336 + $0x2400] sm:$0xff]
        %v1994 = vld [vmem:[%s336 + $0x2408] sm:$0xff]
        %v1995 = vld [vmem:[%s336 + $0x2410] sm:$0xff]
        %v1996 = vld [vmem:[%s336 + $0x2418] sm:$0xff]
        %v1997 = vld [vmem:[%s336 + $0x2420] sm:$0xff]
        %v1998 = vld [vmem:[%s336 + $0x2428] sm:$0xff]
        %v1999 = vld [vmem:[%s336 + $0x2430] sm:$0xff]
        %v2000 = vld [vmem:[%s336 + $0x2438] sm:$0xff]
        %v2001 = vld [vmem:[%s336 + $0x2440] sm:$0xff]
        %v2002 = vld [vmem:[%s336 + $0x2448] sm:$0xff]
        %v2003 = vld [vmem:[%s336 + $0x2450] sm:$0xff]
        %v2004 = vld [vmem:[%s336 + $0x2458] sm:$0xff]
        %v2005 = vld [vmem:[%s336 + $0x2460] sm:$0xff]
        %v2006 = vld [vmem:[%s336 + $0x2468] sm:$0xff]
        %v2007 = vld [vmem:[%s336 + $0x2470] sm:$0xff]
        %v2008 = vld [vmem:[%s336 + $0x2478] sm:$0xff]
        %v2009 = vld [vmem:[%s336 + $0x2480] sm:$0xff]
        %v2010 = vld [vmem:[%s336 + $0x2488] sm:$0xff]
        %v2011 = vld [vmem:[%s336 + $0x2490] sm:$0xff]
        %v2012 = vld [vmem:[%s336 + $0x2498] sm:$0xff]
        %v2013 = vld [vmem:[%s336 + $0x24a0] sm:$0xff]
        %v2014 = vld [vmem:[%s336 + $0x24a8] sm:$0xff]
        %v2015 = vld [vmem:[%s336 + $0x24b0] sm:$0xff]
        %v2016 = vld [vmem:[%s336 + $0x24b8] sm:$0xff]
        %v2017 = vld [vmem:[%s336 + $0x24c0] sm:$0xff]
        %v2018 = vld [vmem:[%s336 + $0x24c8] sm:$0xff]
        %v2019 = vld [vmem:[%s336 + $0x24d0] sm:$0xff]
        %v2020 = vld [vmem:[%s336 + $0x24d8] sm:$0xff]
        %v2021 = vld [vmem:[%s336 + $0x24e0] sm:$0xff]
        %v2022 = vld [vmem:[%s336 + $0x24e8] sm:$0xff]
        %v2023 = vld [vmem:[%s336 + $0x24f0] sm:$0xff]
        %v2024 = vld [vmem:[%s336 + $0x24f8] sm:$0xff]
        %v2025 = vld [vmem:[%s336 + $0x2500] sm:$0xff]
        %v2026 = vld [vmem:[%s336 + $0x2508] sm:$0xff]
        %v2027 = vld [vmem:[%s336 + $0x2510] sm:$0xff]
        %v2028 = vld [vmem:[%s336 + $0x2518] sm:$0xff]
        %v2029 = vld [vmem:[%s336 + $0x2520] sm:$0xff]
        %v2030 = vld [vmem:[%s336 + $0x2528] sm:$0xff]
        %v2031 = vld [vmem:[%s336 + $0x2530] sm:$0xff]
        %v2032 = vld [vmem:[%s336 + $0x2538] sm:$0xff]
        %v2033 = vld [vmem:[%s336 + $0x2540] sm:$0xff]
        %v2034 = vld [vmem:[%s336 + $0x2548] sm:$0xff]
        %v2035 = vld [vmem:[%s336 + $0x2550] sm:$0xff]
        %v2036 = vld [vmem:[%s336 + $0x2558] sm:$0xff]
        %v2037 = vld [vmem:[%s336 + $0x2560] sm:$0xff]
        %v2038 = vld [vmem:[%s336 + $0x2568] sm:$0xff]
        %v2039 = vld [vmem:[%s336 + $0x2570] sm:$0xff]
        %v2040 = vld [vmem:[%s336 + $0x2578] sm:$0xff]
        %v2041 = vld [vmem:[%s336 + $0x2580] sm:$0xff]
        %v2042 = vld [vmem:[%s336 + $0x2588] sm:$0xff]
        %v2043 = vld [vmem:[%s336 + $0x2590] sm:$0xff]
        %v2044 = vld [vmem:[%s336 + $0x2598] sm:$0xff]
        %v2045 = vld [vmem:[%s336 + $0x25a0] sm:$0xff]
        %v2046 = vld [vmem:[%s336 + $0x25a8] sm:$0xff]
        %v2047 = vld [vmem:[%s336 + $0x25b0] sm:$0xff]
        %v2048 = vld [vmem:[%s336 + $0x25b8] sm:$0xff]
        %v2049 = vld [vmem:[%s336 + $0x25c0] sm:$0xff]
        %v2050 = vld [vmem:[%s336 + $0x25c8] sm:$0xff]
        %v2051 = vld [vmem:[%s336 + $0x25d0] sm:$0xff]
        %v2052 = vld [vmem:[%s336 + $0x25d8] sm:$0xff]
        %v2053 = vld [vmem:[%s336 + $0x25e0] sm:$0xff]
        %v2054 = vld [vmem:[%s336 + $0x25e8] sm:$0xff]
        %v2055 = vld [vmem:[%s336 + $0x25f0] sm:$0xff]
        %v2056 = vld [vmem:[%s336 + $0x25f8] sm:$0xff]
        %v2057 = vld [vmem:[%s336 + $0x2600] sm:$0xff]
        %v2058 = vld [vmem:[%s336 + $0x2608] sm:$0xff]
        %v2059 = vld [vmem:[%s336 + $0x2610] sm:$0xff]
        %v2060 = vld [vmem:[%s336 + $0x2618] sm:$0xff]
        %v2061 = vld [vmem:[%s336 + $0x2620] sm:$0xff]
        %v2062 = vld [vmem:[%s336 + $0x2628] sm:$0xff]
        %v2063 = vld [vmem:[%s336 + $0x2630] sm:$0xff]
        %v2064 = vld [vmem:[%s336 + $0x2638] sm:$0xff]
        %v2065 = vld [vmem:[%s336 + $0x2640] sm:$0xff]
        %v2066 = vld [vmem:[%s336 + $0x2648] sm:$0xff]
        %v2067 = vld [vmem:[%s336 + $0x2650] sm:$0xff]
        %v2068 = vld [vmem:[%s336 + $0x2658] sm:$0xff]
        %v2069 = vld [vmem:[%s336 + $0x2660] sm:$0xff]
        %v2070 = vld [vmem:[%s336 + $0x2668] sm:$0xff]
        %v2071 = vld [vmem:[%s336 + $0x2670] sm:$0xff]
        %v2072 = vld [vmem:[%s336 + $0x2678] sm:$0xff]
        %v2073 = vld [vmem:[%s336 + $0x2680] sm:$0xff]
        %v2074 = vld [vmem:[%s336 + $0x2688] sm:$0xff]
        %v2075 = vld [vmem:[%s336 + $0x2690] sm:$0xff]
        %v2076 = vld [vmem:[%s336 + $0x2698] sm:$0xff]
        %v2077 = vld [vmem:[%s336 + $0x26a0] sm:$0xff]
        %v2078 = vld [vmem:[%s336 + $0x26a8] sm:$0xff]
        %v2079 = vld [vmem:[%s336 + $0x26b0] sm:$0xff]
        %v2080 = vld [vmem:[%s336 + $0x26b8] sm:$0xff]
        %v2081 = vld [vmem:[%s336 + $0x26c0] sm:$0xff]
        %v2082 = vld [vmem:[%s336 + $0x26c8] sm:$0xff]
        %v2083 = vld [vmem:[%s336 + $0x26d0] sm:$0xff]
        %v2084 = vld [vmem:[%s336 + $0x26d8] sm:$0xff]
        %v2085 = vld [vmem:[%s336 + $0x26e0] sm:$0xff]
        %v2086 = vld [vmem:[%s336 + $0x26e8] sm:$0xff]
        %v2087 = vld [vmem:[%s336 + $0x26f0] sm:$0xff]
        %v2088 = vld [vmem:[%s336 + $0x26f8] sm:$0xff]
        %v2089 = vld [vmem:[%s336 + $0x2700] sm:$0xff]
        %v2090 = vld [vmem:[%s336 + $0x2708] sm:$0xff]
        %v2091 = vld [vmem:[%s336 + $0x2710] sm:$0xff]
        %v2092 = vld [vmem:[%s336 + $0x2718] sm:$0xff]
        %v2093 = vld [vmem:[%s336 + $0x2720] sm:$0xff]
        %v2094 = vld [vmem:[%s336 + $0x2728] sm:$0xff]
        %v2095 = vld [vmem:[%s336 + $0x2730] sm:$0xff]
        %v2096 = vld [vmem:[%s336 + $0x2738] sm:$0xff]
        %v2097 = vld [vmem:[%s336 + $0x2740] sm:$0xff]
        %v2098 = vld [vmem:[%s336 + $0x2748] sm:$0xff]
        %v2099 = vld [vmem:[%s336 + $0x2750] sm:$0xff]
        %v2100 = vld [vmem:[%s336 + $0x2758] sm:$0xff]
        %v2101 = vld [vmem:[%s336 + $0x2760] sm:$0xff]
        %v2102 = vld [vmem:[%s336 + $0x2768] sm:$0xff]
        %v2103 = vld [vmem:[%s336 + $0x2770] sm:$0xff]
        %v2104 = vld [vmem:[%s336 + $0x2778] sm:$0xff]
        %v2105 = vld [vmem:[%s336 + $0x2780] sm:$0xff]
        %v2106 = vld [vmem:[%s336 + $0x2788] sm:$0xff]
        %v2107 = vld [vmem:[%s336 + $0x2790] sm:$0xff]
        %v2108 = vld [vmem:[%s336 + $0x2798] sm:$0xff]
        %v2109 = vld [vmem:[%s336 + $0x27a0] sm:$0xff]
        %v2110 = vld [vmem:[%s336 + $0x27a8] sm:$0xff]
        %v2111 = vld [vmem:[%s336 + $0x27b0] sm:$0xff]
        %v2112 = vld [vmem:[%s336 + $0x27b8] sm:$0xff]
        %v2113 = vld [vmem:[%s336 + $0x27c0] sm:$0xff]
        %v2114 = vld [vmem:[%s336 + $0x27c8] sm:$0xff]
        %v2115 = vld [vmem:[%s336 + $0x27d0] sm:$0xff]
        %v2116 = vld [vmem:[%s336 + $0x27d8] sm:$0xff]
        %v2117 = vld [vmem:[%s336 + $0x27e0] sm:$0xff]
        %v2118 = vld [vmem:[%s336 + $0x27e8] sm:$0xff]
        %v2119 = vld [vmem:[%s336 + $0x27f0] sm:$0xff]
        %v2120 = vld [vmem:[%s336 + $0x27f8] sm:$0xff]
        %v2121 = vld [vmem:[%s336 + $0x2800] sm:$0xff]
        %v2122 = vld [vmem:[%s336 + $0x2808] sm:$0xff]
        %v2123 = vld [vmem:[%s336 + $0x2810] sm:$0xff]
        %v2124 = vld [vmem:[%s336 + $0x2818] sm:$0xff]
        %v2125 = vld [vmem:[%s336 + $0x2820] sm:$0xff]
        %v2126 = vld [vmem:[%s336 + $0x2828] sm:$0xff]
        %v2127 = vld [vmem:[%s336 + $0x2830] sm:$0xff]
        %v2128 = vld [vmem:[%s336 + $0x2838] sm:$0xff]
        %v2129 = vld [vmem:[%s336 + $0x2840] sm:$0xff]
        %v2130 = vld [vmem:[%s336 + $0x2848] sm:$0xff]
        %v2131 = vld [vmem:[%s336 + $0x2850] sm:$0xff]
        %v2132 = vld [vmem:[%s336 + $0x2858] sm:$0xff]
        %v2133 = vld [vmem:[%s336 + $0x2860] sm:$0xff]
        %v2134 = vld [vmem:[%s336 + $0x2868] sm:$0xff]
        %v2135 = vld [vmem:[%s336 + $0x2870] sm:$0xff]
        %v2136 = vld [vmem:[%s336 + $0x2878] sm:$0xff]
        %v2137 = vld [vmem:[%s336 + $0x2880] sm:$0xff]
        %v2138 = vld [vmem:[%s336 + $0x2888] sm:$0xff]
        %v2139 = vld [vmem:[%s336 + $0x2890] sm:$0xff]
        %v2140 = vld [vmem:[%s336 + $0x2898] sm:$0xff]
        %v2141 = vld [vmem:[%s336 + $0x28a0] sm:$0xff]
        %v2142 = vld [vmem:[%s336 + $0x28a8] sm:$0xff]
        %v2143 = vld [vmem:[%s336 + $0x28b0] sm:$0xff]
        %v2144 = vld [vmem:[%s336 + $0x28b8] sm:$0xff]
        %v2145 = vld [vmem:[%s336 + $0x28c0] sm:$0xff]
        %v2146 = vld [vmem:[%s336 + $0x28c8] sm:$0xff]
        %v2147 = vld [vmem:[%s336 + $0x28d0] sm:$0xff]
        %v2148 = vld [vmem:[%s336 + $0x28d8] sm:$0xff]
        %v2149 = vld [vmem:[%s336 + $0x28e0] sm:$0xff]
        %v2150 = vld [vmem:[%s336 + $0x28e8] sm:$0xff]
        %v2151 = vld [vmem:[%s336 + $0x28f0] sm:$0xff]
        %v2152 = vld [vmem:[%s336 + $0x28f8] sm:$0xff]
        %v2153 = vld [vmem:[%s336 + $0x2900] sm:$0xff]
        %v2154 = vld [vmem:[%s336 + $0x2908] sm:$0xff]
        %v2155 = vld [vmem:[%s336 + $0x2910] sm:$0xff]
        %v2156 = vld [vmem:[%s336 + $0x2918] sm:$0xff]
        %v2157 = vld [vmem:[%s336 + $0x2920] sm:$0xff]
        %v2158 = vld [vmem:[%s336 + $0x2928] sm:$0xff]
        %v2159 = vld [vmem:[%s336 + $0x2930] sm:$0xff]
        %v2160 = vld [vmem:[%s336 + $0x2938] sm:$0xff]
        %v2161 = vld [vmem:[%s336 + $0x2940] sm:$0xff]
        %v2162 = vld [vmem:[%s336 + $0x2948] sm:$0xff]
        %v2163 = vld [vmem:[%s336 + $0x2950] sm:$0xff]
        %v2164 = vld [vmem:[%s336 + $0x2958] sm:$0xff]
        %v2165 = vld [vmem:[%s336 + $0x2960] sm:$0xff]
        %v2166 = vld [vmem:[%s336 + $0x2968] sm:$0xff]
        %v2167 = vld [vmem:[%s336 + $0x2970] sm:$0xff]
        %v2168 = vld [vmem:[%s336 + $0x2978] sm:$0xff]
        %v2169 = vld [vmem:[%s336 + $0x2980] sm:$0xff]
        %v2170 = vld [vmem:[%s336 + $0x2988] sm:$0xff]
        %v2171 = vld [vmem:[%s336 + $0x2990] sm:$0xff]
        %v2172 = vld [vmem:[%s336 + $0x2998] sm:$0xff]
        %v2173 = vld [vmem:[%s336 + $0x29a0] sm:$0xff]
        %v2174 = vld [vmem:[%s336 + $0x29a8] sm:$0xff]
        %v2175 = vld [vmem:[%s336 + $0x29b0] sm:$0xff]
        %v2176 = vld [vmem:[%s336 + $0x29b8] sm:$0xff]
        %v2177 = vld [vmem:[%s336 + $0x29c0] sm:$0xff]
        %v2178 = vld [vmem:[%s336 + $0x29c8] sm:$0xff]
        %v2179 = vld [vmem:[%s336 + $0x29d0] sm:$0xff]
        %v2180 = vld [vmem:[%s336 + $0x29d8] sm:$0xff]
        %v2181 = vld [vmem:[%s336 + $0x29e0] sm:$0xff]
        %v2182 = vld [vmem:[%s336 + $0x29e8] sm:$0xff]
        %v2183 = vld [vmem:[%s336 + $0x29f0] sm:$0xff]
        %v2184 = vld [vmem:[%s336 + $0x29f8] sm:$0xff]
        %v2185 = vld [vmem:[%s336 + $0x2a00] sm:$0xff]
        %v2186 = vld [vmem:[%s336 + $0x2a08] sm:$0xff]
        %v2187 = vld [vmem:[%s336 + $0x2a10] sm:$0xff]
        %v2188 = vld [vmem:[%s336 + $0x2a18] sm:$0xff]
        %v2189 = vld [vmem:[%s336 + $0x2a20] sm:$0xff]
        %v2190 = vld [vmem:[%s336 + $0x2a28] sm:$0xff]
        %v2191 = vld [vmem:[%s336 + $0x2a30] sm:$0xff]
        %v2192 = vld [vmem:[%s336 + $0x2a38] sm:$0xff]
        %v2193 = vld [vmem:[%s336 + $0x2a40] sm:$0xff]
        %v2194 = vld [vmem:[%s336 + $0x2a48] sm:$0xff]
        %v2195 = vld [vmem:[%s336 + $0x2a50] sm:$0xff]
        %v2196 = vld [vmem:[%s336 + $0x2a58] sm:$0xff]
        %v2197 = vld [vmem:[%s336 + $0x2a60] sm:$0xff]
        %v2198 = vld [vmem:[%s336 + $0x2a68] sm:$0xff]
        %v2199 = vld [vmem:[%s336 + $0x2a70] sm:$0xff]
        %v2200 = vld [vmem:[%s336 + $0x2a78] sm:$0xff]
        %v2201 = vld [vmem:[%s336 + $0x2a80] sm:$0xff]
        %v2202 = vld [vmem:[%s336 + $0x2a88] sm:$0xff]
        %v2203 = vld [vmem:[%s336 + $0x2a90] sm:$0xff]
        %v2204 = vld [vmem:[%s336 + $0x2a98] sm:$0xff]
        %v2205 = vld [vmem:[%s336 + $0x2aa0] sm:$0xff]
        %v2206 = vld [vmem:[%s336 + $0x2aa8] sm:$0xff]
        %v2207 = vld [vmem:[%s336 + $0x2ab0] sm:$0xff]
        %v2208 = vld [vmem:[%s336 + $0x2ab8] sm:$0xff]
        %v2209 = vld [vmem:[%s336 + $0x2ac0] sm:$0xff]
        %v2210 = vld [vmem:[%s336 + $0x2ac8] sm:$0xff]
        %v2211 = vld [vmem:[%s336 + $0x2ad0] sm:$0xff]
        %v2212 = vld [vmem:[%s336 + $0x2ad8] sm:$0xff]
        %v2213 = vld [vmem:[%s336 + $0x2ae0] sm:$0xff]
        %v2214 = vld [vmem:[%s336 + $0x2ae8] sm:$0xff]
        %v2215 = vld [vmem:[%s336 + $0x2af0] sm:$0xff]
        %v2216 = vld [vmem:[%s336 + $0x2af8] sm:$0xff]
        %v2217 = vld [vmem:[%s336 + $0x2b00] sm:$0xff]
        %v2218 = vld [vmem:[%s336 + $0x2b08] sm:$0xff]
        %v2219 = vld [vmem:[%s336 + $0x2b10] sm:$0xff]
        %v2220 = vld [vmem:[%s336 + $0x2b18] sm:$0xff]
        %v2221 = vld [vmem:[%s336 + $0x2b20] sm:$0xff]
        %v2222 = vld [vmem:[%s336 + $0x2b28] sm:$0xff]
        %v2223 = vld [vmem:[%s336 + $0x2b30] sm:$0xff]
        %v2224 = vld [vmem:[%s336 + $0x2b38] sm:$0xff]
        %v2225 = vld [vmem:[%s336 + $0x2b40] sm:$0xff]
        %v2226 = vld [vmem:[%s336 + $0x2b48] sm:$0xff]
        %v2227 = vld [vmem:[%s336 + $0x2b50] sm:$0xff]
        %v2228 = vld [vmem:[%s336 + $0x2b58] sm:$0xff]
        %v2229 = vld [vmem:[%s336 + $0x2b60] sm:$0xff]
        %v2230 = vld [vmem:[%s336 + $0x2b68] sm:$0xff]
        %v2231 = vld [vmem:[%s336 + $0x2b70] sm:$0xff]
        %v2232 = vld [vmem:[%s336 + $0x2b78] sm:$0xff]
        %v2233 = vld [vmem:[%s336 + $0x2b80] sm:$0xff]
        %v2234 = vld [vmem:[%s336 + $0x2b88] sm:$0xff]
        %v2235 = vld [vmem:[%s336 + $0x2b90] sm:$0xff]
        %v2236 = vld [vmem:[%s336 + $0x2b98] sm:$0xff]
        %v2237 = vld [vmem:[%s336 + $0x2ba0] sm:$0xff]
        %v2238 = vld [vmem:[%s336 + $0x2ba8] sm:$0xff]
        %v2239 = vld [vmem:[%s336 + $0x2bb0] sm:$0xff]
        %v2240 = vld [vmem:[%s336 + $0x2bb8] sm:$0xff]
        %v2241 = vld [vmem:[%s336 + $0x2bc0] sm:$0xff]
        %v2242 = vld [vmem:[%s336 + $0x2bc8] sm:$0xff]
        %v2243 = vld [vmem:[%s336 + $0x2bd0] sm:$0xff]
        %v2244 = vld [vmem:[%s336 + $0x2bd8] sm:$0xff]
        %v2245 = vld [vmem:[%s336 + $0x2be0] sm:$0xff]
        %v2246 = vld [vmem:[%s336 + $0x2be8] sm:$0xff]
        %v2247 = vld [vmem:[%s336 + $0x2bf0] sm:$0xff]
        %v2248 = vld [vmem:[%s336 + $0x2bf8] sm:$0xff]
        %v2249 = vld [vmem:[%s336 + $0x2c00] sm:$0xff]
        %v2250 = vld [vmem:[%s336 + $0x2c08] sm:$0xff]
        %v2251 = vld [vmem:[%s336 + $0x2c10] sm:$0xff]
        %v2252 = vld [vmem:[%s336 + $0x2c18] sm:$0xff]
        %v2253 = vld [vmem:[%s336 + $0x2c20] sm:$0xff]
        %v2254 = vld [vmem:[%s336 + $0x2c28] sm:$0xff]
        %v2255 = vld [vmem:[%s336 + $0x2c30] sm:$0xff]
        %v2256 = vld [vmem:[%s336 + $0x2c38] sm:$0xff]
        %v2257 = vld [vmem:[%s336 + $0x2c40] sm:$0xff]
        %v2258 = vld [vmem:[%s336 + $0x2c48] sm:$0xff]
        %v2259 = vld [vmem:[%s336 + $0x2c50] sm:$0xff]
        %v2260 = vld [vmem:[%s336 + $0x2c58] sm:$0xff]
        %v2261 = vld [vmem:[%s336 + $0x2c60] sm:$0xff]
        %v2262 = vld [vmem:[%s336 + $0x2c68] sm:$0xff]
        %v2263 = vld [vmem:[%s336 + $0x2c70] sm:$0xff]
        %v2264 = vld [vmem:[%s336 + $0x2c78] sm:$0xff]
        %v2265 = vld [vmem:[%s336 + $0x2c80] sm:$0xff]
        %v2266 = vld [vmem:[%s336 + $0x2c88] sm:$0xff]
        %v2267 = vld [vmem:[%s336 + $0x2c90] sm:$0xff]
        %v2268 = vld [vmem:[%s336 + $0x2c98] sm:$0xff]
        %v2269 = vld [vmem:[%s336 + $0x2ca0] sm:$0xff]
        %v2270 = vld [vmem:[%s336 + $0x2ca8] sm:$0xff]
        %v2271 = vld [vmem:[%s336 + $0x2cb0] sm:$0xff]
        %v2272 = vld [vmem:[%s336 + $0x2cb8] sm:$0xff]
        %v2273 = vld [vmem:[%s336 + $0x2cc0] sm:$0xff]
        %v2274 = vld [vmem:[%s336 + $0x2cc8] sm:$0xff]
        %v2275 = vld [vmem:[%s336 + $0x2cd0] sm:$0xff]
        %v2276 = vld [vmem:[%s336 + $0x2cd8] sm:$0xff]
        %v2277 = vld [vmem:[%s336 + $0x2ce0] sm:$0xff]
        %v2278 = vld [vmem:[%s336 + $0x2ce8] sm:$0xff]
        %v2279 = vld [vmem:[%s336 + $0x2cf0] sm:$0xff]
        %v2280 = vld [vmem:[%s336 + $0x2cf8] sm:$0xff]
        %v2281 = vld [vmem:[%s336 + $0x2d00] sm:$0xff]
        %v2282 = vld [vmem:[%s336 + $0x2d08] sm:$0xff]
        %v2283 = vld [vmem:[%s336 + $0x2d10] sm:$0xff]
        %v2284 = vld [vmem:[%s336 + $0x2d18] sm:$0xff]
        %v2285 = vld [vmem:[%s336 + $0x2d20] sm:$0xff]
        %v2286 = vld [vmem:[%s336 + $0x2d28] sm:$0xff]
        %v2287 = vld [vmem:[%s336 + $0x2d30] sm:$0xff]
        %v2288 = vld [vmem:[%s336 + $0x2d38] sm:$0xff]
        %v2289 = vld [vmem:[%s336 + $0x2d40] sm:$0xff]
        %v2290 = vld [vmem:[%s336 + $0x2d48] sm:$0xff]
        %v2291 = vld [vmem:[%s336 + $0x2d50] sm:$0xff]
        %v2292 = vld [vmem:[%s336 + $0x2d58] sm:$0xff]
        %v2293 = vld [vmem:[%s336 + $0x2d60] sm:$0xff]
        %v2294 = vld [vmem:[%s336 + $0x2d68] sm:$0xff]
        %v2295 = vld [vmem:[%s336 + $0x2d70] sm:$0xff]
        %v2296 = vld [vmem:[%s336 + $0x2d78] sm:$0xff]
        %v2297 = vld [vmem:[%s336 + $0x2d80] sm:$0xff]
        %v2298 = vld [vmem:[%s336 + $0x2d88] sm:$0xff]
        %v2299 = vld [vmem:[%s336 + $0x2d90] sm:$0xff]
        %v2300 = vld [vmem:[%s336 + $0x2d98] sm:$0xff]
        %v2301 = vld [vmem:[%s336 + $0x2da0] sm:$0xff]
        %v2302 = vld [vmem:[%s336 + $0x2da8] sm:$0xff]
        %v2303 = vld [vmem:[%s336 + $0x2db0] sm:$0xff]
        %v2304 = vld [vmem:[%s336 + $0x2db8] sm:$0xff]
        %v2305 = vld [vmem:[%s336 + $0x2dc0] sm:$0xff]
        %v2306 = vld [vmem:[%s336 + $0x2dc8] sm:$0xff]
        %v2307 = vld [vmem:[%s336 + $0x2dd0] sm:$0xff]
        %v2308 = vld [vmem:[%s336 + $0x2dd8] sm:$0xff]
        %v2309 = vld [vmem:[%s336 + $0x2de0] sm:$0xff]
        %v2310 = vld [vmem:[%s336 + $0x2de8] sm:$0xff]
        %v2311 = vld [vmem:[%s336 + $0x2df0] sm:$0xff]
        %v2312 = vld [vmem:[%s336 + $0x2df8] sm:$0xff]
        %v2313 = vld [vmem:[%s336 + $0x2e00] sm:$0xff]
        %v2314 = vld [vmem:[%s336 + $0x2e08] sm:$0xff]
        %v2315 = vld [vmem:[%s336 + $0x2e10] sm:$0xff]
        %v2316 = vld [vmem:[%s336 + $0x2e18] sm:$0xff]
        %v2317 = vld [vmem:[%s336 + $0x2e20] sm:$0xff]
        %v2318 = vld [vmem:[%s336 + $0x2e28] sm:$0xff]
        %v2319 = vld [vmem:[%s336 + $0x2e30] sm:$0xff]
        %v2320 = vld [vmem:[%s336 + $0x2e38] sm:$0xff]
        %v2321 = vld [vmem:[%s336 + $0x2e40] sm:$0xff]
        %v2322 = vld [vmem:[%s336 + $0x2e48] sm:$0xff]
        %v2323 = vld [vmem:[%s336 + $0x2e50] sm:$0xff]
        %v2324 = vld [vmem:[%s336 + $0x2e58] sm:$0xff]
        %v2325 = vld [vmem:[%s336 + $0x2e60] sm:$0xff]
        %v2326 = vld [vmem:[%s336 + $0x2e68] sm:$0xff]
        %v2327 = vld [vmem:[%s336 + $0x2e70] sm:$0xff]
        %v2328 = vld [vmem:[%s336 + $0x2e78] sm:$0xff]
        %v2329 = vld [vmem:[%s336 + $0x2e80] sm:$0xff]
        %v2330 = vld [vmem:[%s336 + $0x2e88] sm:$0xff]
        %v2331 = vld [vmem:[%s336 + $0x2e90] sm:$0xff]
        %v2332 = vld [vmem:[%s336 + $0x2e98] sm:$0xff]
        %v2333 = vld [vmem:[%s336 + $0x2ea0] sm:$0xff]
        %v2334 = vld [vmem:[%s336 + $0x2ea8] sm:$0xff]
        %v2335 = vld [vmem:[%s336 + $0x2eb0] sm:$0xff]
        %v2336 = vld [vmem:[%s336 + $0x2eb8] sm:$0xff]
        %v2337 = vld [vmem:[%s336 + $0x2ec0] sm:$0xff]
        %v2338 = vld [vmem:[%s336 + $0x2ec8] sm:$0xff]
        %v2339 = vld [vmem:[%s336 + $0x2ed0] sm:$0xff]
        %v2340 = vld [vmem:[%s336 + $0x2ed8] sm:$0xff]
        %v2341 = vld [vmem:[%s336 + $0x2ee0] sm:$0xff]
        %v2342 = vld [vmem:[%s336 + $0x2ee8] sm:$0xff]
        %v2343 = vld [vmem:[%s336 + $0x2ef0] sm:$0xff]
        %v2344 = vld [vmem:[%s336 + $0x2ef8] sm:$0xff]
        %v2345 = vld [vmem:[%s336 + $0x2f00] sm:$0xff]
        %v2346 = vld [vmem:[%s336 + $0x2f08] sm:$0xff]
        %v2347 = vld [vmem:[%s336 + $0x2f10] sm:$0xff]
        %v2348 = vld [vmem:[%s336 + $0x2f18] sm:$0xff]
        %v2349 = vld [vmem:[%s336 + $0x2f20] sm:$0xff]
        %v2350 = vld [vmem:[%s336 + $0x2f28] sm:$0xff]
        %v2351 = vld [vmem:[%s336 + $0x2f30] sm:$0xff]
        %v2352 = vld [vmem:[%s336 + $0x2f38] sm:$0xff]
        %v2353 = vld [vmem:[%s336 + $0x2f40] sm:$0xff]
        %v2354 = vld [vmem:[%s336 + $0x2f48] sm:$0xff]
        %v2355 = vld [vmem:[%s336 + $0x2f50] sm:$0xff]
        %v2356 = vld [vmem:[%s336 + $0x2f58] sm:$0xff]
        %v2357 = vld [vmem:[%s336 + $0x2f60] sm:$0xff]
        %v2358 = vld [vmem:[%s336 + $0x2f68] sm:$0xff]
        %v2359 = vld [vmem:[%s336 + $0x2f70] sm:$0xff]
        %v2360 = vld [vmem:[%s336 + $0x2f78] sm:$0xff]
        %v2361 = vld [vmem:[%s336 + $0x2f80] sm:$0xff]
        %v2362 = vld [vmem:[%s336 + $0x2f88] sm:$0xff]
        %v2363 = vld [vmem:[%s336 + $0x2f90] sm:$0xff]
        %v2364 = vld [vmem:[%s336 + $0x2f98] sm:$0xff]
        %v2365 = vld [vmem:[%s336 + $0x2fa0] sm:$0xff]
        %v2366 = vld [vmem:[%s336 + $0x2fa8] sm:$0xff]
        %v2367 = vld [vmem:[%s336 + $0x2fb0] sm:$0xff]
        %v2368 = vld [vmem:[%s336 + $0x2fb8] sm:$0xff]
        %v2369 = vld [vmem:[%s336 + $0x2fc0] sm:$0xff]
        %v2370 = vld [vmem:[%s336 + $0x2fc8] sm:$0xff]
        %v2371 = vld [vmem:[%s336 + $0x2fd0] sm:$0xff]
        %v2372 = vld [vmem:[%s336 + $0x2fd8] sm:$0xff]
        %v2373 = vld [vmem:[%s336 + $0x2fe0] sm:$0xff]
        %v2374 = vld [vmem:[%s336 + $0x2fe8] sm:$0xff]
        %v2375 = vld [vmem:[%s336 + $0x2ff0] sm:$0xff]
        %v2376 = vld [vmem:[%s336 + $0x2ff8] sm:$0xff]
        %v2377 = vld [vmem:[%s336 + $0x3000] sm:$0xff]
        %v2378 = vld [vmem:[%s336 + $0x3008] sm:$0xff]
        %v2379 = vld [vmem:[%s336 + $0x3010] sm:$0xff]
        %v2380 = vld [vmem:[%s336 + $0x3018] sm:$0xff]
        %v2381 = vld [vmem:[%s336 + $0x3020] sm:$0xff]
        %v2382 = vld [vmem:[%s336 + $0x3028] sm:$0xff]
        %v2383 = vld [vmem:[%s336 + $0x3030] sm:$0xff]
        %v2384 = vld [vmem:[%s336 + $0x3038] sm:$0xff]
        %v2385 = vld [vmem:[%s336 + $0x3040] sm:$0xff]
        %v2386 = vld [vmem:[%s336 + $0x3048] sm:$0xff]
        %v2387 = vld [vmem:[%s336 + $0x3050] sm:$0xff]
        %v2388 = vld [vmem:[%s336 + $0x3058] sm:$0xff]
        %v2389 = vld [vmem:[%s336 + $0x3060] sm:$0xff]
        %v2390 = vld [vmem:[%s336 + $0x3068] sm:$0xff]
        %v2391 = vld [vmem:[%s336 + $0x3070] sm:$0xff]
        %v2392 = vld [vmem:[%s336 + $0x3078] sm:$0xff]
        %v2393 = vld [vmem:[%s336 + $0x3080] sm:$0xff]
        %v2394 = vld [vmem:[%s336 + $0x3088] sm:$0xff]
        %v2395 = vld [vmem:[%s336 + $0x3090] sm:$0xff]
        %v2396 = vld [vmem:[%s336 + $0x3098] sm:$0xff]
        %v2397 = vld [vmem:[%s336 + $0x30a0] sm:$0xff]
        %v2398 = vld [vmem:[%s336 + $0x30a8] sm:$0xff]
        %v2399 = vld [vmem:[%s336 + $0x30b0] sm:$0xff]
        %v2400 = vld [vmem:[%s336 + $0x30b8] sm:$0xff]
        %v2401 = vld [vmem:[%s336 + $0x30c0] sm:$0xff]
        %v2402 = vld [vmem:[%s336 + $0x30c8] sm:$0xff]
        %v2403 = vld [vmem:[%s336 + $0x30d0] sm:$0xff]
        %v2404 = vld [vmem:[%s336 + $0x30d8] sm:$0xff]
        %v2405 = vld [vmem:[%s336 + $0x30e0] sm:$0xff]
        %v2406 = vld [vmem:[%s336 + $0x30e8] sm:$0xff]
        %v2407 = vld [vmem:[%s336 + $0x30f0] sm:$0xff]
        %v2408 = vld [vmem:[%s336 + $0x30f8] sm:$0xff]
        %v2409 = vld [vmem:[%s336 + $0x3100] sm:$0xff]
        %v2410 = vld [vmem:[%s336 + $0x3108] sm:$0xff]
        %v2411 = vld [vmem:[%s336 + $0x3110] sm:$0xff]
        %v2412 = vld [vmem:[%s336 + $0x3118] sm:$0xff]
        %v2413 = vld [vmem:[%s336 + $0x3120] sm:$0xff]
        %v2414 = vld [vmem:[%s336 + $0x3128] sm:$0xff]
        %v2415 = vld [vmem:[%s336 + $0x3130] sm:$0xff]
        %v2416 = vld [vmem:[%s336 + $0x3138] sm:$0xff]
        %v2417 = vld [vmem:[%s336 + $0x3140] sm:$0xff]
        %v2418 = vld [vmem:[%s336 + $0x3148] sm:$0xff]
        %v2419 = vld [vmem:[%s336 + $0x3150] sm:$0xff]
        %v2420 = vld [vmem:[%s336 + $0x3158] sm:$0xff]
        %v2421 = vld [vmem:[%s336 + $0x3160] sm:$0xff]
        %v2422 = vld [vmem:[%s336 + $0x3168] sm:$0xff]
        %v2423 = vld [vmem:[%s336 + $0x3170] sm:$0xff]
        %v2424 = vld [vmem:[%s336 + $0x3178] sm:$0xff]
        %v2425 = vld [vmem:[%s336 + $0x3180] sm:$0xff]
        %v2426 = vld [vmem:[%s336 + $0x3188] sm:$0xff]
        %v2427 = vld [vmem:[%s336 + $0x3190] sm:$0xff]
        %v2428 = vld [vmem:[%s336 + $0x3198] sm:$0xff]
        %v2429 = vld [vmem:[%s336 + $0x31a0] sm:$0xff]
        %v2430 = vld [vmem:[%s336 + $0x31a8] sm:$0xff]
        %v2431 = vld [vmem:[%s336 + $0x31b0] sm:$0xff]
        %v2432 = vld [vmem:[%s336 + $0x31b8] sm:$0xff]
        %v2433 = vld [vmem:[%s336 + $0x31c0] sm:$0xff]
        %v2434 = vld [vmem:[%s336 + $0x31c8] sm:$0xff]
        %v2435 = vld [vmem:[%s336 + $0x31d0] sm:$0xff]
        %v2436 = vld [vmem:[%s336 + $0x31d8] sm:$0xff]
        %v2437 = vld [vmem:[%s336 + $0x31e0] sm:$0xff]
        %v2438 = vld [vmem:[%s336 + $0x31e8] sm:$0xff]
        %v2439 = vld [vmem:[%s336 + $0x31f0] sm:$0xff]
        %v2440 = vld [vmem:[%s336 + $0x31f8] sm:$0xff]
        %v2441 = vld [vmem:[%s336 + $0x3200] sm:$0xff]
        %v2442 = vld [vmem:[%s336 + $0x3208] sm:$0xff]
        %v2443 = vld [vmem:[%s336 + $0x3210] sm:$0xff]
        %v2444 = vld [vmem:[%s336 + $0x3218] sm:$0xff]
        %v2445 = vld [vmem:[%s336 + $0x3220] sm:$0xff]
        %v2446 = vld [vmem:[%s336 + $0x3228] sm:$0xff]
        %v2447 = vld [vmem:[%s336 + $0x3230] sm:$0xff]
        %v2448 = vld [vmem:[%s336 + $0x3238] sm:$0xff]
        %v2449 = vld [vmem:[%s336 + $0x3240] sm:$0xff]
        %v2450 = vld [vmem:[%s336 + $0x3248] sm:$0xff]
        %v2451 = vld [vmem:[%s336 + $0x3250] sm:$0xff]
        %v2452 = vld [vmem:[%s336 + $0x3258] sm:$0xff]
        %v2453 = vld [vmem:[%s336 + $0x3260] sm:$0xff]
        %v2454 = vld [vmem:[%s336 + $0x3268] sm:$0xff]
        %v2455 = vld [vmem:[%s336 + $0x3270] sm:$0xff]
        %v2456 = vld [vmem:[%s336 + $0x3278] sm:$0xff]
        %v2457 = vld [vmem:[%s336 + $0x3280] sm:$0xff]
        %v2458 = vld [vmem:[%s336 + $0x3288] sm:$0xff]
        %v2459 = vld [vmem:[%s336 + $0x3290] sm:$0xff]
        %v2460 = vld [vmem:[%s336 + $0x3298] sm:$0xff]
        %v2461 = vld [vmem:[%s336 + $0x32a0] sm:$0xff]
        %v2462 = vld [vmem:[%s336 + $0x32a8] sm:$0xff]
        %v2463 = vld [vmem:[%s336 + $0x32b0] sm:$0xff]
        %v2464 = vld [vmem:[%s336 + $0x32b8] sm:$0xff]
        %v2465 = vld [vmem:[%s336 + $0x32c0] sm:$0xff]
        %v2466 = vld [vmem:[%s336 + $0x32c8] sm:$0xff]
        %v2467 = vld [vmem:[%s336 + $0x32d0] sm:$0xff]
        %v2468 = vld [vmem:[%s336 + $0x32d8] sm:$0xff]
        %v2469 = vld [vmem:[%s336 + $0x32e0] sm:$0xff]
        %v2470 = vld [vmem:[%s336 + $0x32e8] sm:$0xff]
        %v2471 = vld [vmem:[%s336 + $0x32f0] sm:$0xff]
        %v2472 = vld [vmem:[%s336 + $0x32f8] sm:$0xff]
        %v2473 = vld [vmem:[%s336 + $0x3300] sm:$0xff]
        %v2474 = vld [vmem:[%s336 + $0x3308] sm:$0xff]
        %v2475 = vld [vmem:[%s336 + $0x3310] sm:$0xff]
        %v2476 = vld [vmem:[%s336 + $0x3318] sm:$0xff]
        %v2477 = vld [vmem:[%s336 + $0x3320] sm:$0xff]
        %v2478 = vld [vmem:[%s336 + $0x3328] sm:$0xff]
        %v2479 = vld [vmem:[%s336 + $0x3330] sm:$0xff]
        %v2480 = vld [vmem:[%s336 + $0x3338] sm:$0xff]
        %v2481 = vld [vmem:[%s336 + $0x3340] sm:$0xff]
        %v2482 = vld [vmem:[%s336 + $0x3348] sm:$0xff]
        %v2483 = vld [vmem:[%s336 + $0x3350] sm:$0xff]
        %v2484 = vld [vmem:[%s336 + $0x3358] sm:$0xff]
        %v2485 = vld [vmem:[%s336 + $0x3360] sm:$0xff]
        %v2486 = vld [vmem:[%s336 + $0x3368] sm:$0xff]
        %v2487 = vld [vmem:[%s336 + $0x3370] sm:$0xff]
        %v2488 = vld [vmem:[%s336 + $0x3378] sm:$0xff]
        %v2489 = vld [vmem:[%s336 + $0x3380] sm:$0xff]
        %v2490 = vld [vmem:[%s336 + $0x3388] sm:$0xff]
        %v2491 = vld [vmem:[%s336 + $0x3390] sm:$0xff]
        %v2492 = vld [vmem:[%s336 + $0x3398] sm:$0xff]
        %v2493 = vld [vmem:[%s336 + $0x33a0] sm:$0xff]
        %v2494 = vld [vmem:[%s336 + $0x33a8] sm:$0xff]
        %v2495 = vld [vmem:[%s336 + $0x33b0] sm:$0xff]
        %v2496 = vld [vmem:[%s336 + $0x33b8] sm:$0xff]
        %v2497 = vld [vmem:[%s336 + $0x33c0] sm:$0xff]
        %v2498 = vld [vmem:[%s336 + $0x33c8] sm:$0xff]
        %v2499 = vld [vmem:[%s336 + $0x33d0] sm:$0xff]
        %v2500 = vld [vmem:[%s336 + $0x33d8] sm:$0xff]
        %v2501 = vld [vmem:[%s336 + $0x33e0] sm:$0xff]
        %v2502 = vld [vmem:[%s336 + $0x33e8] sm:$0xff]
        %v2503 = vld [vmem:[%s336 + $0x33f0] sm:$0xff]
        %v2504 = vld [vmem:[%s336 + $0x33f8] sm:$0xff]
        %v2505 = vld [vmem:[%s336 + $0x3400] sm:$0xff]
        %v2506 = vld [vmem:[%s336 + $0x3408] sm:$0xff]
        %v2507 = vld [vmem:[%s336 + $0x3410] sm:$0xff]
        %v2508 = vld [vmem:[%s336 + $0x3418] sm:$0xff]
        %v2509 = vld [vmem:[%s336 + $0x3420] sm:$0xff]
        %v2510 = vld [vmem:[%s336 + $0x3428] sm:$0xff]
        %v2511 = vld [vmem:[%s336 + $0x3430] sm:$0xff]
        %v2512 = vld [vmem:[%s336 + $0x3438] sm:$0xff]
        %v2513 = vld [vmem:[%s336 + $0x3440] sm:$0xff]
        %v2514 = vld [vmem:[%s336 + $0x3448] sm:$0xff]
        %v2515 = vld [vmem:[%s336 + $0x3450] sm:$0xff]
        %v2516 = vld [vmem:[%s336 + $0x3458] sm:$0xff]
        %v2517 = vld [vmem:[%s336 + $0x3460] sm:$0xff]
        %v2518 = vld [vmem:[%s336 + $0x3468] sm:$0xff]
        %v2519 = vld [vmem:[%s336 + $0x3470] sm:$0xff]
        %v2520 = vld [vmem:[%s336 + $0x3478] sm:$0xff]
        %v2521 = vld [vmem:[%s336 + $0x3480] sm:$0xff]
        %v2522 = vld [vmem:[%s336 + $0x3488] sm:$0xff]
        %v2523 = vld [vmem:[%s336 + $0x3490] sm:$0xff]
        %v2524 = vld [vmem:[%s336 + $0x3498] sm:$0xff]
        %v2525 = vld [vmem:[%s336 + $0x34a0] sm:$0xff]
        %v2526 = vld [vmem:[%s336 + $0x34a8] sm:$0xff]
        %v2527 = vld [vmem:[%s336 + $0x34b0] sm:$0xff]
        %v2528 = vld [vmem:[%s336 + $0x34b8] sm:$0xff]
        %v2529 = vld [vmem:[%s336 + $0x34c0] sm:$0xff]
        %v2530 = vld [vmem:[%s336 + $0x34c8] sm:$0xff]
        %v2531 = vld [vmem:[%s336 + $0x34d0] sm:$0xff]
        %v2532 = vld [vmem:[%s336 + $0x34d8] sm:$0xff]
        %v2533 = vld [vmem:[%s336 + $0x34e0] sm:$0xff]
        %v2534 = vld [vmem:[%s336 + $0x34e8] sm:$0xff]
        %v2535 = vld [vmem:[%s336 + $0x34f0] sm:$0xff]
        %v2536 = vld [vmem:[%s336 + $0x34f8] sm:$0xff]
        %v2537 = vld [vmem:[%s336 + $0x3500] sm:$0xff]
        %v2538 = vld [vmem:[%s336 + $0x3508] sm:$0xff]
        %v2539 = vld [vmem:[%s336 + $0x3510] sm:$0xff]
        %v2540 = vld [vmem:[%s336 + $0x3518] sm:$0xff]
        %v2541 = vld [vmem:[%s336 + $0x3520] sm:$0xff]
        %v2542 = vld [vmem:[%s336 + $0x3528] sm:$0xff]
        %v2543 = vld [vmem:[%s336 + $0x3530] sm:$0xff]
        %v2544 = vld [vmem:[%s336 + $0x3538] sm:$0xff]
        %v2545 = vld [vmem:[%s336 + $0x3540] sm:$0xff]
        %v2546 = vld [vmem:[%s336 + $0x3548] sm:$0xff]
        %v2547 = vld [vmem:[%s336 + $0x3550] sm:$0xff]
        %v2548 = vld [vmem:[%s336 + $0x3558] sm:$0xff]
        %v2549 = vld [vmem:[%s336 + $0x3560] sm:$0xff]
        %v2550 = vld [vmem:[%s336 + $0x3568] sm:$0xff]
        %v2551 = vld [vmem:[%s336 + $0x3570] sm:$0xff]
        %v2552 = vld [vmem:[%s336 + $0x3578] sm:$0xff]
        %v2553 = vld [vmem:[%s336 + $0x3580] sm:$0xff]
        %v2554 = vld [vmem:[%s336 + $0x3588] sm:$0xff]
        %v2555 = vld [vmem:[%s336 + $0x3590] sm:$0xff]
        %v2556 = vld [vmem:[%s336 + $0x3598] sm:$0xff]
        %v2557 = vld [vmem:[%s336 + $0x35a0] sm:$0xff]
        %v2558 = vld [vmem:[%s336 + $0x35a8] sm:$0xff]
        %v2559 = vld [vmem:[%s336 + $0x35b0] sm:$0xff]
        %v2560 = vld [vmem:[%s336 + $0x35b8] sm:$0xff]
        %v2561 = vld [vmem:[%s336 + $0x35c0] sm:$0xff]
        %v2562 = vld [vmem:[%s336 + $0x35c8] sm:$0xff]
        %v2563 = vld [vmem:[%s336 + $0x35d0] sm:$0xff]
        %v2564 = vld [vmem:[%s336 + $0x35d8] sm:$0xff]
        %v2565 = vld [vmem:[%s336 + $0x35e0] sm:$0xff]
        %v2566 = vld [vmem:[%s336 + $0x35e8] sm:$0xff]
        %v2567 = vld [vmem:[%s336 + $0x35f0] sm:$0xff]
        %v2568 = vld [vmem:[%s336 + $0x35f8] sm:$0xff]
        %v2569 = vld [vmem:[%s336 + $0x3600] sm:$0xff]
        %v2570 = vld [vmem:[%s336 + $0x3608] sm:$0xff]
        %v2571 = vld [vmem:[%s336 + $0x3610] sm:$0xff]
        %v2572 = vld [vmem:[%s336 + $0x3618] sm:$0xff]
        %v2573 = vld [vmem:[%s336 + $0x3620] sm:$0xff]
        %v2574 = vld [vmem:[%s336 + $0x3628] sm:$0xff]
        %v2575 = vld [vmem:[%s336 + $0x3630] sm:$0xff]
        %v2576 = vld [vmem:[%s336 + $0x3638] sm:$0xff]
        %v2577 = vld [vmem:[%s336 + $0x3640] sm:$0xff]
        %v2578 = vld [vmem:[%s336 + $0x3648] sm:$0xff]
        %v2579 = vld [vmem:[%s336 + $0x3650] sm:$0xff]
        %v2580 = vld [vmem:[%s336 + $0x3658] sm:$0xff]
        %v2581 = vld [vmem:[%s336 + $0x3660] sm:$0xff]
        %v2582 = vld [vmem:[%s336 + $0x3668] sm:$0xff]
        %v2583 = vld [vmem:[%s336 + $0x3670] sm:$0xff]
        %v2584 = vld [vmem:[%s336 + $0x3678] sm:$0xff]
        %v2585 = vld [vmem:[%s336 + $0x3680] sm:$0xff]
        %v2586 = vld [vmem:[%s336 + $0x3688] sm:$0xff]
        %v2587 = vld [vmem:[%s336 + $0x3690] sm:$0xff]
        %v2588 = vld [vmem:[%s336 + $0x3698] sm:$0xff]
        %v2589 = vld [vmem:[%s336 + $0x36a0] sm:$0xff]
        %v2590 = vld [vmem:[%s336 + $0x36a8] sm:$0xff]
        %v2591 = vld [vmem:[%s336 + $0x36b0] sm:$0xff]
        %v2592 = vld [vmem:[%s336 + $0x36b8] sm:$0xff]
        %v2593 = vld [vmem:[%s336 + $0x36c0] sm:$0xff]
        %v2594 = vld [vmem:[%s336 + $0x36c8] sm:$0xff]
        %v2595 = vld [vmem:[%s336 + $0x36d0] sm:$0xff]
        %v2596 = vld [vmem:[%s336 + $0x36d8] sm:$0xff]
        %v2597 = vld [vmem:[%s336 + $0x36e0] sm:$0xff]
        %v2598 = vld [vmem:[%s336 + $0x36e8] sm:$0xff]
        %v2599 = vld [vmem:[%s336 + $0x36f0] sm:$0xff]
        %v2600 = vld [vmem:[%s336 + $0x36f8] sm:$0xff]
        %v2601 = vld [vmem:[%s336 + $0x3700] sm:$0xff]
        %v2602 = vld [vmem:[%s336 + $0x3708] sm:$0xff]
        %v2603 = vld [vmem:[%s336 + $0x3710] sm:$0xff]
        %v2604 = vld [vmem:[%s336 + $0x3718] sm:$0xff]
        %v2605 = vld [vmem:[%s336 + $0x3720] sm:$0xff]
        %v2606 = vld [vmem:[%s336 + $0x3728] sm:$0xff]
        %v2607 = vld [vmem:[%s336 + $0x3730] sm:$0xff]
        %v2608 = vld [vmem:[%s336 + $0x3738] sm:$0xff]
        %v2609 = vld [vmem:[%s336 + $0x3740] sm:$0xff]
        %v2610 = vld [vmem:[%s336 + $0x3748] sm:$0xff]
        %v2611 = vld [vmem:[%s336 + $0x3750] sm:$0xff]
        %v2612 = vld [vmem:[%s336 + $0x3758] sm:$0xff]
        %v2613 = vld [vmem:[%s336 + $0x3760] sm:$0xff]
        %v2614 = vld [vmem:[%s336 + $0x3768] sm:$0xff]
        %v2615 = vld [vmem:[%s336 + $0x3770] sm:$0xff]
        %v2616 = vld [vmem:[%s336 + $0x3778] sm:$0xff]
        %v2617 = vld [vmem:[%s336 + $0x3780] sm:$0xff]
        %v2618 = vld [vmem:[%s336 + $0x3788] sm:$0xff]
        %v2619 = vld [vmem:[%s336 + $0x3790] sm:$0xff]
        %v2620 = vld [vmem:[%s336 + $0x3798] sm:$0xff]
        %v2621 = vld [vmem:[%s336 + $0x37a0] sm:$0xff]
        %v2622 = vld [vmem:[%s336 + $0x37a8] sm:$0xff]
        %v2623 = vld [vmem:[%s336 + $0x37b0] sm:$0xff]
        %v2624 = vld [vmem:[%s336 + $0x37b8] sm:$0xff]
        %v2625 = vld [vmem:[%s336 + $0x37c0] sm:$0xff]
        %v2626 = vld [vmem:[%s336 + $0x37c8] sm:$0xff]
        %v2627 = vld [vmem:[%s336 + $0x37d0] sm:$0xff]
        %v2628 = vld [vmem:[%s336 + $0x37d8] sm:$0xff]
        %v2629 = vld [vmem:[%s336 + $0x37e0] sm:$0xff]
        %v2630 = vld [vmem:[%s336 + $0x37e8] sm:$0xff]
        %v2631 = vld [vmem:[%s336 + $0x37f0] sm:$0xff]
        %v2632 = vld [vmem:[%s336 + $0x37f8] sm:$0xff]
        %v2633 = vld [vmem:[%s336 + $0x3800] sm:$0xff]
        %v2634 = vld [vmem:[%s336 + $0x3808] sm:$0xff]
        %v2635 = vld [vmem:[%s336 + $0x3810] sm:$0xff]
        %v2636 = vld [vmem:[%s336 + $0x3818] sm:$0xff]
        %v2637 = vld [vmem:[%s336 + $0x3820] sm:$0xff]
        %v2638 = vld [vmem:[%s336 + $0x3828] sm:$0xff]
        %v2639 = vld [vmem:[%s336 + $0x3830] sm:$0xff]
        %v2640 = vld [vmem:[%s336 + $0x3838] sm:$0xff]
        %v2641 = vld [vmem:[%s336 + $0x3840] sm:$0xff]
        %v2642 = vld [vmem:[%s336 + $0x3848] sm:$0xff]
        %v2643 = vld [vmem:[%s336 + $0x3850] sm:$0xff]
        %v2644 = vld [vmem:[%s336 + $0x3858] sm:$0xff]
        %v2645 = vld [vmem:[%s336 + $0x3860] sm:$0xff]
        %v2646 = vld [vmem:[%s336 + $0x3868] sm:$0xff]
        %v2647 = vld [vmem:[%s336 + $0x3870] sm:$0xff]
        %v2648 = vld [vmem:[%s336 + $0x3878] sm:$0xff]
        %v2649 = vld [vmem:[%s336 + $0x3880] sm:$0xff]
        %v2650 = vld [vmem:[%s336 + $0x3888] sm:$0xff]
        %v2651 = vld [vmem:[%s336 + $0x3890] sm:$0xff]
        %v2652 = vld [vmem:[%s336 + $0x3898] sm:$0xff]
        %v2653 = vld [vmem:[%s336 + $0x38a0] sm:$0xff]
        %v2654 = vld [vmem:[%s336 + $0x38a8] sm:$0xff]
        %v2655 = vld [vmem:[%s336 + $0x38b0] sm:$0xff]
        %v2656 = vld [vmem:[%s336 + $0x38b8] sm:$0xff]
        %v2657 = vld [vmem:[%s336 + $0x38c0] sm:$0xff]
        %v2658 = vld [vmem:[%s336 + $0x38c8] sm:$0xff]
        %v2659 = vld [vmem:[%s336 + $0x38d0] sm:$0xff]
        %v2660 = vld [vmem:[%s336 + $0x38d8] sm:$0xff]
        %v2661 = vld [vmem:[%s336 + $0x38e0] sm:$0xff]
        %v2662 = vld [vmem:[%s336 + $0x38e8] sm:$0xff]
        %v2663 = vld [vmem:[%s336 + $0x38f0] sm:$0xff]
        %v2664 = vld [vmem:[%s336 + $0x38f8] sm:$0xff]
        %v2665 = vld [vmem:[%s336 + $0x3900] sm:$0xff]
        %v2666 = vld [vmem:[%s336 + $0x3908] sm:$0xff]
        %v2667 = vld [vmem:[%s336 + $0x3910] sm:$0xff]
        %v2668 = vld [vmem:[%s336 + $0x3918] sm:$0xff]
        %v2669 = vld [vmem:[%s336 + $0x3920] sm:$0xff]
        %v2670 = vld [vmem:[%s336 + $0x3928] sm:$0xff]
        %v2671 = vld [vmem:[%s336 + $0x3930] sm:$0xff]
        %v2672 = vld [vmem:[%s336 + $0x3938] sm:$0xff]
        %v2673 = vld [vmem:[%s336 + $0x3940] sm:$0xff]
        %v2674 = vld [vmem:[%s336 + $0x3948] sm:$0xff]
        %v2675 = vld [vmem:[%s336 + $0x3950] sm:$0xff]
        %v2676 = vld [vmem:[%s336 + $0x3958] sm:$0xff]
        %v2677 = vld [vmem:[%s336 + $0x3960] sm:$0xff]
        %v2678 = vld [vmem:[%s336 + $0x3968] sm:$0xff]
        %v2679 = vld [vmem:[%s336 + $0x3970] sm:$0xff]
        %v2680 = vld [vmem:[%s336 + $0x3978] sm:$0xff]
        %v2681 = vld [vmem:[%s336 + $0x3980] sm:$0xff]
        %v2682 = vld [vmem:[%s336 + $0x3988] sm:$0xff]
        %v2683 = vld [vmem:[%s336 + $0x3990] sm:$0xff]
        %v2684 = vld [vmem:[%s336 + $0x3998] sm:$0xff]
        %v2685 = vld [vmem:[%s336 + $0x39a0] sm:$0xff]
        %v2686 = vld [vmem:[%s336 + $0x39a8] sm:$0xff]
        %v2687 = vld [vmem:[%s336 + $0x39b0] sm:$0xff]
        %v2688 = vld [vmem:[%s336 + $0x39b8] sm:$0xff]
        %v2689 = vld [vmem:[%s336 + $0x39c0] sm:$0xff]
        %v2690 = vld [vmem:[%s336 + $0x39c8] sm:$0xff]
        %v2691 = vld [vmem:[%s336 + $0x39d0] sm:$0xff]
        %v2692 = vld [vmem:[%s336 + $0x39d8] sm:$0xff]
        %v2693 = vld [vmem:[%s336 + $0x39e0] sm:$0xff]
        %v2694 = vld [vmem:[%s336 + $0x39e8] sm:$0xff]
        %v2695 = vld [vmem:[%s336 + $0x39f0] sm:$0xff]
        %v2696 = vld [vmem:[%s336 + $0x39f8] sm:$0xff]
        %v2697 = vld [vmem:[%s336 + $0x3a00] sm:$0xff]
        %v2698 = vld [vmem:[%s336 + $0x3a08] sm:$0xff]
        %v2699 = vld [vmem:[%s336 + $0x3a10] sm:$0xff]
        %v2700 = vld [vmem:[%s336 + $0x3a18] sm:$0xff]
        %v2701 = vld [vmem:[%s336 + $0x3a20] sm:$0xff]
        %v2702 = vld [vmem:[%s336 + $0x3a28] sm:$0xff]
        %v2703 = vld [vmem:[%s336 + $0x3a30] sm:$0xff]
        %v2704 = vld [vmem:[%s336 + $0x3a38] sm:$0xff]
        %v2705 = vld [vmem:[%s336 + $0x3a40] sm:$0xff]
        %v2706 = vld [vmem:[%s336 + $0x3a48] sm:$0xff]
        %v2707 = vld [vmem:[%s336 + $0x3a50] sm:$0xff]
        %v2708 = vld [vmem:[%s336 + $0x3a58] sm:$0xff]
        %v2709 = vld [vmem:[%s336 + $0x3a60] sm:$0xff]
        %v2710 = vld [vmem:[%s336 + $0x3a68] sm:$0xff]
        %v2711 = vld [vmem:[%s336 + $0x3a70] sm:$0xff]
        %v2712 = vld [vmem:[%s336 + $0x3a78] sm:$0xff]
        %v2713 = vld [vmem:[%s336 + $0x3a80] sm:$0xff]
        %v2714 = vld [vmem:[%s336 + $0x3a88] sm:$0xff]
        %v2715 = vld [vmem:[%s336 + $0x3a90] sm:$0xff]
        %v2716 = vld [vmem:[%s336 + $0x3a98] sm:$0xff]
        %v2717 = vld [vmem:[%s336 + $0x3aa0] sm:$0xff]
        %v2718 = vld [vmem:[%s336 + $0x3aa8] sm:$0xff]
        %v2719 = vld [vmem:[%s336 + $0x3ab0] sm:$0xff]
        %v2720 = vld [vmem:[%s336 + $0x3ab8] sm:$0xff]
        %v2721 = vld [vmem:[%s336 + $0x3ac0] sm:$0xff]
        %v2722 = vld [vmem:[%s336 + $0x3ac8] sm:$0xff]
        %v2723 = vld [vmem:[%s336 + $0x3ad0] sm:$0xff]
        %v2724 = vld [vmem:[%s336 + $0x3ad8] sm:$0xff]
        %v2725 = vld [vmem:[%s336 + $0x3ae0] sm:$0xff]
        %v2726 = vld [vmem:[%s336 + $0x3ae8] sm:$0xff]
        %v2727 = vld [vmem:[%s336 + $0x3af0] sm:$0xff]
        %v2728 = vld [vmem:[%s336 + $0x3af8] sm:$0xff]
        %v2729 = vld [vmem:[%s336 + $0x3b00] sm:$0xff]
        %v2730 = vld [vmem:[%s336 + $0x3b08] sm:$0xff]
        %v2731 = vld [vmem:[%s336 + $0x3b10] sm:$0xff]
        %v2732 = vld [vmem:[%s336 + $0x3b18] sm:$0xff]
        %v2733 = vld [vmem:[%s336 + $0x3b20] sm:$0xff]
        %v2734 = vld [vmem:[%s336 + $0x3b28] sm:$0xff]
        %v2735 = vld [vmem:[%s336 + $0x3b30] sm:$0xff]
        %v2736 = vld [vmem:[%s336 + $0x3b38] sm:$0xff]
        %v2737 = vld [vmem:[%s336 + $0x3b40] sm:$0xff]
        %v2738 = vld [vmem:[%s336 + $0x3b48] sm:$0xff]
        %v2739 = vld [vmem:[%s336 + $0x3b50] sm:$0xff]
        %v2740 = vld [vmem:[%s336 + $0x3b58] sm:$0xff]
        %v2741 = vld [vmem:[%s336 + $0x3b60] sm:$0xff]
        %v2742 = vld [vmem:[%s336 + $0x3b68] sm:$0xff]
        %v2743 = vld [vmem:[%s336 + $0x3b70] sm:$0xff]
        %v2744 = vld [vmem:[%s336 + $0x3b78] sm:$0xff]
        %v2745 = vld [vmem:[%s336 + $0x3b80] sm:$0xff]
        %v2746 = vld [vmem:[%s336 + $0x3b88] sm:$0xff]
        %v2747 = vld [vmem:[%s336 + $0x3b90] sm:$0xff]
        %v2748 = vld [vmem:[%s336 + $0x3b98] sm:$0xff]
        %v2749 = vld [vmem:[%s336 + $0x3ba0] sm:$0xff]
        %v2750 = vld [vmem:[%s336 + $0x3ba8] sm:$0xff]
        %v2751 = vld [vmem:[%s336 + $0x3bb0] sm:$0xff]
        %v2752 = vld [vmem:[%s336 + $0x3bb8] sm:$0xff]
        %v2753 = vld [vmem:[%s336 + $0x3bc0] sm:$0xff]
        %v2754 = vld [vmem:[%s336 + $0x3bc8] sm:$0xff]
        %v2755 = vld [vmem:[%s336 + $0x3bd0] sm:$0xff]
        %v2756 = vld [vmem:[%s336 + $0x3bd8] sm:$0xff]
        %v2757 = vld [vmem:[%s336 + $0x3be0] sm:$0xff]
        %v2758 = vld [vmem:[%s336 + $0x3be8] sm:$0xff]
        %v2759 = vld [vmem:[%s336 + $0x3bf0] sm:$0xff]
        %v2760 = vld [vmem:[%s336 + $0x3bf8] sm:$0xff]
        %v2761 = vld [vmem:[%s336 + $0x3c00] sm:$0xff]
        %v2762 = vld [vmem:[%s336 + $0x3c08] sm:$0xff]
        %v2763 = vld [vmem:[%s336 + $0x3c10] sm:$0xff]
        %v2764 = vld [vmem:[%s336 + $0x3c18] sm:$0xff]
        %v2765 = vld [vmem:[%s336 + $0x3c20] sm:$0xff]
        %v2766 = vld [vmem:[%s336 + $0x3c28] sm:$0xff]
        %v2767 = vld [vmem:[%s336 + $0x3c30] sm:$0xff]
        %v2768 = vld [vmem:[%s336 + $0x3c38] sm:$0xff]
        %v2769 = vld [vmem:[%s336 + $0x3c40] sm:$0xff]
        %v2770 = vld [vmem:[%s336 + $0x3c48] sm:$0xff]
        %v2771 = vld [vmem:[%s336 + $0x3c50] sm:$0xff]
        %v2772 = vld [vmem:[%s336 + $0x3c58] sm:$0xff]
        %v2773 = vld [vmem:[%s336 + $0x3c60] sm:$0xff]
        %v2774 = vld [vmem:[%s336 + $0x3c68] sm:$0xff]
        %v2775 = vld [vmem:[%s336 + $0x3c70] sm:$0xff]
        %v2776 = vld [vmem:[%s336 + $0x3c78] sm:$0xff]
        %v2777 = vld [vmem:[%s336 + $0x3c80] sm:$0xff]
        %v2778 = vld [vmem:[%s336 + $0x3c88] sm:$0xff]
        %v2779 = vld [vmem:[%s336 + $0x3c90] sm:$0xff]
        %v2780 = vld [vmem:[%s336 + $0x3c98] sm:$0xff]
        %v2781 = vld [vmem:[%s336 + $0x3ca0] sm:$0xff]
        %v2782 = vld [vmem:[%s336 + $0x3ca8] sm:$0xff]
        %v2783 = vld [vmem:[%s336 + $0x3cb0] sm:$0xff]
        %v2784 = vld [vmem:[%s336 + $0x3cb8] sm:$0xff]
        %v2785 = vld [vmem:[%s336 + $0x3cc0] sm:$0xff]
        %v2786 = vld [vmem:[%s336 + $0x3cc8] sm:$0xff]
        %v2787 = vld [vmem:[%s336 + $0x3cd0] sm:$0xff]
        %v2788 = vld [vmem:[%s336 + $0x3cd8] sm:$0xff]
        %v2789 = vld [vmem:[%s336 + $0x3ce0] sm:$0xff]
        %v2790 = vld [vmem:[%s336 + $0x3ce8] sm:$0xff]
        %v2791 = vld [vmem:[%s336 + $0x3cf0] sm:$0xff]
        %v2792 = vld [vmem:[%s336 + $0x3cf8] sm:$0xff]
        %v2793 = vld [vmem:[%s336 + $0x3d00] sm:$0xff]
        %v2794 = vld [vmem:[%s336 + $0x3d08] sm:$0xff]
        %v2795 = vld [vmem:[%s336 + $0x3d10] sm:$0xff]
        %v2796 = vld [vmem:[%s336 + $0x3d18] sm:$0xff]
        %v2797 = vld [vmem:[%s336 + $0x3d20] sm:$0xff]
        %v2798 = vld [vmem:[%s336 + $0x3d28] sm:$0xff]
        %v2799 = vld [vmem:[%s336 + $0x3d30] sm:$0xff]
        %v2800 = vld [vmem:[%s336 + $0x3d38] sm:$0xff]
        %v2801 = vld [vmem:[%s336 + $0x3d40] sm:$0xff]
        %v2802 = vld [vmem:[%s336 + $0x3d48] sm:$0xff]
        %v2803 = vld [vmem:[%s336 + $0x3d50] sm:$0xff]
        %v2804 = vld [vmem:[%s336 + $0x3d58] sm:$0xff]
        %v2805 = vld [vmem:[%s336 + $0x3d60] sm:$0xff]
        %v2806 = vld [vmem:[%s336 + $0x3d68] sm:$0xff]
        %v2807 = vld [vmem:[%s336 + $0x3d70] sm:$0xff]
        %v2808 = vld [vmem:[%s336 + $0x3d78] sm:$0xff]
        %v2809 = vld [vmem:[%s336 + $0x3d80] sm:$0xff]
        %v2810 = vld [vmem:[%s336 + $0x3d88] sm:$0xff]
        %v2811 = vld [vmem:[%s336 + $0x3d90] sm:$0xff]
        %v2812 = vld [vmem:[%s336 + $0x3d98] sm:$0xff]
        %v2813 = vld [vmem:[%s336 + $0x3da0] sm:$0xff]
        %v2814 = vld [vmem:[%s336 + $0x3da8] sm:$0xff]
        %v2815 = vld [vmem:[%s336 + $0x3db0] sm:$0xff]
        %v2816 = vld [vmem:[%s336 + $0x3db8] sm:$0xff]
        %v2817 = vld [vmem:[%s336 + $0x3dc0] sm:$0xff]
        %v2818 = vld [vmem:[%s336 + $0x3dc8] sm:$0xff]
        %v2819 = vld [vmem:[%s336 + $0x3dd0] sm:$0xff]
        %v2820 = vld [vmem:[%s336 + $0x3dd8] sm:$0xff]
        %v2821 = vld [vmem:[%s336 + $0x3de0] sm:$0xff]
        %v2822 = vld [vmem:[%s336 + $0x3de8] sm:$0xff]
        %v2823 = vld [vmem:[%s336 + $0x3df0] sm:$0xff]
        %v2824 = vld [vmem:[%s336 + $0x3df8] sm:$0xff]
        %v2825 = vld [vmem:[%s336 + $0x3e00] sm:$0xff]
        %v2826 = vld [vmem:[%s336 + $0x3e08] sm:$0xff]
        %v2827 = vld [vmem:[%s336 + $0x3e10] sm:$0xff]
        %v2828 = vld [vmem:[%s336 + $0x3e18] sm:$0xff]
        %v2829 = vld [vmem:[%s336 + $0x3e20] sm:$0xff]
        %v2830 = vld [vmem:[%s336 + $0x3e28] sm:$0xff]
        %v2831 = vld [vmem:[%s336 + $0x3e30] sm:$0xff]
        %v2832 = vld [vmem:[%s336 + $0x3e38] sm:$0xff]
        %v2833 = vld [vmem:[%s336 + $0x3e40] sm:$0xff]
        %v2834 = vld [vmem:[%s336 + $0x3e48] sm:$0xff]
        %v2835 = vld [vmem:[%s336 + $0x3e50] sm:$0xff]
        %v2836 = vld [vmem:[%s336 + $0x3e58] sm:$0xff]
        %v2837 = vld [vmem:[%s336 + $0x3e60] sm:$0xff]
        %v2838 = vld [vmem:[%s336 + $0x3e68] sm:$0xff]
        %v2839 = vld [vmem:[%s336 + $0x3e70] sm:$0xff]
        %v2840 = vld [vmem:[%s336 + $0x3e78] sm:$0xff]
        %v2841 = vld [vmem:[%s336 + $0x3e80] sm:$0xff]
        %v2842 = vld [vmem:[%s336 + $0x3e88] sm:$0xff]
        %v2843 = vld [vmem:[%s336 + $0x3e90] sm:$0xff]
        %v2844 = vld [vmem:[%s336 + $0x3e98] sm:$0xff]
        %v2845 = vld [vmem:[%s336 + $0x3ea0] sm:$0xff]
        %v2846 = vld [vmem:[%s336 + $0x3ea8] sm:$0xff]
        %v2847 = vld [vmem:[%s336 + $0x3eb0] sm:$0xff]
        %v2848 = vld [vmem:[%s336 + $0x3eb8] sm:$0xff]
        %v2849 = vld [vmem:[%s336 + $0x3ec0] sm:$0xff]
        %v2850 = vld [vmem:[%s336 + $0x3ec8] sm:$0xff]
        %v2851 = vld [vmem:[%s336 + $0x3ed0] sm:$0xff]
        %v2852 = vld [vmem:[%s336 + $0x3ed8] sm:$0xff]
        %v2853 = vld [vmem:[%s336 + $0x3ee0] sm:$0xff]
        %v2854 = vld [vmem:[%s336 + $0x3ee8] sm:$0xff]
        %v2855 = vld [vmem:[%s336 + $0x3ef0] sm:$0xff]
        %v2856 = vld [vmem:[%s336 + $0x3ef8] sm:$0xff]
        %v2857 = vld [vmem:[%s336 + $0x3f00] sm:$0xff]
        %v2858 = vld [vmem:[%s336 + $0x3f08] sm:$0xff]
        %v2859 = vld [vmem:[%s336 + $0x3f10] sm:$0xff]
        %v2860 = vld [vmem:[%s336 + $0x3f18] sm:$0xff]
        %v2861 = vld [vmem:[%s336 + $0x3f20] sm:$0xff]
        %v2862 = vld [vmem:[%s336 + $0x3f28] sm:$0xff]
        %v2863 = vld [vmem:[%s336 + $0x3f30] sm:$0xff]
        %v2864 = vld [vmem:[%s336 + $0x3f38] sm:$0xff]
        %v2865 = vld [vmem:[%s336 + $0x3f40] sm:$0xff]
        %v2866 = vld [vmem:[%s336 + $0x3f48] sm:$0xff]
        %v2867 = vld [vmem:[%s336 + $0x3f50] sm:$0xff]
        %v2868 = vld [vmem:[%s336 + $0x3f58] sm:$0xff]
        %v2869 = vld [vmem:[%s336 + $0x3f60] sm:$0xff]
        %v2870 = vld [vmem:[%s336 + $0x3f68] sm:$0xff]
        %v2871 = vld [vmem:[%s336 + $0x3f70] sm:$0xff]
        %v2872 = vld [vmem:[%s336 + $0x3f78] sm:$0xff]
        %v2873 = vld [vmem:[%s336 + $0x3f80] sm:$0xff]
        %v2874 = vld [vmem:[%s336 + $0x3f88] sm:$0xff]
        %v2875 = vld [vmem:[%s336 + $0x3f90] sm:$0xff]
        %v2876 = vld [vmem:[%s336 + $0x3f98] sm:$0xff]
        %v2877 = vld [vmem:[%s336 + $0x3fa0] sm:$0xff]
        %v2878 = vld [vmem:[%s336 + $0x3fa8] sm:$0xff]
        %v2879 = vld [vmem:[%s336 + $0x3fb0] sm:$0xff]
        %v2880 = vld [vmem:[%s336 + $0x3fb8] sm:$0xff]
        %v2881 = vld [vmem:[%s336 + $0x3fc0] sm:$0xff]
        %v2882 = vld [vmem:[%s336 + $0x3fc8] sm:$0xff]
        %v2883 = vld [vmem:[%s336 + $0x3fd0] sm:$0xff]
        %v2884 = vld [vmem:[%s336 + $0x3fd8] sm:$0xff]
        %v2885 = vld [vmem:[%s336 + $0x3fe0] sm:$0xff]
        %v2886 = vld [vmem:[%s336 + $0x3fe8] sm:$0xff]
        %v2887 = vld [vmem:[%s336 + $0x3ff0] sm:$0xff]
        %v2888 = vld [vmem:[%s336 + $0x3ff8] sm:$0xff]
        %v2889 = vld [vmem:[%s336 + $0x4000] sm:$0xff]
        %v2890 = vld [vmem:[%s336 + $0x4008] sm:$0xff]
        %v2891 = vld [vmem:[%s336 + $0x4010] sm:$0xff]
        %v2892 = vld [vmem:[%s336 + $0x4018] sm:$0xff]
        %v2893 = vld [vmem:[%s336 + $0x4020] sm:$0xff]
        %v2894 = vld [vmem:[%s336 + $0x4028] sm:$0xff]
        %v2895 = vld [vmem:[%s336 + $0x4030] sm:$0xff]
        %v2896 = vld [vmem:[%s336 + $0x4038] sm:$0xff]
        %v2897 = vld [vmem:[%s336 + $0x4040] sm:$0xff]
        %v2898 = vld [vmem:[%s336 + $0x4048] sm:$0xff]
        %v2899 = vld [vmem:[%s336 + $0x4050] sm:$0xff]
        %v2900 = vld [vmem:[%s336 + $0x4058] sm:$0xff]
        %v2901 = vld [vmem:[%s336 + $0x4060] sm:$0xff]
        %v2902 = vld [vmem:[%s336 + $0x4068] sm:$0xff]
        %v2903 = vld [vmem:[%s336 + $0x4070] sm:$0xff]
        %v2904 = vld [vmem:[%s336 + $0x4078] sm:$0xff]
        %v2905 = vld [vmem:[%s336 + $0x4080] sm:$0xff]
        %v2906 = vld [vmem:[%s336 + $0x4088] sm:$0xff]
        %v2907 = vld [vmem:[%s336 + $0x4090] sm:$0xff]
        %v2908 = vld [vmem:[%s336 + $0x4098] sm:$0xff]
        %v2909 = vld [vmem:[%s336 + $0x40a0] sm:$0xff]
        %v2910 = vld [vmem:[%s336 + $0x40a8] sm:$0xff]
        %v2911 = vld [vmem:[%s336 + $0x40b0] sm:$0xff]
        %v2912 = vld [vmem:[%s336 + $0x40b8] sm:$0xff]
        %v2913 = vld [vmem:[%s336 + $0x40c0] sm:$0xff]
        %v2914 = vld [vmem:[%s336 + $0x40c8] sm:$0xff]
        %v2915 = vld [vmem:[%s336 + $0x40d0] sm:$0xff]
        %v2916 = vld [vmem:[%s336 + $0x40d8] sm:$0xff]
        %v2917 = vld [vmem:[%s336 + $0x40e0] sm:$0xff]
        %v2918 = vld [vmem:[%s336 + $0x40e8] sm:$0xff]
        %v2919 = vld [vmem:[%s336 + $0x40f0] sm:$0xff]
        %v2920 = vld [vmem:[%s336 + $0x40f8] sm:$0xff]
        %v2921 = vld [vmem:[%s336 + $0x4100] sm:$0xff]
        %v2922 = vld [vmem:[%s336 + $0x4108] sm:$0xff]
        %v2923 = vld [vmem:[%s336 + $0x4110] sm:$0xff]
        %v2924 = vld [vmem:[%s336 + $0x4118] sm:$0xff]
        %v2925 = vld [vmem:[%s336 + $0x4120] sm:$0xff]
        %v2926 = vld [vmem:[%s336 + $0x4128] sm:$0xff]
        %v2927 = vld [vmem:[%s336 + $0x4130] sm:$0xff]
        %v2928 = vld [vmem:[%s336 + $0x4138] sm:$0xff]
        %v2929 = vld [vmem:[%s336 + $0x4140] sm:$0xff]
        %v2930 = vld [vmem:[%s336 + $0x4148] sm:$0xff]
        %v2931 = vld [vmem:[%s336 + $0x4150] sm:$0xff]
        %v2932 = vld [vmem:[%s336 + $0x4158] sm:$0xff]
        %v2933 = vld [vmem:[%s336 + $0x4160] sm:$0xff]
        %v2934 = vld [vmem:[%s336 + $0x4168] sm:$0xff]
        %v2935 = vld [vmem:[%s336 + $0x4170] sm:$0xff]
        %v2936 = vld [vmem:[%s336 + $0x4178] sm:$0xff]
        %v2937 = vld [vmem:[%s336 + $0x4180] sm:$0xff]
        %v2938 = vld [vmem:[%s336 + $0x4188] sm:$0xff]
        %v2939 = vld [vmem:[%s336 + $0x4190] sm:$0xff]
        %v2940 = vld [vmem:[%s336 + $0x4198] sm:$0xff]
        %v2941 = vld [vmem:[%s336 + $0x41a0] sm:$0xff]
        %v2942 = vld [vmem:[%s336 + $0x41a8] sm:$0xff]
        %v2943 = vld [vmem:[%s336 + $0x41b0] sm:$0xff]
        %v2944 = vld [vmem:[%s336 + $0x41b8] sm:$0xff]
        %v2945 = vld [vmem:[%s336 + $0x41c0] sm:$0xff]
        %v2946 = vld [vmem:[%s336 + $0x41c8] sm:$0xff]
        %v2947 = vld [vmem:[%s336 + $0x41d0] sm:$0xff]
        %v2948 = vld [vmem:[%s336 + $0x41d8] sm:$0xff]
        %v2949 = vld [vmem:[%s336 + $0x41e0] sm:$0xff]
        %v2950 = vld [vmem:[%s336 + $0x41e8] sm:$0xff]
        %v2951 = vld [vmem:[%s336 + $0x41f0] sm:$0xff]
        %v2952 = vld [vmem:[%s336 + $0x41f8] sm:$0xff]
        %v2953 = vld [vmem:[%s336 + $0x4200] sm:$0xff]
        %v2954 = vld [vmem:[%s336 + $0x4208] sm:$0xff]
        %v2955 = vld [vmem:[%s336 + $0x4210] sm:$0xff]
        %v2956 = vld [vmem:[%s336 + $0x4218] sm:$0xff]
        %v2957 = vld [vmem:[%s336 + $0x4220] sm:$0xff]
        %v2958 = vld [vmem:[%s336 + $0x4228] sm:$0xff]
        %v2959 = vld [vmem:[%s336 + $0x4230] sm:$0xff]
        %v2960 = vld [vmem:[%s336 + $0x4238] sm:$0xff]
        %v2961 = vld [vmem:[%s336 + $0x4240] sm:$0xff]
        %v2962 = vld [vmem:[%s336 + $0x4248] sm:$0xff]
        %v2963 = vld [vmem:[%s336 + $0x4250] sm:$0xff]
        %v2964 = vld [vmem:[%s336 + $0x4258] sm:$0xff]
        %v2965 = vld [vmem:[%s336 + $0x4260] sm:$0xff]
        %v2966 = vld [vmem:[%s336 + $0x4268] sm:$0xff]
        %v2967 = vld [vmem:[%s336 + $0x4270] sm:$0xff]
        %v2968 = vld [vmem:[%s336 + $0x4278] sm:$0xff]
        %v2969 = vld [vmem:[%s336 + $0x4280] sm:$0xff]
        %v2970 = vld [vmem:[%s336 + $0x4288] sm:$0xff]
        %v2971 = vld [vmem:[%s336 + $0x4290] sm:$0xff]
        %v2972 = vld [vmem:[%s336 + $0x4298] sm:$0xff]
        %v2973 = vld [vmem:[%s336 + $0x42a0] sm:$0xff]
        %v2974 = vld [vmem:[%s336 + $0x42a8] sm:$0xff]
        %v2975 = vld [vmem:[%s336 + $0x42b0] sm:$0xff]
        %v2976 = vld [vmem:[%s336 + $0x42b8] sm:$0xff]
        %v2977 = vld [vmem:[%s336 + $0x42c0] sm:$0xff]
        %v2978 = vld [vmem:[%s336 + $0x42c8] sm:$0xff]
        %v2979 = vld [vmem:[%s336 + $0x42d0] sm:$0xff]
        %v2980 = vld [vmem:[%s336 + $0x42d8] sm:$0xff]
        %v2981 = vld [vmem:[%s336 + $0x42e0] sm:$0xff]
        %v2982 = vld [vmem:[%s336 + $0x42e8] sm:$0xff]
        %v2983 = vld [vmem:[%s336 + $0x42f0] sm:$0xff]
        %v2984 = vld [vmem:[%s336 + $0x42f8] sm:$0xff]
        %v2985 = vld [vmem:[%s336 + $0x4300] sm:$0xff]
        %v2986 = vld [vmem:[%s336 + $0x4308] sm:$0xff]
        %v2987 = vld [vmem:[%s336 + $0x4310] sm:$0xff]
        %v2988 = vld [vmem:[%s336 + $0x4318] sm:$0xff]
        %v2989 = vld [vmem:[%s336 + $0x4320] sm:$0xff]
        %v2990 = vld [vmem:[%s336 + $0x4328] sm:$0xff]
        %v2991 = vld [vmem:[%s336 + $0x4330] sm:$0xff]
        %v2992 = vld [vmem:[%s336 + $0x4338] sm:$0xff]
        %v2993 = vld [vmem:[%s336 + $0x4340] sm:$0xff]
        %v2994 = vld [vmem:[%s336 + $0x4348] sm:$0xff]
        %v2995 = vld [vmem:[%s336 + $0x4350] sm:$0xff]
        %v2996 = vld [vmem:[%s336 + $0x4358] sm:$0xff]
        %v2997 = vld [vmem:[%s336 + $0x4360] sm:$0xff]
        %v2998 = vld [vmem:[%s336 + $0x4368] sm:$0xff]
        %v2999 = vld [vmem:[%s336 + $0x4370] sm:$0xff]
        %v3000 = vld [vmem:[%s336 + $0x4378] sm:$0xff]
        %v3001 = vld [vmem:[%s336 + $0x4380] sm:$0xff]
        %v3002 = vld [vmem:[%s336 + $0x4388] sm:$0xff]
        %v3003 = vld [vmem:[%s336 + $0x4390] sm:$0xff]
        %v3004 = vld [vmem:[%s336 + $0x4398] sm:$0xff]
        %v3005 = vld [vmem:[%s336 + $0x43a0] sm:$0xff]
        %v3006 = vld [vmem:[%s336 + $0x43a8] sm:$0xff]
        %v3007 = vld [vmem:[%s336 + $0x43b0] sm:$0xff]
        %v3008 = vld [vmem:[%s336 + $0x43b8] sm:$0xff]
        %v3009 = vld [vmem:[%s336 + $0x43c0] sm:$0xff]
        %v3010 = vld [vmem:[%s336 + $0x43c8] sm:$0xff]
        %v3011 = vld [vmem:[%s336 + $0x43d0] sm:$0xff]
        %v3012 = vld [vmem:[%s336 + $0x43d8] sm:$0xff]
        %v3013 = vld [vmem:[%s336 + $0x43e0] sm:$0xff]
        %v3014 = vld [vmem:[%s336 + $0x43e8] sm:$0xff]
        %v3015 = vld [vmem:[%s336 + $0x43f0] sm:$0xff]
        %v3016 = vld [vmem:[%s336 + $0x43f8] sm:$0xff]
        %v3017 = vld [vmem:[%s336 + $0x4400] sm:$0xff]
        %v3018 = vld [vmem:[%s336 + $0x4408] sm:$0xff]
        %v3019 = vld [vmem:[%s336 + $0x4410] sm:$0xff]
        %v3020 = vld [vmem:[%s336 + $0x4418] sm:$0xff]
        %v3021 = vld [vmem:[%s336 + $0x4420] sm:$0xff]
        %v3022 = vld [vmem:[%s336 + $0x4428] sm:$0xff]
        %v3023 = vld [vmem:[%s336 + $0x4430] sm:$0xff]
        %v3024 = vld [vmem:[%s336 + $0x4438] sm:$0xff]
        %v3025 = vld [vmem:[%s336 + $0x4440] sm:$0xff]
        %v3026 = vld [vmem:[%s336 + $0x4448] sm:$0xff]
        %v3027 = vld [vmem:[%s336 + $0x4450] sm:$0xff]
        %v3028 = vld [vmem:[%s336 + $0x4458] sm:$0xff]
        %v3029 = vld [vmem:[%s336 + $0x4460] sm:$0xff]
        %v3030 = vld [vmem:[%s336 + $0x4468] sm:$0xff]
        %v3031 = vld [vmem:[%s336 + $0x4470] sm:$0xff]
        %v3032 = vld [vmem:[%s336 + $0x4478] sm:$0xff]
        %v3033 = vld [vmem:[%s336 + $0x4480] sm:$0xff]
        %v3034 = vld [vmem:[%s336 + $0x4488] sm:$0xff]
        %v3035 = vld [vmem:[%s336 + $0x4490] sm:$0xff]
        %v3036 = vld [vmem:[%s336 + $0x4498] sm:$0xff]
        %v3037 = vld [vmem:[%s336 + $0x44a0] sm:$0xff]
        %v3038 = vld [vmem:[%s336 + $0x44a8] sm:$0xff]
        %v3039 = vld [vmem:[%s336 + $0x44b0] sm:$0xff]
        %v3040 = vld [vmem:[%s336 + $0x44b8] sm:$0xff]
        %v3041 = vld [vmem:[%s336 + $0x44c0] sm:$0xff]
        %v3042 = vld [vmem:[%s336 + $0x44c8] sm:$0xff]
        %v3043 = vld [vmem:[%s336 + $0x44d0] sm:$0xff]
        %v3044 = vld [vmem:[%s336 + $0x44d8] sm:$0xff]
        %v3045 = vld [vmem:[%s336 + $0x44e0] sm:$0xff]
        %v3046 = vld [vmem:[%s336 + $0x44e8] sm:$0xff]
        %v3047 = vld [vmem:[%s336 + $0x44f0] sm:$0xff]
        %v3048 = vld [vmem:[%s336 + $0x44f8] sm:$0xff]
        %v3049 = vld [vmem:[%s336 + $0x4500] sm:$0xff]
        %v3050 = vld [vmem:[%s336 + $0x4508] sm:$0xff]
        %v3051 = vld [vmem:[%s336 + $0x4510] sm:$0xff]
        %v3052 = vld [vmem:[%s336 + $0x4518] sm:$0xff]
        %v3053 = vld [vmem:[%s336 + $0x4520] sm:$0xff]
        %v3054 = vld [vmem:[%s336 + $0x4528] sm:$0xff]
        %v3055 = vld [vmem:[%s336 + $0x4530] sm:$0xff]
        %v3056 = vld [vmem:[%s336 + $0x4538] sm:$0xff]
        %v3057 = vld [vmem:[%s336 + $0x4540] sm:$0xff]
        %v3058 = vld [vmem:[%s336 + $0x4548] sm:$0xff]
        %v3059 = vld [vmem:[%s336 + $0x4550] sm:$0xff]
        %v3060 = vld [vmem:[%s336 + $0x4558] sm:$0xff]
        %v3061 = vld [vmem:[%s336 + $0x4560] sm:$0xff]
        %v3062 = vld [vmem:[%s336 + $0x4568] sm:$0xff]
        %v3063 = vld [vmem:[%s336 + $0x4570] sm:$0xff]
        %v3064 = vld [vmem:[%s336 + $0x4578] sm:$0xff]
        %v3065 = vld [vmem:[%s336 + $0x4580] sm:$0xff]
        %v3066 = vld [vmem:[%s336 + $0x4588] sm:$0xff]
        %v3067 = vld [vmem:[%s336 + $0x4590] sm:$0xff]
        %v3068 = vld [vmem:[%s336 + $0x4598] sm:$0xff]
        %v3069 = vld [vmem:[%s336 + $0x45a0] sm:$0xff]
        %v3070 = vld [vmem:[%s336 + $0x45a8] sm:$0xff]
        %v3071 = vld [vmem:[%s336 + $0x45b0] sm:$0xff]
        %v3072 = vld [vmem:[%s336 + $0x45b8] sm:$0xff]
        %v3073 = vld [vmem:[%s336 + $0x45c0] sm:$0xff]
        %v3074 = vld [vmem:[%s336 + $0x45c8] sm:$0xff]
        %v3075 = vld [vmem:[%s336 + $0x45d0] sm:$0xff]
        %v3076 = vld [vmem:[%s336 + $0x45d8] sm:$0xff]
        %v3077 = vld [vmem:[%s336 + $0x45e0] sm:$0xff]
        %v3078 = vld [vmem:[%s336 + $0x45e8] sm:$0xff]
        %v3079 = vld [vmem:[%s336 + $0x45f0] sm:$0xff]
        %v3080 = vld [vmem:[%s336 + $0x45f8] sm:$0xff]
        %v3081 = vld [vmem:[%s336 + $0x4600] sm:$0xff]
        %v3082 = vld [vmem:[%s336 + $0x4608] sm:$0xff]
        %v3083 = vld [vmem:[%s336 + $0x4610] sm:$0xff]
        %v3084 = vld [vmem:[%s336 + $0x4618] sm:$0xff]
        %v3085 = vld [vmem:[%s336 + $0x4620] sm:$0xff]
        %v3086 = vld [vmem:[%s336 + $0x4628] sm:$0xff]
        %v3087 = vld [vmem:[%s336 + $0x4630] sm:$0xff]
        %v3088 = vld [vmem:[%s336 + $0x4638] sm:$0xff]
        %v3089 = vld [vmem:[%s336 + $0x4640] sm:$0xff]
        %v3090 = vld [vmem:[%s336 + $0x4648] sm:$0xff]
        %v3091 = vld [vmem:[%s336 + $0x4650] sm:$0xff]
        %v3092 = vld [vmem:[%s336 + $0x4658] sm:$0xff]
        %v3093 = vld [vmem:[%s336 + $0x4660] sm:$0xff]
        %v3094 = vld [vmem:[%s336 + $0x4668] sm:$0xff]
        %v3095 = vld [vmem:[%s336 + $0x4670] sm:$0xff]
        %v3096 = vld [vmem:[%s336 + $0x4678] sm:$0xff]
        %v3097 = vld [vmem:[%s336 + $0x4680] sm:$0xff]
        %v3098 = vld [vmem:[%s336 + $0x4688] sm:$0xff]
        %v3099 = vld [vmem:[%s336 + $0x4690] sm:$0xff]
        %v3100 = vld [vmem:[%s336 + $0x4698] sm:$0xff]
        %v3101 = vld [vmem:[%s336 + $0x46a0] sm:$0xff]
        %v3102 = vld [vmem:[%s336 + $0x46a8] sm:$0xff]
        %v3103 = vld [vmem:[%s336 + $0x46b0] sm:$0xff]
        %v3104 = vld [vmem:[%s336 + $0x46b8] sm:$0xff]
        %v3105 = vld [vmem:[%s336 + $0x46c0] sm:$0xff]
        %v3106 = vld [vmem:[%s336 + $0x46c8] sm:$0xff]
        %v3107 = vld [vmem:[%s336 + $0x46d0] sm:$0xff]
        %v3108 = vld [vmem:[%s336 + $0x46d8] sm:$0xff]
        %v3109 = vld [vmem:[%s336 + $0x46e0] sm:$0xff]
        %v3110 = vld [vmem:[%s336 + $0x46e8] sm:$0xff]
        %v3111 = vld [vmem:[%s336 + $0x46f0] sm:$0xff]
        %v3112 = vld [vmem:[%s336 + $0x46f8] sm:$0xff]
        %v3113 = vld [vmem:[%s336 + $0x4700] sm:$0xff]
        %v3114 = vld [vmem:[%s336 + $0x4708] sm:$0xff]
        %v3115 = vld [vmem:[%s336 + $0x4710] sm:$0xff]
        %v3116 = vld [vmem:[%s336 + $0x4718] sm:$0xff]
        %v3117 = vld [vmem:[%s336 + $0x4720] sm:$0xff]
        %v3118 = vld [vmem:[%s336 + $0x4728] sm:$0xff]
        %v3119 = vld [vmem:[%s336 + $0x4730] sm:$0xff]
        %v3120 = vld [vmem:[%s336 + $0x4738] sm:$0xff]
        %v3121 = vld [vmem:[%s336 + $0x4740] sm:$0xff]
        %v3122 = vld [vmem:[%s336 + $0x4748] sm:$0xff]
        %v3123 = vld [vmem:[%s336 + $0x4750] sm:$0xff]
        %v3124 = vld [vmem:[%s336 + $0x4758] sm:$0xff]
        %v3125 = vld [vmem:[%s336 + $0x4760] sm:$0xff]
        %v3126 = vld [vmem:[%s336 + $0x4768] sm:$0xff]
        %v3127 = vld [vmem:[%s336 + $0x4770] sm:$0xff]
        %v3128 = vld [vmem:[%s336 + $0x4778] sm:$0xff]
        %v3129 = vld [vmem:[%s336 + $0x4780] sm:$0xff]
        %v3130 = vld [vmem:[%s336 + $0x4788] sm:$0xff]
        %v3131 = vld [vmem:[%s336 + $0x4790] sm:$0xff]
        %v3132 = vld [vmem:[%s336 + $0x4798] sm:$0xff]
        %v3133 = vld [vmem:[%s336 + $0x47a0] sm:$0xff]
        %v3134 = vld [vmem:[%s336 + $0x47a8] sm:$0xff]
        %v3135 = vld [vmem:[%s336 + $0x47b0] sm:$0xff]
        %v3136 = vld [vmem:[%s336 + $0x47b8] sm:$0xff]
        %v3137 = vld [vmem:[%s336 + $0x47c0] sm:$0xff]
        %v3138 = vld [vmem:[%s336 + $0x47c8] sm:$0xff]
        %v3139 = vld [vmem:[%s336 + $0x47d0] sm:$0xff]
        %v3140 = vld [vmem:[%s336 + $0x47d8] sm:$0xff]
        %v3141 = vld [vmem:[%s336 + $0x47e0] sm:$0xff]
        %v3142 = vld [vmem:[%s336 + $0x47e8] sm:$0xff]
        %v3143 = vld [vmem:[%s336 + $0x47f0] sm:$0xff]
        %v3144 = vld [vmem:[%s336 + $0x47f8] sm:$0xff]
        %v3145 = vld [vmem:[%s336 + $0x4800] sm:$0xff]
        %v3146 = vld [vmem:[%s336 + $0x4808] sm:$0xff]
        %v3147 = vld [vmem:[%s336 + $0x4810] sm:$0xff]
        %v3148 = vld [vmem:[%s336 + $0x4818] sm:$0xff]
        %v3149 = vld [vmem:[%s336 + $0x4820] sm:$0xff]
        %v3150 = vld [vmem:[%s336 + $0x4828] sm:$0xff]
        %v3151 = vld [vmem:[%s336 + $0x4830] sm:$0xff]
        %v3152 = vld [vmem:[%s336 + $0x4838] sm:$0xff]
        %v3153 = vld [vmem:[%s336 + $0x4840] sm:$0xff]
        %v3154 = vld [vmem:[%s336 + $0x4848] sm:$0xff]
        %v3155 = vld [vmem:[%s336 + $0x4850] sm:$0xff]
        %v3156 = vld [vmem:[%s336 + $0x4858] sm:$0xff]
        %v3157 = vld [vmem:[%s336 + $0x4860] sm:$0xff]
        %v3158 = vld [vmem:[%s336 + $0x4868] sm:$0xff]
        %v3159 = vld [vmem:[%s336 + $0x4870] sm:$0xff]
        %v3160 = vld [vmem:[%s336 + $0x4878] sm:$0xff]
        %v3161 = vld [vmem:[%s336 + $0x4880] sm:$0xff]
        %v3162 = vld [vmem:[%s336 + $0x4888] sm:$0xff]
        %v3163 = vld [vmem:[%s336 + $0x4890] sm:$0xff]
        %v3164 = vld [vmem:[%s336 + $0x4898] sm:$0xff]
        %v3165 = vld [vmem:[%s336 + $0x48a0] sm:$0xff]
        %v3166 = vld [vmem:[%s336 + $0x48a8] sm:$0xff]
        %v3167 = vld [vmem:[%s336 + $0x48b0] sm:$0xff]
        %v3168 = vld [vmem:[%s336 + $0x48b8] sm:$0xff]
        %v3169 = vld [vmem:[%s336 + $0x48c0] sm:$0xff]
        %v3170 = vld [vmem:[%s336 + $0x48c8] sm:$0xff]
        %v3171 = vld [vmem:[%s336 + $0x48d0] sm:$0xff]
        %v3172 = vld [vmem:[%s336 + $0x48d8] sm:$0xff]
        %v3173 = vld [vmem:[%s336 + $0x48e0] sm:$0xff]
        %v3174 = vld [vmem:[%s336 + $0x48e8] sm:$0xff]
        %v3175 = vld [vmem:[%s336 + $0x48f0] sm:$0xff]
        %v3176 = vld [vmem:[%s336 + $0x48f8] sm:$0xff]
        %v3177 = vld [vmem:[%s336 + $0x4900] sm:$0xff]
        %v3178 = vld [vmem:[%s336 + $0x4908] sm:$0xff]
        %v3179 = vld [vmem:[%s336 + $0x4910] sm:$0xff]
        %v3180 = vld [vmem:[%s336 + $0x4918] sm:$0xff]
        %v3181 = vld [vmem:[%s336 + $0x4920] sm:$0xff]
        %v3182 = vld [vmem:[%s336 + $0x4928] sm:$0xff]
        %v3183 = vld [vmem:[%s336 + $0x4930] sm:$0xff]
        %v3184 = vld [vmem:[%s336 + $0x4938] sm:$0xff]
        %v3185 = vld [vmem:[%s336 + $0x4940] sm:$0xff]
        %v3186 = vld [vmem:[%s336 + $0x4948] sm:$0xff]
        %v3187 = vld [vmem:[%s336 + $0x4950] sm:$0xff]
        %v3188 = vld [vmem:[%s336 + $0x4958] sm:$0xff]
        %v3189 = vld [vmem:[%s336 + $0x4960] sm:$0xff]
        %v3190 = vld [vmem:[%s336 + $0x4968] sm:$0xff]
        %v3191 = vld [vmem:[%s336 + $0x4970] sm:$0xff]
        %v3192 = vld [vmem:[%s336 + $0x4978] sm:$0xff]
        %v3193 = vld [vmem:[%s336 + $0x4980] sm:$0xff]
        %v3194 = vld [vmem:[%s336 + $0x4988] sm:$0xff]
        %v3195 = vld [vmem:[%s336 + $0x4990] sm:$0xff]
        %v3196 = vld [vmem:[%s336 + $0x4998] sm:$0xff]
        %v3197 = vld [vmem:[%s336 + $0x49a0] sm:$0xff]
        %v3198 = vld [vmem:[%s336 + $0x49a8] sm:$0xff]
        %v3199 = vld [vmem:[%s336 + $0x49b0] sm:$0xff]
        %v3200 = vld [vmem:[%s336 + $0x49b8] sm:$0xff]
        %v3201 = vld [vmem:[%s336 + $0x49c0] sm:$0xff]
        %v3202 = vld [vmem:[%s336 + $0x49c8] sm:$0xff]
        %v3203 = vld [vmem:[%s336 + $0x49d0] sm:$0xff]
        %v3204 = vld [vmem:[%s336 + $0x49d8] sm:$0xff]
        %v3205 = vld [vmem:[%s336 + $0x49e0] sm:$0xff]
        %v3206 = vld [vmem:[%s336 + $0x49e8] sm:$0xff]
        %v3207 = vld [vmem:[%s336 + $0x49f0] sm:$0xff]
        %v3208 = vld [vmem:[%s336 + $0x49f8] sm:$0xff]
        %v3209 = vld [vmem:[%s336 + $0x4a00] sm:$0xff]
        %v3210 = vld [vmem:[%s336 + $0x4a08] sm:$0xff]
        %v3211 = vld [vmem:[%s336 + $0x4a10] sm:$0xff]
        %v3212 = vld [vmem:[%s336 + $0x4a18] sm:$0xff]
        %v3213 = vld [vmem:[%s336 + $0x4a20] sm:$0xff]
        %v3214 = vld [vmem:[%s336 + $0x4a28] sm:$0xff]
        %v3215 = vld [vmem:[%s336 + $0x4a30] sm:$0xff]
        %v3216 = vld [vmem:[%s336 + $0x4a38] sm:$0xff]
        %v3217 = vld [vmem:[%s336 + $0x4a40] sm:$0xff]
        %v3218 = vld [vmem:[%s336 + $0x4a48] sm:$0xff]
        %v3219 = vld [vmem:[%s336 + $0x4a50] sm:$0xff]
        %v3220 = vld [vmem:[%s336 + $0x4a58] sm:$0xff]
        %v3221 = vld [vmem:[%s336 + $0x4a60] sm:$0xff]
        %v3222 = vld [vmem:[%s336 + $0x4a68] sm:$0xff]
        %v3223 = vld [vmem:[%s336 + $0x4a70] sm:$0xff]
        %v3224 = vld [vmem:[%s336 + $0x4a78] sm:$0xff]
        %v3225 = vld [vmem:[%s336 + $0x4a80] sm:$0xff]
        %v3226 = vld [vmem:[%s336 + $0x4a88] sm:$0xff]
        %v3227 = vld [vmem:[%s336 + $0x4a90] sm:$0xff]
        %v3228 = vld [vmem:[%s336 + $0x4a98] sm:$0xff]
        %v3229 = vld [vmem:[%s336 + $0x4aa0] sm:$0xff]
        %v3230 = vld [vmem:[%s336 + $0x4aa8] sm:$0xff]
        %v3231 = vld [vmem:[%s336 + $0x4ab0] sm:$0xff]
        %v3232 = vld [vmem:[%s336 + $0x4ab8] sm:$0xff]
        %v3233 = vld [vmem:[%s336 + $0x4ac0] sm:$0xff]
        %v3234 = vld [vmem:[%s336 + $0x4ac8] sm:$0xff]
        %v3235 = vld [vmem:[%s336 + $0x4ad0] sm:$0xff]
        %v3236 = vld [vmem:[%s336 + $0x4ad8] sm:$0xff]
        %v3237 = vld [vmem:[%s336 + $0x4ae0] sm:$0xff]
        %v3238 = vld [vmem:[%s336 + $0x4ae8] sm:$0xff]
        %v3239 = vld [vmem:[%s336 + $0x4af0] sm:$0xff]
        %v3240 = vld [vmem:[%s336 + $0x4af8] sm:$0xff]
        %v3241 = vld [vmem:[%s336 + $0x4b00] sm:$0xff]
        %v3242 = vld [vmem:[%s336 + $0x4b08] sm:$0xff]
        %v3243 = vld [vmem:[%s336 + $0x4b10] sm:$0xff]
        %v3244 = vld [vmem:[%s336 + $0x4b18] sm:$0xff]
        %v3245 = vld [vmem:[%s336 + $0x4b20] sm:$0xff]
        %v3246 = vld [vmem:[%s336 + $0x4b28] sm:$0xff]
        %v3247 = vld [vmem:[%s336 + $0x4b30] sm:$0xff]
        %v3248 = vld [vmem:[%s336 + $0x4b38] sm:$0xff]
        %v3249 = vld [vmem:[%s336 + $0x4b40] sm:$0xff]
        %v3250 = vld [vmem:[%s336 + $0x4b48] sm:$0xff]
        %v3251 = vld [vmem:[%s336 + $0x4b50] sm:$0xff]
        %v3252 = vld [vmem:[%s336 + $0x4b58] sm:$0xff]
        %v3253 = vld [vmem:[%s336 + $0x4b60] sm:$0xff]
        %v3254 = vld [vmem:[%s336 + $0x4b68] sm:$0xff]
        %v3255 = vld [vmem:[%s336 + $0x4b70] sm:$0xff]
        %v3256 = vld [vmem:[%s336 + $0x4b78] sm:$0xff]
        %v3257 = vld [vmem:[%s336 + $0x4b80] sm:$0xff]
        %v3258 = vld [vmem:[%s336 + $0x4b88] sm:$0xff]
        %v3259 = vld [vmem:[%s336 + $0x4b90] sm:$0xff]
        %v3260 = vld [vmem:[%s336 + $0x4b98] sm:$0xff]
        %v3261 = vld [vmem:[%s336 + $0x4ba0] sm:$0xff]
        %v3262 = vld [vmem:[%s336 + $0x4ba8] sm:$0xff]
        %v3263 = vld [vmem:[%s336 + $0x4bb0] sm:$0xff]
        %v3264 = vld [vmem:[%s336 + $0x4bb8] sm:$0xff]
        %v3265 = vld [vmem:[%s336 + $0x4bc0] sm:$0xff]
        %v3266 = vld [vmem:[%s336 + $0x4bc8] sm:$0xff]
        %v3267 = vld [vmem:[%s336 + $0x4bd0] sm:$0xff]
        %v3268 = vld [vmem:[%s336 + $0x4bd8] sm:$0xff]
        %v3269 = vld [vmem:[%s336 + $0x4be0] sm:$0xff]
        %v3270 = vld [vmem:[%s336 + $0x4be8] sm:$0xff]
        %v3271 = vld [vmem:[%s336 + $0x4bf0] sm:$0xff]
        %v3272 = vld [vmem:[%s336 + $0x4bf8] sm:$0xff]
        %v3273 = vld [vmem:[%s336 + $0x4c00] sm:$0xff]
        %v3274 = vld [vmem:[%s336 + $0x4c08] sm:$0xff]
        %v3275 = vld [vmem:[%s336 + $0x4c10] sm:$0xff]
        %v3276 = vld [vmem:[%s336 + $0x4c18] sm:$0xff]
        %v3277 = vld [vmem:[%s336 + $0x4c20] sm:$0xff]
        %v3278 = vld [vmem:[%s336 + $0x4c28] sm:$0xff]
        %v3279 = vld [vmem:[%s336 + $0x4c30] sm:$0xff]
        %v3280 = vld [vmem:[%s336 + $0x4c38] sm:$0xff]
        %v3281 = vld [vmem:[%s336 + $0x4c40] sm:$0xff]
        %v3282 = vld [vmem:[%s336 + $0x4c48] sm:$0xff]
        %v3283 = vld [vmem:[%s336 + $0x4c50] sm:$0xff]
        %v3284 = vld [vmem:[%s336 + $0x4c58] sm:$0xff]
        %v3285 = vld [vmem:[%s336 + $0x4c60] sm:$0xff]
        %v3286 = vld [vmem:[%s336 + $0x4c68] sm:$0xff]
        %v3287 = vld [vmem:[%s336 + $0x4c70] sm:$0xff]
        %v3288 = vld [vmem:[%s336 + $0x4c78] sm:$0xff]
        %v3289 = vld [vmem:[%s336 + $0x4c80] sm:$0xff]
        %v3290 = vld [vmem:[%s336 + $0x4c88] sm:$0xff]
        %v3291 = vld [vmem:[%s336 + $0x4c90] sm:$0xff]
        %v3292 = vld [vmem:[%s336 + $0x4c98] sm:$0xff]
        %v3293 = vld [vmem:[%s336 + $0x4ca0] sm:$0xff]
        %v3294 = vld [vmem:[%s336 + $0x4ca8] sm:$0xff]
        %v3295 = vld [vmem:[%s336 + $0x4cb0] sm:$0xff]
        %v3296 = vld [vmem:[%s336 + $0x4cb8] sm:$0xff]
        %v3297 = vld [vmem:[%s336 + $0x4cc0] sm:$0xff]
        %v3298 = vld [vmem:[%s336 + $0x4cc8] sm:$0xff]
        %v3299 = vld [vmem:[%s336 + $0x4cd0] sm:$0xff]
        %v3300 = vld [vmem:[%s336 + $0x4cd8] sm:$0xff]
        %v3301 = vld [vmem:[%s336 + $0x4ce0] sm:$0xff]
        %v3302 = vld [vmem:[%s336 + $0x4ce8] sm:$0xff]
        %v3303 = vld [vmem:[%s336 + $0x4cf0] sm:$0xff]
        %v3304 = vld [vmem:[%s336 + $0x4cf8] sm:$0xff]
        %v3305 = vld [vmem:[%s336 + $0x4d00] sm:$0xff]
        %v3306 = vld [vmem:[%s336 + $0x4d08] sm:$0xff]
        %v3307 = vld [vmem:[%s336 + $0x4d10] sm:$0xff]
        %v3308 = vld [vmem:[%s336 + $0x4d18] sm:$0xff]
        %v3309 = vld [vmem:[%s336 + $0x4d20] sm:$0xff]
        %v3310 = vld [vmem:[%s336 + $0x4d28] sm:$0xff]
        %v3311 = vld [vmem:[%s336 + $0x4d30] sm:$0xff]
        %v3312 = vld [vmem:[%s336 + $0x4d38] sm:$0xff]
        %v3313 = vld [vmem:[%s336 + $0x4d40] sm:$0xff]
        %v3314 = vld [vmem:[%s336 + $0x4d48] sm:$0xff]
        %v3315 = vld [vmem:[%s336 + $0x4d50] sm:$0xff]
        %v3316 = vld [vmem:[%s336 + $0x4d58] sm:$0xff]
        %v3317 = vld [vmem:[%s336 + $0x4d60] sm:$0xff]
        %v3318 = vld [vmem:[%s336 + $0x4d68] sm:$0xff]
        %v3319 = vld [vmem:[%s336 + $0x4d70] sm:$0xff]
        %v3320 = vld [vmem:[%s336 + $0x4d78] sm:$0xff]
        %v3321 = vld [vmem:[%s336 + $0x4d80] sm:$0xff]
        %v3322 = vld [vmem:[%s336 + $0x4d88] sm:$0xff]
        %v3323 = vld [vmem:[%s336 + $0x4d90] sm:$0xff]
        %v3324 = vld [vmem:[%s336 + $0x4d98] sm:$0xff]
        %v3325 = vld [vmem:[%s336 + $0x4da0] sm:$0xff]
        %v3326 = vld [vmem:[%s336 + $0x4da8] sm:$0xff]
        %v3327 = vld [vmem:[%s336 + $0x4db0] sm:$0xff]
        %v3328 = vld [vmem:[%s336 + $0x4db8] sm:$0xff]
        %v3329 = vld [vmem:[%s336 + $0x4dc0] sm:$0xff]
        %v3330 = vld [vmem:[%s336 + $0x4dc8] sm:$0xff]
        %v3331 = vld [vmem:[%s336 + $0x4dd0] sm:$0xff]
        %v3332 = vld [vmem:[%s336 + $0x4dd8] sm:$0xff]
        %v3333 = vld [vmem:[%s336 + $0x4de0] sm:$0xff]
        %v3334 = vld [vmem:[%s336 + $0x4de8] sm:$0xff]
        %v3335 = vld [vmem:[%s336 + $0x4df0] sm:$0xff]
        %v3336 = vld [vmem:[%s336 + $0x4df8] sm:$0xff]
        %v3337 = vld [vmem:[%s336 + $0x4e00] sm:$0xff]
        %v3338 = vld [vmem:[%s336 + $0x4e08] sm:$0xff]
        %v3339 = vld [vmem:[%s336 + $0x4e10] sm:$0xff]
        %v3340 = vld [vmem:[%s336 + $0x4e18] sm:$0xff]
        %v3341 = vld [vmem:[%s336 + $0x4e20] sm:$0xff]
        %v3342 = vld [vmem:[%s336 + $0x4e28] sm:$0xff]
        %v3343 = vld [vmem:[%s336 + $0x4e30] sm:$0xff]
        %v3344 = vld [vmem:[%s336 + $0x4e38] sm:$0xff]
        %v3345 = vld [vmem:[%s336 + $0x4e40] sm:$0xff]
        %v3346 = vld [vmem:[%s336 + $0x4e48] sm:$0xff]
        %v3347 = vld [vmem:[%s336 + $0x4e50] sm:$0xff]
        %v3348 = vld [vmem:[%s336 + $0x4e58] sm:$0xff]
        %v3349 = vld [vmem:[%s336 + $0x4e60] sm:$0xff]
        %v3350 = vld [vmem:[%s336 + $0x4e68] sm:$0xff]
        %v3351 = vld [vmem:[%s336 + $0x4e70] sm:$0xff]
        %v3352 = vld [vmem:[%s336 + $0x4e78] sm:$0xff]
        %v3353 = vld [vmem:[%s336 + $0x4e80] sm:$0xff]
        %v3354 = vld [vmem:[%s336 + $0x4e88] sm:$0xff]
        %v3355 = vld [vmem:[%s336 + $0x4e90] sm:$0xff]
        %v3356 = vld [vmem:[%s336 + $0x4e98] sm:$0xff]
        %v3357 = vld [vmem:[%s336 + $0x4ea0] sm:$0xff]
        %v3358 = vld [vmem:[%s336 + $0x4ea8] sm:$0xff]
        %v3359 = vld [vmem:[%s336 + $0x4eb0] sm:$0xff]
        %v3360 = vld [vmem:[%s336 + $0x4eb8] sm:$0xff]
        %v3361 = vld [vmem:[%s336 + $0x4ec0] sm:$0xff]
        %v3362 = vld [vmem:[%s336 + $0x4ec8] sm:$0xff]
        %v3363 = vld [vmem:[%s336 + $0x4ed0] sm:$0xff]
        %v3364 = vld [vmem:[%s336 + $0x4ed8] sm:$0xff]
        %v3365 = vld [vmem:[%s336 + $0x4ee0] sm:$0xff]
        %v3366 = vld [vmem:[%s336 + $0x4ee8] sm:$0xff]
        %v3367 = vld [vmem:[%s336 + $0x4ef0] sm:$0xff]
        %v3368 = vld [vmem:[%s336 + $0x4ef8] sm:$0xff]
        %v3369 = vld [vmem:[%s336 + $0x4f00] sm:$0xff]
        %v3370 = vld [vmem:[%s336 + $0x4f08] sm:$0xff]
        %v3371 = vld [vmem:[%s336 + $0x4f10] sm:$0xff]
        %v3372 = vld [vmem:[%s336 + $0x4f18] sm:$0xff]
        %v3373 = vld [vmem:[%s336 + $0x4f20] sm:$0xff]
        %v3374 = vld [vmem:[%s336 + $0x4f28] sm:$0xff]
        %v3375 = vld [vmem:[%s336 + $0x4f30] sm:$0xff]
        %v3376 = vld [vmem:[%s336 + $0x4f38] sm:$0xff]
        %v3377 = vld [vmem:[%s336 + $0x4f40] sm:$0xff]
        %v3378 = vld [vmem:[%s336 + $0x4f48] sm:$0xff]
        %v3379 = vld [vmem:[%s336 + $0x4f50] sm:$0xff]
        %v3380 = vld [vmem:[%s336 + $0x4f58] sm:$0xff]
        %v3381 = vld [vmem:[%s336 + $0x4f60] sm:$0xff]
        %v3382 = vld [vmem:[%s336 + $0x4f68] sm:$0xff]
        %v3383 = vld [vmem:[%s336 + $0x4f70] sm:$0xff]
        %v3384 = vld [vmem:[%s336 + $0x4f78] sm:$0xff]
        %v3385 = vld [vmem:[%s336 + $0x4f80] sm:$0xff]
        %v3386 = vld [vmem:[%s336 + $0x4f88] sm:$0xff]
        %v3387 = vld [vmem:[%s336 + $0x4f90] sm:$0xff]
        %v3388 = vld [vmem:[%s336 + $0x4f98] sm:$0xff]
        %v3389 = vld [vmem:[%s336 + $0x4fa0] sm:$0xff]
        %v3390 = vld [vmem:[%s336 + $0x4fa8] sm:$0xff]
        %v3391 = vld [vmem:[%s336 + $0x4fb0] sm:$0xff]
        %v3392 = vld [vmem:[%s336 + $0x4fb8] sm:$0xff]
        %v3393 = vld [vmem:[%s336 + $0x4fc0] sm:$0xff]
        %v3394 = vld [vmem:[%s336 + $0x4fc8] sm:$0xff]
        %v3395 = vld [vmem:[%s336 + $0x4fd0] sm:$0xff]
        %v3396 = vld [vmem:[%s336 + $0x4fd8] sm:$0xff]
        %v3397 = vld [vmem:[%s336 + $0x4fe0] sm:$0xff]
        %v3398 = vld [vmem:[%s336 + $0x4fe8] sm:$0xff]
        %v3399 = vld [vmem:[%s336 + $0x4ff0] sm:$0xff]
        %v3400 = vld [vmem:[%s336 + $0x4ff8] sm:$0xff]
        %v3401 = vld [vmem:[%s336 + $0x5000] sm:$0xff]
        %v3402 = vld [vmem:[%s336 + $0x5008] sm:$0xff]
        %v3403 = vld [vmem:[%s336 + $0x5010] sm:$0xff]
        %v3404 = vld [vmem:[%s336 + $0x5018] sm:$0xff]
        %v3405 = vld [vmem:[%s336 + $0x5020] sm:$0xff]
        %v3406 = vld [vmem:[%s336 + $0x5028] sm:$0xff]
        %v3407 = vld [vmem:[%s336 + $0x5030] sm:$0xff]
        %v3408 = vld [vmem:[%s336 + $0x5038] sm:$0xff]
        %v3409 = vld [vmem:[%s336 + $0x5040] sm:$0xff]
        %v3410 = vld [vmem:[%s336 + $0x5048] sm:$0xff]
        %v3411 = vld [vmem:[%s336 + $0x5050] sm:$0xff]
        %v3412 = vld [vmem:[%s336 + $0x5058] sm:$0xff]
        %v3413 = vld [vmem:[%s336 + $0x5060] sm:$0xff]
        %v3414 = vld [vmem:[%s336 + $0x5068] sm:$0xff]
        %v3415 = vld [vmem:[%s336 + $0x5070] sm:$0xff]
        %v3416 = vld [vmem:[%s336 + $0x5078] sm:$0xff]
        %v3417 = vld [vmem:[%s336 + $0x5080] sm:$0xff]
        %v3418 = vld [vmem:[%s336 + $0x5088] sm:$0xff]
        %v3419 = vld [vmem:[%s336 + $0x5090] sm:$0xff]
        %v3420 = vld [vmem:[%s336 + $0x5098] sm:$0xff]
        %v3421 = vld [vmem:[%s336 + $0x50a0] sm:$0xff]
        %v3422 = vld [vmem:[%s336 + $0x50a8] sm:$0xff]
        %v3423 = vld [vmem:[%s336 + $0x50b0] sm:$0xff]
        %v3424 = vld [vmem:[%s336 + $0x50b8] sm:$0xff]
        %v3425 = vld [vmem:[%s336 + $0x50c0] sm:$0xff]
        %v3426 = vld [vmem:[%s336 + $0x50c8] sm:$0xff]
        %v3427 = vld [vmem:[%s336 + $0x50d0] sm:$0xff]
        %v3428 = vld [vmem:[%s336 + $0x50d8] sm:$0xff]
        %v3429 = vld [vmem:[%s336 + $0x50e0] sm:$0xff]
        %v3430 = vld [vmem:[%s336 + $0x50e8] sm:$0xff]
        %v3431 = vld [vmem:[%s336 + $0x50f0] sm:$0xff]
        %v3432 = vld [vmem:[%s336 + $0x50f8] sm:$0xff]
        %v3433 = vld [vmem:[%s336 + $0x5100] sm:$0xff]
        %v3434 = vld [vmem:[%s336 + $0x5108] sm:$0xff]
        %v3435 = vld [vmem:[%s336 + $0x5110] sm:$0xff]
        %v3436 = vld [vmem:[%s336 + $0x5118] sm:$0xff]
        %v3437 = vld [vmem:[%s336 + $0x5120] sm:$0xff]
        %v3438 = vld [vmem:[%s336 + $0x5128] sm:$0xff]
        %v3439 = vld [vmem:[%s336 + $0x5130] sm:$0xff]
        %v3440 = vld [vmem:[%s336 + $0x5138] sm:$0xff]
        %v3441 = vld [vmem:[%s336 + $0x5140] sm:$0xff]
        %v3442 = vld [vmem:[%s336 + $0x5148] sm:$0xff]
        %v3443 = vld [vmem:[%s336 + $0x5150] sm:$0xff]
        %v3444 = vld [vmem:[%s336 + $0x5158] sm:$0xff]
        %v3445 = vld [vmem:[%s336 + $0x5160] sm:$0xff]
        %v3446 = vld [vmem:[%s336 + $0x5168] sm:$0xff]
        %v3447 = vld [vmem:[%s336 + $0x5170] sm:$0xff]
        %v3448 = vld [vmem:[%s336 + $0x5178] sm:$0xff]
        %v3449 = vld [vmem:[%s336 + $0x5180] sm:$0xff]
        %v3450 = vld [vmem:[%s336 + $0x5188] sm:$0xff]
        %v3451 = vld [vmem:[%s336 + $0x5190] sm:$0xff]
        %v3452 = vld [vmem:[%s336 + $0x5198] sm:$0xff]
        %v3453 = vld [vmem:[%s336 + $0x51a0] sm:$0xff]
        %v3454 = vld [vmem:[%s336 + $0x51a8] sm:$0xff]
        %v3455 = vld [vmem:[%s336 + $0x51b0] sm:$0xff]
        %v3456 = vld [vmem:[%s336 + $0x51b8] sm:$0xff]
        %v3457 = vld [vmem:[%s336 + $0x51c0] sm:$0xff]
        %v3458 = vld [vmem:[%s336 + $0x51c8] sm:$0xff]
        %v3459 = vld [vmem:[%s336 + $0x51d0] sm:$0xff]
        %v3460 = vld [vmem:[%s336 + $0x51d8] sm:$0xff]
        %v3461 = vld [vmem:[%s336 + $0x51e0] sm:$0xff]
        %v3462 = vld [vmem:[%s336 + $0x51e8] sm:$0xff]
        %v3463 = vld [vmem:[%s336 + $0x51f0] sm:$0xff]
        %v3464 = vld [vmem:[%s336 + $0x51f8] sm:$0xff]
        %v3465 = vld [vmem:[%s336 + $0x5200] sm:$0xff]
        %v3466 = vld [vmem:[%s336 + $0x5208] sm:$0xff]
        %v3467 = vld [vmem:[%s336 + $0x5210] sm:$0xff]
        %v3468 = vld [vmem:[%s336 + $0x5218] sm:$0xff]
        %v3469 = vld [vmem:[%s336 + $0x5220] sm:$0xff]
        %v3470 = vld [vmem:[%s336 + $0x5228] sm:$0xff]
        %v3471 = vld [vmem:[%s336 + $0x5230] sm:$0xff]
        %v3472 = vld [vmem:[%s336 + $0x5238] sm:$0xff]
        %v3473 = vld [vmem:[%s336 + $0x5240] sm:$0xff]
        %v3474 = vld [vmem:[%s336 + $0x5248] sm:$0xff]
        %v3475 = vld [vmem:[%s336 + $0x5250] sm:$0xff]
        %v3476 = vld [vmem:[%s336 + $0x5258] sm:$0xff]
        %v3477 = vld [vmem:[%s336 + $0x5260] sm:$0xff]
        %v3478 = vld [vmem:[%s336 + $0x5268] sm:$0xff]
        %v3479 = vld [vmem:[%s336 + $0x5270] sm:$0xff]
        %v3480 = vld [vmem:[%s336 + $0x5278] sm:$0xff]
        %v3481 = vld [vmem:[%s336 + $0x5280] sm:$0xff]
        %v3482 = vld [vmem:[%s336 + $0x5288] sm:$0xff]
        %v3483 = vld [vmem:[%s336 + $0x5290] sm:$0xff]
        %v3484 = vld [vmem:[%s336 + $0x5298] sm:$0xff]
        %v3485 = vld [vmem:[%s336 + $0x52a0] sm:$0xff]
        %v3486 = vld [vmem:[%s336 + $0x52a8] sm:$0xff]
        %v3487 = vld [vmem:[%s336 + $0x52b0] sm:$0xff]
        %v3488 = vld [vmem:[%s336 + $0x52b8] sm:$0xff]
        %v3489 = vld [vmem:[%s336 + $0x52c0] sm:$0xff]
        %v3490 = vld [vmem:[%s336 + $0x52c8] sm:$0xff]
        %v3491 = vld [vmem:[%s336 + $0x52d0] sm:$0xff]
        %v3492 = vld [vmem:[%s336 + $0x52d8] sm:$0xff]
        %v3493 = vld [vmem:[%s336 + $0x52e0] sm:$0xff]
        %v3494 = vld [vmem:[%s336 + $0x52e8] sm:$0xff]
        %v3495 = vld [vmem:[%s336 + $0x52f0] sm:$0xff]
        %v3496 = vld [vmem:[%s336 + $0x52f8] sm:$0xff]
        %v3497 = vld [vmem:[%s336 + $0x5300] sm:$0xff]
        %v3498 = vld [vmem:[%s336 + $0x5308] sm:$0xff]
        %v3499 = vld [vmem:[%s336 + $0x5310] sm:$0xff]
        %v3500 = vld [vmem:[%s336 + $0x5318] sm:$0xff]
        %v3501 = vld [vmem:[%s336 + $0x5320] sm:$0xff]
        %v3502 = vld [vmem:[%s336 + $0x5328] sm:$0xff]
        %v3503 = vld [vmem:[%s336 + $0x5330] sm:$0xff]
        %v3504 = vld [vmem:[%s336 + $0x5338] sm:$0xff]
        %v3505 = vld [vmem:[%s336 + $0x5340] sm:$0xff]
        %v3506 = vld [vmem:[%s336 + $0x5348] sm:$0xff]
        %v3507 = vld [vmem:[%s336 + $0x5350] sm:$0xff]
        %v3508 = vld [vmem:[%s336 + $0x5358] sm:$0xff]
        %v3509 = vld [vmem:[%s336 + $0x5360] sm:$0xff]
        %v3510 = vld [vmem:[%s336 + $0x5368] sm:$0xff]
        %v3511 = vld [vmem:[%s336 + $0x5370] sm:$0xff]
        %v3512 = vld [vmem:[%s336 + $0x5378] sm:$0xff]
        %v3513 = vld [vmem:[%s336 + $0x5380] sm:$0xff]
        %v3514 = vld [vmem:[%s336 + $0x5388] sm:$0xff]
        %v3515 = vld [vmem:[%s336 + $0x5390] sm:$0xff]
        %v3516 = vld [vmem:[%s336 + $0x5398] sm:$0xff]
        %v3517 = vld [vmem:[%s336 + $0x53a0] sm:$0xff]
        %v3518 = vld [vmem:[%s336 + $0x53a8] sm:$0xff]
        %v3519 = vld [vmem:[%s336 + $0x53b0] sm:$0xff]
        %v3520 = vld [vmem:[%s336 + $0x53b8] sm:$0xff]
        %v3521 = vld [vmem:[%s336 + $0x53c0] sm:$0xff]
        %v3522 = vld [vmem:[%s336 + $0x53c8] sm:$0xff]
        %v3523 = vld [vmem:[%s336 + $0x53d0] sm:$0xff]
        %v3524 = vld [vmem:[%s336 + $0x53d8] sm:$0xff]
        %v3525 = vld [vmem:[%s336 + $0x53e0] sm:$0xff]
        %v3526 = vld [vmem:[%s336 + $0x53e8] sm:$0xff]
        %v3527 = vld [vmem:[%s336 + $0x53f0] sm:$0xff]
        %v3528 = vld [vmem:[%s336 + $0x53f8] sm:$0xff]
        %v3529 = vld [vmem:[%s336 + $0x5400] sm:$0xff]
        %v3530 = vld [vmem:[%s336 + $0x5408] sm:$0xff]
        %v3531 = vld [vmem:[%s336 + $0x5410] sm:$0xff]
        %v3532 = vld [vmem:[%s336 + $0x5418] sm:$0xff]
        %v3533 = vld [vmem:[%s336 + $0x5420] sm:$0xff]
        %v3534 = vld [vmem:[%s336 + $0x5428] sm:$0xff]
        %v3535 = vld [vmem:[%s336 + $0x5430] sm:$0xff]
        %v3536 = vld [vmem:[%s336 + $0x5438] sm:$0xff]
        %v3537 = vld [vmem:[%s336 + $0x5440] sm:$0xff]
        %v3538 = vld [vmem:[%s336 + $0x5448] sm:$0xff]
        %v3539 = vld [vmem:[%s336 + $0x5450] sm:$0xff]
        %v3540 = vld [vmem:[%s336 + $0x5458] sm:$0xff]
        %v3541 = vld [vmem:[%s336 + $0x5460] sm:$0xff]
        %v3542 = vld [vmem:[%s336 + $0x5468] sm:$0xff]
        %v3543 = vld [vmem:[%s336 + $0x5470] sm:$0xff]
        %v3544 = vld [vmem:[%s336 + $0x5478] sm:$0xff]
        %v3545 = vld [vmem:[%s336 + $0x5480] sm:$0xff]
        %v3546 = vld [vmem:[%s336 + $0x5488] sm:$0xff]
        %v3547 = vld [vmem:[%s336 + $0x5490] sm:$0xff]
        %v3548 = vld [vmem:[%s336 + $0x5498] sm:$0xff]
        %v3549 = vld [vmem:[%s336 + $0x54a0] sm:$0xff]
        %v3550 = vld [vmem:[%s336 + $0x54a8] sm:$0xff]
        %v3551 = vld [vmem:[%s336 + $0x54b0] sm:$0xff]
        %v3552 = vld [vmem:[%s336 + $0x54b8] sm:$0xff]
        %v3553 = vld [vmem:[%s336 + $0x54c0] sm:$0xff]
        %v3554 = vld [vmem:[%s336 + $0x54c8] sm:$0xff]
        %v3555 = vld [vmem:[%s336 + $0x54d0] sm:$0xff]
        %v3556 = vld [vmem:[%s336 + $0x54d8] sm:$0xff]
        %v3557 = vld [vmem:[%s336 + $0x54e0] sm:$0xff]
        %v3558 = vld [vmem:[%s336 + $0x54e8] sm:$0xff]
        %v3559 = vld [vmem:[%s336 + $0x54f0] sm:$0xff]
        %v3560 = vld [vmem:[%s336 + $0x54f8] sm:$0xff]
        %v3561 = vld [vmem:[%s336 + $0x5500] sm:$0xff]
        %v3562 = vld [vmem:[%s336 + $0x5508] sm:$0xff]
        %v3563 = vld [vmem:[%s336 + $0x5510] sm:$0xff]
        %v3564 = vld [vmem:[%s336 + $0x5518] sm:$0xff]
        %v3565 = vld [vmem:[%s336 + $0x5520] sm:$0xff]
        %v3566 = vld [vmem:[%s336 + $0x5528] sm:$0xff]
        %v3567 = vld [vmem:[%s336 + $0x5530] sm:$0xff]
        %v3568 = vld [vmem:[%s336 + $0x5538] sm:$0xff]
        %v3569 = vld [vmem:[%s336 + $0x5540] sm:$0xff]
        %v3570 = vld [vmem:[%s336 + $0x5548] sm:$0xff]
        %v3571 = vld [vmem:[%s336 + $0x5550] sm:$0xff]
        %v3572 = vld [vmem:[%s336 + $0x5558] sm:$0xff]
        %v3573 = vld [vmem:[%s336 + $0x5560] sm:$0xff]
        %v3574 = vld [vmem:[%s336 + $0x5568] sm:$0xff]
        %v3575 = vld [vmem:[%s336 + $0x5570] sm:$0xff]
        %v3576 = vld [vmem:[%s336 + $0x5578] sm:$0xff]
        %v3577 = vld [vmem:[%s336 + $0x5580] sm:$0xff]
        %v3578 = vld [vmem:[%s336 + $0x5588] sm:$0xff]
        %v3579 = vld [vmem:[%s336 + $0x5590] sm:$0xff]
        %v3580 = vld [vmem:[%s336 + $0x5598] sm:$0xff]
        %v3581 = vld [vmem:[%s336 + $0x55a0] sm:$0xff]
        %v3582 = vld [vmem:[%s336 + $0x55a8] sm:$0xff]
        %v3583 = vld [vmem:[%s336 + $0x55b0] sm:$0xff]
        %v3584 = vld [vmem:[%s336 + $0x55b8] sm:$0xff]
        %v3585 = vld [vmem:[%s336 + $0x55c0] sm:$0xff]
        %v3586 = vld [vmem:[%s336 + $0x55c8] sm:$0xff]
        %v3587 = vld [vmem:[%s336 + $0x55d0] sm:$0xff]
        %v3588 = vld [vmem:[%s336 + $0x55d8] sm:$0xff]
        %v3589 = vld [vmem:[%s336 + $0x55e0] sm:$0xff]
        %v3590 = vld [vmem:[%s336 + $0x55e8] sm:$0xff]
        %v3591 = vld [vmem:[%s336 + $0x55f0] sm:$0xff]
        %v3592 = vld [vmem:[%s336 + $0x55f8] sm:$0xff]
        %v3593 = vld [vmem:[%s336 + $0x5600] sm:$0xff]
        %v3594 = vld [vmem:[%s336 + $0x5608] sm:$0xff]
        %v3595 = vld [vmem:[%s336 + $0x5610] sm:$0xff]
        %v3596 = vld [vmem:[%s336 + $0x5618] sm:$0xff]
        %v3597 = vld [vmem:[%s336 + $0x5620] sm:$0xff]
        %v3598 = vld [vmem:[%s336 + $0x5628] sm:$0xff]
        %v3599 = vld [vmem:[%s336 + $0x5630] sm:$0xff]
        %v3600 = vld [vmem:[%s336 + $0x5638] sm:$0xff]
        %v3601 = vld [vmem:[%s336 + $0x5640] sm:$0xff]
        %v3602 = vld [vmem:[%s336 + $0x5648] sm:$0xff]
        %v3603 = vld [vmem:[%s336 + $0x5650] sm:$0xff]
        %v3604 = vld [vmem:[%s336 + $0x5658] sm:$0xff]
        %v3605 = vld [vmem:[%s336 + $0x5660] sm:$0xff]
        %v3606 = vld [vmem:[%s336 + $0x5668] sm:$0xff]
        %v3607 = vld [vmem:[%s336 + $0x5670] sm:$0xff]
        %v3608 = vld [vmem:[%s336 + $0x5678] sm:$0xff]
        %v3609 = vld [vmem:[%s336 + $0x5680] sm:$0xff]
        %v3610 = vld [vmem:[%s336 + $0x5688] sm:$0xff]
        %v3611 = vld [vmem:[%s336 + $0x5690] sm:$0xff]
        %v3612 = vld [vmem:[%s336 + $0x5698] sm:$0xff]
        %v3613 = vld [vmem:[%s336 + $0x56a0] sm:$0xff]
        %v3614 = vld [vmem:[%s336 + $0x56a8] sm:$0xff]
        %v3615 = vld [vmem:[%s336 + $0x56b0] sm:$0xff]
        %v3616 = vld [vmem:[%s336 + $0x56b8] sm:$0xff]
        %v3617 = vld [vmem:[%s336 + $0x56c0] sm:$0xff]
        %v3618 = vld [vmem:[%s336 + $0x56c8] sm:$0xff]
        %v3619 = vld [vmem:[%s336 + $0x56d0] sm:$0xff]
        %v3620 = vld [vmem:[%s336 + $0x56d8] sm:$0xff]
        %v3621 = vld [vmem:[%s336 + $0x56e0] sm:$0xff]
        %v3622 = vld [vmem:[%s336 + $0x56e8] sm:$0xff]
        %v3623 = vld [vmem:[%s336 + $0x56f0] sm:$0xff]
        %v3624 = vld [vmem:[%s336 + $0x56f8] sm:$0xff]
        %v3625 = vld [vmem:[%s336 + $0x5700] sm:$0xff]
        %v3626 = vld [vmem:[%s336 + $0x5708] sm:$0xff]
        %v3627 = vld [vmem:[%s336 + $0x5710] sm:$0xff]
        %v3628 = vld [vmem:[%s336 + $0x5718] sm:$0xff]
        %v3629 = vld [vmem:[%s336 + $0x5720] sm:$0xff]
        %v3630 = vld [vmem:[%s336 + $0x5728] sm:$0xff]
        %v3631 = vld [vmem:[%s336 + $0x5730] sm:$0xff]
        %v3632 = vld [vmem:[%s336 + $0x5738] sm:$0xff]
        %v3633 = vld [vmem:[%s336 + $0x5740] sm:$0xff]
        %v3634 = vld [vmem:[%s336 + $0x5748] sm:$0xff]
        %v3635 = vld [vmem:[%s336 + $0x5750] sm:$0xff]
        %v3636 = vld [vmem:[%s336 + $0x5758] sm:$0xff]
        %v3637 = vld [vmem:[%s336 + $0x5760] sm:$0xff]
        %v3638 = vld [vmem:[%s336 + $0x5768] sm:$0xff]
        %v3639 = vld [vmem:[%s336 + $0x5770] sm:$0xff]
        %v3640 = vld [vmem:[%s336 + $0x5778] sm:$0xff]
        %v3641 = vld [vmem:[%s336 + $0x5780] sm:$0xff]
        %v3642 = vld [vmem:[%s336 + $0x5788] sm:$0xff]
        %v3643 = vld [vmem:[%s336 + $0x5790] sm:$0xff]
        %v3644 = vld [vmem:[%s336 + $0x5798] sm:$0xff]
        %v3645 = vld [vmem:[%s336 + $0x57a0] sm:$0xff]
        %v3646 = vld [vmem:[%s336 + $0x57a8] sm:$0xff]
        %v3647 = vld [vmem:[%s336 + $0x57b0] sm:$0xff]
        %v3648 = vld [vmem:[%s336 + $0x57b8] sm:$0xff]
        %v3649 = vld [vmem:[%s336 + $0x57c0] sm:$0xff]
        %v3650 = vld [vmem:[%s336 + $0x57c8] sm:$0xff]
        %v3651 = vld [vmem:[%s336 + $0x57d0] sm:$0xff]
        %v3652 = vld [vmem:[%s336 + $0x57d8] sm:$0xff]
        %v3653 = vld [vmem:[%s336 + $0x57e0] sm:$0xff]
        %v3654 = vld [vmem:[%s336 + $0x57e8] sm:$0xff]
        %v3655 = vld [vmem:[%s336 + $0x57f0] sm:$0xff]
        %v3656 = vld [vmem:[%s336 + $0x57f8] sm:$0xff]
        %3657 = vmatpush.msra.mxu0 %v871
        %3658 = vmatpush.msra.mxu0 %v869
        %3659 = vmatpush.msra.mxu0 %v867
        %3660 = vmatpush.msra.mxu0 %v865
        %3661 = vmatpush.msra.mxu0 %v863
        %3662 = vmatpush.msra.mxu0 %v861
        %3663 = vmatpush.msra.mxu0 %v859
        %3664 = vmatpush.msra.mxu0 %v857
        %3665 = vmatpush.msra.mxu0 %v855
        %3666 = vmatpush.msra.mxu0 %v853
        %3667 = vmatpush.msra.mxu0 %v851
        %3668 = vmatpush.msra.mxu0 %v849
        %3669 = vmatpush.msra.mxu0 %v847
        %3670 = vmatpush.msra.mxu0 %v845
        %3671 = vmatpush.msra.mxu0 %v843
        %3672 = vmatpush.msra.mxu0 %v841
        %3673 = vmatmul.f32.gmra.mxu0 %v751
        %v3674 = vpop.f32.mrf.mxu0
        %v3675 = vadd.f32 0.0, %v3674
        %3676 = vdwg.mxu0
        %3677 = vmatpush.msra.mxu0 %v903
        %3678 = vmatpush.msra.mxu0 %v901
        %3679 = vmatpush.msra.mxu0 %v899
        %3680 = vmatpush.msra.mxu0 %v897
        %3681 = vmatpush.msra.mxu0 %v895
        %3682 = vmatpush.msra.mxu0 %v893
        %3683 = vmatpush.msra.mxu0 %v891
        %3684 = vmatpush.msra.mxu0 %v889
        %3685 = vmatpush.msra.mxu0 %v887
        %3686 = vmatpush.msra.mxu0 %v885
        %3687 = vmatpush.msra.mxu0 %v883
        %3688 = vmatpush.msra.mxu0 %v881
        %3689 = vmatpush.msra.mxu0 %v879
        %3690 = vmatpush.msra.mxu0 %v877
        %3691 = vmatpush.msra.mxu0 %v875
        %3692 = vmatpush.msra.mxu0 %v873
        %3693 = vmatmul.f32.gmra.mxu0 %v752
        %v3694 = vpop.f32.mrf.mxu0
        %v3695 = vadd.f32 %v3675, %v3694
        %3696 = vdwg.mxu0
        %3697 = vmatpush.msra.mxu0 %v935
        %3698 = vmatpush.msra.mxu0 %v933
        %3699 = vmatpush.msra.mxu0 %v931
        %3700 = vmatpush.msra.mxu0 %v929
        %3701 = vmatpush.msra.mxu0 %v927
        %3702 = vmatpush.msra.mxu0 %v925
        %3703 = vmatpush.msra.mxu0 %v923
        %3704 = vmatpush.msra.mxu0 %v921
        %3705 = vmatpush.msra.mxu0 %v919
        %3706 = vmatpush.msra.mxu0 %v917
        %3707 = vmatpush.msra.mxu0 %v915
        %3708 = vmatpush.msra.mxu0 %v913
        %3709 = vmatpush.msra.mxu0 %v911
        %3710 = vmatpush.msra.mxu0 %v909
        %3711 = vmatpush.msra.mxu0 %v907
        %3712 = vmatpush.msra.mxu0 %v905
        %3713 = vmatmul.f32.gmra.mxu0 %v753
        %v3714 = vpop.f32.mrf.mxu0
        %v3715 = vadd.f32 %v3695, %v3714
        %3716 = vdwg.mxu0
        %3717 = vmatpush.msra.mxu0 %v967
        %3718 = vmatpush.msra.mxu0 %v965
        %3719 = vmatpush.msra.mxu0 %v963
        %3720 = vmatpush.msra.mxu0 %v961
        %3721 = vmatpush.msra.mxu0 %v959
        %3722 = vmatpush.msra.mxu0 %v957
        %3723 = vmatpush.msra.mxu0 %v955
        %3724 = vmatpush.msra.mxu0 %v953
        %3725 = vmatpush.msra.mxu0 %v951
        %3726 = vmatpush.msra.mxu0 %v949
        %3727 = vmatpush.msra.mxu0 %v947
        %3728 = vmatpush.msra.mxu0 %v945
        %3729 = vmatpush.msra.mxu0 %v943
        %3730 = vmatpush.msra.mxu0 %v941
        %3731 = vmatpush.msra.mxu0 %v939
        %3732 = vmatpush.msra.mxu0 %v937
        %3733 = vmatmul.f32.gmra.mxu0 %v754
        %v3734 = vpop.f32.mrf.mxu0
        %v3735 = vadd.f32 %v3715, %v3734
        %3736 = vdwg.mxu0
        %3737 = vmatpush.msra.mxu0 %v999
        %3738 = vmatpush.msra.mxu0 %v997
        %3739 = vmatpush.msra.mxu0 %v995
        %3740 = vmatpush.msra.mxu0 %v993
        %3741 = vmatpush.msra.mxu0 %v991
        %3742 = vmatpush.msra.mxu0 %v989
        %3743 = vmatpush.msra.mxu0 %v987
        %3744 = vmatpush.msra.mxu0 %v985
        %3745 = vmatpush.msra.mxu0 %v983
        %3746 = vmatpush.msra.mxu0 %v981
        %3747 = vmatpush.msra.mxu0 %v979
        %3748 = vmatpush.msra.mxu0 %v977
        %3749 = vmatpush.msra.mxu0 %v975
        %3750 = vmatpush.msra.mxu0 %v973
        %3751 = vmatpush.msra.mxu0 %v971
        %3752 = vmatpush.msra.mxu0 %v969
        %3753 = vmatmul.f32.gmra.mxu0 %v755
        %v3754 = vpop.f32.mrf.mxu0
        %v3755 = vadd.f32 %v3735, %v3754
        %3756 = vdwg.mxu0
        %3757 = vmatpush.msra.mxu0 %v1031
        %3758 = vmatpush.msra.mxu0 %v1029
        %3759 = vmatpush.msra.mxu0 %v1027
        %3760 = vmatpush.msra.mxu0 %v1025
        %3761 = vmatpush.msra.mxu0 %v1023
        %3762 = vmatpush.msra.mxu0 %v1021
        %3763 = vmatpush.msra.mxu0 %v1019
        %3764 = vmatpush.msra.mxu0 %v1017
        %3765 = vmatpush.msra.mxu0 %v1015
        %3766 = vmatpush.msra.mxu0 %v1013
        %3767 = vmatpush.msra.mxu0 %v1011
        %3768 = vmatpush.msra.mxu0 %v1009
        %3769 = vmatpush.msra.mxu0 %v1007
        %3770 = vmatpush.msra.mxu0 %v1005
        %3771 = vmatpush.msra.mxu0 %v1003
        %3772 = vmatpush.msra.mxu0 %v1001
        %3773 = vmatmul.f32.gmra.mxu0 %v756
        %v3774 = vpop.f32.mrf.mxu0
        %v3775 = vadd.f32 %v3755, %v3774
        %3776 = vdwg.mxu0
        %3777 = vmatpush.msra.mxu0 %v1063
        %3778 = vmatpush.msra.mxu0 %v1061
        %3779 = vmatpush.msra.mxu0 %v1059
        %3780 = vmatpush.msra.mxu0 %v1057
        %3781 = vmatpush.msra.mxu0 %v1055
        %3782 = vmatpush.msra.mxu0 %v1053
        %3783 = vmatpush.msra.mxu0 %v1051
        %3784 = vmatpush.msra.mxu0 %v1049
        %3785 = vmatpush.msra.mxu0 %v1047
        %3786 = vmatpush.msra.mxu0 %v1045
        %3787 = vmatpush.msra.mxu0 %v1043
        %3788 = vmatpush.msra.mxu0 %v1041
        %3789 = vmatpush.msra.mxu0 %v1039
        %3790 = vmatpush.msra.mxu0 %v1037
        %3791 = vmatpush.msra.mxu0 %v1035
        %3792 = vmatpush.msra.mxu0 %v1033
        %3793 = vmatmul.f32.gmra.mxu0 %v757
        %v3794 = vpop.f32.mrf.mxu0
        %v3795 = vadd.f32 %v3775, %v3794
        %3796 = vdwg.mxu0
        %3797 = vmatpush.msra.mxu0 %v1095
        %3798 = vmatpush.msra.mxu0 %v1093
        %3799 = vmatpush.msra.mxu0 %v1091
        %3800 = vmatpush.msra.mxu0 %v1089
        %3801 = vmatpush.msra.mxu0 %v1087
        %3802 = vmatpush.msra.mxu0 %v1085
        %3803 = vmatpush.msra.mxu0 %v1083
        %3804 = vmatpush.msra.mxu0 %v1081
        %3805 = vmatpush.msra.mxu0 %v1079
        %3806 = vmatpush.msra.mxu0 %v1077
        %3807 = vmatpush.msra.mxu0 %v1075
        %3808 = vmatpush.msra.mxu0 %v1073
        %3809 = vmatpush.msra.mxu0 %v1071
        %3810 = vmatpush.msra.mxu0 %v1069
        %3811 = vmatpush.msra.mxu0 %v1067
        %3812 = vmatpush.msra.mxu0 %v1065
        %3813 = vmatmul.f32.gmra.mxu0 %v758
        %v3814 = vpop.f32.mrf.mxu0
        %v3815 = vadd.f32 %v3795, %v3814
        %3816 = vdwg.mxu0
        %3817 = vmatpush.msra.mxu0 %v1127
        %3818 = vmatpush.msra.mxu0 %v1125
        %3819 = vmatpush.msra.mxu0 %v1123
        %3820 = vmatpush.msra.mxu0 %v1121
        %3821 = vmatpush.msra.mxu0 %v1119
        %3822 = vmatpush.msra.mxu0 %v1117
        %3823 = vmatpush.msra.mxu0 %v1115
        %3824 = vmatpush.msra.mxu0 %v1113
        %3825 = vmatpush.msra.mxu0 %v1111
        %3826 = vmatpush.msra.mxu0 %v1109
        %3827 = vmatpush.msra.mxu0 %v1107
        %3828 = vmatpush.msra.mxu0 %v1105
        %3829 = vmatpush.msra.mxu0 %v1103
        %3830 = vmatpush.msra.mxu0 %v1101
        %3831 = vmatpush.msra.mxu0 %v1099
        %3832 = vmatpush.msra.mxu0 %v1097
        %3833 = vmatmul.f32.gmra.mxu0 %v759
        %v3834 = vpop.f32.mrf.mxu0
        %v3835 = vadd.f32 %v3815, %v3834
        %3836 = vdwg.mxu0
        %3837 = vmatpush.msra.mxu0 %v1159
        %3838 = vmatpush.msra.mxu0 %v1157
        %3839 = vmatpush.msra.mxu0 %v1155
        %3840 = vmatpush.msra.mxu0 %v1153
        %3841 = vmatpush.msra.mxu0 %v1151
        %3842 = vmatpush.msra.mxu0 %v1149
        %3843 = vmatpush.msra.mxu0 %v1147
        %3844 = vmatpush.msra.mxu0 %v1145
        %3845 = vmatpush.msra.mxu0 %v1143
        %3846 = vmatpush.msra.mxu0 %v1141
        %3847 = vmatpush.msra.mxu0 %v1139
        %3848 = vmatpush.msra.mxu0 %v1137
        %3849 = vmatpush.msra.mxu0 %v1135
        %3850 = vmatpush.msra.mxu0 %v1133
        %3851 = vmatpush.msra.mxu0 %v1131
        %3852 = vmatpush.msra.mxu0 %v1129
        %3853 = vmatmul.f32.gmra.mxu0 %v760
        %v3854 = vpop.f32.mrf.mxu0
        %v3855 = vadd.f32 %v3835, %v3854
        %3856 = vdwg.mxu0
        %3857 = vmatpush.msra.mxu0 %v1191
        %3858 = vmatpush.msra.mxu0 %v1189
        %3859 = vmatpush.msra.mxu0 %v1187
        %3860 = vmatpush.msra.mxu0 %v1185
        %3861 = vmatpush.msra.mxu0 %v1183
        %3862 = vmatpush.msra.mxu0 %v1181
        %3863 = vmatpush.msra.mxu0 %v1179
        %3864 = vmatpush.msra.mxu0 %v1177
        %3865 = vmatpush.msra.mxu0 %v1175
        %3866 = vmatpush.msra.mxu0 %v1173
        %3867 = vmatpush.msra.mxu0 %v1171
        %3868 = vmatpush.msra.mxu0 %v1169
        %3869 = vmatpush.msra.mxu0 %v1167
        %3870 = vmatpush.msra.mxu0 %v1165
        %3871 = vmatpush.msra.mxu0 %v1163
        %3872 = vmatpush.msra.mxu0 %v1161
        %3873 = vmatmul.f32.gmra.mxu0 %v761
        %v3874 = vpop.f32.mrf.mxu0
        %v3875 = vadd.f32 %v3855, %v3874
        %3876 = vdwg.mxu0
        %3877 = vmatpush.msra.mxu0 %v1223
        %3878 = vmatpush.msra.mxu0 %v1221
        %3879 = vmatpush.msra.mxu0 %v1219
        %3880 = vmatpush.msra.mxu0 %v1217
        %3881 = vmatpush.msra.mxu0 %v1215
        %3882 = vmatpush.msra.mxu0 %v1213
        %3883 = vmatpush.msra.mxu0 %v1211
        %3884 = vmatpush.msra.mxu0 %v1209
        %3885 = vmatpush.msra.mxu0 %v1207
        %3886 = vmatpush.msra.mxu0 %v1205
        %3887 = vmatpush.msra.mxu0 %v1203
        %3888 = vmatpush.msra.mxu0 %v1201
        %3889 = vmatpush.msra.mxu0 %v1199
        %3890 = vmatpush.msra.mxu0 %v1197
        %3891 = vmatpush.msra.mxu0 %v1195
        %3892 = vmatpush.msra.mxu0 %v1193
        %3893 = vmatmul.f32.gmra.mxu0 %v762
        %v3894 = vpop.f32.mrf.mxu0
        %v3895 = vadd.f32 %v3875, %v3894
        %3896 = vdwg.mxu0
        %3897 = vmatpush.msra.mxu0 %v1255
        %3898 = vmatpush.msra.mxu0 %v1253
        %3899 = vmatpush.msra.mxu0 %v1251
        %3900 = vmatpush.msra.mxu0 %v1249
        %3901 = vmatpush.msra.mxu0 %v1247
        %3902 = vmatpush.msra.mxu0 %v1245
        %3903 = vmatpush.msra.mxu0 %v1243
        %3904 = vmatpush.msra.mxu0 %v1241
        %3905 = vmatpush.msra.mxu0 %v1239
        %3906 = vmatpush.msra.mxu0 %v1237
        %3907 = vmatpush.msra.mxu0 %v1235
        %3908 = vmatpush.msra.mxu0 %v1233
        %3909 = vmatpush.msra.mxu0 %v1231
        %3910 = vmatpush.msra.mxu0 %v1229
        %3911 = vmatpush.msra.mxu0 %v1227
        %3912 = vmatpush.msra.mxu0 %v1225
        %3913 = vmatmul.f32.gmra.mxu0 %v763
        %v3914 = vpop.f32.mrf.mxu0
        %v3915 = vadd.f32 %v3895, %v3914
        %3916 = vdwg.mxu0
        %3917 = vmatpush.msra.mxu0 %v1287
        %3918 = vmatpush.msra.mxu0 %v1285
        %3919 = vmatpush.msra.mxu0 %v1283
        %3920 = vmatpush.msra.mxu0 %v1281
        %3921 = vmatpush.msra.mxu0 %v1279
        %3922 = vmatpush.msra.mxu0 %v1277
        %3923 = vmatpush.msra.mxu0 %v1275
        %3924 = vmatpush.msra.mxu0 %v1273
        %3925 = vmatpush.msra.mxu0 %v1271
        %3926 = vmatpush.msra.mxu0 %v1269
        %3927 = vmatpush.msra.mxu0 %v1267
        %3928 = vmatpush.msra.mxu0 %v1265
        %3929 = vmatpush.msra.mxu0 %v1263
        %3930 = vmatpush.msra.mxu0 %v1261
        %3931 = vmatpush.msra.mxu0 %v1259
        %3932 = vmatpush.msra.mxu0 %v1257
        %3933 = vmatmul.f32.gmra.mxu0 %v764
        %v3934 = vpop.f32.mrf.mxu0
        %v3935 = vadd.f32 %v3915, %v3934
        %3936 = vdwg.mxu0
        %3937 = vmatpush.msra.mxu0 %v1319
        %3938 = vmatpush.msra.mxu0 %v1317
        %3939 = vmatpush.msra.mxu0 %v1315
        %3940 = vmatpush.msra.mxu0 %v1313
        %3941 = vmatpush.msra.mxu0 %v1311
        %3942 = vmatpush.msra.mxu0 %v1309
        %3943 = vmatpush.msra.mxu0 %v1307
        %3944 = vmatpush.msra.mxu0 %v1305
        %3945 = vmatpush.msra.mxu0 %v1303
        %3946 = vmatpush.msra.mxu0 %v1301
        %3947 = vmatpush.msra.mxu0 %v1299
        %3948 = vmatpush.msra.mxu0 %v1297
        %3949 = vmatpush.msra.mxu0 %v1295
        %3950 = vmatpush.msra.mxu0 %v1293
        %3951 = vmatpush.msra.mxu0 %v1291
        %3952 = vmatpush.msra.mxu0 %v1289
        %3953 = vmatmul.f32.gmra.mxu0 %v765
        %v3954 = vpop.f32.mrf.mxu0
        %v3955 = vadd.f32 %v3935, %v3954
        %3956 = vdwg.mxu0
        %3957 = vmatpush.msra.mxu0 %v1351
        %3958 = vmatpush.msra.mxu0 %v1349
        %3959 = vmatpush.msra.mxu0 %v1347
        %3960 = vmatpush.msra.mxu0 %v1345
        %3961 = vmatpush.msra.mxu0 %v1343
        %3962 = vmatpush.msra.mxu0 %v1341
        %3963 = vmatpush.msra.mxu0 %v1339
        %3964 = vmatpush.msra.mxu0 %v1337
        %3965 = vmatpush.msra.mxu0 %v1335
        %3966 = vmatpush.msra.mxu0 %v1333
        %3967 = vmatpush.msra.mxu0 %v1331
        %3968 = vmatpush.msra.mxu0 %v1329
        %3969 = vmatpush.msra.mxu0 %v1327
        %3970 = vmatpush.msra.mxu0 %v1325
        %3971 = vmatpush.msra.mxu0 %v1323
        %3972 = vmatpush.msra.mxu0 %v1321
        %3973 = vmatmul.f32.gmra.mxu0 %v766
        %v3974 = vpop.f32.mrf.mxu0
        %v3975 = vadd.f32 %v3955, %v3974
        %3976 = vdwg.mxu0
        %3977 = vmatpush.msra.mxu0 %v1383
        %3978 = vmatpush.msra.mxu0 %v1381
        %3979 = vmatpush.msra.mxu0 %v1379
        %3980 = vmatpush.msra.mxu0 %v1377
        %3981 = vmatpush.msra.mxu0 %v1375
        %3982 = vmatpush.msra.mxu0 %v1373
        %3983 = vmatpush.msra.mxu0 %v1371
        %3984 = vmatpush.msra.mxu0 %v1369
        %3985 = vmatpush.msra.mxu0 %v1367
        %3986 = vmatpush.msra.mxu0 %v1365
        %3987 = vmatpush.msra.mxu0 %v1363
        %3988 = vmatpush.msra.mxu0 %v1361
        %3989 = vmatpush.msra.mxu0 %v1359
        %3990 = vmatpush.msra.mxu0 %v1357
        %3991 = vmatpush.msra.mxu0 %v1355
        %3992 = vmatpush.msra.mxu0 %v1353
        %3993 = vmatmul.f32.gmra.mxu0 %v767
        %v3994 = vpop.f32.mrf.mxu0
        %v3995 = vadd.f32 %v3975, %v3994
        %3996 = vdwg.mxu0
        %3997 = vmatpush.msra.mxu0 %v1415
        %3998 = vmatpush.msra.mxu0 %v1413
        %3999 = vmatpush.msra.mxu0 %v1411
        %4000 = vmatpush.msra.mxu0 %v1409
        %4001 = vmatpush.msra.mxu0 %v1407
        %4002 = vmatpush.msra.mxu0 %v1405
        %4003 = vmatpush.msra.mxu0 %v1403
        %4004 = vmatpush.msra.mxu0 %v1401
        %4005 = vmatpush.msra.mxu0 %v1399
        %4006 = vmatpush.msra.mxu0 %v1397
        %4007 = vmatpush.msra.mxu0 %v1395
        %4008 = vmatpush.msra.mxu0 %v1393
        %4009 = vmatpush.msra.mxu0 %v1391
        %4010 = vmatpush.msra.mxu0 %v1389
        %4011 = vmatpush.msra.mxu0 %v1387
        %4012 = vmatpush.msra.mxu0 %v1385
        %4013 = vmatmul.f32.gmra.mxu0 %v768
        %v4014 = vpop.f32.mrf.mxu0
        %v4015 = vadd.f32 %v3995, %v4014
        %4016 = vdwg.mxu0
        %4017 = vmatpush.msra.mxu0 %v1447
        %4018 = vmatpush.msra.mxu0 %v1445
        %4019 = vmatpush.msra.mxu0 %v1443
        %4020 = vmatpush.msra.mxu0 %v1441
        %4021 = vmatpush.msra.mxu0 %v1439
        %4022 = vmatpush.msra.mxu0 %v1437
        %4023 = vmatpush.msra.mxu0 %v1435
        %4024 = vmatpush.msra.mxu0 %v1433
        %4025 = vmatpush.msra.mxu0 %v1431
        %4026 = vmatpush.msra.mxu0 %v1429
        %4027 = vmatpush.msra.mxu0 %v1427
        %4028 = vmatpush.msra.mxu0 %v1425
        %4029 = vmatpush.msra.mxu0 %v1423
        %4030 = vmatpush.msra.mxu0 %v1421
        %4031 = vmatpush.msra.mxu0 %v1419
        %4032 = vmatpush.msra.mxu0 %v1417
        %4033 = vmatmul.f32.gmra.mxu0 %v769
        %v4034 = vpop.f32.mrf.mxu0
        %v4035 = vadd.f32 %v4015, %v4034
        %4036 = vdwg.mxu0
        %4037 = vmatpush.msra.mxu0 %v1479
        %4038 = vmatpush.msra.mxu0 %v1477
        %4039 = vmatpush.msra.mxu0 %v1475
        %4040 = vmatpush.msra.mxu0 %v1473
        %4041 = vmatpush.msra.mxu0 %v1471
        %4042 = vmatpush.msra.mxu0 %v1469
        %4043 = vmatpush.msra.mxu0 %v1467
        %4044 = vmatpush.msra.mxu0 %v1465
        %4045 = vmatpush.msra.mxu0 %v1463
        %4046 = vmatpush.msra.mxu0 %v1461
        %4047 = vmatpush.msra.mxu0 %v1459
        %4048 = vmatpush.msra.mxu0 %v1457
        %4049 = vmatpush.msra.mxu0 %v1455
        %4050 = vmatpush.msra.mxu0 %v1453
        %4051 = vmatpush.msra.mxu0 %v1451
        %4052 = vmatpush.msra.mxu0 %v1449
        %4053 = vmatmul.f32.gmra.mxu0 %v770
        %v4054 = vpop.f32.mrf.mxu0
        %v4055 = vadd.f32 %v4035, %v4054
        %4056 = vdwg.mxu0
        %4057 = vmatpush.msra.mxu0 %v1511
        %4058 = vmatpush.msra.mxu0 %v1509
        %4059 = vmatpush.msra.mxu0 %v1507
        %4060 = vmatpush.msra.mxu0 %v1505
        %4061 = vmatpush.msra.mxu0 %v1503
        %4062 = vmatpush.msra.mxu0 %v1501
        %4063 = vmatpush.msra.mxu0 %v1499
        %4064 = vmatpush.msra.mxu0 %v1497
        %4065 = vmatpush.msra.mxu0 %v1495
        %4066 = vmatpush.msra.mxu0 %v1493
        %4067 = vmatpush.msra.mxu0 %v1491
        %4068 = vmatpush.msra.mxu0 %v1489
        %4069 = vmatpush.msra.mxu0 %v1487
        %4070 = vmatpush.msra.mxu0 %v1485
        %4071 = vmatpush.msra.mxu0 %v1483
        %4072 = vmatpush.msra.mxu0 %v1481
        %4073 = vmatmul.f32.gmra.mxu0 %v771
        %v4074 = vpop.f32.mrf.mxu0
        %v4075 = vadd.f32 %v4055, %v4074
        %4076 = vdwg.mxu0
        %4077 = vmatpush.msra.mxu0 %v1543
        %4078 = vmatpush.msra.mxu0 %v1541
        %4079 = vmatpush.msra.mxu0 %v1539
        %4080 = vmatpush.msra.mxu0 %v1537
        %4081 = vmatpush.msra.mxu0 %v1535
        %4082 = vmatpush.msra.mxu0 %v1533
        %4083 = vmatpush.msra.mxu0 %v1531
        %4084 = vmatpush.msra.mxu0 %v1529
        %4085 = vmatpush.msra.mxu0 %v1527
        %4086 = vmatpush.msra.mxu0 %v1525
        %4087 = vmatpush.msra.mxu0 %v1523
        %4088 = vmatpush.msra.mxu0 %v1521
        %4089 = vmatpush.msra.mxu0 %v1519
        %4090 = vmatpush.msra.mxu0 %v1517
        %4091 = vmatpush.msra.mxu0 %v1515
        %4092 = vmatpush.msra.mxu0 %v1513
        %4093 = vmatmul.f32.gmra.mxu0 %v772
        %v4094 = vpop.f32.mrf.mxu0
        %v4095 = vadd.f32 %v4075, %v4094
        %4096 = vdwg.mxu0
        %4097 = vmatpush.msra.mxu0 %v1575
        %4098 = vmatpush.msra.mxu0 %v1573
        %4099 = vmatpush.msra.mxu0 %v1571
        %4100 = vmatpush.msra.mxu0 %v1569
        %4101 = vmatpush.msra.mxu0 %v1567
        %4102 = vmatpush.msra.mxu0 %v1565
        %4103 = vmatpush.msra.mxu0 %v1563
        %4104 = vmatpush.msra.mxu0 %v1561
        %4105 = vmatpush.msra.mxu0 %v1559
        %4106 = vmatpush.msra.mxu0 %v1557
        %4107 = vmatpush.msra.mxu0 %v1555
        %4108 = vmatpush.msra.mxu0 %v1553
        %4109 = vmatpush.msra.mxu0 %v1551
        %4110 = vmatpush.msra.mxu0 %v1549
        %4111 = vmatpush.msra.mxu0 %v1547
        %4112 = vmatpush.msra.mxu0 %v1545
        %4113 = vmatmul.f32.gmra.mxu0 %v773
        %v4114 = vpop.f32.mrf.mxu0
        %v4115 = vadd.f32 %v4095, %v4114
        %4116 = vdwg.mxu0
        %4117 = vmatpush.msra.mxu0 %v1607
        %4118 = vmatpush.msra.mxu0 %v1605
        %4119 = vmatpush.msra.mxu0 %v1603
        %4120 = vmatpush.msra.mxu0 %v1601
        %4121 = vmatpush.msra.mxu0 %v1599
        %4122 = vmatpush.msra.mxu0 %v1597
        %4123 = vmatpush.msra.mxu0 %v1595
        %4124 = vmatpush.msra.mxu0 %v1593
        %4125 = vmatpush.msra.mxu0 %v1591
        %4126 = vmatpush.msra.mxu0 %v1589
        %4127 = vmatpush.msra.mxu0 %v1587
        %4128 = vmatpush.msra.mxu0 %v1585
        %4129 = vmatpush.msra.mxu0 %v1583
        %4130 = vmatpush.msra.mxu0 %v1581
        %4131 = vmatpush.msra.mxu0 %v1579
        %4132 = vmatpush.msra.mxu0 %v1577
        %4133 = vmatmul.f32.gmra.mxu0 %v774
        %v4134 = vpop.f32.mrf.mxu0
        %v4135 = vadd.f32 %v4115, %v4134
        %4136 = vdwg.mxu0
        %4137 = vmatpush.msra.mxu0 %v1639
        %4138 = vmatpush.msra.mxu0 %v1637
        %4139 = vmatpush.msra.mxu0 %v1635
        %4140 = vmatpush.msra.mxu0 %v1633
        %4141 = vmatpush.msra.mxu0 %v1631
        %4142 = vmatpush.msra.mxu0 %v1629
        %4143 = vmatpush.msra.mxu0 %v1627
        %4144 = vmatpush.msra.mxu0 %v1625
        %4145 = vmatpush.msra.mxu0 %v1623
        %4146 = vmatpush.msra.mxu0 %v1621
        %4147 = vmatpush.msra.mxu0 %v1619
        %4148 = vmatpush.msra.mxu0 %v1617
        %4149 = vmatpush.msra.mxu0 %v1615
        %4150 = vmatpush.msra.mxu0 %v1613
        %4151 = vmatpush.msra.mxu0 %v1611
        %4152 = vmatpush.msra.mxu0 %v1609
        %4153 = vmatmul.f32.gmra.mxu0 %v775
        %v4154 = vpop.f32.mrf.mxu0
        %v4155 = vadd.f32 %v4135, %v4154
        %4156 = vdwg.mxu0
        %4157 = vmatpush.msra.mxu0 %v1671
        %4158 = vmatpush.msra.mxu0 %v1669
        %4159 = vmatpush.msra.mxu0 %v1667
        %4160 = vmatpush.msra.mxu0 %v1665
        %4161 = vmatpush.msra.mxu0 %v1663
        %4162 = vmatpush.msra.mxu0 %v1661
        %4163 = vmatpush.msra.mxu0 %v1659
        %4164 = vmatpush.msra.mxu0 %v1657
        %4165 = vmatpush.msra.mxu0 %v1655
        %4166 = vmatpush.msra.mxu0 %v1653
        %4167 = vmatpush.msra.mxu0 %v1651
        %4168 = vmatpush.msra.mxu0 %v1649
        %4169 = vmatpush.msra.mxu0 %v1647
        %4170 = vmatpush.msra.mxu0 %v1645
        %4171 = vmatpush.msra.mxu0 %v1643
        %4172 = vmatpush.msra.mxu0 %v1641
        %4173 = vmatmul.f32.gmra.mxu0 %v776
        %v4174 = vpop.f32.mrf.mxu0
        %v4175 = vadd.f32 %v4155, %v4174
        %4176 = vdwg.mxu0
        %4177 = vmatpush.msra.mxu0 %v1703
        %4178 = vmatpush.msra.mxu0 %v1701
        %4179 = vmatpush.msra.mxu0 %v1699
        %4180 = vmatpush.msra.mxu0 %v1697
        %4181 = vmatpush.msra.mxu0 %v1695
        %4182 = vmatpush.msra.mxu0 %v1693
        %4183 = vmatpush.msra.mxu0 %v1691
        %4184 = vmatpush.msra.mxu0 %v1689
        %4185 = vmatpush.msra.mxu0 %v1687
        %4186 = vmatpush.msra.mxu0 %v1685
        %4187 = vmatpush.msra.mxu0 %v1683
        %4188 = vmatpush.msra.mxu0 %v1681
        %4189 = vmatpush.msra.mxu0 %v1679
        %4190 = vmatpush.msra.mxu0 %v1677
        %4191 = vmatpush.msra.mxu0 %v1675
        %4192 = vmatpush.msra.mxu0 %v1673
        %4193 = vmatmul.f32.gmra.mxu0 %v777
        %v4194 = vpop.f32.mrf.mxu0
        %v4195 = vadd.f32 %v4175, %v4194
        %4196 = vdwg.mxu0
        %4197 = vmatpush.msra.mxu0 %v1735
        %4198 = vmatpush.msra.mxu0 %v1733
        %4199 = vmatpush.msra.mxu0 %v1731
        %4200 = vmatpush.msra.mxu0 %v1729
        %4201 = vmatpush.msra.mxu0 %v1727
        %4202 = vmatpush.msra.mxu0 %v1725
        %4203 = vmatpush.msra.mxu0 %v1723
        %4204 = vmatpush.msra.mxu0 %v1721
        %4205 = vmatpush.msra.mxu0 %v1719
        %4206 = vmatpush.msra.mxu0 %v1717
        %4207 = vmatpush.msra.mxu0 %v1715
        %4208 = vmatpush.msra.mxu0 %v1713
        %4209 = vmatpush.msra.mxu0 %v1711
        %4210 = vmatpush.msra.mxu0 %v1709
        %4211 = vmatpush.msra.mxu0 %v1707
        %4212 = vmatpush.msra.mxu0 %v1705
        %4213 = vmatmul.f32.gmra.mxu0 %v778
        %v4214 = vpop.f32.mrf.mxu0
        %v4215 = vadd.f32 %v4195, %v4214
        %4216 = vdwg.mxu0
        %4217 = vmatpush.msra.mxu0 %v1767
        %4218 = vmatpush.msra.mxu0 %v1765
        %4219 = vmatpush.msra.mxu0 %v1763
        %4220 = vmatpush.msra.mxu0 %v1761
        %4221 = vmatpush.msra.mxu0 %v1759
        %4222 = vmatpush.msra.mxu0 %v1757
        %4223 = vmatpush.msra.mxu0 %v1755
        %4224 = vmatpush.msra.mxu0 %v1753
        %4225 = vmatpush.msra.mxu0 %v1751
        %4226 = vmatpush.msra.mxu0 %v1749
        %4227 = vmatpush.msra.mxu0 %v1747
        %4228 = vmatpush.msra.mxu0 %v1745
        %4229 = vmatpush.msra.mxu0 %v1743
        %4230 = vmatpush.msra.mxu0 %v1741
        %4231 = vmatpush.msra.mxu0 %v1739
        %4232 = vmatpush.msra.mxu0 %v1737
        %4233 = vmatmul.f32.gmra.mxu0 %v779
        %v4234 = vpop.f32.mrf.mxu0
        %v4235 = vadd.f32 %v4215, %v4234
        %4236 = vdwg.mxu0
        %4237 = vmatpush.msra.mxu0 %v1799
        %4238 = vmatpush.msra.mxu0 %v1797
        %4239 = vmatpush.msra.mxu0 %v1795
        %4240 = vmatpush.msra.mxu0 %v1793
        %4241 = vmatpush.msra.mxu0 %v1791
        %4242 = vmatpush.msra.mxu0 %v1789
        %4243 = vmatpush.msra.mxu0 %v1787
        %4244 = vmatpush.msra.mxu0 %v1785
        %4245 = vmatpush.msra.mxu0 %v1783
        %4246 = vmatpush.msra.mxu0 %v1781
        %4247 = vmatpush.msra.mxu0 %v1779
        %4248 = vmatpush.msra.mxu0 %v1777
        %4249 = vmatpush.msra.mxu0 %v1775
        %4250 = vmatpush.msra.mxu0 %v1773
        %4251 = vmatpush.msra.mxu0 %v1771
        %4252 = vmatpush.msra.mxu0 %v1769
        %4253 = vmatmul.f32.gmra.mxu0 %v780
        %v4254 = vpop.f32.mrf.mxu0
        %v4255 = vadd.f32 %v4235, %v4254
        %4256 = vdwg.mxu0
        %4257 = vmatpush.msra.mxu0 %v1831
        %4258 = vmatpush.msra.mxu0 %v1829
        %4259 = vmatpush.msra.mxu0 %v1827
        %4260 = vmatpush.msra.mxu0 %v1825
        %4261 = vmatpush.msra.mxu0 %v1823
        %4262 = vmatpush.msra.mxu0 %v1821
        %4263 = vmatpush.msra.mxu0 %v1819
        %4264 = vmatpush.msra.mxu0 %v1817
        %4265 = vmatpush.msra.mxu0 %v1815
        %4266 = vmatpush.msra.mxu0 %v1813
        %4267 = vmatpush.msra.mxu0 %v1811
        %4268 = vmatpush.msra.mxu0 %v1809
        %4269 = vmatpush.msra.mxu0 %v1807
        %4270 = vmatpush.msra.mxu0 %v1805
        %4271 = vmatpush.msra.mxu0 %v1803
        %4272 = vmatpush.msra.mxu0 %v1801
        %4273 = vmatmul.f32.gmra.mxu0 %v781
        %v4274 = vpop.f32.mrf.mxu0
        %v4275 = vadd.f32 %v4255, %v4274
        %4276 = vdwg.mxu0
        %4277 = vmatpush.msra.mxu0 %v1863
        %4278 = vmatpush.msra.mxu0 %v1861
        %4279 = vmatpush.msra.mxu0 %v1859
        %4280 = vmatpush.msra.mxu0 %v1857
        %4281 = vmatpush.msra.mxu0 %v1855
        %4282 = vmatpush.msra.mxu0 %v1853
        %4283 = vmatpush.msra.mxu0 %v1851
        %4284 = vmatpush.msra.mxu0 %v1849
        %4285 = vmatpush.msra.mxu0 %v1847
        %4286 = vmatpush.msra.mxu0 %v1845
        %4287 = vmatpush.msra.mxu0 %v1843
        %4288 = vmatpush.msra.mxu0 %v1841
        %4289 = vmatpush.msra.mxu0 %v1839
        %4290 = vmatpush.msra.mxu0 %v1837
        %4291 = vmatpush.msra.mxu0 %v1835
        %4292 = vmatpush.msra.mxu0 %v1833
        %4293 = vmatmul.f32.gmra.mxu0 %v782
        %v4294 = vpop.f32.mrf.mxu0
        %v4295 = vadd.f32 %v4275, %v4294
        %4296 = vdwg.mxu0
        %4297 = vmatpush.msra.mxu0 %v1895
        %4298 = vmatpush.msra.mxu0 %v1893
        %4299 = vmatpush.msra.mxu0 %v1891
        %4300 = vmatpush.msra.mxu0 %v1889
        %4301 = vmatpush.msra.mxu0 %v1887
        %4302 = vmatpush.msra.mxu0 %v1885
        %4303 = vmatpush.msra.mxu0 %v1883
        %4304 = vmatpush.msra.mxu0 %v1881
        %4305 = vmatpush.msra.mxu0 %v1879
        %4306 = vmatpush.msra.mxu0 %v1877
        %4307 = vmatpush.msra.mxu0 %v1875
        %4308 = vmatpush.msra.mxu0 %v1873
        %4309 = vmatpush.msra.mxu0 %v1871
        %4310 = vmatpush.msra.mxu0 %v1869
        %4311 = vmatpush.msra.mxu0 %v1867
        %4312 = vmatpush.msra.mxu0 %v1865
        %4313 = vmatmul.f32.gmra.mxu0 %v783
        %v4314 = vpop.f32.mrf.mxu0
        %v4315 = vadd.f32 %v4295, %v4314
        %4316 = vdwg.mxu0
        %4317 = vmatpush.msra.mxu0 %v1927
        %4318 = vmatpush.msra.mxu0 %v1925
        %4319 = vmatpush.msra.mxu0 %v1923
        %4320 = vmatpush.msra.mxu0 %v1921
        %4321 = vmatpush.msra.mxu0 %v1919
        %4322 = vmatpush.msra.mxu0 %v1917
        %4323 = vmatpush.msra.mxu0 %v1915
        %4324 = vmatpush.msra.mxu0 %v1913
        %4325 = vmatpush.msra.mxu0 %v1911
        %4326 = vmatpush.msra.mxu0 %v1909
        %4327 = vmatpush.msra.mxu0 %v1907
        %4328 = vmatpush.msra.mxu0 %v1905
        %4329 = vmatpush.msra.mxu0 %v1903
        %4330 = vmatpush.msra.mxu0 %v1901
        %4331 = vmatpush.msra.mxu0 %v1899
        %4332 = vmatpush.msra.mxu0 %v1897
        %4333 = vmatmul.f32.gmra.mxu0 %v784
        %v4334 = vpop.f32.mrf.mxu0
        %v4335 = vadd.f32 %v4315, %v4334
        %4336 = vdwg.mxu0
        %4337 = vmatpush.msra.mxu0 %v1959
        %4338 = vmatpush.msra.mxu0 %v1957
        %4339 = vmatpush.msra.mxu0 %v1955
        %4340 = vmatpush.msra.mxu0 %v1953
        %4341 = vmatpush.msra.mxu0 %v1951
        %4342 = vmatpush.msra.mxu0 %v1949
        %4343 = vmatpush.msra.mxu0 %v1947
        %4344 = vmatpush.msra.mxu0 %v1945
        %4345 = vmatpush.msra.mxu0 %v1943
        %4346 = vmatpush.msra.mxu0 %v1941
        %4347 = vmatpush.msra.mxu0 %v1939
        %4348 = vmatpush.msra.mxu0 %v1937
        %4349 = vmatpush.msra.mxu0 %v1935
        %4350 = vmatpush.msra.mxu0 %v1933
        %4351 = vmatpush.msra.mxu0 %v1931
        %4352 = vmatpush.msra.mxu0 %v1929
        %4353 = vmatmul.f32.gmra.mxu0 %v785
        %v4354 = vpop.f32.mrf.mxu0
        %v4355 = vadd.f32 %v4335, %v4354
        %4356 = vdwg.mxu0
        %4357 = vmatpush.msra.mxu0 %v1991
        %4358 = vmatpush.msra.mxu0 %v1989
        %4359 = vmatpush.msra.mxu0 %v1987
        %4360 = vmatpush.msra.mxu0 %v1985
        %4361 = vmatpush.msra.mxu0 %v1983
        %4362 = vmatpush.msra.mxu0 %v1981
        %4363 = vmatpush.msra.mxu0 %v1979
        %4364 = vmatpush.msra.mxu0 %v1977
        %4365 = vmatpush.msra.mxu0 %v1975
        %4366 = vmatpush.msra.mxu0 %v1973
        %4367 = vmatpush.msra.mxu0 %v1971
        %4368 = vmatpush.msra.mxu0 %v1969
        %4369 = vmatpush.msra.mxu0 %v1967
        %4370 = vmatpush.msra.mxu0 %v1965
        %4371 = vmatpush.msra.mxu0 %v1963
        %4372 = vmatpush.msra.mxu0 %v1961
        %4373 = vmatmul.f32.gmra.mxu0 %v786
        %v4374 = vpop.f32.mrf.mxu0
        %v4375 = vadd.f32 %v4355, %v4374
        %4376 = vdwg.mxu0
        %4377 = vmatpush.msra.mxu0 %v2023
        %4378 = vmatpush.msra.mxu0 %v2021
        %4379 = vmatpush.msra.mxu0 %v2019
        %4380 = vmatpush.msra.mxu0 %v2017
        %4381 = vmatpush.msra.mxu0 %v2015
        %4382 = vmatpush.msra.mxu0 %v2013
        %4383 = vmatpush.msra.mxu0 %v2011
        %4384 = vmatpush.msra.mxu0 %v2009
        %4385 = vmatpush.msra.mxu0 %v2007
        %4386 = vmatpush.msra.mxu0 %v2005
        %4387 = vmatpush.msra.mxu0 %v2003
        %4388 = vmatpush.msra.mxu0 %v2001
        %4389 = vmatpush.msra.mxu0 %v1999
        %4390 = vmatpush.msra.mxu0 %v1997
        %4391 = vmatpush.msra.mxu0 %v1995
        %4392 = vmatpush.msra.mxu0 %v1993
        %4393 = vmatmul.f32.gmra.mxu0 %v787
        %v4394 = vpop.f32.mrf.mxu0
        %v4395 = vadd.f32 %v4375, %v4394
        %4396 = vdwg.mxu0
        %4397 = vmatpush.msra.mxu0 %v2055
        %4398 = vmatpush.msra.mxu0 %v2053
        %4399 = vmatpush.msra.mxu0 %v2051
        %4400 = vmatpush.msra.mxu0 %v2049
        %4401 = vmatpush.msra.mxu0 %v2047
        %4402 = vmatpush.msra.mxu0 %v2045
        %4403 = vmatpush.msra.mxu0 %v2043
        %4404 = vmatpush.msra.mxu0 %v2041
        %4405 = vmatpush.msra.mxu0 %v2039
        %4406 = vmatpush.msra.mxu0 %v2037
        %4407 = vmatpush.msra.mxu0 %v2035
        %4408 = vmatpush.msra.mxu0 %v2033
        %4409 = vmatpush.msra.mxu0 %v2031
        %4410 = vmatpush.msra.mxu0 %v2029
        %4411 = vmatpush.msra.mxu0 %v2027
        %4412 = vmatpush.msra.mxu0 %v2025
        %4413 = vmatmul.f32.gmra.mxu0 %v788
        %v4414 = vpop.f32.mrf.mxu0
        %v4415 = vadd.f32 %v4395, %v4414
        %4416 = vdwg.mxu0
        %4417 = vmatpush.msra.mxu0 %v2087
        %4418 = vmatpush.msra.mxu0 %v2085
        %4419 = vmatpush.msra.mxu0 %v2083
        %4420 = vmatpush.msra.mxu0 %v2081
        %4421 = vmatpush.msra.mxu0 %v2079
        %4422 = vmatpush.msra.mxu0 %v2077
        %4423 = vmatpush.msra.mxu0 %v2075
        %4424 = vmatpush.msra.mxu0 %v2073
        %4425 = vmatpush.msra.mxu0 %v2071
        %4426 = vmatpush.msra.mxu0 %v2069
        %4427 = vmatpush.msra.mxu0 %v2067
        %4428 = vmatpush.msra.mxu0 %v2065
        %4429 = vmatpush.msra.mxu0 %v2063
        %4430 = vmatpush.msra.mxu0 %v2061
        %4431 = vmatpush.msra.mxu0 %v2059
        %4432 = vmatpush.msra.mxu0 %v2057
        %4433 = vmatmul.f32.gmra.mxu0 %v789
        %v4434 = vpop.f32.mrf.mxu0
        %v4435 = vadd.f32 %v4415, %v4434
        %4436 = vdwg.mxu0
        %4437 = vmatpush.msra.mxu0 %v2119
        %4438 = vmatpush.msra.mxu0 %v2117
        %4439 = vmatpush.msra.mxu0 %v2115
        %4440 = vmatpush.msra.mxu0 %v2113
        %4441 = vmatpush.msra.mxu0 %v2111
        %4442 = vmatpush.msra.mxu0 %v2109
        %4443 = vmatpush.msra.mxu0 %v2107
        %4444 = vmatpush.msra.mxu0 %v2105
        %4445 = vmatpush.msra.mxu0 %v2103
        %4446 = vmatpush.msra.mxu0 %v2101
        %4447 = vmatpush.msra.mxu0 %v2099
        %4448 = vmatpush.msra.mxu0 %v2097
        %4449 = vmatpush.msra.mxu0 %v2095
        %4450 = vmatpush.msra.mxu0 %v2093
        %4451 = vmatpush.msra.mxu0 %v2091
        %4452 = vmatpush.msra.mxu0 %v2089
        %4453 = vmatmul.f32.gmra.mxu0 %v790
        %v4454 = vpop.f32.mrf.mxu0
        %v4455 = vadd.f32 %v4435, %v4454
        %4456 = vdwg.mxu0
        %4457 = vmatpush.msra.mxu0 %v2151
        %4458 = vmatpush.msra.mxu0 %v2149
        %4459 = vmatpush.msra.mxu0 %v2147
        %4460 = vmatpush.msra.mxu0 %v2145
        %4461 = vmatpush.msra.mxu0 %v2143
        %4462 = vmatpush.msra.mxu0 %v2141
        %4463 = vmatpush.msra.mxu0 %v2139
        %4464 = vmatpush.msra.mxu0 %v2137
        %4465 = vmatpush.msra.mxu0 %v2135
        %4466 = vmatpush.msra.mxu0 %v2133
        %4467 = vmatpush.msra.mxu0 %v2131
        %4468 = vmatpush.msra.mxu0 %v2129
        %4469 = vmatpush.msra.mxu0 %v2127
        %4470 = vmatpush.msra.mxu0 %v2125
        %4471 = vmatpush.msra.mxu0 %v2123
        %4472 = vmatpush.msra.mxu0 %v2121
        %4473 = vmatmul.f32.gmra.mxu0 %v791
        %v4474 = vpop.f32.mrf.mxu0
        %v4475 = vadd.f32 %v4455, %v4474
        %4476 = vdwg.mxu0
        %4477 = vmatpush.msra.mxu0 %v2183
        %4478 = vmatpush.msra.mxu0 %v2181
        %4479 = vmatpush.msra.mxu0 %v2179
        %4480 = vmatpush.msra.mxu0 %v2177
        %4481 = vmatpush.msra.mxu0 %v2175
        %4482 = vmatpush.msra.mxu0 %v2173
        %4483 = vmatpush.msra.mxu0 %v2171
        %4484 = vmatpush.msra.mxu0 %v2169
        %4485 = vmatpush.msra.mxu0 %v2167
        %4486 = vmatpush.msra.mxu0 %v2165
        %4487 = vmatpush.msra.mxu0 %v2163
        %4488 = vmatpush.msra.mxu0 %v2161
        %4489 = vmatpush.msra.mxu0 %v2159
        %4490 = vmatpush.msra.mxu0 %v2157
        %4491 = vmatpush.msra.mxu0 %v2155
        %4492 = vmatpush.msra.mxu0 %v2153
        %4493 = vmatmul.f32.gmra.mxu0 %v792
        %v4494 = vpop.f32.mrf.mxu0
        %v4495 = vadd.f32 %v4475, %v4494
        %4496 = vdwg.mxu0
        %4497 = vmatpush.msra.mxu0 %v2215
        %4498 = vmatpush.msra.mxu0 %v2213
        %4499 = vmatpush.msra.mxu0 %v2211
        %4500 = vmatpush.msra.mxu0 %v2209
        %4501 = vmatpush.msra.mxu0 %v2207
        %4502 = vmatpush.msra.mxu0 %v2205
        %4503 = vmatpush.msra.mxu0 %v2203
        %4504 = vmatpush.msra.mxu0 %v2201
        %4505 = vmatpush.msra.mxu0 %v2199
        %4506 = vmatpush.msra.mxu0 %v2197
        %4507 = vmatpush.msra.mxu0 %v2195
        %4508 = vmatpush.msra.mxu0 %v2193
        %4509 = vmatpush.msra.mxu0 %v2191
        %4510 = vmatpush.msra.mxu0 %v2189
        %4511 = vmatpush.msra.mxu0 %v2187
        %4512 = vmatpush.msra.mxu0 %v2185
        %4513 = vmatmul.f32.gmra.mxu0 %v793
        %v4514 = vpop.f32.mrf.mxu0
        %v4515 = vadd.f32 %v4495, %v4514
        %4516 = vdwg.mxu0
        %4517 = vmatpush.msra.mxu0 %v2247
        %4518 = vmatpush.msra.mxu0 %v2245
        %4519 = vmatpush.msra.mxu0 %v2243
        %4520 = vmatpush.msra.mxu0 %v2241
        %4521 = vmatpush.msra.mxu0 %v2239
        %4522 = vmatpush.msra.mxu0 %v2237
        %4523 = vmatpush.msra.mxu0 %v2235
        %4524 = vmatpush.msra.mxu0 %v2233
        %4525 = vmatpush.msra.mxu0 %v2231
        %4526 = vmatpush.msra.mxu0 %v2229
        %4527 = vmatpush.msra.mxu0 %v2227
        %4528 = vmatpush.msra.mxu0 %v2225
        %4529 = vmatpush.msra.mxu0 %v2223
        %4530 = vmatpush.msra.mxu0 %v2221
        %4531 = vmatpush.msra.mxu0 %v2219
        %4532 = vmatpush.msra.mxu0 %v2217
        %4533 = vmatmul.f32.gmra.mxu0 %v794
        %v4534 = vpop.f32.mrf.mxu0
        %v4535 = vadd.f32 %v4515, %v4534
        %4536 = vdwg.mxu0
        %4537 = vmatpush.msra.mxu0 %v2279
        %4538 = vmatpush.msra.mxu0 %v2277
        %4539 = vmatpush.msra.mxu0 %v2275
        %4540 = vmatpush.msra.mxu0 %v2273
        %4541 = vmatpush.msra.mxu0 %v2271
        %4542 = vmatpush.msra.mxu0 %v2269
        %4543 = vmatpush.msra.mxu0 %v2267
        %4544 = vmatpush.msra.mxu0 %v2265
        %4545 = vmatpush.msra.mxu0 %v2263
        %4546 = vmatpush.msra.mxu0 %v2261
        %4547 = vmatpush.msra.mxu0 %v2259
        %4548 = vmatpush.msra.mxu0 %v2257
        %4549 = vmatpush.msra.mxu0 %v2255
        %4550 = vmatpush.msra.mxu0 %v2253
        %4551 = vmatpush.msra.mxu0 %v2251
        %4552 = vmatpush.msra.mxu0 %v2249
        %4553 = vmatmul.f32.gmra.mxu0 %v795
        %v4554 = vpop.f32.mrf.mxu0
        %v4555 = vadd.f32 %v4535, %v4554
        %4556 = vdwg.mxu0
        %4557 = vmatpush.msra.mxu0 %v2311
        %4558 = vmatpush.msra.mxu0 %v2309
        %4559 = vmatpush.msra.mxu0 %v2307
        %4560 = vmatpush.msra.mxu0 %v2305
        %4561 = vmatpush.msra.mxu0 %v2303
        %4562 = vmatpush.msra.mxu0 %v2301
        %4563 = vmatpush.msra.mxu0 %v2299
        %4564 = vmatpush.msra.mxu0 %v2297
        %4565 = vmatpush.msra.mxu0 %v2295
        %4566 = vmatpush.msra.mxu0 %v2293
        %4567 = vmatpush.msra.mxu0 %v2291
        %4568 = vmatpush.msra.mxu0 %v2289
        %4569 = vmatpush.msra.mxu0 %v2287
        %4570 = vmatpush.msra.mxu0 %v2285
        %4571 = vmatpush.msra.mxu0 %v2283
        %4572 = vmatpush.msra.mxu0 %v2281
        %4573 = vmatmul.f32.gmra.mxu0 %v796
        %v4574 = vpop.f32.mrf.mxu0
        %v4575 = vadd.f32 %v4555, %v4574
        %4576 = vdwg.mxu0
        %4577 = vmatpush.msra.mxu0 %v2343
        %4578 = vmatpush.msra.mxu0 %v2341
        %4579 = vmatpush.msra.mxu0 %v2339
        %4580 = vmatpush.msra.mxu0 %v2337
        %4581 = vmatpush.msra.mxu0 %v2335
        %4582 = vmatpush.msra.mxu0 %v2333
        %4583 = vmatpush.msra.mxu0 %v2331
        %4584 = vmatpush.msra.mxu0 %v2329
        %4585 = vmatpush.msra.mxu0 %v2327
        %4586 = vmatpush.msra.mxu0 %v2325
        %4587 = vmatpush.msra.mxu0 %v2323
        %4588 = vmatpush.msra.mxu0 %v2321
        %4589 = vmatpush.msra.mxu0 %v2319
        %4590 = vmatpush.msra.mxu0 %v2317
        %4591 = vmatpush.msra.mxu0 %v2315
        %4592 = vmatpush.msra.mxu0 %v2313
        %4593 = vmatmul.f32.gmra.mxu0 %v797
        %v4594 = vpop.f32.mrf.mxu0
        %v4595 = vadd.f32 %v4575, %v4594
        %4596 = vdwg.mxu0
        %4597 = vmatpush.msra.mxu0 %v2375
        %4598 = vmatpush.msra.mxu0 %v2373
        %4599 = vmatpush.msra.mxu0 %v2371
        %4600 = vmatpush.msra.mxu0 %v2369
        %4601 = vmatpush.msra.mxu0 %v2367
        %4602 = vmatpush.msra.mxu0 %v2365
        %4603 = vmatpush.msra.mxu0 %v2363
        %4604 = vmatpush.msra.mxu0 %v2361
        %4605 = vmatpush.msra.mxu0 %v2359
        %4606 = vmatpush.msra.mxu0 %v2357
        %4607 = vmatpush.msra.mxu0 %v2355
        %4608 = vmatpush.msra.mxu0 %v2353
        %4609 = vmatpush.msra.mxu0 %v2351
        %4610 = vmatpush.msra.mxu0 %v2349
        %4611 = vmatpush.msra.mxu0 %v2347
        %4612 = vmatpush.msra.mxu0 %v2345
        %4613 = vmatmul.f32.gmra.mxu0 %v798
        %v4614 = vpop.f32.mrf.mxu0
        %v4615 = vadd.f32 %v4595, %v4614
        %4616 = vdwg.mxu0
        %4617 = vmatpush.msra.mxu0 %v2407
        %4618 = vmatpush.msra.mxu0 %v2405
        %4619 = vmatpush.msra.mxu0 %v2403
        %4620 = vmatpush.msra.mxu0 %v2401
        %4621 = vmatpush.msra.mxu0 %v2399
        %4622 = vmatpush.msra.mxu0 %v2397
        %4623 = vmatpush.msra.mxu0 %v2395
        %4624 = vmatpush.msra.mxu0 %v2393
        %4625 = vmatpush.msra.mxu0 %v2391
        %4626 = vmatpush.msra.mxu0 %v2389
        %4627 = vmatpush.msra.mxu0 %v2387
        %4628 = vmatpush.msra.mxu0 %v2385
        %4629 = vmatpush.msra.mxu0 %v2383
        %4630 = vmatpush.msra.mxu0 %v2381
        %4631 = vmatpush.msra.mxu0 %v2379
        %4632 = vmatpush.msra.mxu0 %v2377
        %4633 = vmatmul.f32.gmra.mxu0 %v799
        %v4634 = vpop.f32.mrf.mxu0
        %v4635 = vadd.f32 %v4615, %v4634
        %4636 = vdwg.mxu0
        %4637 = vmatpush.msra.mxu0 %v2439
        %4638 = vmatpush.msra.mxu0 %v2437
        %4639 = vmatpush.msra.mxu0 %v2435
        %4640 = vmatpush.msra.mxu0 %v2433
        %4641 = vmatpush.msra.mxu0 %v2431
        %4642 = vmatpush.msra.mxu0 %v2429
        %4643 = vmatpush.msra.mxu0 %v2427
        %4644 = vmatpush.msra.mxu0 %v2425
        %4645 = vmatpush.msra.mxu0 %v2423
        %4646 = vmatpush.msra.mxu0 %v2421
        %4647 = vmatpush.msra.mxu0 %v2419
        %4648 = vmatpush.msra.mxu0 %v2417
        %4649 = vmatpush.msra.mxu0 %v2415
        %4650 = vmatpush.msra.mxu0 %v2413
        %4651 = vmatpush.msra.mxu0 %v2411
        %4652 = vmatpush.msra.mxu0 %v2409
        %4653 = vmatmul.f32.gmra.mxu0 %v800
        %v4654 = vpop.f32.mrf.mxu0
        %v4655 = vadd.f32 %v4635, %v4654
        %4656 = vdwg.mxu0
        %4657 = vmatpush.msra.mxu0 %v2471
        %4658 = vmatpush.msra.mxu0 %v2469
        %4659 = vmatpush.msra.mxu0 %v2467
        %4660 = vmatpush.msra.mxu0 %v2465
        %4661 = vmatpush.msra.mxu0 %v2463
        %4662 = vmatpush.msra.mxu0 %v2461
        %4663 = vmatpush.msra.mxu0 %v2459
        %4664 = vmatpush.msra.mxu0 %v2457
        %4665 = vmatpush.msra.mxu0 %v2455
        %4666 = vmatpush.msra.mxu0 %v2453
        %4667 = vmatpush.msra.mxu0 %v2451
        %4668 = vmatpush.msra.mxu0 %v2449
        %4669 = vmatpush.msra.mxu0 %v2447
        %4670 = vmatpush.msra.mxu0 %v2445
        %4671 = vmatpush.msra.mxu0 %v2443
        %4672 = vmatpush.msra.mxu0 %v2441
        %4673 = vmatmul.f32.gmra.mxu0 %v801
        %v4674 = vpop.f32.mrf.mxu0
        %v4675 = vadd.f32 %v4655, %v4674
        %4676 = vdwg.mxu0
        %4677 = vmatpush.msra.mxu0 %v2503
        %4678 = vmatpush.msra.mxu0 %v2501
        %4679 = vmatpush.msra.mxu0 %v2499
        %4680 = vmatpush.msra.mxu0 %v2497
        %4681 = vmatpush.msra.mxu0 %v2495
        %4682 = vmatpush.msra.mxu0 %v2493
        %4683 = vmatpush.msra.mxu0 %v2491
        %4684 = vmatpush.msra.mxu0 %v2489
        %4685 = vmatpush.msra.mxu0 %v2487
        %4686 = vmatpush.msra.mxu0 %v2485
        %4687 = vmatpush.msra.mxu0 %v2483
        %4688 = vmatpush.msra.mxu0 %v2481
        %4689 = vmatpush.msra.mxu0 %v2479
        %4690 = vmatpush.msra.mxu0 %v2477
        %4691 = vmatpush.msra.mxu0 %v2475
        %4692 = vmatpush.msra.mxu0 %v2473
        %4693 = vmatmul.f32.gmra.mxu0 %v802
        %v4694 = vpop.f32.mrf.mxu0
        %v4695 = vadd.f32 %v4675, %v4694
        %4696 = vdwg.mxu0
        %4697 = vmatpush.msra.mxu0 %v2535
        %4698 = vmatpush.msra.mxu0 %v2533
        %4699 = vmatpush.msra.mxu0 %v2531
        %4700 = vmatpush.msra.mxu0 %v2529
        %4701 = vmatpush.msra.mxu0 %v2527
        %4702 = vmatpush.msra.mxu0 %v2525
        %4703 = vmatpush.msra.mxu0 %v2523
        %4704 = vmatpush.msra.mxu0 %v2521
        %4705 = vmatpush.msra.mxu0 %v2519
        %4706 = vmatpush.msra.mxu0 %v2517
        %4707 = vmatpush.msra.mxu0 %v2515
        %4708 = vmatpush.msra.mxu0 %v2513
        %4709 = vmatpush.msra.mxu0 %v2511
        %4710 = vmatpush.msra.mxu0 %v2509
        %4711 = vmatpush.msra.mxu0 %v2507
        %4712 = vmatpush.msra.mxu0 %v2505
        %4713 = vmatmul.f32.gmra.mxu0 %v803
        %v4714 = vpop.f32.mrf.mxu0
        %v4715 = vadd.f32 %v4695, %v4714
        %4716 = vdwg.mxu0
        %4717 = vmatpush.msra.mxu0 %v2567
        %4718 = vmatpush.msra.mxu0 %v2565
        %4719 = vmatpush.msra.mxu0 %v2563
        %4720 = vmatpush.msra.mxu0 %v2561
        %4721 = vmatpush.msra.mxu0 %v2559
        %4722 = vmatpush.msra.mxu0 %v2557
        %4723 = vmatpush.msra.mxu0 %v2555
        %4724 = vmatpush.msra.mxu0 %v2553
        %4725 = vmatpush.msra.mxu0 %v2551
        %4726 = vmatpush.msra.mxu0 %v2549
        %4727 = vmatpush.msra.mxu0 %v2547
        %4728 = vmatpush.msra.mxu0 %v2545
        %4729 = vmatpush.msra.mxu0 %v2543
        %4730 = vmatpush.msra.mxu0 %v2541
        %4731 = vmatpush.msra.mxu0 %v2539
        %4732 = vmatpush.msra.mxu0 %v2537
        %4733 = vmatmul.f32.gmra.mxu0 %v804
        %v4734 = vpop.f32.mrf.mxu0
        %v4735 = vadd.f32 %v4715, %v4734
        %4736 = vdwg.mxu0
        %4737 = vmatpush.msra.mxu0 %v2599
        %4738 = vmatpush.msra.mxu0 %v2597
        %4739 = vmatpush.msra.mxu0 %v2595
        %4740 = vmatpush.msra.mxu0 %v2593
        %4741 = vmatpush.msra.mxu0 %v2591
        %4742 = vmatpush.msra.mxu0 %v2589
        %4743 = vmatpush.msra.mxu0 %v2587
        %4744 = vmatpush.msra.mxu0 %v2585
        %4745 = vmatpush.msra.mxu0 %v2583
        %4746 = vmatpush.msra.mxu0 %v2581
        %4747 = vmatpush.msra.mxu0 %v2579
        %4748 = vmatpush.msra.mxu0 %v2577
        %4749 = vmatpush.msra.mxu0 %v2575
        %4750 = vmatpush.msra.mxu0 %v2573
        %4751 = vmatpush.msra.mxu0 %v2571
        %4752 = vmatpush.msra.mxu0 %v2569
        %4753 = vmatmul.f32.gmra.mxu0 %v805
        %v4754 = vpop.f32.mrf.mxu0
        %v4755 = vadd.f32 %v4735, %v4754
        %4756 = vdwg.mxu0
        %4757 = vmatpush.msra.mxu0 %v2631
        %4758 = vmatpush.msra.mxu0 %v2629
        %4759 = vmatpush.msra.mxu0 %v2627
        %4760 = vmatpush.msra.mxu0 %v2625
        %4761 = vmatpush.msra.mxu0 %v2623
        %4762 = vmatpush.msra.mxu0 %v2621
        %4763 = vmatpush.msra.mxu0 %v2619
        %4764 = vmatpush.msra.mxu0 %v2617
        %4765 = vmatpush.msra.mxu0 %v2615
        %4766 = vmatpush.msra.mxu0 %v2613
        %4767 = vmatpush.msra.mxu0 %v2611
        %4768 = vmatpush.msra.mxu0 %v2609
        %4769 = vmatpush.msra.mxu0 %v2607
        %4770 = vmatpush.msra.mxu0 %v2605
        %4771 = vmatpush.msra.mxu0 %v2603
        %4772 = vmatpush.msra.mxu0 %v2601
        %4773 = vmatmul.f32.gmra.mxu0 %v806
        %v4774 = vpop.f32.mrf.mxu0
        %v4775 = vadd.f32 %v4755, %v4774
        %4776 = vdwg.mxu0
        %4777 = vmatpush.msra.mxu0 %v2663
        %4778 = vmatpush.msra.mxu0 %v2661
        %4779 = vmatpush.msra.mxu0 %v2659
        %4780 = vmatpush.msra.mxu0 %v2657
        %4781 = vmatpush.msra.mxu0 %v2655
        %4782 = vmatpush.msra.mxu0 %v2653
        %4783 = vmatpush.msra.mxu0 %v2651
        %4784 = vmatpush.msra.mxu0 %v2649
        %4785 = vmatpush.msra.mxu0 %v2647
        %4786 = vmatpush.msra.mxu0 %v2645
        %4787 = vmatpush.msra.mxu0 %v2643
        %4788 = vmatpush.msra.mxu0 %v2641
        %4789 = vmatpush.msra.mxu0 %v2639
        %4790 = vmatpush.msra.mxu0 %v2637
        %4791 = vmatpush.msra.mxu0 %v2635
        %4792 = vmatpush.msra.mxu0 %v2633
        %4793 = vmatmul.f32.gmra.mxu0 %v807
        %v4794 = vpop.f32.mrf.mxu0
        %v4795 = vadd.f32 %v4775, %v4794
        %4796 = vdwg.mxu0
        %4797 = vmatpush.msra.mxu0 %v2695
        %4798 = vmatpush.msra.mxu0 %v2693
        %4799 = vmatpush.msra.mxu0 %v2691
        %4800 = vmatpush.msra.mxu0 %v2689
        %4801 = vmatpush.msra.mxu0 %v2687
        %4802 = vmatpush.msra.mxu0 %v2685
        %4803 = vmatpush.msra.mxu0 %v2683
        %4804 = vmatpush.msra.mxu0 %v2681
        %4805 = vmatpush.msra.mxu0 %v2679
        %4806 = vmatpush.msra.mxu0 %v2677
        %4807 = vmatpush.msra.mxu0 %v2675
        %4808 = vmatpush.msra.mxu0 %v2673
        %4809 = vmatpush.msra.mxu0 %v2671
        %4810 = vmatpush.msra.mxu0 %v2669
        %4811 = vmatpush.msra.mxu0 %v2667
        %4812 = vmatpush.msra.mxu0 %v2665
        %4813 = vmatmul.f32.gmra.mxu0 %v808
        %v4814 = vpop.f32.mrf.mxu0
        %v4815 = vadd.f32 %v4795, %v4814
        %4816 = vdwg.mxu0
        %4817 = vmatpush.msra.mxu0 %v2727
        %4818 = vmatpush.msra.mxu0 %v2725
        %4819 = vmatpush.msra.mxu0 %v2723
        %4820 = vmatpush.msra.mxu0 %v2721
        %4821 = vmatpush.msra.mxu0 %v2719
        %4822 = vmatpush.msra.mxu0 %v2717
        %4823 = vmatpush.msra.mxu0 %v2715
        %4824 = vmatpush.msra.mxu0 %v2713
        %4825 = vmatpush.msra.mxu0 %v2711
        %4826 = vmatpush.msra.mxu0 %v2709
        %4827 = vmatpush.msra.mxu0 %v2707
        %4828 = vmatpush.msra.mxu0 %v2705
        %4829 = vmatpush.msra.mxu0 %v2703
        %4830 = vmatpush.msra.mxu0 %v2701
        %4831 = vmatpush.msra.mxu0 %v2699
        %4832 = vmatpush.msra.mxu0 %v2697
        %4833 = vmatmul.f32.gmra.mxu0 %v809
        %v4834 = vpop.f32.mrf.mxu0
        %v4835 = vadd.f32 %v4815, %v4834
        %4836 = vdwg.mxu0
        %4837 = vmatpush.msra.mxu0 %v2759
        %4838 = vmatpush.msra.mxu0 %v2757
        %4839 = vmatpush.msra.mxu0 %v2755
        %4840 = vmatpush.msra.mxu0 %v2753
        %4841 = vmatpush.msra.mxu0 %v2751
        %4842 = vmatpush.msra.mxu0 %v2749
        %4843 = vmatpush.msra.mxu0 %v2747
        %4844 = vmatpush.msra.mxu0 %v2745
        %4845 = vmatpush.msra.mxu0 %v2743
        %4846 = vmatpush.msra.mxu0 %v2741
        %4847 = vmatpush.msra.mxu0 %v2739
        %4848 = vmatpush.msra.mxu0 %v2737
        %4849 = vmatpush.msra.mxu0 %v2735
        %4850 = vmatpush.msra.mxu0 %v2733
        %4851 = vmatpush.msra.mxu0 %v2731
        %4852 = vmatpush.msra.mxu0 %v2729
        %4853 = vmatmul.f32.gmra.mxu0 %v810
        %v4854 = vpop.f32.mrf.mxu0
        %v4855 = vadd.f32 %v4835, %v4854
        %4856 = vdwg.mxu0
        %4857 = vmatpush.msra.mxu0 %v2791
        %4858 = vmatpush.msra.mxu0 %v2789
        %4859 = vmatpush.msra.mxu0 %v2787
        %4860 = vmatpush.msra.mxu0 %v2785
        %4861 = vmatpush.msra.mxu0 %v2783
        %4862 = vmatpush.msra.mxu0 %v2781
        %4863 = vmatpush.msra.mxu0 %v2779
        %4864 = vmatpush.msra.mxu0 %v2777
        %4865 = vmatpush.msra.mxu0 %v2775
        %4866 = vmatpush.msra.mxu0 %v2773
        %4867 = vmatpush.msra.mxu0 %v2771
        %4868 = vmatpush.msra.mxu0 %v2769
        %4869 = vmatpush.msra.mxu0 %v2767
        %4870 = vmatpush.msra.mxu0 %v2765
        %4871 = vmatpush.msra.mxu0 %v2763
        %4872 = vmatpush.msra.mxu0 %v2761
        %4873 = vmatmul.f32.gmra.mxu0 %v811
        %v4874 = vpop.f32.mrf.mxu0
        %v4875 = vadd.f32 %v4855, %v4874
        %4876 = vdwg.mxu0
        %4877 = vmatpush.msra.mxu0 %v2823
        %4878 = vmatpush.msra.mxu0 %v2821
        %4879 = vmatpush.msra.mxu0 %v2819
        %4880 = vmatpush.msra.mxu0 %v2817
        %4881 = vmatpush.msra.mxu0 %v2815
        %4882 = vmatpush.msra.mxu0 %v2813
        %4883 = vmatpush.msra.mxu0 %v2811
        %4884 = vmatpush.msra.mxu0 %v2809
        %4885 = vmatpush.msra.mxu0 %v2807
        %4886 = vmatpush.msra.mxu0 %v2805
        %4887 = vmatpush.msra.mxu0 %v2803
        %4888 = vmatpush.msra.mxu0 %v2801
        %4889 = vmatpush.msra.mxu0 %v2799
        %4890 = vmatpush.msra.mxu0 %v2797
        %4891 = vmatpush.msra.mxu0 %v2795
        %4892 = vmatpush.msra.mxu0 %v2793
        %4893 = vmatmul.f32.gmra.mxu0 %v812
        %v4894 = vpop.f32.mrf.mxu0
        %v4895 = vadd.f32 %v4875, %v4894
        %4896 = vdwg.mxu0
        %4897 = vmatpush.msra.mxu0 %v2855
        %4898 = vmatpush.msra.mxu0 %v2853
        %4899 = vmatpush.msra.mxu0 %v2851
        %4900 = vmatpush.msra.mxu0 %v2849
        %4901 = vmatpush.msra.mxu0 %v2847
        %4902 = vmatpush.msra.mxu0 %v2845
        %4903 = vmatpush.msra.mxu0 %v2843
        %4904 = vmatpush.msra.mxu0 %v2841
        %4905 = vmatpush.msra.mxu0 %v2839
        %4906 = vmatpush.msra.mxu0 %v2837
        %4907 = vmatpush.msra.mxu0 %v2835
        %4908 = vmatpush.msra.mxu0 %v2833
        %4909 = vmatpush.msra.mxu0 %v2831
        %4910 = vmatpush.msra.mxu0 %v2829
        %4911 = vmatpush.msra.mxu0 %v2827
        %4912 = vmatpush.msra.mxu0 %v2825
        %4913 = vmatmul.f32.gmra.mxu0 %v813
        %v4914 = vpop.f32.mrf.mxu0
        %v4915 = vadd.f32 %v4895, %v4914
        %4916 = vdwg.mxu0
        %4917 = vmatpush.msra.mxu0 %v2887
        %4918 = vmatpush.msra.mxu0 %v2885
        %4919 = vmatpush.msra.mxu0 %v2883
        %4920 = vmatpush.msra.mxu0 %v2881
        %4921 = vmatpush.msra.mxu0 %v2879
        %4922 = vmatpush.msra.mxu0 %v2877
        %4923 = vmatpush.msra.mxu0 %v2875
        %4924 = vmatpush.msra.mxu0 %v2873
        %4925 = vmatpush.msra.mxu0 %v2871
        %4926 = vmatpush.msra.mxu0 %v2869
        %4927 = vmatpush.msra.mxu0 %v2867
        %4928 = vmatpush.msra.mxu0 %v2865
        %4929 = vmatpush.msra.mxu0 %v2863
        %4930 = vmatpush.msra.mxu0 %v2861
        %4931 = vmatpush.msra.mxu0 %v2859
        %4932 = vmatpush.msra.mxu0 %v2857
        %4933 = vmatmul.f32.gmra.mxu0 %v814
        %v4934 = vpop.f32.mrf.mxu0
        %v4935 = vadd.f32 %v4915, %v4934
        %4936 = vdwg.mxu0
        %4937 = vmatpush.msra.mxu0 %v2919
        %4938 = vmatpush.msra.mxu0 %v2917
        %4939 = vmatpush.msra.mxu0 %v2915
        %4940 = vmatpush.msra.mxu0 %v2913
        %4941 = vmatpush.msra.mxu0 %v2911
        %4942 = vmatpush.msra.mxu0 %v2909
        %4943 = vmatpush.msra.mxu0 %v2907
        %4944 = vmatpush.msra.mxu0 %v2905
        %4945 = vmatpush.msra.mxu0 %v2903
        %4946 = vmatpush.msra.mxu0 %v2901
        %4947 = vmatpush.msra.mxu0 %v2899
        %4948 = vmatpush.msra.mxu0 %v2897
        %4949 = vmatpush.msra.mxu0 %v2895
        %4950 = vmatpush.msra.mxu0 %v2893
        %4951 = vmatpush.msra.mxu0 %v2891
        %4952 = vmatpush.msra.mxu0 %v2889
        %4953 = vmatmul.f32.gmra.mxu0 %v815
        %v4954 = vpop.f32.mrf.mxu0
        %v4955 = vadd.f32 %v4935, %v4954
        %4956 = vdwg.mxu0
        %4957 = vmatpush.msra.mxu0 %v2951
        %4958 = vmatpush.msra.mxu0 %v2949
        %4959 = vmatpush.msra.mxu0 %v2947
        %4960 = vmatpush.msra.mxu0 %v2945
        %4961 = vmatpush.msra.mxu0 %v2943
        %4962 = vmatpush.msra.mxu0 %v2941
        %4963 = vmatpush.msra.mxu0 %v2939
        %4964 = vmatpush.msra.mxu0 %v2937
        %4965 = vmatpush.msra.mxu0 %v2935
        %4966 = vmatpush.msra.mxu0 %v2933
        %4967 = vmatpush.msra.mxu0 %v2931
        %4968 = vmatpush.msra.mxu0 %v2929
        %4969 = vmatpush.msra.mxu0 %v2927
        %4970 = vmatpush.msra.mxu0 %v2925
        %4971 = vmatpush.msra.mxu0 %v2923
        %4972 = vmatpush.msra.mxu0 %v2921
        %4973 = vmatmul.f32.gmra.mxu0 %v816
        %v4974 = vpop.f32.mrf.mxu0
        %v4975 = vadd.f32 %v4955, %v4974
        %4976 = vdwg.mxu0
        %4977 = vmatpush.msra.mxu0 %v2983
        %4978 = vmatpush.msra.mxu0 %v2981
        %4979 = vmatpush.msra.mxu0 %v2979
        %4980 = vmatpush.msra.mxu0 %v2977
        %4981 = vmatpush.msra.mxu0 %v2975
        %4982 = vmatpush.msra.mxu0 %v2973
        %4983 = vmatpush.msra.mxu0 %v2971
        %4984 = vmatpush.msra.mxu0 %v2969
        %4985 = vmatpush.msra.mxu0 %v2967
        %4986 = vmatpush.msra.mxu0 %v2965
        %4987 = vmatpush.msra.mxu0 %v2963
        %4988 = vmatpush.msra.mxu0 %v2961
        %4989 = vmatpush.msra.mxu0 %v2959
        %4990 = vmatpush.msra.mxu0 %v2957
        %4991 = vmatpush.msra.mxu0 %v2955
        %4992 = vmatpush.msra.mxu0 %v2953
        %4993 = vmatmul.f32.gmra.mxu0 %v817
        %v4994 = vpop.f32.mrf.mxu0
        %v4995 = vadd.f32 %v4975, %v4994
        %4996 = vdwg.mxu0
        %4997 = vmatpush.msra.mxu0 %v3015
        %4998 = vmatpush.msra.mxu0 %v3013
        %4999 = vmatpush.msra.mxu0 %v3011
        %5000 = vmatpush.msra.mxu0 %v3009
        %5001 = vmatpush.msra.mxu0 %v3007
        %5002 = vmatpush.msra.mxu0 %v3005
        %5003 = vmatpush.msra.mxu0 %v3003
        %5004 = vmatpush.msra.mxu0 %v3001
        %5005 = vmatpush.msra.mxu0 %v2999
        %5006 = vmatpush.msra.mxu0 %v2997
        %5007 = vmatpush.msra.mxu0 %v2995
        %5008 = vmatpush.msra.mxu0 %v2993
        %5009 = vmatpush.msra.mxu0 %v2991
        %5010 = vmatpush.msra.mxu0 %v2989
        %5011 = vmatpush.msra.mxu0 %v2987
        %5012 = vmatpush.msra.mxu0 %v2985
        %5013 = vmatmul.f32.gmra.mxu0 %v818
        %v5014 = vpop.f32.mrf.mxu0
        %v5015 = vadd.f32 %v4995, %v5014
        %5016 = vdwg.mxu0
        %5017 = vmatpush.msra.mxu0 %v3047
        %5018 = vmatpush.msra.mxu0 %v3045
        %5019 = vmatpush.msra.mxu0 %v3043
        %5020 = vmatpush.msra.mxu0 %v3041
        %5021 = vmatpush.msra.mxu0 %v3039
        %5022 = vmatpush.msra.mxu0 %v3037
        %5023 = vmatpush.msra.mxu0 %v3035
        %5024 = vmatpush.msra.mxu0 %v3033
        %5025 = vmatpush.msra.mxu0 %v3031
        %5026 = vmatpush.msra.mxu0 %v3029
        %5027 = vmatpush.msra.mxu0 %v3027
        %5028 = vmatpush.msra.mxu0 %v3025
        %5029 = vmatpush.msra.mxu0 %v3023
        %5030 = vmatpush.msra.mxu0 %v3021
        %5031 = vmatpush.msra.mxu0 %v3019
        %5032 = vmatpush.msra.mxu0 %v3017
        %5033 = vmatmul.f32.gmra.mxu0 %v819
        %v5034 = vpop.f32.mrf.mxu0
        %v5035 = vadd.f32 %v5015, %v5034
        %5036 = vdwg.mxu0
        %5037 = vmatpush.msra.mxu0 %v3079
        %5038 = vmatpush.msra.mxu0 %v3077
        %5039 = vmatpush.msra.mxu0 %v3075
        %5040 = vmatpush.msra.mxu0 %v3073
        %5041 = vmatpush.msra.mxu0 %v3071
        %5042 = vmatpush.msra.mxu0 %v3069
        %5043 = vmatpush.msra.mxu0 %v3067
        %5044 = vmatpush.msra.mxu0 %v3065
        %5045 = vmatpush.msra.mxu0 %v3063
        %5046 = vmatpush.msra.mxu0 %v3061
        %5047 = vmatpush.msra.mxu0 %v3059
        %5048 = vmatpush.msra.mxu0 %v3057
        %5049 = vmatpush.msra.mxu0 %v3055
        %5050 = vmatpush.msra.mxu0 %v3053
        %5051 = vmatpush.msra.mxu0 %v3051
        %5052 = vmatpush.msra.mxu0 %v3049
        %5053 = vmatmul.f32.gmra.mxu0 %v820
        %v5054 = vpop.f32.mrf.mxu0
        %v5055 = vadd.f32 %v5035, %v5054
        %5056 = vdwg.mxu0
        %5057 = vmatpush.msra.mxu0 %v3111
        %5058 = vmatpush.msra.mxu0 %v3109
        %5059 = vmatpush.msra.mxu0 %v3107
        %5060 = vmatpush.msra.mxu0 %v3105
        %5061 = vmatpush.msra.mxu0 %v3103
        %5062 = vmatpush.msra.mxu0 %v3101
        %5063 = vmatpush.msra.mxu0 %v3099
        %5064 = vmatpush.msra.mxu0 %v3097
        %5065 = vmatpush.msra.mxu0 %v3095
        %5066 = vmatpush.msra.mxu0 %v3093
        %5067 = vmatpush.msra.mxu0 %v3091
        %5068 = vmatpush.msra.mxu0 %v3089
        %5069 = vmatpush.msra.mxu0 %v3087
        %5070 = vmatpush.msra.mxu0 %v3085
        %5071 = vmatpush.msra.mxu0 %v3083
        %5072 = vmatpush.msra.mxu0 %v3081
        %5073 = vmatmul.f32.gmra.mxu0 %v821
        %v5074 = vpop.f32.mrf.mxu0
        %v5075 = vadd.f32 %v5055, %v5074
        %5076 = vdwg.mxu0
        %5077 = vmatpush.msra.mxu0 %v3143
        %5078 = vmatpush.msra.mxu0 %v3141
        %5079 = vmatpush.msra.mxu0 %v3139
        %5080 = vmatpush.msra.mxu0 %v3137
        %5081 = vmatpush.msra.mxu0 %v3135
        %5082 = vmatpush.msra.mxu0 %v3133
        %5083 = vmatpush.msra.mxu0 %v3131
        %5084 = vmatpush.msra.mxu0 %v3129
        %5085 = vmatpush.msra.mxu0 %v3127
        %5086 = vmatpush.msra.mxu0 %v3125
        %5087 = vmatpush.msra.mxu0 %v3123
        %5088 = vmatpush.msra.mxu0 %v3121
        %5089 = vmatpush.msra.mxu0 %v3119
        %5090 = vmatpush.msra.mxu0 %v3117
        %5091 = vmatpush.msra.mxu0 %v3115
        %5092 = vmatpush.msra.mxu0 %v3113
        %5093 = vmatmul.f32.gmra.mxu0 %v822
        %v5094 = vpop.f32.mrf.mxu0
        %v5095 = vadd.f32 %v5075, %v5094
        %5096 = vdwg.mxu0
        %5097 = vmatpush.msra.mxu0 %v3175
        %5098 = vmatpush.msra.mxu0 %v3173
        %5099 = vmatpush.msra.mxu0 %v3171
        %5100 = vmatpush.msra.mxu0 %v3169
        %5101 = vmatpush.msra.mxu0 %v3167
        %5102 = vmatpush.msra.mxu0 %v3165
        %5103 = vmatpush.msra.mxu0 %v3163
        %5104 = vmatpush.msra.mxu0 %v3161
        %5105 = vmatpush.msra.mxu0 %v3159
        %5106 = vmatpush.msra.mxu0 %v3157
        %5107 = vmatpush.msra.mxu0 %v3155
        %5108 = vmatpush.msra.mxu0 %v3153
        %5109 = vmatpush.msra.mxu0 %v3151
        %5110 = vmatpush.msra.mxu0 %v3149
        %5111 = vmatpush.msra.mxu0 %v3147
        %5112 = vmatpush.msra.mxu0 %v3145
        %5113 = vmatmul.f32.gmra.mxu0 %v823
        %v5114 = vpop.f32.mrf.mxu0
        %v5115 = vadd.f32 %v5095, %v5114
        %5116 = vdwg.mxu0
        %5117 = vmatpush.msra.mxu0 %v3207
        %5118 = vmatpush.msra.mxu0 %v3205
        %5119 = vmatpush.msra.mxu0 %v3203
        %5120 = vmatpush.msra.mxu0 %v3201
        %5121 = vmatpush.msra.mxu0 %v3199
        %5122 = vmatpush.msra.mxu0 %v3197
        %5123 = vmatpush.msra.mxu0 %v3195
        %5124 = vmatpush.msra.mxu0 %v3193
        %5125 = vmatpush.msra.mxu0 %v3191
        %5126 = vmatpush.msra.mxu0 %v3189
        %5127 = vmatpush.msra.mxu0 %v3187
        %5128 = vmatpush.msra.mxu0 %v3185
        %5129 = vmatpush.msra.mxu0 %v3183
        %5130 = vmatpush.msra.mxu0 %v3181
        %5131 = vmatpush.msra.mxu0 %v3179
        %5132 = vmatpush.msra.mxu0 %v3177
        %5133 = vmatmul.f32.gmra.mxu0 %v824
        %v5134 = vpop.f32.mrf.mxu0
        %v5135 = vadd.f32 %v5115, %v5134
        %5136 = vdwg.mxu0
        %5137 = vmatpush.msra.mxu0 %v3239
        %5138 = vmatpush.msra.mxu0 %v3237
        %5139 = vmatpush.msra.mxu0 %v3235
        %5140 = vmatpush.msra.mxu0 %v3233
        %5141 = vmatpush.msra.mxu0 %v3231
        %5142 = vmatpush.msra.mxu0 %v3229
        %5143 = vmatpush.msra.mxu0 %v3227
        %5144 = vmatpush.msra.mxu0 %v3225
        %5145 = vmatpush.msra.mxu0 %v3223
        %5146 = vmatpush.msra.mxu0 %v3221
        %5147 = vmatpush.msra.mxu0 %v3219
        %5148 = vmatpush.msra.mxu0 %v3217
        %5149 = vmatpush.msra.mxu0 %v3215
        %5150 = vmatpush.msra.mxu0 %v3213
        %5151 = vmatpush.msra.mxu0 %v3211
        %5152 = vmatpush.msra.mxu0 %v3209
        %5153 = vmatmul.f32.gmra.mxu0 %v825
        %v5154 = vpop.f32.mrf.mxu0
        %v5155 = vadd.f32 %v5135, %v5154
        %5156 = vdwg.mxu0
        %5157 = vmatpush.msra.mxu0 %v3271
        %5158 = vmatpush.msra.mxu0 %v3269
        %5159 = vmatpush.msra.mxu0 %v3267
        %5160 = vmatpush.msra.mxu0 %v3265
        %5161 = vmatpush.msra.mxu0 %v3263
        %5162 = vmatpush.msra.mxu0 %v3261
        %5163 = vmatpush.msra.mxu0 %v3259
        %5164 = vmatpush.msra.mxu0 %v3257
        %5165 = vmatpush.msra.mxu0 %v3255
        %5166 = vmatpush.msra.mxu0 %v3253
        %5167 = vmatpush.msra.mxu0 %v3251
        %5168 = vmatpush.msra.mxu0 %v3249
        %5169 = vmatpush.msra.mxu0 %v3247
        %5170 = vmatpush.msra.mxu0 %v3245
        %5171 = vmatpush.msra.mxu0 %v3243
        %5172 = vmatpush.msra.mxu0 %v3241
        %5173 = vmatmul.f32.gmra.mxu0 %v826
        %v5174 = vpop.f32.mrf.mxu0
        %v5175 = vadd.f32 %v5155, %v5174
        %5176 = vdwg.mxu0
        %5177 = vmatpush.msra.mxu0 %v3303
        %5178 = vmatpush.msra.mxu0 %v3301
        %5179 = vmatpush.msra.mxu0 %v3299
        %5180 = vmatpush.msra.mxu0 %v3297
        %5181 = vmatpush.msra.mxu0 %v3295
        %5182 = vmatpush.msra.mxu0 %v3293
        %5183 = vmatpush.msra.mxu0 %v3291
        %5184 = vmatpush.msra.mxu0 %v3289
        %5185 = vmatpush.msra.mxu0 %v3287
        %5186 = vmatpush.msra.mxu0 %v3285
        %5187 = vmatpush.msra.mxu0 %v3283
        %5188 = vmatpush.msra.mxu0 %v3281
        %5189 = vmatpush.msra.mxu0 %v3279
        %5190 = vmatpush.msra.mxu0 %v3277
        %5191 = vmatpush.msra.mxu0 %v3275
        %5192 = vmatpush.msra.mxu0 %v3273
        %5193 = vmatmul.f32.gmra.mxu0 %v827
        %v5194 = vpop.f32.mrf.mxu0
        %v5195 = vadd.f32 %v5175, %v5194
        %5196 = vdwg.mxu0
        %5197 = vmatpush.msra.mxu0 %v3335
        %5198 = vmatpush.msra.mxu0 %v3333
        %5199 = vmatpush.msra.mxu0 %v3331
        %5200 = vmatpush.msra.mxu0 %v3329
        %5201 = vmatpush.msra.mxu0 %v3327
        %5202 = vmatpush.msra.mxu0 %v3325
        %5203 = vmatpush.msra.mxu0 %v3323
        %5204 = vmatpush.msra.mxu0 %v3321
        %5205 = vmatpush.msra.mxu0 %v3319
        %5206 = vmatpush.msra.mxu0 %v3317
        %5207 = vmatpush.msra.mxu0 %v3315
        %5208 = vmatpush.msra.mxu0 %v3313
        %5209 = vmatpush.msra.mxu0 %v3311
        %5210 = vmatpush.msra.mxu0 %v3309
        %5211 = vmatpush.msra.mxu0 %v3307
        %5212 = vmatpush.msra.mxu0 %v3305
        %5213 = vmatmul.f32.gmra.mxu0 %v828
        %v5214 = vpop.f32.mrf.mxu0
        %v5215 = vadd.f32 %v5195, %v5214
        %5216 = vdwg.mxu0
        %5217 = vmatpush.msra.mxu0 %v3367
        %5218 = vmatpush.msra.mxu0 %v3365
        %5219 = vmatpush.msra.mxu0 %v3363
        %5220 = vmatpush.msra.mxu0 %v3361
        %5221 = vmatpush.msra.mxu0 %v3359
        %5222 = vmatpush.msra.mxu0 %v3357
        %5223 = vmatpush.msra.mxu0 %v3355
        %5224 = vmatpush.msra.mxu0 %v3353
        %5225 = vmatpush.msra.mxu0 %v3351
        %5226 = vmatpush.msra.mxu0 %v3349
        %5227 = vmatpush.msra.mxu0 %v3347
        %5228 = vmatpush.msra.mxu0 %v3345
        %5229 = vmatpush.msra.mxu0 %v3343
        %5230 = vmatpush.msra.mxu0 %v3341
        %5231 = vmatpush.msra.mxu0 %v3339
        %5232 = vmatpush.msra.mxu0 %v3337
        %5233 = vmatmul.f32.gmra.mxu0 %v829
        %v5234 = vpop.f32.mrf.mxu0
        %v5235 = vadd.f32 %v5215, %v5234
        %5236 = vdwg.mxu0
        %5237 = vmatpush.msra.mxu0 %v3399
        %5238 = vmatpush.msra.mxu0 %v3397
        %5239 = vmatpush.msra.mxu0 %v3395
        %5240 = vmatpush.msra.mxu0 %v3393
        %5241 = vmatpush.msra.mxu0 %v3391
        %5242 = vmatpush.msra.mxu0 %v3389
        %5243 = vmatpush.msra.mxu0 %v3387
        %5244 = vmatpush.msra.mxu0 %v3385
        %5245 = vmatpush.msra.mxu0 %v3383
        %5246 = vmatpush.msra.mxu0 %v3381
        %5247 = vmatpush.msra.mxu0 %v3379
        %5248 = vmatpush.msra.mxu0 %v3377
        %5249 = vmatpush.msra.mxu0 %v3375
        %5250 = vmatpush.msra.mxu0 %v3373
        %5251 = vmatpush.msra.mxu0 %v3371
        %5252 = vmatpush.msra.mxu0 %v3369
        %5253 = vmatmul.f32.gmra.mxu0 %v830
        %v5254 = vpop.f32.mrf.mxu0
        %v5255 = vadd.f32 %v5235, %v5254
        %5256 = vdwg.mxu0
        %5257 = vmatpush.msra.mxu0 %v3431
        %5258 = vmatpush.msra.mxu0 %v3429
        %5259 = vmatpush.msra.mxu0 %v3427
        %5260 = vmatpush.msra.mxu0 %v3425
        %5261 = vmatpush.msra.mxu0 %v3423
        %5262 = vmatpush.msra.mxu0 %v3421
        %5263 = vmatpush.msra.mxu0 %v3419
        %5264 = vmatpush.msra.mxu0 %v3417
        %5265 = vmatpush.msra.mxu0 %v3415
        %5266 = vmatpush.msra.mxu0 %v3413
        %5267 = vmatpush.msra.mxu0 %v3411
        %5268 = vmatpush.msra.mxu0 %v3409
        %5269 = vmatpush.msra.mxu0 %v3407
        %5270 = vmatpush.msra.mxu0 %v3405
        %5271 = vmatpush.msra.mxu0 %v3403
        %5272 = vmatpush.msra.mxu0 %v3401
        %5273 = vmatmul.f32.gmra.mxu0 %v831
        %v5274 = vpop.f32.mrf.mxu0
        %v5275 = vadd.f32 %v5255, %v5274
        %5276 = vdwg.mxu0
        %5277 = vmatpush.msra.mxu0 %v3463
        %5278 = vmatpush.msra.mxu0 %v3461
        %5279 = vmatpush.msra.mxu0 %v3459
        %5280 = vmatpush.msra.mxu0 %v3457
        %5281 = vmatpush.msra.mxu0 %v3455
        %5282 = vmatpush.msra.mxu0 %v3453
        %5283 = vmatpush.msra.mxu0 %v3451
        %5284 = vmatpush.msra.mxu0 %v3449
        %5285 = vmatpush.msra.mxu0 %v3447
        %5286 = vmatpush.msra.mxu0 %v3445
        %5287 = vmatpush.msra.mxu0 %v3443
        %5288 = vmatpush.msra.mxu0 %v3441
        %5289 = vmatpush.msra.mxu0 %v3439
        %5290 = vmatpush.msra.mxu0 %v3437
        %5291 = vmatpush.msra.mxu0 %v3435
        %5292 = vmatpush.msra.mxu0 %v3433
        %5293 = vmatmul.f32.gmra.mxu0 %v832
        %v5294 = vpop.f32.mrf.mxu0
        %v5295 = vadd.f32 %v5275, %v5294
        %5296 = vdwg.mxu0
        %5297 = vmatpush.msra.mxu0 %v3495
        %5298 = vmatpush.msra.mxu0 %v3493
        %5299 = vmatpush.msra.mxu0 %v3491
        %5300 = vmatpush.msra.mxu0 %v3489
        %5301 = vmatpush.msra.mxu0 %v3487
        %5302 = vmatpush.msra.mxu0 %v3485
        %5303 = vmatpush.msra.mxu0 %v3483
        %5304 = vmatpush.msra.mxu0 %v3481
        %5305 = vmatpush.msra.mxu0 %v3479
        %5306 = vmatpush.msra.mxu0 %v3477
        %5307 = vmatpush.msra.mxu0 %v3475
        %5308 = vmatpush.msra.mxu0 %v3473
        %5309 = vmatpush.msra.mxu0 %v3471
        %5310 = vmatpush.msra.mxu0 %v3469
        %5311 = vmatpush.msra.mxu0 %v3467
        %5312 = vmatpush.msra.mxu0 %v3465
        %5313 = vmatmul.f32.gmra.mxu0 %v833
        %v5314 = vpop.f32.mrf.mxu0
        %v5315 = vadd.f32 %v5295, %v5314
        %5316 = vdwg.mxu0
        %5317 = vmatpush.msra.mxu0 %v3527
        %5318 = vmatpush.msra.mxu0 %v3525
        %5319 = vmatpush.msra.mxu0 %v3523
        %5320 = vmatpush.msra.mxu0 %v3521
        %5321 = vmatpush.msra.mxu0 %v3519
        %5322 = vmatpush.msra.mxu0 %v3517
        %5323 = vmatpush.msra.mxu0 %v3515
        %5324 = vmatpush.msra.mxu0 %v3513
        %5325 = vmatpush.msra.mxu0 %v3511
        %5326 = vmatpush.msra.mxu0 %v3509
        %5327 = vmatpush.msra.mxu0 %v3507
        %5328 = vmatpush.msra.mxu0 %v3505
        %5329 = vmatpush.msra.mxu0 %v3503
        %5330 = vmatpush.msra.mxu0 %v3501
        %5331 = vmatpush.msra.mxu0 %v3499
        %5332 = vmatpush.msra.mxu0 %v3497
        %5333 = vmatmul.f32.gmra.mxu0 %v834
        %v5334 = vpop.f32.mrf.mxu0
        %v5335 = vadd.f32 %v5315, %v5334
        %5336 = vdwg.mxu0
        %5337 = vmatpush.msra.mxu0 %v3559
        %5338 = vmatpush.msra.mxu0 %v3557
        %5339 = vmatpush.msra.mxu0 %v3555
        %5340 = vmatpush.msra.mxu0 %v3553
        %5341 = vmatpush.msra.mxu0 %v3551
        %5342 = vmatpush.msra.mxu0 %v3549
        %5343 = vmatpush.msra.mxu0 %v3547
        %5344 = vmatpush.msra.mxu0 %v3545
        %5345 = vmatpush.msra.mxu0 %v3543
        %5346 = vmatpush.msra.mxu0 %v3541
        %5347 = vmatpush.msra.mxu0 %v3539
        %5348 = vmatpush.msra.mxu0 %v3537
        %5349 = vmatpush.msra.mxu0 %v3535
        %5350 = vmatpush.msra.mxu0 %v3533
        %5351 = vmatpush.msra.mxu0 %v3531
        %5352 = vmatpush.msra.mxu0 %v3529
        %5353 = vmatmul.f32.gmra.mxu0 %v835
        %v5354 = vpop.f32.mrf.mxu0
        %v5355 = vadd.f32 %v5335, %v5354
        %5356 = vdwg.mxu0
        %5357 = vmatpush.msra.mxu0 %v3591
        %5358 = vmatpush.msra.mxu0 %v3589
        %5359 = vmatpush.msra.mxu0 %v3587
        %5360 = vmatpush.msra.mxu0 %v3585
        %5361 = vmatpush.msra.mxu0 %v3583
        %5362 = vmatpush.msra.mxu0 %v3581
        %5363 = vmatpush.msra.mxu0 %v3579
        %5364 = vmatpush.msra.mxu0 %v3577
        %5365 = vmatpush.msra.mxu0 %v3575
        %5366 = vmatpush.msra.mxu0 %v3573
        %5367 = vmatpush.msra.mxu0 %v3571
        %5368 = vmatpush.msra.mxu0 %v3569
        %5369 = vmatpush.msra.mxu0 %v3567
        %5370 = vmatpush.msra.mxu0 %v3565
        %5371 = vmatpush.msra.mxu0 %v3563
        %5372 = vmatpush.msra.mxu0 %v3561
        %5373 = vmatmul.f32.gmra.mxu0 %v836
        %v5374 = vpop.f32.mrf.mxu0
        %v5375 = vadd.f32 %v5355, %v5374
        %5376 = vdwg.mxu0
        %5377 = vmatpush.msra.mxu0 %v3623
        %5378 = vmatpush.msra.mxu0 %v3621
        %5379 = vmatpush.msra.mxu0 %v3619
        %5380 = vmatpush.msra.mxu0 %v3617
        %5381 = vmatpush.msra.mxu0 %v3615
        %5382 = vmatpush.msra.mxu0 %v3613
        %5383 = vmatpush.msra.mxu0 %v3611
        %5384 = vmatpush.msra.mxu0 %v3609
        %5385 = vmatpush.msra.mxu0 %v3607
        %5386 = vmatpush.msra.mxu0 %v3605
        %5387 = vmatpush.msra.mxu0 %v3603
        %5388 = vmatpush.msra.mxu0 %v3601
        %5389 = vmatpush.msra.mxu0 %v3599
        %5390 = vmatpush.msra.mxu0 %v3597
        %5391 = vmatpush.msra.mxu0 %v3595
        %5392 = vmatpush.msra.mxu0 %v3593
        %5393 = vmatmul.f32.gmra.mxu0 %v837
        %v5394 = vpop.f32.mrf.mxu0
        %v5395 = vadd.f32 %v5375, %v5394
        %5396 = vdwg.mxu0
        %5397 = vmatpush.msra.mxu0 %v3655
        %5398 = vmatpush.msra.mxu0 %v3653
        %5399 = vmatpush.msra.mxu0 %v3651
        %5400 = vmatpush.msra.mxu0 %v3649
        %5401 = vmatpush.msra.mxu0 %v3647
        %5402 = vmatpush.msra.mxu0 %v3645
        %5403 = vmatpush.msra.mxu0 %v3643
        %5404 = vmatpush.msra.mxu0 %v3641
        %5405 = vmatpush.msra.mxu0 %v3639
        %5406 = vmatpush.msra.mxu0 %v3637
        %5407 = vmatpush.msra.mxu0 %v3635
        %5408 = vmatpush.msra.mxu0 %v3633
        %5409 = vmatpush.msra.mxu0 %v3631
        %5410 = vmatpush.msra.mxu0 %v3629
        %5411 = vmatpush.msra.mxu0 %v3627
        %5412 = vmatpush.msra.mxu0 %v3625
        %5413 = vmatmul.f32.gmra.mxu0 %v838
        %v5414 = vpop.f32.mrf.mxu0
        %v5415 = vadd.f32 %v5395, %v5414
        %5416 = vdwg.mxu0
        %5417 = vmatpush.msra.mxu0 %v872
        %5418 = vmatpush.msra.mxu0 %v870
        %5419 = vmatpush.msra.mxu0 %v868
        %5420 = vmatpush.msra.mxu0 %v866
        %5421 = vmatpush.msra.mxu0 %v864
        %5422 = vmatpush.msra.mxu0 %v862
        %5423 = vmatpush.msra.mxu0 %v860
        %5424 = vmatpush.msra.mxu0 %v858
        %5425 = vmatpush.msra.mxu0 %v856
        %5426 = vmatpush.msra.mxu0 %v854
        %5427 = vmatpush.msra.mxu0 %v852
        %5428 = vmatpush.msra.mxu0 %v850
        %5429 = vmatpush.msra.mxu0 %v848
        %5430 = vmatpush.msra.mxu0 %v846
        %5431 = vmatpush.msra.mxu0 %v844
        %5432 = vmatpush.msra.mxu0 %v842
        %5433 = vmatmul.f32.gmra.mxu0 %v751
        %v5434 = vpop.f32.mrf.mxu0
        %v5435 = vadd.f32 0.0, %v5434
        %5436 = vdwg.mxu0
        %5437 = vmatpush.msra.mxu0 %v904
        %5438 = vmatpush.msra.mxu0 %v902
        %5439 = vmatpush.msra.mxu0 %v900
        %5440 = vmatpush.msra.mxu0 %v898
        %5441 = vmatpush.msra.mxu0 %v896
        %5442 = vmatpush.msra.mxu0 %v894
        %5443 = vmatpush.msra.mxu0 %v892
        %5444 = vmatpush.msra.mxu0 %v890
        %5445 = vmatpush.msra.mxu0 %v888
        %5446 = vmatpush.msra.mxu0 %v886
        %5447 = vmatpush.msra.mxu0 %v884
        %5448 = vmatpush.msra.mxu0 %v882
        %5449 = vmatpush.msra.mxu0 %v880
        %5450 = vmatpush.msra.mxu0 %v878
        %5451 = vmatpush.msra.mxu0 %v876
        %5452 = vmatpush.msra.mxu0 %v874
        %5453 = vmatmul.f32.gmra.mxu0 %v752
        %v5454 = vpop.f32.mrf.mxu0
        %v5455 = vadd.f32 %v5435, %v5454
        %5456 = vdwg.mxu0
        %5457 = vmatpush.msra.mxu0 %v936
        %5458 = vmatpush.msra.mxu0 %v934
        %5459 = vmatpush.msra.mxu0 %v932
        %5460 = vmatpush.msra.mxu0 %v930
        %5461 = vmatpush.msra.mxu0 %v928
        %5462 = vmatpush.msra.mxu0 %v926
        %5463 = vmatpush.msra.mxu0 %v924
        %5464 = vmatpush.msra.mxu0 %v922
        %5465 = vmatpush.msra.mxu0 %v920
        %5466 = vmatpush.msra.mxu0 %v918
        %5467 = vmatpush.msra.mxu0 %v916
        %5468 = vmatpush.msra.mxu0 %v914
        %5469 = vmatpush.msra.mxu0 %v912
        %5470 = vmatpush.msra.mxu0 %v910
        %5471 = vmatpush.msra.mxu0 %v908
        %5472 = vmatpush.msra.mxu0 %v906
        %5473 = vmatmul.f32.gmra.mxu0 %v753
        %v5474 = vpop.f32.mrf.mxu0
        %v5475 = vadd.f32 %v5455, %v5474
        %5476 = vdwg.mxu0
        %5477 = vmatpush.msra.mxu0 %v968
        %5478 = vmatpush.msra.mxu0 %v966
        %5479 = vmatpush.msra.mxu0 %v964
        %5480 = vmatpush.msra.mxu0 %v962
        %5481 = vmatpush.msra.mxu0 %v960
        %5482 = vmatpush.msra.mxu0 %v958
        %5483 = vmatpush.msra.mxu0 %v956
        %5484 = vmatpush.msra.mxu0 %v954
        %5485 = vmatpush.msra.mxu0 %v952
        %5486 = vmatpush.msra.mxu0 %v950
        %5487 = vmatpush.msra.mxu0 %v948
        %5488 = vmatpush.msra.mxu0 %v946
        %5489 = vmatpush.msra.mxu0 %v944
        %5490 = vmatpush.msra.mxu0 %v942
        %5491 = vmatpush.msra.mxu0 %v940
        %5492 = vmatpush.msra.mxu0 %v938
        %5493 = vmatmul.f32.gmra.mxu0 %v754
        %v5494 = vpop.f32.mrf.mxu0
        %v5495 = vadd.f32 %v5475, %v5494
        %5496 = vdwg.mxu0
        %5497 = vmatpush.msra.mxu0 %v1000
        %5498 = vmatpush.msra.mxu0 %v998
        %5499 = vmatpush.msra.mxu0 %v996
        %5500 = vmatpush.msra.mxu0 %v994
        %5501 = vmatpush.msra.mxu0 %v992
        %5502 = vmatpush.msra.mxu0 %v990
        %5503 = vmatpush.msra.mxu0 %v988
        %5504 = vmatpush.msra.mxu0 %v986
        %5505 = vmatpush.msra.mxu0 %v984
        %5506 = vmatpush.msra.mxu0 %v982
        %5507 = vmatpush.msra.mxu0 %v980
        %5508 = vmatpush.msra.mxu0 %v978
        %5509 = vmatpush.msra.mxu0 %v976
        %5510 = vmatpush.msra.mxu0 %v974
        %5511 = vmatpush.msra.mxu0 %v972
        %5512 = vmatpush.msra.mxu0 %v970
        %5513 = vmatmul.f32.gmra.mxu0 %v755
        %v5514 = vpop.f32.mrf.mxu0
        %v5515 = vadd.f32 %v5495, %v5514
        %5516 = vdwg.mxu0
        %5517 = vmatpush.msra.mxu0 %v1032
        %5518 = vmatpush.msra.mxu0 %v1030
        %5519 = vmatpush.msra.mxu0 %v1028
        %5520 = vmatpush.msra.mxu0 %v1026
        %5521 = vmatpush.msra.mxu0 %v1024
        %5522 = vmatpush.msra.mxu0 %v1022
        %5523 = vmatpush.msra.mxu0 %v1020
        %5524 = vmatpush.msra.mxu0 %v1018
        %5525 = vmatpush.msra.mxu0 %v1016
        %5526 = vmatpush.msra.mxu0 %v1014
        %5527 = vmatpush.msra.mxu0 %v1012
        %5528 = vmatpush.msra.mxu0 %v1010
        %5529 = vmatpush.msra.mxu0 %v1008
        %5530 = vmatpush.msra.mxu0 %v1006
        %5531 = vmatpush.msra.mxu0 %v1004
        %5532 = vmatpush.msra.mxu0 %v1002
        %5533 = vmatmul.f32.gmra.mxu0 %v756
        %v5534 = vpop.f32.mrf.mxu0
        %v5535 = vadd.f32 %v5515, %v5534
        %5536 = vdwg.mxu0
        %5537 = vmatpush.msra.mxu0 %v1064
        %5538 = vmatpush.msra.mxu0 %v1062
        %5539 = vmatpush.msra.mxu0 %v1060
        %5540 = vmatpush.msra.mxu0 %v1058
        %5541 = vmatpush.msra.mxu0 %v1056
        %5542 = vmatpush.msra.mxu0 %v1054
        %5543 = vmatpush.msra.mxu0 %v1052
        %5544 = vmatpush.msra.mxu0 %v1050
        %5545 = vmatpush.msra.mxu0 %v1048
        %5546 = vmatpush.msra.mxu0 %v1046
        %5547 = vmatpush.msra.mxu0 %v1044
        %5548 = vmatpush.msra.mxu0 %v1042
        %5549 = vmatpush.msra.mxu0 %v1040
        %5550 = vmatpush.msra.mxu0 %v1038
        %5551 = vmatpush.msra.mxu0 %v1036
        %5552 = vmatpush.msra.mxu0 %v1034
        %5553 = vmatmul.f32.gmra.mxu0 %v757
        %v5554 = vpop.f32.mrf.mxu0
        %v5555 = vadd.f32 %v5535, %v5554
        %5556 = vdwg.mxu0
        %5557 = vmatpush.msra.mxu0 %v1096
        %5558 = vmatpush.msra.mxu0 %v1094
        %5559 = vmatpush.msra.mxu0 %v1092
        %5560 = vmatpush.msra.mxu0 %v1090
        %5561 = vmatpush.msra.mxu0 %v1088
        %5562 = vmatpush.msra.mxu0 %v1086
        %5563 = vmatpush.msra.mxu0 %v1084
        %5564 = vmatpush.msra.mxu0 %v1082
        %5565 = vmatpush.msra.mxu0 %v1080
        %5566 = vmatpush.msra.mxu0 %v1078
        %5567 = vmatpush.msra.mxu0 %v1076
        %5568 = vmatpush.msra.mxu0 %v1074
        %5569 = vmatpush.msra.mxu0 %v1072
        %5570 = vmatpush.msra.mxu0 %v1070
        %5571 = vmatpush.msra.mxu0 %v1068
        %5572 = vmatpush.msra.mxu0 %v1066
        %5573 = vmatmul.f32.gmra.mxu0 %v758
        %v5574 = vpop.f32.mrf.mxu0
        %v5575 = vadd.f32 %v5555, %v5574
        %5576 = vdwg.mxu0
        %5577 = vmatpush.msra.mxu0 %v1128
        %5578 = vmatpush.msra.mxu0 %v1126
        %5579 = vmatpush.msra.mxu0 %v1124
        %5580 = vmatpush.msra.mxu0 %v1122
        %5581 = vmatpush.msra.mxu0 %v1120
        %5582 = vmatpush.msra.mxu0 %v1118
        %5583 = vmatpush.msra.mxu0 %v1116
        %5584 = vmatpush.msra.mxu0 %v1114
        %5585 = vmatpush.msra.mxu0 %v1112
        %5586 = vmatpush.msra.mxu0 %v1110
        %5587 = vmatpush.msra.mxu0 %v1108
        %5588 = vmatpush.msra.mxu0 %v1106
        %5589 = vmatpush.msra.mxu0 %v1104
        %5590 = vmatpush.msra.mxu0 %v1102
        %5591 = vmatpush.msra.mxu0 %v1100
        %5592 = vmatpush.msra.mxu0 %v1098
        %5593 = vmatmul.f32.gmra.mxu0 %v759
        %v5594 = vpop.f32.mrf.mxu0
        %v5595 = vadd.f32 %v5575, %v5594
        %5596 = vdwg.mxu0
        %5597 = vmatpush.msra.mxu0 %v1160
        %5598 = vmatpush.msra.mxu0 %v1158
        %5599 = vmatpush.msra.mxu0 %v1156
        %5600 = vmatpush.msra.mxu0 %v1154
        %5601 = vmatpush.msra.mxu0 %v1152
        %5602 = vmatpush.msra.mxu0 %v1150
        %5603 = vmatpush.msra.mxu0 %v1148
        %5604 = vmatpush.msra.mxu0 %v1146
        %5605 = vmatpush.msra.mxu0 %v1144
        %5606 = vmatpush.msra.mxu0 %v1142
        %5607 = vmatpush.msra.mxu0 %v1140
        %5608 = vmatpush.msra.mxu0 %v1138
        %5609 = vmatpush.msra.mxu0 %v1136
        %5610 = vmatpush.msra.mxu0 %v1134
        %5611 = vmatpush.msra.mxu0 %v1132
        %5612 = vmatpush.msra.mxu0 %v1130
        %5613 = vmatmul.f32.gmra.mxu0 %v760
        %v5614 = vpop.f32.mrf.mxu0
        %v5615 = vadd.f32 %v5595, %v5614
        %5616 = vdwg.mxu0
        %5617 = vmatpush.msra.mxu0 %v1192
        %5618 = vmatpush.msra.mxu0 %v1190
        %5619 = vmatpush.msra.mxu0 %v1188
        %5620 = vmatpush.msra.mxu0 %v1186
        %5621 = vmatpush.msra.mxu0 %v1184
        %5622 = vmatpush.msra.mxu0 %v1182
        %5623 = vmatpush.msra.mxu0 %v1180
        %5624 = vmatpush.msra.mxu0 %v1178
        %5625 = vmatpush.msra.mxu0 %v1176
        %5626 = vmatpush.msra.mxu0 %v1174
        %5627 = vmatpush.msra.mxu0 %v1172
        %5628 = vmatpush.msra.mxu0 %v1170
        %5629 = vmatpush.msra.mxu0 %v1168
        %5630 = vmatpush.msra.mxu0 %v1166
        %5631 = vmatpush.msra.mxu0 %v1164
        %5632 = vmatpush.msra.mxu0 %v1162
        %5633 = vmatmul.f32.gmra.mxu0 %v761
        %v5634 = vpop.f32.mrf.mxu0
        %v5635 = vadd.f32 %v5615, %v5634
        %5636 = vdwg.mxu0
        %5637 = vmatpush.msra.mxu0 %v1224
        %5638 = vmatpush.msra.mxu0 %v1222
        %5639 = vmatpush.msra.mxu0 %v1220
        %5640 = vmatpush.msra.mxu0 %v1218
        %5641 = vmatpush.msra.mxu0 %v1216
        %5642 = vmatpush.msra.mxu0 %v1214
        %5643 = vmatpush.msra.mxu0 %v1212
        %5644 = vmatpush.msra.mxu0 %v1210
        %5645 = vmatpush.msra.mxu0 %v1208
        %5646 = vmatpush.msra.mxu0 %v1206
        %5647 = vmatpush.msra.mxu0 %v1204
        %5648 = vmatpush.msra.mxu0 %v1202
        %5649 = vmatpush.msra.mxu0 %v1200
        %5650 = vmatpush.msra.mxu0 %v1198
        %5651 = vmatpush.msra.mxu0 %v1196
        %5652 = vmatpush.msra.mxu0 %v1194
        %5653 = vmatmul.f32.gmra.mxu0 %v762
        %v5654 = vpop.f32.mrf.mxu0
        %v5655 = vadd.f32 %v5635, %v5654
        %5656 = vdwg.mxu0
        %5657 = vmatpush.msra.mxu0 %v1256
        %5658 = vmatpush.msra.mxu0 %v1254
        %5659 = vmatpush.msra.mxu0 %v1252
        %5660 = vmatpush.msra.mxu0 %v1250
        %5661 = vmatpush.msra.mxu0 %v1248
        %5662 = vmatpush.msra.mxu0 %v1246
        %5663 = vmatpush.msra.mxu0 %v1244
        %5664 = vmatpush.msra.mxu0 %v1242
        %5665 = vmatpush.msra.mxu0 %v1240
        %5666 = vmatpush.msra.mxu0 %v1238
        %5667 = vmatpush.msra.mxu0 %v1236
        %5668 = vmatpush.msra.mxu0 %v1234
        %5669 = vmatpush.msra.mxu0 %v1232
        %5670 = vmatpush.msra.mxu0 %v1230
        %5671 = vmatpush.msra.mxu0 %v1228
        %5672 = vmatpush.msra.mxu0 %v1226
        %5673 = vmatmul.f32.gmra.mxu0 %v763
        %v5674 = vpop.f32.mrf.mxu0
        %v5675 = vadd.f32 %v5655, %v5674
        %5676 = vdwg.mxu0
        %5677 = vmatpush.msra.mxu0 %v1288
        %5678 = vmatpush.msra.mxu0 %v1286
        %5679 = vmatpush.msra.mxu0 %v1284
        %5680 = vmatpush.msra.mxu0 %v1282
        %5681 = vmatpush.msra.mxu0 %v1280
        %5682 = vmatpush.msra.mxu0 %v1278
        %5683 = vmatpush.msra.mxu0 %v1276
        %5684 = vmatpush.msra.mxu0 %v1274
        %5685 = vmatpush.msra.mxu0 %v1272
        %5686 = vmatpush.msra.mxu0 %v1270
        %5687 = vmatpush.msra.mxu0 %v1268
        %5688 = vmatpush.msra.mxu0 %v1266
        %5689 = vmatpush.msra.mxu0 %v1264
        %5690 = vmatpush.msra.mxu0 %v1262
        %5691 = vmatpush.msra.mxu0 %v1260
        %5692 = vmatpush.msra.mxu0 %v1258
        %5693 = vmatmul.f32.gmra.mxu0 %v764
        %v5694 = vpop.f32.mrf.mxu0
        %v5695 = vadd.f32 %v5675, %v5694
        %5696 = vdwg.mxu0
        %5697 = vmatpush.msra.mxu0 %v1320
        %5698 = vmatpush.msra.mxu0 %v1318
        %5699 = vmatpush.msra.mxu0 %v1316
        %5700 = vmatpush.msra.mxu0 %v1314
        %5701 = vmatpush.msra.mxu0 %v1312
        %5702 = vmatpush.msra.mxu0 %v1310
        %5703 = vmatpush.msra.mxu0 %v1308
        %5704 = vmatpush.msra.mxu0 %v1306
        %5705 = vmatpush.msra.mxu0 %v1304
        %5706 = vmatpush.msra.mxu0 %v1302
        %5707 = vmatpush.msra.mxu0 %v1300
        %5708 = vmatpush.msra.mxu0 %v1298
        %5709 = vmatpush.msra.mxu0 %v1296
        %5710 = vmatpush.msra.mxu0 %v1294
        %5711 = vmatpush.msra.mxu0 %v1292
        %5712 = vmatpush.msra.mxu0 %v1290
        %5713 = vmatmul.f32.gmra.mxu0 %v765
        %v5714 = vpop.f32.mrf.mxu0
        %v5715 = vadd.f32 %v5695, %v5714
        %5716 = vdwg.mxu0
        %5717 = vmatpush.msra.mxu0 %v1352
        %5718 = vmatpush.msra.mxu0 %v1350
        %5719 = vmatpush.msra.mxu0 %v1348
        %5720 = vmatpush.msra.mxu0 %v1346
        %5721 = vmatpush.msra.mxu0 %v1344
        %5722 = vmatpush.msra.mxu0 %v1342
        %5723 = vmatpush.msra.mxu0 %v1340
        %5724 = vmatpush.msra.mxu0 %v1338
        %5725 = vmatpush.msra.mxu0 %v1336
        %5726 = vmatpush.msra.mxu0 %v1334
        %5727 = vmatpush.msra.mxu0 %v1332
        %5728 = vmatpush.msra.mxu0 %v1330
        %5729 = vmatpush.msra.mxu0 %v1328
        %5730 = vmatpush.msra.mxu0 %v1326
        %5731 = vmatpush.msra.mxu0 %v1324
        %5732 = vmatpush.msra.mxu0 %v1322
        %5733 = vmatmul.f32.gmra.mxu0 %v766
        %v5734 = vpop.f32.mrf.mxu0
        %v5735 = vadd.f32 %v5715, %v5734
        %5736 = vdwg.mxu0
        %5737 = vmatpush.msra.mxu0 %v1384
        %5738 = vmatpush.msra.mxu0 %v1382
        %5739 = vmatpush.msra.mxu0 %v1380
        %5740 = vmatpush.msra.mxu0 %v1378
        %5741 = vmatpush.msra.mxu0 %v1376
        %5742 = vmatpush.msra.mxu0 %v1374
        %5743 = vmatpush.msra.mxu0 %v1372
        %5744 = vmatpush.msra.mxu0 %v1370
        %5745 = vmatpush.msra.mxu0 %v1368
        %5746 = vmatpush.msra.mxu0 %v1366
        %5747 = vmatpush.msra.mxu0 %v1364
        %5748 = vmatpush.msra.mxu0 %v1362
        %5749 = vmatpush.msra.mxu0 %v1360
        %5750 = vmatpush.msra.mxu0 %v1358
        %5751 = vmatpush.msra.mxu0 %v1356
        %5752 = vmatpush.msra.mxu0 %v1354
        %5753 = vmatmul.f32.gmra.mxu0 %v767
        %v5754 = vpop.f32.mrf.mxu0
        %v5755 = vadd.f32 %v5735, %v5754
        %5756 = vdwg.mxu0
        %5757 = vmatpush.msra.mxu0 %v1416
        %5758 = vmatpush.msra.mxu0 %v1414
        %5759 = vmatpush.msra.mxu0 %v1412
        %5760 = vmatpush.msra.mxu0 %v1410
        %5761 = vmatpush.msra.mxu0 %v1408
        %5762 = vmatpush.msra.mxu0 %v1406
        %5763 = vmatpush.msra.mxu0 %v1404
        %5764 = vmatpush.msra.mxu0 %v1402
        %5765 = vmatpush.msra.mxu0 %v1400
        %5766 = vmatpush.msra.mxu0 %v1398
        %5767 = vmatpush.msra.mxu0 %v1396
        %5768 = vmatpush.msra.mxu0 %v1394
        %5769 = vmatpush.msra.mxu0 %v1392
        %5770 = vmatpush.msra.mxu0 %v1390
        %5771 = vmatpush.msra.mxu0 %v1388
        %5772 = vmatpush.msra.mxu0 %v1386
        %5773 = vmatmul.f32.gmra.mxu0 %v768
        %v5774 = vpop.f32.mrf.mxu0
        %v5775 = vadd.f32 %v5755, %v5774
        %5776 = vdwg.mxu0
        %5777 = vmatpush.msra.mxu0 %v1448
        %5778 = vmatpush.msra.mxu0 %v1446
        %5779 = vmatpush.msra.mxu0 %v1444
        %5780 = vmatpush.msra.mxu0 %v1442
        %5781 = vmatpush.msra.mxu0 %v1440
        %5782 = vmatpush.msra.mxu0 %v1438
        %5783 = vmatpush.msra.mxu0 %v1436
        %5784 = vmatpush.msra.mxu0 %v1434
        %5785 = vmatpush.msra.mxu0 %v1432
        %5786 = vmatpush.msra.mxu0 %v1430
        %5787 = vmatpush.msra.mxu0 %v1428
        %5788 = vmatpush.msra.mxu0 %v1426
        %5789 = vmatpush.msra.mxu0 %v1424
        %5790 = vmatpush.msra.mxu0 %v1422
        %5791 = vmatpush.msra.mxu0 %v1420
        %5792 = vmatpush.msra.mxu0 %v1418
        %5793 = vmatmul.f32.gmra.mxu0 %v769
        %v5794 = vpop.f32.mrf.mxu0
        %v5795 = vadd.f32 %v5775, %v5794
        %5796 = vdwg.mxu0
        %5797 = vmatpush.msra.mxu0 %v1480
        %5798 = vmatpush.msra.mxu0 %v1478
        %5799 = vmatpush.msra.mxu0 %v1476
        %5800 = vmatpush.msra.mxu0 %v1474
        %5801 = vmatpush.msra.mxu0 %v1472
        %5802 = vmatpush.msra.mxu0 %v1470
        %5803 = vmatpush.msra.mxu0 %v1468
        %5804 = vmatpush.msra.mxu0 %v1466
        %5805 = vmatpush.msra.mxu0 %v1464
        %5806 = vmatpush.msra.mxu0 %v1462
        %5807 = vmatpush.msra.mxu0 %v1460
        %5808 = vmatpush.msra.mxu0 %v1458
        %5809 = vmatpush.msra.mxu0 %v1456
        %5810 = vmatpush.msra.mxu0 %v1454
        %5811 = vmatpush.msra.mxu0 %v1452
        %5812 = vmatpush.msra.mxu0 %v1450
        %5813 = vmatmul.f32.gmra.mxu0 %v770
        %v5814 = vpop.f32.mrf.mxu0
        %v5815 = vadd.f32 %v5795, %v5814
        %5816 = vdwg.mxu0
        %5817 = vmatpush.msra.mxu0 %v1512
        %5818 = vmatpush.msra.mxu0 %v1510
        %5819 = vmatpush.msra.mxu0 %v1508
        %5820 = vmatpush.msra.mxu0 %v1506
        %5821 = vmatpush.msra.mxu0 %v1504
        %5822 = vmatpush.msra.mxu0 %v1502
        %5823 = vmatpush.msra.mxu0 %v1500
        %5824 = vmatpush.msra.mxu0 %v1498
        %5825 = vmatpush.msra.mxu0 %v1496
        %5826 = vmatpush.msra.mxu0 %v1494
        %5827 = vmatpush.msra.mxu0 %v1492
        %5828 = vmatpush.msra.mxu0 %v1490
        %5829 = vmatpush.msra.mxu0 %v1488
        %5830 = vmatpush.msra.mxu0 %v1486
        %5831 = vmatpush.msra.mxu0 %v1484
        %5832 = vmatpush.msra.mxu0 %v1482
        %5833 = vmatmul.f32.gmra.mxu0 %v771
        %v5834 = vpop.f32.mrf.mxu0
        %v5835 = vadd.f32 %v5815, %v5834
        %5836 = vdwg.mxu0
        %5837 = vmatpush.msra.mxu0 %v1544
        %5838 = vmatpush.msra.mxu0 %v1542
        %5839 = vmatpush.msra.mxu0 %v1540
        %5840 = vmatpush.msra.mxu0 %v1538
        %5841 = vmatpush.msra.mxu0 %v1536
        %5842 = vmatpush.msra.mxu0 %v1534
        %5843 = vmatpush.msra.mxu0 %v1532
        %5844 = vmatpush.msra.mxu0 %v1530
        %5845 = vmatpush.msra.mxu0 %v1528
        %5846 = vmatpush.msra.mxu0 %v1526
        %5847 = vmatpush.msra.mxu0 %v1524
        %5848 = vmatpush.msra.mxu0 %v1522
        %5849 = vmatpush.msra.mxu0 %v1520
        %5850 = vmatpush.msra.mxu0 %v1518
        %5851 = vmatpush.msra.mxu0 %v1516
        %5852 = vmatpush.msra.mxu0 %v1514
        %5853 = vmatmul.f32.gmra.mxu0 %v772
        %v5854 = vpop.f32.mrf.mxu0
        %v5855 = vadd.f32 %v5835, %v5854
        %5856 = vdwg.mxu0
        %5857 = vmatpush.msra.mxu0 %v1576
        %5858 = vmatpush.msra.mxu0 %v1574
        %5859 = vmatpush.msra.mxu0 %v1572
        %5860 = vmatpush.msra.mxu0 %v1570
        %5861 = vmatpush.msra.mxu0 %v1568
        %5862 = vmatpush.msra.mxu0 %v1566
        %5863 = vmatpush.msra.mxu0 %v1564
        %5864 = vmatpush.msra.mxu0 %v1562
        %5865 = vmatpush.msra.mxu0 %v1560
        %5866 = vmatpush.msra.mxu0 %v1558
        %5867 = vmatpush.msra.mxu0 %v1556
        %5868 = vmatpush.msra.mxu0 %v1554
        %5869 = vmatpush.msra.mxu0 %v1552
        %5870 = vmatpush.msra.mxu0 %v1550
        %5871 = vmatpush.msra.mxu0 %v1548
        %5872 = vmatpush.msra.mxu0 %v1546
        %5873 = vmatmul.f32.gmra.mxu0 %v773
        %v5874 = vpop.f32.mrf.mxu0
        %v5875 = vadd.f32 %v5855, %v5874
        %5876 = vdwg.mxu0
        %5877 = vmatpush.msra.mxu0 %v1608
        %5878 = vmatpush.msra.mxu0 %v1606
        %5879 = vmatpush.msra.mxu0 %v1604
        %5880 = vmatpush.msra.mxu0 %v1602
        %5881 = vmatpush.msra.mxu0 %v1600
        %5882 = vmatpush.msra.mxu0 %v1598
        %5883 = vmatpush.msra.mxu0 %v1596
        %5884 = vmatpush.msra.mxu0 %v1594
        %5885 = vmatpush.msra.mxu0 %v1592
        %5886 = vmatpush.msra.mxu0 %v1590
        %5887 = vmatpush.msra.mxu0 %v1588
        %5888 = vmatpush.msra.mxu0 %v1586
        %5889 = vmatpush.msra.mxu0 %v1584
        %5890 = vmatpush.msra.mxu0 %v1582
        %5891 = vmatpush.msra.mxu0 %v1580
        %5892 = vmatpush.msra.mxu0 %v1578
        %5893 = vmatmul.f32.gmra.mxu0 %v774
        %v5894 = vpop.f32.mrf.mxu0
        %v5895 = vadd.f32 %v5875, %v5894
        %5896 = vdwg.mxu0
        %5897 = vmatpush.msra.mxu0 %v1640
        %5898 = vmatpush.msra.mxu0 %v1638
        %5899 = vmatpush.msra.mxu0 %v1636
        %5900 = vmatpush.msra.mxu0 %v1634
        %5901 = vmatpush.msra.mxu0 %v1632
        %5902 = vmatpush.msra.mxu0 %v1630
        %5903 = vmatpush.msra.mxu0 %v1628
        %5904 = vmatpush.msra.mxu0 %v1626
        %5905 = vmatpush.msra.mxu0 %v1624
        %5906 = vmatpush.msra.mxu0 %v1622
        %5907 = vmatpush.msra.mxu0 %v1620
        %5908 = vmatpush.msra.mxu0 %v1618
        %5909 = vmatpush.msra.mxu0 %v1616
        %5910 = vmatpush.msra.mxu0 %v1614
        %5911 = vmatpush.msra.mxu0 %v1612
        %5912 = vmatpush.msra.mxu0 %v1610
        %5913 = vmatmul.f32.gmra.mxu0 %v775
        %v5914 = vpop.f32.mrf.mxu0
        %v5915 = vadd.f32 %v5895, %v5914
        %5916 = vdwg.mxu0
        %5917 = vmatpush.msra.mxu0 %v1672
        %5918 = vmatpush.msra.mxu0 %v1670
        %5919 = vmatpush.msra.mxu0 %v1668
        %5920 = vmatpush.msra.mxu0 %v1666
        %5921 = vmatpush.msra.mxu0 %v1664
        %5922 = vmatpush.msra.mxu0 %v1662
        %5923 = vmatpush.msra.mxu0 %v1660
        %5924 = vmatpush.msra.mxu0 %v1658
        %5925 = vmatpush.msra.mxu0 %v1656
        %5926 = vmatpush.msra.mxu0 %v1654
        %5927 = vmatpush.msra.mxu0 %v1652
        %5928 = vmatpush.msra.mxu0 %v1650
        %5929 = vmatpush.msra.mxu0 %v1648
        %5930 = vmatpush.msra.mxu0 %v1646
        %5931 = vmatpush.msra.mxu0 %v1644
        %5932 = vmatpush.msra.mxu0 %v1642
        %5933 = vmatmul.f32.gmra.mxu0 %v776
        %v5934 = vpop.f32.mrf.mxu0
        %v5935 = vadd.f32 %v5915, %v5934
        %5936 = vdwg.mxu0
        %5937 = vmatpush.msra.mxu0 %v1704
        %5938 = vmatpush.msra.mxu0 %v1702
        %5939 = vmatpush.msra.mxu0 %v1700
        %5940 = vmatpush.msra.mxu0 %v1698
        %5941 = vmatpush.msra.mxu0 %v1696
        %5942 = vmatpush.msra.mxu0 %v1694
        %5943 = vmatpush.msra.mxu0 %v1692
        %5944 = vmatpush.msra.mxu0 %v1690
        %5945 = vmatpush.msra.mxu0 %v1688
        %5946 = vmatpush.msra.mxu0 %v1686
        %5947 = vmatpush.msra.mxu0 %v1684
        %5948 = vmatpush.msra.mxu0 %v1682
        %5949 = vmatpush.msra.mxu0 %v1680
        %5950 = vmatpush.msra.mxu0 %v1678
        %5951 = vmatpush.msra.mxu0 %v1676
        %5952 = vmatpush.msra.mxu0 %v1674
        %5953 = vmatmul.f32.gmra.mxu0 %v777
        %v5954 = vpop.f32.mrf.mxu0
        %v5955 = vadd.f32 %v5935, %v5954
        %5956 = vdwg.mxu0
        %5957 = vmatpush.msra.mxu0 %v1736
        %5958 = vmatpush.msra.mxu0 %v1734
        %5959 = vmatpush.msra.mxu0 %v1732
        %5960 = vmatpush.msra.mxu0 %v1730
        %5961 = vmatpush.msra.mxu0 %v1728
        %5962 = vmatpush.msra.mxu0 %v1726
        %5963 = vmatpush.msra.mxu0 %v1724
        %5964 = vmatpush.msra.mxu0 %v1722
        %5965 = vmatpush.msra.mxu0 %v1720
        %5966 = vmatpush.msra.mxu0 %v1718
        %5967 = vmatpush.msra.mxu0 %v1716
        %5968 = vmatpush.msra.mxu0 %v1714
        %5969 = vmatpush.msra.mxu0 %v1712
        %5970 = vmatpush.msra.mxu0 %v1710
        %5971 = vmatpush.msra.mxu0 %v1708
        %5972 = vmatpush.msra.mxu0 %v1706
        %5973 = vmatmul.f32.gmra.mxu0 %v778
        %v5974 = vpop.f32.mrf.mxu0
        %v5975 = vadd.f32 %v5955, %v5974
        %5976 = vdwg.mxu0
        %5977 = vmatpush.msra.mxu0 %v1768
        %5978 = vmatpush.msra.mxu0 %v1766
        %5979 = vmatpush.msra.mxu0 %v1764
        %5980 = vmatpush.msra.mxu0 %v1762
        %5981 = vmatpush.msra.mxu0 %v1760
        %5982 = vmatpush.msra.mxu0 %v1758
        %5983 = vmatpush.msra.mxu0 %v1756
        %5984 = vmatpush.msra.mxu0 %v1754
        %5985 = vmatpush.msra.mxu0 %v1752
        %5986 = vmatpush.msra.mxu0 %v1750
        %5987 = vmatpush.msra.mxu0 %v1748
        %5988 = vmatpush.msra.mxu0 %v1746
        %5989 = vmatpush.msra.mxu0 %v1744
        %5990 = vmatpush.msra.mxu0 %v1742
        %5991 = vmatpush.msra.mxu0 %v1740
        %5992 = vmatpush.msra.mxu0 %v1738
        %5993 = vmatmul.f32.gmra.mxu0 %v779
        %v5994 = vpop.f32.mrf.mxu0
        %v5995 = vadd.f32 %v5975, %v5994
        %5996 = vdwg.mxu0
        %5997 = vmatpush.msra.mxu0 %v1800
        %5998 = vmatpush.msra.mxu0 %v1798
        %5999 = vmatpush.msra.mxu0 %v1796
        %6000 = vmatpush.msra.mxu0 %v1794
        %6001 = vmatpush.msra.mxu0 %v1792
        %6002 = vmatpush.msra.mxu0 %v1790
        %6003 = vmatpush.msra.mxu0 %v1788
        %6004 = vmatpush.msra.mxu0 %v1786
        %6005 = vmatpush.msra.mxu0 %v1784
        %6006 = vmatpush.msra.mxu0 %v1782
        %6007 = vmatpush.msra.mxu0 %v1780
        %6008 = vmatpush.msra.mxu0 %v1778
        %6009 = vmatpush.msra.mxu0 %v1776
        %6010 = vmatpush.msra.mxu0 %v1774
        %6011 = vmatpush.msra.mxu0 %v1772
        %6012 = vmatpush.msra.mxu0 %v1770
        %6013 = vmatmul.f32.gmra.mxu0 %v780
        %v6014 = vpop.f32.mrf.mxu0
        %v6015 = vadd.f32 %v5995, %v6014
        %6016 = vdwg.mxu0
        %6017 = vmatpush.msra.mxu0 %v1832
        %6018 = vmatpush.msra.mxu0 %v1830
        %6019 = vmatpush.msra.mxu0 %v1828
        %6020 = vmatpush.msra.mxu0 %v1826
        %6021 = vmatpush.msra.mxu0 %v1824
        %6022 = vmatpush.msra.mxu0 %v1822
        %6023 = vmatpush.msra.mxu0 %v1820
        %6024 = vmatpush.msra.mxu0 %v1818
        %6025 = vmatpush.msra.mxu0 %v1816
        %6026 = vmatpush.msra.mxu0 %v1814
        %6027 = vmatpush.msra.mxu0 %v1812
        %6028 = vmatpush.msra.mxu0 %v1810
        %6029 = vmatpush.msra.mxu0 %v1808
        %6030 = vmatpush.msra.mxu0 %v1806
        %6031 = vmatpush.msra.mxu0 %v1804
        %6032 = vmatpush.msra.mxu0 %v1802
        %6033 = vmatmul.f32.gmra.mxu0 %v781
        %v6034 = vpop.f32.mrf.mxu0
        %v6035 = vadd.f32 %v6015, %v6034
        %6036 = vdwg.mxu0
        %6037 = vmatpush.msra.mxu0 %v1864
        %6038 = vmatpush.msra.mxu0 %v1862
        %6039 = vmatpush.msra.mxu0 %v1860
        %6040 = vmatpush.msra.mxu0 %v1858
        %6041 = vmatpush.msra.mxu0 %v1856
        %6042 = vmatpush.msra.mxu0 %v1854
        %6043 = vmatpush.msra.mxu0 %v1852
        %6044 = vmatpush.msra.mxu0 %v1850
        %6045 = vmatpush.msra.mxu0 %v1848
        %6046 = vmatpush.msra.mxu0 %v1846
        %6047 = vmatpush.msra.mxu0 %v1844
        %6048 = vmatpush.msra.mxu0 %v1842
        %6049 = vmatpush.msra.mxu0 %v1840
        %6050 = vmatpush.msra.mxu0 %v1838
        %6051 = vmatpush.msra.mxu0 %v1836
        %6052 = vmatpush.msra.mxu0 %v1834
        %6053 = vmatmul.f32.gmra.mxu0 %v782
        %v6054 = vpop.f32.mrf.mxu0
        %v6055 = vadd.f32 %v6035, %v6054
        %6056 = vdwg.mxu0
        %6057 = vmatpush.msra.mxu0 %v1896
        %6058 = vmatpush.msra.mxu0 %v1894
        %6059 = vmatpush.msra.mxu0 %v1892
        %6060 = vmatpush.msra.mxu0 %v1890
        %6061 = vmatpush.msra.mxu0 %v1888
        %6062 = vmatpush.msra.mxu0 %v1886
        %6063 = vmatpush.msra.mxu0 %v1884
        %6064 = vmatpush.msra.mxu0 %v1882
        %6065 = vmatpush.msra.mxu0 %v1880
        %6066 = vmatpush.msra.mxu0 %v1878
        %6067 = vmatpush.msra.mxu0 %v1876
        %6068 = vmatpush.msra.mxu0 %v1874
        %6069 = vmatpush.msra.mxu0 %v1872
        %6070 = vmatpush.msra.mxu0 %v1870
        %6071 = vmatpush.msra.mxu0 %v1868
        %6072 = vmatpush.msra.mxu0 %v1866
        %6073 = vmatmul.f32.gmra.mxu0 %v783
        %v6074 = vpop.f32.mrf.mxu0
        %v6075 = vadd.f32 %v6055, %v6074
        %6076 = vdwg.mxu0
        %6077 = vmatpush.msra.mxu0 %v1928
        %6078 = vmatpush.msra.mxu0 %v1926
        %6079 = vmatpush.msra.mxu0 %v1924
        %6080 = vmatpush.msra.mxu0 %v1922
        %6081 = vmatpush.msra.mxu0 %v1920
        %6082 = vmatpush.msra.mxu0 %v1918
        %6083 = vmatpush.msra.mxu0 %v1916
        %6084 = vmatpush.msra.mxu0 %v1914
        %6085 = vmatpush.msra.mxu0 %v1912
        %6086 = vmatpush.msra.mxu0 %v1910
        %6087 = vmatpush.msra.mxu0 %v1908
        %6088 = vmatpush.msra.mxu0 %v1906
        %6089 = vmatpush.msra.mxu0 %v1904
        %6090 = vmatpush.msra.mxu0 %v1902
        %6091 = vmatpush.msra.mxu0 %v1900
        %6092 = vmatpush.msra.mxu0 %v1898
        %6093 = vmatmul.f32.gmra.mxu0 %v784
        %v6094 = vpop.f32.mrf.mxu0
        %v6095 = vadd.f32 %v6075, %v6094
        %6096 = vdwg.mxu0
        %6097 = vmatpush.msra.mxu0 %v1960
        %6098 = vmatpush.msra.mxu0 %v1958
        %6099 = vmatpush.msra.mxu0 %v1956
        %6100 = vmatpush.msra.mxu0 %v1954
        %6101 = vmatpush.msra.mxu0 %v1952
        %6102 = vmatpush.msra.mxu0 %v1950
        %6103 = vmatpush.msra.mxu0 %v1948
        %6104 = vmatpush.msra.mxu0 %v1946
        %6105 = vmatpush.msra.mxu0 %v1944
        %6106 = vmatpush.msra.mxu0 %v1942
        %6107 = vmatpush.msra.mxu0 %v1940
        %6108 = vmatpush.msra.mxu0 %v1938
        %6109 = vmatpush.msra.mxu0 %v1936
        %6110 = vmatpush.msra.mxu0 %v1934
        %6111 = vmatpush.msra.mxu0 %v1932
        %6112 = vmatpush.msra.mxu0 %v1930
        %6113 = vmatmul.f32.gmra.mxu0 %v785
        %v6114 = vpop.f32.mrf.mxu0
        %v6115 = vadd.f32 %v6095, %v6114
        %6116 = vdwg.mxu0
        %6117 = vmatpush.msra.mxu0 %v1992
        %6118 = vmatpush.msra.mxu0 %v1990
        %6119 = vmatpush.msra.mxu0 %v1988
        %6120 = vmatpush.msra.mxu0 %v1986
        %6121 = vmatpush.msra.mxu0 %v1984
        %6122 = vmatpush.msra.mxu0 %v1982
        %6123 = vmatpush.msra.mxu0 %v1980
        %6124 = vmatpush.msra.mxu0 %v1978
        %6125 = vmatpush.msra.mxu0 %v1976
        %6126 = vmatpush.msra.mxu0 %v1974
        %6127 = vmatpush.msra.mxu0 %v1972
        %6128 = vmatpush.msra.mxu0 %v1970
        %6129 = vmatpush.msra.mxu0 %v1968
        %6130 = vmatpush.msra.mxu0 %v1966
        %6131 = vmatpush.msra.mxu0 %v1964
        %6132 = vmatpush.msra.mxu0 %v1962
        %6133 = vmatmul.f32.gmra.mxu0 %v786
        %v6134 = vpop.f32.mrf.mxu0
        %v6135 = vadd.f32 %v6115, %v6134
        %6136 = vdwg.mxu0
        %6137 = vmatpush.msra.mxu0 %v2024
        %6138 = vmatpush.msra.mxu0 %v2022
        %6139 = vmatpush.msra.mxu0 %v2020
        %6140 = vmatpush.msra.mxu0 %v2018
        %6141 = vmatpush.msra.mxu0 %v2016
        %6142 = vmatpush.msra.mxu0 %v2014
        %6143 = vmatpush.msra.mxu0 %v2012
        %6144 = vmatpush.msra.mxu0 %v2010
        %6145 = vmatpush.msra.mxu0 %v2008
        %6146 = vmatpush.msra.mxu0 %v2006
        %6147 = vmatpush.msra.mxu0 %v2004
        %6148 = vmatpush.msra.mxu0 %v2002
        %6149 = vmatpush.msra.mxu0 %v2000
        %6150 = vmatpush.msra.mxu0 %v1998
        %6151 = vmatpush.msra.mxu0 %v1996
        %6152 = vmatpush.msra.mxu0 %v1994
        %6153 = vmatmul.f32.gmra.mxu0 %v787
        %v6154 = vpop.f32.mrf.mxu0
        %v6155 = vadd.f32 %v6135, %v6154
        %6156 = vdwg.mxu0
        %6157 = vmatpush.msra.mxu0 %v2056
        %6158 = vmatpush.msra.mxu0 %v2054
        %6159 = vmatpush.msra.mxu0 %v2052
        %6160 = vmatpush.msra.mxu0 %v2050
        %6161 = vmatpush.msra.mxu0 %v2048
        %6162 = vmatpush.msra.mxu0 %v2046
        %6163 = vmatpush.msra.mxu0 %v2044
        %6164 = vmatpush.msra.mxu0 %v2042
        %6165 = vmatpush.msra.mxu0 %v2040
        %6166 = vmatpush.msra.mxu0 %v2038
        %6167 = vmatpush.msra.mxu0 %v2036
        %6168 = vmatpush.msra.mxu0 %v2034
        %6169 = vmatpush.msra.mxu0 %v2032
        %6170 = vmatpush.msra.mxu0 %v2030
        %6171 = vmatpush.msra.mxu0 %v2028
        %6172 = vmatpush.msra.mxu0 %v2026
        %6173 = vmatmul.f32.gmra.mxu0 %v788
        %v6174 = vpop.f32.mrf.mxu0
        %v6175 = vadd.f32 %v6155, %v6174
        %6176 = vdwg.mxu0
        %6177 = vmatpush.msra.mxu0 %v2088
        %6178 = vmatpush.msra.mxu0 %v2086
        %6179 = vmatpush.msra.mxu0 %v2084
        %6180 = vmatpush.msra.mxu0 %v2082
        %6181 = vmatpush.msra.mxu0 %v2080
        %6182 = vmatpush.msra.mxu0 %v2078
        %6183 = vmatpush.msra.mxu0 %v2076
        %6184 = vmatpush.msra.mxu0 %v2074
        %6185 = vmatpush.msra.mxu0 %v2072
        %6186 = vmatpush.msra.mxu0 %v2070
        %6187 = vmatpush.msra.mxu0 %v2068
        %6188 = vmatpush.msra.mxu0 %v2066
        %6189 = vmatpush.msra.mxu0 %v2064
        %6190 = vmatpush.msra.mxu0 %v2062
        %6191 = vmatpush.msra.mxu0 %v2060
        %6192 = vmatpush.msra.mxu0 %v2058
        %6193 = vmatmul.f32.gmra.mxu0 %v789
        %v6194 = vpop.f32.mrf.mxu0
        %v6195 = vadd.f32 %v6175, %v6194
        %6196 = vdwg.mxu0
        %6197 = vmatpush.msra.mxu0 %v2120
        %6198 = vmatpush.msra.mxu0 %v2118
        %6199 = vmatpush.msra.mxu0 %v2116
        %6200 = vmatpush.msra.mxu0 %v2114
        %6201 = vmatpush.msra.mxu0 %v2112
        %6202 = vmatpush.msra.mxu0 %v2110
        %6203 = vmatpush.msra.mxu0 %v2108
        %6204 = vmatpush.msra.mxu0 %v2106
        %6205 = vmatpush.msra.mxu0 %v2104
        %6206 = vmatpush.msra.mxu0 %v2102
        %6207 = vmatpush.msra.mxu0 %v2100
        %6208 = vmatpush.msra.mxu0 %v2098
        %6209 = vmatpush.msra.mxu0 %v2096
        %6210 = vmatpush.msra.mxu0 %v2094
        %6211 = vmatpush.msra.mxu0 %v2092
        %6212 = vmatpush.msra.mxu0 %v2090
        %6213 = vmatmul.f32.gmra.mxu0 %v790
        %v6214 = vpop.f32.mrf.mxu0
        %v6215 = vadd.f32 %v6195, %v6214
        %6216 = vdwg.mxu0
        %6217 = vmatpush.msra.mxu0 %v2152
        %6218 = vmatpush.msra.mxu0 %v2150
        %6219 = vmatpush.msra.mxu0 %v2148
        %6220 = vmatpush.msra.mxu0 %v2146
        %6221 = vmatpush.msra.mxu0 %v2144
        %6222 = vmatpush.msra.mxu0 %v2142
        %6223 = vmatpush.msra.mxu0 %v2140
        %6224 = vmatpush.msra.mxu0 %v2138
        %6225 = vmatpush.msra.mxu0 %v2136
        %6226 = vmatpush.msra.mxu0 %v2134
        %6227 = vmatpush.msra.mxu0 %v2132
        %6228 = vmatpush.msra.mxu0 %v2130
        %6229 = vmatpush.msra.mxu0 %v2128
        %6230 = vmatpush.msra.mxu0 %v2126
        %6231 = vmatpush.msra.mxu0 %v2124
        %6232 = vmatpush.msra.mxu0 %v2122
        %6233 = vmatmul.f32.gmra.mxu0 %v791
        %v6234 = vpop.f32.mrf.mxu0
        %v6235 = vadd.f32 %v6215, %v6234
        %6236 = vdwg.mxu0
        %6237 = vmatpush.msra.mxu0 %v2184
        %6238 = vmatpush.msra.mxu0 %v2182
        %6239 = vmatpush.msra.mxu0 %v2180
        %6240 = vmatpush.msra.mxu0 %v2178
        %6241 = vmatpush.msra.mxu0 %v2176
        %6242 = vmatpush.msra.mxu0 %v2174
        %6243 = vmatpush.msra.mxu0 %v2172
        %6244 = vmatpush.msra.mxu0 %v2170
        %6245 = vmatpush.msra.mxu0 %v2168
        %6246 = vmatpush.msra.mxu0 %v2166
        %6247 = vmatpush.msra.mxu0 %v2164
        %6248 = vmatpush.msra.mxu0 %v2162
        %6249 = vmatpush.msra.mxu0 %v2160
        %6250 = vmatpush.msra.mxu0 %v2158
        %6251 = vmatpush.msra.mxu0 %v2156
        %6252 = vmatpush.msra.mxu0 %v2154
        %6253 = vmatmul.f32.gmra.mxu0 %v792
        %v6254 = vpop.f32.mrf.mxu0
        %v6255 = vadd.f32 %v6235, %v6254
        %6256 = vdwg.mxu0
        %6257 = vmatpush.msra.mxu0 %v2216
        %6258 = vmatpush.msra.mxu0 %v2214
        %6259 = vmatpush.msra.mxu0 %v2212
        %6260 = vmatpush.msra.mxu0 %v2210
        %6261 = vmatpush.msra.mxu0 %v2208
        %6262 = vmatpush.msra.mxu0 %v2206
        %6263 = vmatpush.msra.mxu0 %v2204
        %6264 = vmatpush.msra.mxu0 %v2202
        %6265 = vmatpush.msra.mxu0 %v2200
        %6266 = vmatpush.msra.mxu0 %v2198
        %6267 = vmatpush.msra.mxu0 %v2196
        %6268 = vmatpush.msra.mxu0 %v2194
        %6269 = vmatpush.msra.mxu0 %v2192
        %6270 = vmatpush.msra.mxu0 %v2190
        %6271 = vmatpush.msra.mxu0 %v2188
        %6272 = vmatpush.msra.mxu0 %v2186
        %6273 = vmatmul.f32.gmra.mxu0 %v793
        %v6274 = vpop.f32.mrf.mxu0
        %v6275 = vadd.f32 %v6255, %v6274
        %6276 = vdwg.mxu0
        %6277 = vmatpush.msra.mxu0 %v2248
        %6278 = vmatpush.msra.mxu0 %v2246
        %6279 = vmatpush.msra.mxu0 %v2244
        %6280 = vmatpush.msra.mxu0 %v2242
        %6281 = vmatpush.msra.mxu0 %v2240
        %6282 = vmatpush.msra.mxu0 %v2238
        %6283 = vmatpush.msra.mxu0 %v2236
        %6284 = vmatpush.msra.mxu0 %v2234
        %6285 = vmatpush.msra.mxu0 %v2232
        %6286 = vmatpush.msra.mxu0 %v2230
        %6287 = vmatpush.msra.mxu0 %v2228
        %6288 = vmatpush.msra.mxu0 %v2226
        %6289 = vmatpush.msra.mxu0 %v2224
        %6290 = vmatpush.msra.mxu0 %v2222
        %6291 = vmatpush.msra.mxu0 %v2220
        %6292 = vmatpush.msra.mxu0 %v2218
        %6293 = vmatmul.f32.gmra.mxu0 %v794
        %v6294 = vpop.f32.mrf.mxu0
        %v6295 = vadd.f32 %v6275, %v6294
        %6296 = vdwg.mxu0
        %6297 = vmatpush.msra.mxu0 %v2280
        %6298 = vmatpush.msra.mxu0 %v2278
        %6299 = vmatpush.msra.mxu0 %v2276
        %6300 = vmatpush.msra.mxu0 %v2274
        %6301 = vmatpush.msra.mxu0 %v2272
        %6302 = vmatpush.msra.mxu0 %v2270
        %6303 = vmatpush.msra.mxu0 %v2268
        %6304 = vmatpush.msra.mxu0 %v2266
        %6305 = vmatpush.msra.mxu0 %v2264
        %6306 = vmatpush.msra.mxu0 %v2262
        %6307 = vmatpush.msra.mxu0 %v2260
        %6308 = vmatpush.msra.mxu0 %v2258
        %6309 = vmatpush.msra.mxu0 %v2256
        %6310 = vmatpush.msra.mxu0 %v2254
        %6311 = vmatpush.msra.mxu0 %v2252
        %6312 = vmatpush.msra.mxu0 %v2250
        %6313 = vmatmul.f32.gmra.mxu0 %v795
        %v6314 = vpop.f32.mrf.mxu0
        %v6315 = vadd.f32 %v6295, %v6314
        %6316 = vdwg.mxu0
        %6317 = vmatpush.msra.mxu0 %v2312
        %6318 = vmatpush.msra.mxu0 %v2310
        %6319 = vmatpush.msra.mxu0 %v2308
        %6320 = vmatpush.msra.mxu0 %v2306
        %6321 = vmatpush.msra.mxu0 %v2304
        %6322 = vmatpush.msra.mxu0 %v2302
        %6323 = vmatpush.msra.mxu0 %v2300
        %6324 = vmatpush.msra.mxu0 %v2298
        %6325 = vmatpush.msra.mxu0 %v2296
        %6326 = vmatpush.msra.mxu0 %v2294
        %6327 = vmatpush.msra.mxu0 %v2292
        %6328 = vmatpush.msra.mxu0 %v2290
        %6329 = vmatpush.msra.mxu0 %v2288
        %6330 = vmatpush.msra.mxu0 %v2286
        %6331 = vmatpush.msra.mxu0 %v2284
        %6332 = vmatpush.msra.mxu0 %v2282
        %6333 = vmatmul.f32.gmra.mxu0 %v796
        %v6334 = vpop.f32.mrf.mxu0
        %v6335 = vadd.f32 %v6315, %v6334
        %6336 = vdwg.mxu0
        %6337 = vmatpush.msra.mxu0 %v2344
        %6338 = vmatpush.msra.mxu0 %v2342
        %6339 = vmatpush.msra.mxu0 %v2340
        %6340 = vmatpush.msra.mxu0 %v2338
        %6341 = vmatpush.msra.mxu0 %v2336
        %6342 = vmatpush.msra.mxu0 %v2334
        %6343 = vmatpush.msra.mxu0 %v2332
        %6344 = vmatpush.msra.mxu0 %v2330
        %6345 = vmatpush.msra.mxu0 %v2328
        %6346 = vmatpush.msra.mxu0 %v2326
        %6347 = vmatpush.msra.mxu0 %v2324
        %6348 = vmatpush.msra.mxu0 %v2322
        %6349 = vmatpush.msra.mxu0 %v2320
        %6350 = vmatpush.msra.mxu0 %v2318
        %6351 = vmatpush.msra.mxu0 %v2316
        %6352 = vmatpush.msra.mxu0 %v2314
        %6353 = vmatmul.f32.gmra.mxu0 %v797
        %v6354 = vpop.f32.mrf.mxu0
        %v6355 = vadd.f32 %v6335, %v6354
        %6356 = vdwg.mxu0
        %6357 = vmatpush.msra.mxu0 %v2376
        %6358 = vmatpush.msra.mxu0 %v2374
        %6359 = vmatpush.msra.mxu0 %v2372
        %6360 = vmatpush.msra.mxu0 %v2370
        %6361 = vmatpush.msra.mxu0 %v2368
        %6362 = vmatpush.msra.mxu0 %v2366
        %6363 = vmatpush.msra.mxu0 %v2364
        %6364 = vmatpush.msra.mxu0 %v2362
        %6365 = vmatpush.msra.mxu0 %v2360
        %6366 = vmatpush.msra.mxu0 %v2358
        %6367 = vmatpush.msra.mxu0 %v2356
        %6368 = vmatpush.msra.mxu0 %v2354
        %6369 = vmatpush.msra.mxu0 %v2352
        %6370 = vmatpush.msra.mxu0 %v2350
        %6371 = vmatpush.msra.mxu0 %v2348
        %6372 = vmatpush.msra.mxu0 %v2346
        %6373 = vmatmul.f32.gmra.mxu0 %v798
        %v6374 = vpop.f32.mrf.mxu0
        %v6375 = vadd.f32 %v6355, %v6374
        %6376 = vdwg.mxu0
        %6377 = vmatpush.msra.mxu0 %v2408
        %6378 = vmatpush.msra.mxu0 %v2406
        %6379 = vmatpush.msra.mxu0 %v2404
        %6380 = vmatpush.msra.mxu0 %v2402
        %6381 = vmatpush.msra.mxu0 %v2400
        %6382 = vmatpush.msra.mxu0 %v2398
        %6383 = vmatpush.msra.mxu0 %v2396
        %6384 = vmatpush.msra.mxu0 %v2394
        %6385 = vmatpush.msra.mxu0 %v2392
        %6386 = vmatpush.msra.mxu0 %v2390
        %6387 = vmatpush.msra.mxu0 %v2388
        %6388 = vmatpush.msra.mxu0 %v2386
        %6389 = vmatpush.msra.mxu0 %v2384
        %6390 = vmatpush.msra.mxu0 %v2382
        %6391 = vmatpush.msra.mxu0 %v2380
        %6392 = vmatpush.msra.mxu0 %v2378
        %6393 = vmatmul.f32.gmra.mxu0 %v799
        %v6394 = vpop.f32.mrf.mxu0
        %v6395 = vadd.f32 %v6375, %v6394
        %6396 = vdwg.mxu0
        %6397 = vmatpush.msra.mxu0 %v2440
        %6398 = vmatpush.msra.mxu0 %v2438
        %6399 = vmatpush.msra.mxu0 %v2436
        %6400 = vmatpush.msra.mxu0 %v2434
        %6401 = vmatpush.msra.mxu0 %v2432
        %6402 = vmatpush.msra.mxu0 %v2430
        %6403 = vmatpush.msra.mxu0 %v2428
        %6404 = vmatpush.msra.mxu0 %v2426
        %6405 = vmatpush.msra.mxu0 %v2424
        %6406 = vmatpush.msra.mxu0 %v2422
        %6407 = vmatpush.msra.mxu0 %v2420
        %6408 = vmatpush.msra.mxu0 %v2418
        %6409 = vmatpush.msra.mxu0 %v2416
        %6410 = vmatpush.msra.mxu0 %v2414
        %6411 = vmatpush.msra.mxu0 %v2412
        %6412 = vmatpush.msra.mxu0 %v2410
        %6413 = vmatmul.f32.gmra.mxu0 %v800
        %v6414 = vpop.f32.mrf.mxu0
        %v6415 = vadd.f32 %v6395, %v6414
        %6416 = vdwg.mxu0
        %6417 = vmatpush.msra.mxu0 %v2472
        %6418 = vmatpush.msra.mxu0 %v2470
        %6419 = vmatpush.msra.mxu0 %v2468
        %6420 = vmatpush.msra.mxu0 %v2466
        %6421 = vmatpush.msra.mxu0 %v2464
        %6422 = vmatpush.msra.mxu0 %v2462
        %6423 = vmatpush.msra.mxu0 %v2460
        %6424 = vmatpush.msra.mxu0 %v2458
        %6425 = vmatpush.msra.mxu0 %v2456
        %6426 = vmatpush.msra.mxu0 %v2454
        %6427 = vmatpush.msra.mxu0 %v2452
        %6428 = vmatpush.msra.mxu0 %v2450
        %6429 = vmatpush.msra.mxu0 %v2448
        %6430 = vmatpush.msra.mxu0 %v2446
        %6431 = vmatpush.msra.mxu0 %v2444
        %6432 = vmatpush.msra.mxu0 %v2442
        %6433 = vmatmul.f32.gmra.mxu0 %v801
        %v6434 = vpop.f32.mrf.mxu0
        %v6435 = vadd.f32 %v6415, %v6434
        %6436 = vdwg.mxu0
        %6437 = vmatpush.msra.mxu0 %v2504
        %6438 = vmatpush.msra.mxu0 %v2502
        %6439 = vmatpush.msra.mxu0 %v2500
        %6440 = vmatpush.msra.mxu0 %v2498
        %6441 = vmatpush.msra.mxu0 %v2496
        %6442 = vmatpush.msra.mxu0 %v2494
        %6443 = vmatpush.msra.mxu0 %v2492
        %6444 = vmatpush.msra.mxu0 %v2490
        %6445 = vmatpush.msra.mxu0 %v2488
        %6446 = vmatpush.msra.mxu0 %v2486
        %6447 = vmatpush.msra.mxu0 %v2484
        %6448 = vmatpush.msra.mxu0 %v2482
        %6449 = vmatpush.msra.mxu0 %v2480
        %6450 = vmatpush.msra.mxu0 %v2478
        %6451 = vmatpush.msra.mxu0 %v2476
        %6452 = vmatpush.msra.mxu0 %v2474
        %6453 = vmatmul.f32.gmra.mxu0 %v802
        %v6454 = vpop.f32.mrf.mxu0
        %v6455 = vadd.f32 %v6435, %v6454
        %6456 = vdwg.mxu0
        %6457 = vmatpush.msra.mxu0 %v2536
        %6458 = vmatpush.msra.mxu0 %v2534
        %6459 = vmatpush.msra.mxu0 %v2532
        %6460 = vmatpush.msra.mxu0 %v2530
        %6461 = vmatpush.msra.mxu0 %v2528
        %6462 = vmatpush.msra.mxu0 %v2526
        %6463 = vmatpush.msra.mxu0 %v2524
        %6464 = vmatpush.msra.mxu0 %v2522
        %6465 = vmatpush.msra.mxu0 %v2520
        %6466 = vmatpush.msra.mxu0 %v2518
        %6467 = vmatpush.msra.mxu0 %v2516
        %6468 = vmatpush.msra.mxu0 %v2514
        %6469 = vmatpush.msra.mxu0 %v2512
        %6470 = vmatpush.msra.mxu0 %v2510
        %6471 = vmatpush.msra.mxu0 %v2508
        %6472 = vmatpush.msra.mxu0 %v2506
        %6473 = vmatmul.f32.gmra.mxu0 %v803
        %v6474 = vpop.f32.mrf.mxu0
        %v6475 = vadd.f32 %v6455, %v6474
        %6476 = vdwg.mxu0
        %6477 = vmatpush.msra.mxu0 %v2568
        %6478 = vmatpush.msra.mxu0 %v2566
        %6479 = vmatpush.msra.mxu0 %v2564
        %6480 = vmatpush.msra.mxu0 %v2562
        %6481 = vmatpush.msra.mxu0 %v2560
        %6482 = vmatpush.msra.mxu0 %v2558
        %6483 = vmatpush.msra.mxu0 %v2556
        %6484 = vmatpush.msra.mxu0 %v2554
        %6485 = vmatpush.msra.mxu0 %v2552
        %6486 = vmatpush.msra.mxu0 %v2550
        %6487 = vmatpush.msra.mxu0 %v2548
        %6488 = vmatpush.msra.mxu0 %v2546
        %6489 = vmatpush.msra.mxu0 %v2544
        %6490 = vmatpush.msra.mxu0 %v2542
        %6491 = vmatpush.msra.mxu0 %v2540
        %6492 = vmatpush.msra.mxu0 %v2538
        %6493 = vmatmul.f32.gmra.mxu0 %v804
        %v6494 = vpop.f32.mrf.mxu0
        %v6495 = vadd.f32 %v6475, %v6494
        %6496 = vdwg.mxu0
        %6497 = vmatpush.msra.mxu0 %v2600
        %6498 = vmatpush.msra.mxu0 %v2598
        %6499 = vmatpush.msra.mxu0 %v2596
        %6500 = vmatpush.msra.mxu0 %v2594
        %6501 = vmatpush.msra.mxu0 %v2592
        %6502 = vmatpush.msra.mxu0 %v2590
        %6503 = vmatpush.msra.mxu0 %v2588
        %6504 = vmatpush.msra.mxu0 %v2586
        %6505 = vmatpush.msra.mxu0 %v2584
        %6506 = vmatpush.msra.mxu0 %v2582
        %6507 = vmatpush.msra.mxu0 %v2580
        %6508 = vmatpush.msra.mxu0 %v2578
        %6509 = vmatpush.msra.mxu0 %v2576
        %6510 = vmatpush.msra.mxu0 %v2574
        %6511 = vmatpush.msra.mxu0 %v2572
        %6512 = vmatpush.msra.mxu0 %v2570
        %6513 = vmatmul.f32.gmra.mxu0 %v805
        %v6514 = vpop.f32.mrf.mxu0
        %v6515 = vadd.f32 %v6495, %v6514
        %6516 = vdwg.mxu0
        %6517 = vmatpush.msra.mxu0 %v2632
        %6518 = vmatpush.msra.mxu0 %v2630
        %6519 = vmatpush.msra.mxu0 %v2628
        %6520 = vmatpush.msra.mxu0 %v2626
        %6521 = vmatpush.msra.mxu0 %v2624
        %6522 = vmatpush.msra.mxu0 %v2622
        %6523 = vmatpush.msra.mxu0 %v2620
        %6524 = vmatpush.msra.mxu0 %v2618
        %6525 = vmatpush.msra.mxu0 %v2616
        %6526 = vmatpush.msra.mxu0 %v2614
        %6527 = vmatpush.msra.mxu0 %v2612
        %6528 = vmatpush.msra.mxu0 %v2610
        %6529 = vmatpush.msra.mxu0 %v2608
        %6530 = vmatpush.msra.mxu0 %v2606
        %6531 = vmatpush.msra.mxu0 %v2604
        %6532 = vmatpush.msra.mxu0 %v2602
        %6533 = vmatmul.f32.gmra.mxu0 %v806
        %v6534 = vpop.f32.mrf.mxu0
        %v6535 = vadd.f32 %v6515, %v6534
        %6536 = vdwg.mxu0
        %6537 = vmatpush.msra.mxu0 %v2664
        %6538 = vmatpush.msra.mxu0 %v2662
        %6539 = vmatpush.msra.mxu0 %v2660
        %6540 = vmatpush.msra.mxu0 %v2658
        %6541 = vmatpush.msra.mxu0 %v2656
        %6542 = vmatpush.msra.mxu0 %v2654
        %6543 = vmatpush.msra.mxu0 %v2652
        %6544 = vmatpush.msra.mxu0 %v2650
        %6545 = vmatpush.msra.mxu0 %v2648
        %6546 = vmatpush.msra.mxu0 %v2646
        %6547 = vmatpush.msra.mxu0 %v2644
        %6548 = vmatpush.msra.mxu0 %v2642
        %6549 = vmatpush.msra.mxu0 %v2640
        %6550 = vmatpush.msra.mxu0 %v2638
        %6551 = vmatpush.msra.mxu0 %v2636
        %6552 = vmatpush.msra.mxu0 %v2634
        %6553 = vmatmul.f32.gmra.mxu0 %v807
        %v6554 = vpop.f32.mrf.mxu0
        %v6555 = vadd.f32 %v6535, %v6554
        %6556 = vdwg.mxu0
        %6557 = vmatpush.msra.mxu0 %v2696
        %6558 = vmatpush.msra.mxu0 %v2694
        %6559 = vmatpush.msra.mxu0 %v2692
        %6560 = vmatpush.msra.mxu0 %v2690
        %6561 = vmatpush.msra.mxu0 %v2688
        %6562 = vmatpush.msra.mxu0 %v2686
        %6563 = vmatpush.msra.mxu0 %v2684
        %6564 = vmatpush.msra.mxu0 %v2682
        %6565 = vmatpush.msra.mxu0 %v2680
        %6566 = vmatpush.msra.mxu0 %v2678
        %6567 = vmatpush.msra.mxu0 %v2676
        %6568 = vmatpush.msra.mxu0 %v2674
        %6569 = vmatpush.msra.mxu0 %v2672
        %6570 = vmatpush.msra.mxu0 %v2670
        %6571 = vmatpush.msra.mxu0 %v2668
        %6572 = vmatpush.msra.mxu0 %v2666
        %6573 = vmatmul.f32.gmra.mxu0 %v808
        %v6574 = vpop.f32.mrf.mxu0
        %v6575 = vadd.f32 %v6555, %v6574
        %6576 = vdwg.mxu0
        %6577 = vmatpush.msra.mxu0 %v2728
        %6578 = vmatpush.msra.mxu0 %v2726
        %6579 = vmatpush.msra.mxu0 %v2724
        %6580 = vmatpush.msra.mxu0 %v2722
        %6581 = vmatpush.msra.mxu0 %v2720
        %6582 = vmatpush.msra.mxu0 %v2718
        %6583 = vmatpush.msra.mxu0 %v2716
        %6584 = vmatpush.msra.mxu0 %v2714
        %6585 = vmatpush.msra.mxu0 %v2712
        %6586 = vmatpush.msra.mxu0 %v2710
        %6587 = vmatpush.msra.mxu0 %v2708
        %6588 = vmatpush.msra.mxu0 %v2706
        %6589 = vmatpush.msra.mxu0 %v2704
        %6590 = vmatpush.msra.mxu0 %v2702
        %6591 = vmatpush.msra.mxu0 %v2700
        %6592 = vmatpush.msra.mxu0 %v2698
        %6593 = vmatmul.f32.gmra.mxu0 %v809
        %v6594 = vpop.f32.mrf.mxu0
        %v6595 = vadd.f32 %v6575, %v6594
        %6596 = vdwg.mxu0
        %6597 = vmatpush.msra.mxu0 %v2760
        %6598 = vmatpush.msra.mxu0 %v2758
        %6599 = vmatpush.msra.mxu0 %v2756
        %6600 = vmatpush.msra.mxu0 %v2754
        %6601 = vmatpush.msra.mxu0 %v2752
        %6602 = vmatpush.msra.mxu0 %v2750
        %6603 = vmatpush.msra.mxu0 %v2748
        %6604 = vmatpush.msra.mxu0 %v2746
        %6605 = vmatpush.msra.mxu0 %v2744
        %6606 = vmatpush.msra.mxu0 %v2742
        %6607 = vmatpush.msra.mxu0 %v2740
        %6608 = vmatpush.msra.mxu0 %v2738
        %6609 = vmatpush.msra.mxu0 %v2736
        %6610 = vmatpush.msra.mxu0 %v2734
        %6611 = vmatpush.msra.mxu0 %v2732
        %6612 = vmatpush.msra.mxu0 %v2730
        %6613 = vmatmul.f32.gmra.mxu0 %v810
        %v6614 = vpop.f32.mrf.mxu0
        %v6615 = vadd.f32 %v6595, %v6614
        %6616 = vdwg.mxu0
        %6617 = vmatpush.msra.mxu0 %v2792
        %6618 = vmatpush.msra.mxu0 %v2790
        %6619 = vmatpush.msra.mxu0 %v2788
        %6620 = vmatpush.msra.mxu0 %v2786
        %6621 = vmatpush.msra.mxu0 %v2784
        %6622 = vmatpush.msra.mxu0 %v2782
        %6623 = vmatpush.msra.mxu0 %v2780
        %6624 = vmatpush.msra.mxu0 %v2778
        %6625 = vmatpush.msra.mxu0 %v2776
        %6626 = vmatpush.msra.mxu0 %v2774
        %6627 = vmatpush.msra.mxu0 %v2772
        %6628 = vmatpush.msra.mxu0 %v2770
        %6629 = vmatpush.msra.mxu0 %v2768
        %6630 = vmatpush.msra.mxu0 %v2766
        %6631 = vmatpush.msra.mxu0 %v2764
        %6632 = vmatpush.msra.mxu0 %v2762
        %6633 = vmatmul.f32.gmra.mxu0 %v811
        %v6634 = vpop.f32.mrf.mxu0
        %v6635 = vadd.f32 %v6615, %v6634
        %6636 = vdwg.mxu0
        %6637 = vmatpush.msra.mxu0 %v2824
        %6638 = vmatpush.msra.mxu0 %v2822
        %6639 = vmatpush.msra.mxu0 %v2820
        %6640 = vmatpush.msra.mxu0 %v2818
        %6641 = vmatpush.msra.mxu0 %v2816
        %6642 = vmatpush.msra.mxu0 %v2814
        %6643 = vmatpush.msra.mxu0 %v2812
        %6644 = vmatpush.msra.mxu0 %v2810
        %6645 = vmatpush.msra.mxu0 %v2808
        %6646 = vmatpush.msra.mxu0 %v2806
        %6647 = vmatpush.msra.mxu0 %v2804
        %6648 = vmatpush.msra.mxu0 %v2802
        %6649 = vmatpush.msra.mxu0 %v2800
        %6650 = vmatpush.msra.mxu0 %v2798
        %6651 = vmatpush.msra.mxu0 %v2796
        %6652 = vmatpush.msra.mxu0 %v2794
        %6653 = vmatmul.f32.gmra.mxu0 %v812
        %v6654 = vpop.f32.mrf.mxu0
        %v6655 = vadd.f32 %v6635, %v6654
        %6656 = vdwg.mxu0
        %6657 = vmatpush.msra.mxu0 %v2856
        %6658 = vmatpush.msra.mxu0 %v2854
        %6659 = vmatpush.msra.mxu0 %v2852
        %6660 = vmatpush.msra.mxu0 %v2850
        %6661 = vmatpush.msra.mxu0 %v2848
        %6662 = vmatpush.msra.mxu0 %v2846
        %6663 = vmatpush.msra.mxu0 %v2844
        %6664 = vmatpush.msra.mxu0 %v2842
        %6665 = vmatpush.msra.mxu0 %v2840
        %6666 = vmatpush.msra.mxu0 %v2838
        %6667 = vmatpush.msra.mxu0 %v2836
        %6668 = vmatpush.msra.mxu0 %v2834
        %6669 = vmatpush.msra.mxu0 %v2832
        %6670 = vmatpush.msra.mxu0 %v2830
        %6671 = vmatpush.msra.mxu0 %v2828
        %6672 = vmatpush.msra.mxu0 %v2826
        %6673 = vmatmul.f32.gmra.mxu0 %v813
        %v6674 = vpop.f32.mrf.mxu0
        %v6675 = vadd.f32 %v6655, %v6674
        %6676 = vdwg.mxu0
        %6677 = vmatpush.msra.mxu0 %v2888
        %6678 = vmatpush.msra.mxu0 %v2886
        %6679 = vmatpush.msra.mxu0 %v2884
        %6680 = vmatpush.msra.mxu0 %v2882
        %6681 = vmatpush.msra.mxu0 %v2880
        %6682 = vmatpush.msra.mxu0 %v2878
        %6683 = vmatpush.msra.mxu0 %v2876
        %6684 = vmatpush.msra.mxu0 %v2874
        %6685 = vmatpush.msra.mxu0 %v2872
        %6686 = vmatpush.msra.mxu0 %v2870
        %6687 = vmatpush.msra.mxu0 %v2868
        %6688 = vmatpush.msra.mxu0 %v2866
        %6689 = vmatpush.msra.mxu0 %v2864
        %6690 = vmatpush.msra.mxu0 %v2862
        %6691 = vmatpush.msra.mxu0 %v2860
        %6692 = vmatpush.msra.mxu0 %v2858
        %6693 = vmatmul.f32.gmra.mxu0 %v814
        %v6694 = vpop.f32.mrf.mxu0
        %v6695 = vadd.f32 %v6675, %v6694
        %6696 = vdwg.mxu0
        %6697 = vmatpush.msra.mxu0 %v2920
        %6698 = vmatpush.msra.mxu0 %v2918
        %6699 = vmatpush.msra.mxu0 %v2916
        %6700 = vmatpush.msra.mxu0 %v2914
        %6701 = vmatpush.msra.mxu0 %v2912
        %6702 = vmatpush.msra.mxu0 %v2910
        %6703 = vmatpush.msra.mxu0 %v2908
        %6704 = vmatpush.msra.mxu0 %v2906
        %6705 = vmatpush.msra.mxu0 %v2904
        %6706 = vmatpush.msra.mxu0 %v2902
        %6707 = vmatpush.msra.mxu0 %v2900
        %6708 = vmatpush.msra.mxu0 %v2898
        %6709 = vmatpush.msra.mxu0 %v2896
        %6710 = vmatpush.msra.mxu0 %v2894
        %6711 = vmatpush.msra.mxu0 %v2892
        %6712 = vmatpush.msra.mxu0 %v2890
        %6713 = vmatmul.f32.gmra.mxu0 %v815
        %v6714 = vpop.f32.mrf.mxu0
        %v6715 = vadd.f32 %v6695, %v6714
        %6716 = vdwg.mxu0
        %6717 = vmatpush.msra.mxu0 %v2952
        %6718 = vmatpush.msra.mxu0 %v2950
        %6719 = vmatpush.msra.mxu0 %v2948
        %6720 = vmatpush.msra.mxu0 %v2946
        %6721 = vmatpush.msra.mxu0 %v2944
        %6722 = vmatpush.msra.mxu0 %v2942
        %6723 = vmatpush.msra.mxu0 %v2940
        %6724 = vmatpush.msra.mxu0 %v2938
        %6725 = vmatpush.msra.mxu0 %v2936
        %6726 = vmatpush.msra.mxu0 %v2934
        %6727 = vmatpush.msra.mxu0 %v2932
        %6728 = vmatpush.msra.mxu0 %v2930
        %6729 = vmatpush.msra.mxu0 %v2928
        %6730 = vmatpush.msra.mxu0 %v2926
        %6731 = vmatpush.msra.mxu0 %v2924
        %6732 = vmatpush.msra.mxu0 %v2922
        %6733 = vmatmul.f32.gmra.mxu0 %v816
        %v6734 = vpop.f32.mrf.mxu0
        %v6735 = vadd.f32 %v6715, %v6734
        %6736 = vdwg.mxu0
        %6737 = vmatpush.msra.mxu0 %v2984
        %6738 = vmatpush.msra.mxu0 %v2982
        %6739 = vmatpush.msra.mxu0 %v2980
        %6740 = vmatpush.msra.mxu0 %v2978
        %6741 = vmatpush.msra.mxu0 %v2976
        %6742 = vmatpush.msra.mxu0 %v2974
        %6743 = vmatpush.msra.mxu0 %v2972
        %6744 = vmatpush.msra.mxu0 %v2970
        %6745 = vmatpush.msra.mxu0 %v2968
        %6746 = vmatpush.msra.mxu0 %v2966
        %6747 = vmatpush.msra.mxu0 %v2964
        %6748 = vmatpush.msra.mxu0 %v2962
        %6749 = vmatpush.msra.mxu0 %v2960
        %6750 = vmatpush.msra.mxu0 %v2958
        %6751 = vmatpush.msra.mxu0 %v2956
        %6752 = vmatpush.msra.mxu0 %v2954
        %6753 = vmatmul.f32.gmra.mxu0 %v817
        %v6754 = vpop.f32.mrf.mxu0
        %v6755 = vadd.f32 %v6735, %v6754
        %6756 = vdwg.mxu0
        %6757 = vmatpush.msra.mxu0 %v3016
        %6758 = vmatpush.msra.mxu0 %v3014
        %6759 = vmatpush.msra.mxu0 %v3012
        %6760 = vmatpush.msra.mxu0 %v3010
        %6761 = vmatpush.msra.mxu0 %v3008
        %6762 = vmatpush.msra.mxu0 %v3006
        %6763 = vmatpush.msra.mxu0 %v3004
        %6764 = vmatpush.msra.mxu0 %v3002
        %6765 = vmatpush.msra.mxu0 %v3000
        %6766 = vmatpush.msra.mxu0 %v2998
        %6767 = vmatpush.msra.mxu0 %v2996
        %6768 = vmatpush.msra.mxu0 %v2994
        %6769 = vmatpush.msra.mxu0 %v2992
        %6770 = vmatpush.msra.mxu0 %v2990
        %6771 = vmatpush.msra.mxu0 %v2988
        %6772 = vmatpush.msra.mxu0 %v2986
        %6773 = vmatmul.f32.gmra.mxu0 %v818
        %v6774 = vpop.f32.mrf.mxu0
        %v6775 = vadd.f32 %v6755, %v6774
        %6776 = vdwg.mxu0
        %6777 = vmatpush.msra.mxu0 %v3048
        %6778 = vmatpush.msra.mxu0 %v3046
        %6779 = vmatpush.msra.mxu0 %v3044
        %6780 = vmatpush.msra.mxu0 %v3042
        %6781 = vmatpush.msra.mxu0 %v3040
        %6782 = vmatpush.msra.mxu0 %v3038
        %6783 = vmatpush.msra.mxu0 %v3036
        %6784 = vmatpush.msra.mxu0 %v3034
        %6785 = vmatpush.msra.mxu0 %v3032
        %6786 = vmatpush.msra.mxu0 %v3030
        %6787 = vmatpush.msra.mxu0 %v3028
        %6788 = vmatpush.msra.mxu0 %v3026
        %6789 = vmatpush.msra.mxu0 %v3024
        %6790 = vmatpush.msra.mxu0 %v3022
        %6791 = vmatpush.msra.mxu0 %v3020
        %6792 = vmatpush.msra.mxu0 %v3018
        %6793 = vmatmul.f32.gmra.mxu0 %v819
        %v6794 = vpop.f32.mrf.mxu0
        %v6795 = vadd.f32 %v6775, %v6794
        %6796 = vdwg.mxu0
        %6797 = vmatpush.msra.mxu0 %v3080
        %6798 = vmatpush.msra.mxu0 %v3078
        %6799 = vmatpush.msra.mxu0 %v3076
        %6800 = vmatpush.msra.mxu0 %v3074
        %6801 = vmatpush.msra.mxu0 %v3072
        %6802 = vmatpush.msra.mxu0 %v3070
        %6803 = vmatpush.msra.mxu0 %v3068
        %6804 = vmatpush.msra.mxu0 %v3066
        %6805 = vmatpush.msra.mxu0 %v3064
        %6806 = vmatpush.msra.mxu0 %v3062
        %6807 = vmatpush.msra.mxu0 %v3060
        %6808 = vmatpush.msra.mxu0 %v3058
        %6809 = vmatpush.msra.mxu0 %v3056
        %6810 = vmatpush.msra.mxu0 %v3054
        %6811 = vmatpush.msra.mxu0 %v3052
        %6812 = vmatpush.msra.mxu0 %v3050
        %6813 = vmatmul.f32.gmra.mxu0 %v820
        %v6814 = vpop.f32.mrf.mxu0
        %v6815 = vadd.f32 %v6795, %v6814
        %6816 = vdwg.mxu0
        %6817 = vmatpush.msra.mxu0 %v3112
        %6818 = vmatpush.msra.mxu0 %v3110
        %6819 = vmatpush.msra.mxu0 %v3108
        %6820 = vmatpush.msra.mxu0 %v3106
        %6821 = vmatpush.msra.mxu0 %v3104
        %6822 = vmatpush.msra.mxu0 %v3102
        %6823 = vmatpush.msra.mxu0 %v3100
        %6824 = vmatpush.msra.mxu0 %v3098
        %6825 = vmatpush.msra.mxu0 %v3096
        %6826 = vmatpush.msra.mxu0 %v3094
        %6827 = vmatpush.msra.mxu0 %v3092
        %6828 = vmatpush.msra.mxu0 %v3090
        %6829 = vmatpush.msra.mxu0 %v3088
        %6830 = vmatpush.msra.mxu0 %v3086
        %6831 = vmatpush.msra.mxu0 %v3084
        %6832 = vmatpush.msra.mxu0 %v3082
        %6833 = vmatmul.f32.gmra.mxu0 %v821
        %v6834 = vpop.f32.mrf.mxu0
        %v6835 = vadd.f32 %v6815, %v6834
        %6836 = vdwg.mxu0
        %6837 = vmatpush.msra.mxu0 %v3144
        %6838 = vmatpush.msra.mxu0 %v3142
        %6839 = vmatpush.msra.mxu0 %v3140
        %6840 = vmatpush.msra.mxu0 %v3138
        %6841 = vmatpush.msra.mxu0 %v3136
        %6842 = vmatpush.msra.mxu0 %v3134
        %6843 = vmatpush.msra.mxu0 %v3132
        %6844 = vmatpush.msra.mxu0 %v3130
        %6845 = vmatpush.msra.mxu0 %v3128
        %6846 = vmatpush.msra.mxu0 %v3126
        %6847 = vmatpush.msra.mxu0 %v3124
        %6848 = vmatpush.msra.mxu0 %v3122
        %6849 = vmatpush.msra.mxu0 %v3120
        %6850 = vmatpush.msra.mxu0 %v3118
        %6851 = vmatpush.msra.mxu0 %v3116
        %6852 = vmatpush.msra.mxu0 %v3114
        %6853 = vmatmul.f32.gmra.mxu0 %v822
        %v6854 = vpop.f32.mrf.mxu0
        %v6855 = vadd.f32 %v6835, %v6854
        %6856 = vdwg.mxu0
        %6857 = vmatpush.msra.mxu0 %v3176
        %6858 = vmatpush.msra.mxu0 %v3174
        %6859 = vmatpush.msra.mxu0 %v3172
        %6860 = vmatpush.msra.mxu0 %v3170
        %6861 = vmatpush.msra.mxu0 %v3168
        %6862 = vmatpush.msra.mxu0 %v3166
        %6863 = vmatpush.msra.mxu0 %v3164
        %6864 = vmatpush.msra.mxu0 %v3162
        %6865 = vmatpush.msra.mxu0 %v3160
        %6866 = vmatpush.msra.mxu0 %v3158
        %6867 = vmatpush.msra.mxu0 %v3156
        %6868 = vmatpush.msra.mxu0 %v3154
        %6869 = vmatpush.msra.mxu0 %v3152
        %6870 = vmatpush.msra.mxu0 %v3150
        %6871 = vmatpush.msra.mxu0 %v3148
        %6872 = vmatpush.msra.mxu0 %v3146
        %6873 = vmatmul.f32.gmra.mxu0 %v823
        %v6874 = vpop.f32.mrf.mxu0
        %v6875 = vadd.f32 %v6855, %v6874
        %6876 = vdwg.mxu0
        %6877 = vmatpush.msra.mxu0 %v3208
        %6878 = vmatpush.msra.mxu0 %v3206
        %6879 = vmatpush.msra.mxu0 %v3204
        %6880 = vmatpush.msra.mxu0 %v3202
        %6881 = vmatpush.msra.mxu0 %v3200
        %6882 = vmatpush.msra.mxu0 %v3198
        %6883 = vmatpush.msra.mxu0 %v3196
        %6884 = vmatpush.msra.mxu0 %v3194
        %6885 = vmatpush.msra.mxu0 %v3192
        %6886 = vmatpush.msra.mxu0 %v3190
        %6887 = vmatpush.msra.mxu0 %v3188
        %6888 = vmatpush.msra.mxu0 %v3186
        %6889 = vmatpush.msra.mxu0 %v3184
        %6890 = vmatpush.msra.mxu0 %v3182
        %6891 = vmatpush.msra.mxu0 %v3180
        %6892 = vmatpush.msra.mxu0 %v3178
        %6893 = vmatmul.f32.gmra.mxu0 %v824
        %v6894 = vpop.f32.mrf.mxu0
        %v6895 = vadd.f32 %v6875, %v6894
        %6896 = vdwg.mxu0
        %6897 = vmatpush.msra.mxu0 %v3240
        %6898 = vmatpush.msra.mxu0 %v3238
        %6899 = vmatpush.msra.mxu0 %v3236
        %6900 = vmatpush.msra.mxu0 %v3234
        %6901 = vmatpush.msra.mxu0 %v3232
        %6902 = vmatpush.msra.mxu0 %v3230
        %6903 = vmatpush.msra.mxu0 %v3228
        %6904 = vmatpush.msra.mxu0 %v3226
        %6905 = vmatpush.msra.mxu0 %v3224
        %6906 = vmatpush.msra.mxu0 %v3222
        %6907 = vmatpush.msra.mxu0 %v3220
        %6908 = vmatpush.msra.mxu0 %v3218
        %6909 = vmatpush.msra.mxu0 %v3216
        %6910 = vmatpush.msra.mxu0 %v3214
        %6911 = vmatpush.msra.mxu0 %v3212
        %6912 = vmatpush.msra.mxu0 %v3210
        %6913 = vmatmul.f32.gmra.mxu0 %v825
        %v6914 = vpop.f32.mrf.mxu0
        %v6915 = vadd.f32 %v6895, %v6914
        %6916 = vdwg.mxu0
        %6917 = vmatpush.msra.mxu0 %v3272
        %6918 = vmatpush.msra.mxu0 %v3270
        %6919 = vmatpush.msra.mxu0 %v3268
        %6920 = vmatpush.msra.mxu0 %v3266
        %6921 = vmatpush.msra.mxu0 %v3264
        %6922 = vmatpush.msra.mxu0 %v3262
        %6923 = vmatpush.msra.mxu0 %v3260
        %6924 = vmatpush.msra.mxu0 %v3258
        %6925 = vmatpush.msra.mxu0 %v3256
        %6926 = vmatpush.msra.mxu0 %v3254
        %6927 = vmatpush.msra.mxu0 %v3252
        %6928 = vmatpush.msra.mxu0 %v3250
        %6929 = vmatpush.msra.mxu0 %v3248
        %6930 = vmatpush.msra.mxu0 %v3246
        %6931 = vmatpush.msra.mxu0 %v3244
        %6932 = vmatpush.msra.mxu0 %v3242
        %6933 = vmatmul.f32.gmra.mxu0 %v826
        %v6934 = vpop.f32.mrf.mxu0
        %v6935 = vadd.f32 %v6915, %v6934
        %6936 = vdwg.mxu0
        %6937 = vmatpush.msra.mxu0 %v3304
        %6938 = vmatpush.msra.mxu0 %v3302
        %6939 = vmatpush.msra.mxu0 %v3300
        %6940 = vmatpush.msra.mxu0 %v3298
        %6941 = vmatpush.msra.mxu0 %v3296
        %6942 = vmatpush.msra.mxu0 %v3294
        %6943 = vmatpush.msra.mxu0 %v3292
        %6944 = vmatpush.msra.mxu0 %v3290
        %6945 = vmatpush.msra.mxu0 %v3288
        %6946 = vmatpush.msra.mxu0 %v3286
        %6947 = vmatpush.msra.mxu0 %v3284
        %6948 = vmatpush.msra.mxu0 %v3282
        %6949 = vmatpush.msra.mxu0 %v3280
        %6950 = vmatpush.msra.mxu0 %v3278
        %6951 = vmatpush.msra.mxu0 %v3276
        %6952 = vmatpush.msra.mxu0 %v3274
        %6953 = vmatmul.f32.gmra.mxu0 %v827
        %v6954 = vpop.f32.mrf.mxu0
        %v6955 = vadd.f32 %v6935, %v6954
        %6956 = vdwg.mxu0
        %6957 = vmatpush.msra.mxu0 %v3336
        %6958 = vmatpush.msra.mxu0 %v3334
        %6959 = vmatpush.msra.mxu0 %v3332
        %6960 = vmatpush.msra.mxu0 %v3330
        %6961 = vmatpush.msra.mxu0 %v3328
        %6962 = vmatpush.msra.mxu0 %v3326
        %6963 = vmatpush.msra.mxu0 %v3324
        %6964 = vmatpush.msra.mxu0 %v3322
        %6965 = vmatpush.msra.mxu0 %v3320
        %6966 = vmatpush.msra.mxu0 %v3318
        %6967 = vmatpush.msra.mxu0 %v3316
        %6968 = vmatpush.msra.mxu0 %v3314
        %6969 = vmatpush.msra.mxu0 %v3312
        %6970 = vmatpush.msra.mxu0 %v3310
        %6971 = vmatpush.msra.mxu0 %v3308
        %6972 = vmatpush.msra.mxu0 %v3306
        %6973 = vmatmul.f32.gmra.mxu0 %v828
        %v6974 = vpop.f32.mrf.mxu0
        %v6975 = vadd.f32 %v6955, %v6974
        %6976 = vdwg.mxu0
        %6977 = vmatpush.msra.mxu0 %v3368
        %6978 = vmatpush.msra.mxu0 %v3366
        %6979 = vmatpush.msra.mxu0 %v3364
        %6980 = vmatpush.msra.mxu0 %v3362
        %6981 = vmatpush.msra.mxu0 %v3360
        %6982 = vmatpush.msra.mxu0 %v3358
        %6983 = vmatpush.msra.mxu0 %v3356
        %6984 = vmatpush.msra.mxu0 %v3354
        %6985 = vmatpush.msra.mxu0 %v3352
        %6986 = vmatpush.msra.mxu0 %v3350
        %6987 = vmatpush.msra.mxu0 %v3348
        %6988 = vmatpush.msra.mxu0 %v3346
        %6989 = vmatpush.msra.mxu0 %v3344
        %6990 = vmatpush.msra.mxu0 %v3342
        %6991 = vmatpush.msra.mxu0 %v3340
        %6992 = vmatpush.msra.mxu0 %v3338
        %6993 = vmatmul.f32.gmra.mxu0 %v829
        %v6994 = vpop.f32.mrf.mxu0
        %v6995 = vadd.f32 %v6975, %v6994
        %6996 = vdwg.mxu0
        %6997 = vmatpush.msra.mxu0 %v3400
        %6998 = vmatpush.msra.mxu0 %v3398
        %6999 = vmatpush.msra.mxu0 %v3396
        %7000 = vmatpush.msra.mxu0 %v3394
        %7001 = vmatpush.msra.mxu0 %v3392
        %7002 = vmatpush.msra.mxu0 %v3390
        %7003 = vmatpush.msra.mxu0 %v3388
        %7004 = vmatpush.msra.mxu0 %v3386
        %7005 = vmatpush.msra.mxu0 %v3384
        %7006 = vmatpush.msra.mxu0 %v3382
        %7007 = vmatpush.msra.mxu0 %v3380
        %7008 = vmatpush.msra.mxu0 %v3378
        %7009 = vmatpush.msra.mxu0 %v3376
        %7010 = vmatpush.msra.mxu0 %v3374
        %7011 = vmatpush.msra.mxu0 %v3372
        %7012 = vmatpush.msra.mxu0 %v3370
        %7013 = vmatmul.f32.gmra.mxu0 %v830
        %v7014 = vpop.f32.mrf.mxu0
        %v7015 = vadd.f32 %v6995, %v7014
        %7016 = vdwg.mxu0
        %7017 = vmatpush.msra.mxu0 %v3432
        %7018 = vmatpush.msra.mxu0 %v3430
        %7019 = vmatpush.msra.mxu0 %v3428
        %7020 = vmatpush.msra.mxu0 %v3426
        %7021 = vmatpush.msra.mxu0 %v3424
        %7022 = vmatpush.msra.mxu0 %v3422
        %7023 = vmatpush.msra.mxu0 %v3420
        %7024 = vmatpush.msra.mxu0 %v3418
        %7025 = vmatpush.msra.mxu0 %v3416
        %7026 = vmatpush.msra.mxu0 %v3414
        %7027 = vmatpush.msra.mxu0 %v3412
        %7028 = vmatpush.msra.mxu0 %v3410
        %7029 = vmatpush.msra.mxu0 %v3408
        %7030 = vmatpush.msra.mxu0 %v3406
        %7031 = vmatpush.msra.mxu0 %v3404
        %7032 = vmatpush.msra.mxu0 %v3402
        %7033 = vmatmul.f32.gmra.mxu0 %v831
        %v7034 = vpop.f32.mrf.mxu0
        %v7035 = vadd.f32 %v7015, %v7034
        %7036 = vdwg.mxu0
        %7037 = vmatpush.msra.mxu0 %v3464
        %7038 = vmatpush.msra.mxu0 %v3462
        %7039 = vmatpush.msra.mxu0 %v3460
        %7040 = vmatpush.msra.mxu0 %v3458
        %7041 = vmatpush.msra.mxu0 %v3456
        %7042 = vmatpush.msra.mxu0 %v3454
        %7043 = vmatpush.msra.mxu0 %v3452
        %7044 = vmatpush.msra.mxu0 %v3450
        %7045 = vmatpush.msra.mxu0 %v3448
        %7046 = vmatpush.msra.mxu0 %v3446
        %7047 = vmatpush.msra.mxu0 %v3444
        %7048 = vmatpush.msra.mxu0 %v3442
        %7049 = vmatpush.msra.mxu0 %v3440
        %7050 = vmatpush.msra.mxu0 %v3438
        %7051 = vmatpush.msra.mxu0 %v3436
        %7052 = vmatpush.msra.mxu0 %v3434
        %7053 = vmatmul.f32.gmra.mxu0 %v832
        %v7054 = vpop.f32.mrf.mxu0
        %v7055 = vadd.f32 %v7035, %v7054
        %7056 = vdwg.mxu0
        %7057 = vmatpush.msra.mxu0 %v3496
        %7058 = vmatpush.msra.mxu0 %v3494
        %7059 = vmatpush.msra.mxu0 %v3492
        %7060 = vmatpush.msra.mxu0 %v3490
        %7061 = vmatpush.msra.mxu0 %v3488
        %7062 = vmatpush.msra.mxu0 %v3486
        %7063 = vmatpush.msra.mxu0 %v3484
        %7064 = vmatpush.msra.mxu0 %v3482
        %7065 = vmatpush.msra.mxu0 %v3480
        %7066 = vmatpush.msra.mxu0 %v3478
        %7067 = vmatpush.msra.mxu0 %v3476
        %7068 = vmatpush.msra.mxu0 %v3474
        %7069 = vmatpush.msra.mxu0 %v3472
        %7070 = vmatpush.msra.mxu0 %v3470
        %7071 = vmatpush.msra.mxu0 %v3468
        %7072 = vmatpush.msra.mxu0 %v3466
        %7073 = vmatmul.f32.gmra.mxu0 %v833
        %v7074 = vpop.f32.mrf.mxu0
        %v7075 = vadd.f32 %v7055, %v7074
        %7076 = vdwg.mxu0
        %7077 = vmatpush.msra.mxu0 %v3528
        %7078 = vmatpush.msra.mxu0 %v3526
        %7079 = vmatpush.msra.mxu0 %v3524
        %7080 = vmatpush.msra.mxu0 %v3522
        %7081 = vmatpush.msra.mxu0 %v3520
        %7082 = vmatpush.msra.mxu0 %v3518
        %7083 = vmatpush.msra.mxu0 %v3516
        %7084 = vmatpush.msra.mxu0 %v3514
        %7085 = vmatpush.msra.mxu0 %v3512
        %7086 = vmatpush.msra.mxu0 %v3510
        %7087 = vmatpush.msra.mxu0 %v3508
        %7088 = vmatpush.msra.mxu0 %v3506
        %7089 = vmatpush.msra.mxu0 %v3504
        %7090 = vmatpush.msra.mxu0 %v3502
        %7091 = vmatpush.msra.mxu0 %v3500
        %7092 = vmatpush.msra.mxu0 %v3498
        %7093 = vmatmul.f32.gmra.mxu0 %v834
        %v7094 = vpop.f32.mrf.mxu0
        %v7095 = vadd.f32 %v7075, %v7094
        %7096 = vdwg.mxu0
        %7097 = vmatpush.msra.mxu0 %v3560
        %7098 = vmatpush.msra.mxu0 %v3558
        %7099 = vmatpush.msra.mxu0 %v3556
        %7100 = vmatpush.msra.mxu0 %v3554
        %7101 = vmatpush.msra.mxu0 %v3552
        %7102 = vmatpush.msra.mxu0 %v3550
        %7103 = vmatpush.msra.mxu0 %v3548
        %7104 = vmatpush.msra.mxu0 %v3546
        %7105 = vmatpush.msra.mxu0 %v3544
        %7106 = vmatpush.msra.mxu0 %v3542
        %7107 = vmatpush.msra.mxu0 %v3540
        %7108 = vmatpush.msra.mxu0 %v3538
        %7109 = vmatpush.msra.mxu0 %v3536
        %7110 = vmatpush.msra.mxu0 %v3534
        %7111 = vmatpush.msra.mxu0 %v3532
        %7112 = vmatpush.msra.mxu0 %v3530
        %7113 = vmatmul.f32.gmra.mxu0 %v835
        %v7114 = vpop.f32.mrf.mxu0
        %v7115 = vadd.f32 %v7095, %v7114
        %7116 = vdwg.mxu0
        %7117 = vmatpush.msra.mxu0 %v3592
        %7118 = vmatpush.msra.mxu0 %v3590
        %7119 = vmatpush.msra.mxu0 %v3588
        %7120 = vmatpush.msra.mxu0 %v3586
        %7121 = vmatpush.msra.mxu0 %v3584
        %7122 = vmatpush.msra.mxu0 %v3582
        %7123 = vmatpush.msra.mxu0 %v3580
        %7124 = vmatpush.msra.mxu0 %v3578
        %7125 = vmatpush.msra.mxu0 %v3576
        %7126 = vmatpush.msra.mxu0 %v3574
        %7127 = vmatpush.msra.mxu0 %v3572
        %7128 = vmatpush.msra.mxu0 %v3570
        %7129 = vmatpush.msra.mxu0 %v3568
        %7130 = vmatpush.msra.mxu0 %v3566
        %7131 = vmatpush.msra.mxu0 %v3564
        %7132 = vmatpush.msra.mxu0 %v3562
        %7133 = vmatmul.f32.gmra.mxu0 %v836
        %v7134 = vpop.f32.mrf.mxu0
        %v7135 = vadd.f32 %v7115, %v7134
        %7136 = vdwg.mxu0
        %7137 = vmatpush.msra.mxu0 %v3624
        %7138 = vmatpush.msra.mxu0 %v3622
        %7139 = vmatpush.msra.mxu0 %v3620
        %7140 = vmatpush.msra.mxu0 %v3618
        %7141 = vmatpush.msra.mxu0 %v3616
        %7142 = vmatpush.msra.mxu0 %v3614
        %7143 = vmatpush.msra.mxu0 %v3612
        %7144 = vmatpush.msra.mxu0 %v3610
        %7145 = vmatpush.msra.mxu0 %v3608
        %7146 = vmatpush.msra.mxu0 %v3606
        %7147 = vmatpush.msra.mxu0 %v3604
        %7148 = vmatpush.msra.mxu0 %v3602
        %7149 = vmatpush.msra.mxu0 %v3600
        %7150 = vmatpush.msra.mxu0 %v3598
        %7151 = vmatpush.msra.mxu0 %v3596
        %7152 = vmatpush.msra.mxu0 %v3594
        %7153 = vmatmul.f32.gmra.mxu0 %v837
        %v7154 = vpop.f32.mrf.mxu0
        %v7155 = vadd.f32 %v7135, %v7154
        %7156 = vdwg.mxu0
        %7157 = vmatpush.msra.mxu0 %v3656
        %7158 = vmatpush.msra.mxu0 %v3654
        %7159 = vmatpush.msra.mxu0 %v3652
        %7160 = vmatpush.msra.mxu0 %v3650
        %7161 = vmatpush.msra.mxu0 %v3648
        %7162 = vmatpush.msra.mxu0 %v3646
        %7163 = vmatpush.msra.mxu0 %v3644
        %7164 = vmatpush.msra.mxu0 %v3642
        %7165 = vmatpush.msra.mxu0 %v3640
        %7166 = vmatpush.msra.mxu0 %v3638
        %7167 = vmatpush.msra.mxu0 %v3636
        %7168 = vmatpush.msra.mxu0 %v3634
        %7169 = vmatpush.msra.mxu0 %v3632
        %7170 = vmatpush.msra.mxu0 %v3630
        %7171 = vmatpush.msra.mxu0 %v3628
        %7172 = vmatpush.msra.mxu0 %v3626
        %7173 = vmatmul.f32.gmra.mxu0 %v838
        %v7174 = vpop.f32.mrf.mxu0
        %v7175 = vadd.f32 %v7155, %v7174
        %7176 = vdwg.mxu0
        %v7177 = vadd.f32 %v839, %v5415
        %v7178 = vadd.f32 %v840, %v7175
        %7179 = vst [vmem:[#allocation2] sm:$0xff] %v7177
        %7180 = vst [vmem:[#allocation2 + $0x8] sm:$0xff] %v7178
        %p7181 = scmp.eq.s32.totalorder %s27, 7
        // Predicated region
        $region77: #{mlp_forward.1} parent=47 // pred_check
          %p7182 = pneg %p7181
        $region78: #{mlp_forward.1} parent=47 // pred_check_branch
          %7184 = sbr.rel (%p7182) target = $region80
        $region79: #{mlp_forward.1} parent=47 // pred_region
          %v7185 = vld [vmem:[#allocation2] sm:$0xff]
          %v7186 = vld [vmem:[#allocation2 + $0x8] sm:$0xff]
          %v7187 = vld [vmem:[#allocation8] sm:$0x3]
          %v7189 = vperm.slane %v7187, 0
          %v7190 = vperm.slane %v7187, 1
          %v7193 = vadd.f32 %v7185, %v7189
          %v7194 = vadd.f32 %v7186, %v7190
          %v7195 = vmax.f32 %v7193, 0.0
          %v7196 = vmax.f32 %v7194, 0.0
          %v7197 = vld [vmem:[#allocation9] sm:$0xff]
          %v7198 = vld [vmem:[#allocation9 + $0x8] sm:$0xff]
          %v7199 = vld [vmem:[#allocation9 + $0x10] sm:$0xff]
          %v7200 = vld [vmem:[#allocation9 + $0x18] sm:$0xff]
          %v7201 = vld [vmem:[#allocation9 + $0x20] sm:$0xff]
          %v7202 = vld [vmem:[#allocation9 + $0x28] sm:$0xff]
          %v7203 = vld [vmem:[#allocation9 + $0x30] sm:$0xff]
          %v7204 = vld [vmem:[#allocation9 + $0x38] sm:$0xff]
          %v7205 = vld [vmem:[#allocation9 + $0x40] sm:$0xff]
          %v7206 = vld [vmem:[#allocation9 + $0x48] sm:$0xff]
          %v7207 = vld [vmem:[#allocation9 + $0x50] sm:$0xff]
          %v7208 = vld [vmem:[#allocation9 + $0x58] sm:$0xff]
          %v7209 = vld [vmem:[#allocation9 + $0x60] sm:$0xff]
          %v7210 = vld [vmem:[#allocation9 + $0x68] sm:$0xff]
          %v7211 = vld [vmem:[#allocation9 + $0x70] sm:$0xff]
          %v7212 = vld [vmem:[#allocation9 + $0x78] sm:$0xff]
          %v7213 = vld [vmem:[#allocation9 + $0x80] sm:$0xff]
          %v7214 = vld [vmem:[#allocation9 + $0x88] sm:$0xff]
          %v7215 = vld [vmem:[#allocation9 + $0x90] sm:$0xff]
          %v7216 = vld [vmem:[#allocation9 + $0x98] sm:$0xff]
          %v7217 = vld [vmem:[#allocation9 + $0xa0] sm:$0xff]
          %v7218 = vld [vmem:[#allocation9 + $0xa8] sm:$0xff]
          %v7219 = vld [vmem:[#allocation9 + $0xb0] sm:$0xff]
          %v7220 = vld [vmem:[#allocation9 + $0xb8] sm:$0xff]
          %v7221 = vld [vmem:[#allocation9 + $0xc0] sm:$0xff]
          %v7222 = vld [vmem:[#allocation9 + $0xc8] sm:$0xff]
          %v7223 = vld [vmem:[#allocation9 + $0xd0] sm:$0xff]
          %v7224 = vld [vmem:[#allocation9 + $0xd8] sm:$0xff]
          %v7225 = vld [vmem:[#allocation9 + $0xe0] sm:$0xff]
          %v7226 = vld [vmem:[#allocation9 + $0xe8] sm:$0xff]
          %v7227 = vld [vmem:[#allocation9 + $0xf0] sm:$0xff]
          %v7228 = vld [vmem:[#allocation9 + $0xf8] sm:$0xff]
          %v7229 = vld [vmem:[#allocation11] sm:$0x1]
          %v7231 = vperm.slane %v7229, 0
          %7233 = vmatpush.msra.mxu0 %v7212
          %7234 = vmatpush.msra.mxu0 %v7211
          %7235 = vmatpush.msra.mxu0 %v7210
          %7236 = vmatpush.msra.mxu0 %v7209
          %7237 = vmatpush.msra.mxu0 %v7208
          %7238 = vmatpush.msra.mxu0 %v7207
          %7239 = vmatpush.msra.mxu0 %v7206
          %7240 = vmatpush.msra.mxu0 %v7205
          %7241 = vmatpush.msra.mxu0 %v7204
          %7242 = vmatpush.msra.mxu0 %v7203
          %7243 = vmatpush.msra.mxu0 %v7202
          %7244 = vmatpush.msra.mxu0 %v7201
          %7245 = vmatpush.msra.mxu0 %v7200
          %7246 = vmatpush.msra.mxu0 %v7199
          %7247 = vmatpush.msra.mxu0 %v7198
          %7248 = vmatpush.msra.mxu0 %v7197
          %7249 = vmatmul.f32.gmra.mxu0 %v7195
          %v7250 = vpop.f32.mrf.mxu0
          %v7251 = vadd.f32 %v7231, %v7250
          %7252 = vdwg.mxu0
          %7253 = vmatpush.msra.mxu0 %v7228
          %7254 = vmatpush.msra.mxu0 %v7227
          %7255 = vmatpush.msra.mxu0 %v7226
          %7256 = vmatpush.msra.mxu0 %v7225
          %7257 = vmatpush.msra.mxu0 %v7224
          %7258 = vmatpush.msra.mxu0 %v7223
          %7259 = vmatpush.msra.mxu0 %v7222
          %7260 = vmatpush.msra.mxu0 %v7221
          %7261 = vmatpush.msra.mxu0 %v7220
          %7262 = vmatpush.msra.mxu0 %v7219
          %7263 = vmatpush.msra.mxu0 %v7218
          %7264 = vmatpush.msra.mxu0 %v7217
          %7265 = vmatpush.msra.mxu0 %v7216
          %7266 = vmatpush.msra.mxu0 %v7215
          %7267 = vmatpush.msra.mxu0 %v7214
          %7268 = vmatpush.msra.mxu0 %v7213
          %7269 = vmatmul.f32.gmra.mxu0 %v7196
          %v7270 = vpop.f32.mrf.mxu0
          %v7271 = vadd.f32 %v7251, %v7270
          %7272 = vdwg.mxu0
          %v7273 = vmax.f32 %v7271, 0.0
          %v7274 = vld [vmem:[%s5] sm:$0xff]
          %v7275 = vld [vmem:[%s5 + $0x8] sm:$0xff]
          %v7276 = vld [vmem:[%s5 + $0x10] sm:$0xff]
          %v7277 = vld [vmem:[%s5 + $0x18] sm:$0xff]
          %v7278 = vld [vmem:[%s5 + $0x20] sm:$0xff]
          %v7279 = vld [vmem:[%s5 + $0x28] sm:$0xff]
          %v7280 = vld [vmem:[%s5 + $0x30] sm:$0xff]
          %v7281 = vld [vmem:[%s5 + $0x38] sm:$0xff]
          %v7282 = vld [vmem:[%s5 + $0x40] sm:$0xff]
          %v7283 = vld [vmem:[%s5 + $0x48] sm:$0xff]
          %v7284 = vld [vmem:[%s5 + $0x50] sm:$0xff]
          %v7285 = vld [vmem:[%s5 + $0x58] sm:$0xff]
          %v7286 = vld [vmem:[%s5 + $0x60] sm:$0xff]
          %v7287 = vld [vmem:[%s5 + $0x68] sm:$0xff]
          %v7288 = vld [vmem:[%s5 + $0x70] sm:$0xff]
          %v7289 = vld [vmem:[%s5 + $0x78] sm:$0xff]
          %v7290 = vld [vmem:[#allocation12] sm:$0x1]
          %v7292 = vperm.slane %v7290, 0
          %7294 = vmatpush.msra.mxu0 %v7289
          %7295 = vmatpush.msra.mxu0 %v7288
          %7296 = vmatpush.msra.mxu0 %v7287
          %7297 = vmatpush.msra.mxu0 %v7286
          %7298 = vmatpush.msra.mxu0 %v7285
          %7299 = vmatpush.msra.mxu0 %v7284
          %7300 = vmatpush.msra.mxu0 %v7283
          %7301 = vmatpush.msra.mxu0 %v7282
          %7302 = vmatpush.msra.mxu0 %v7281
          %7303 = vmatpush.msra.mxu0 %v7280
          %7304 = vmatpush.msra.mxu0 %v7279
          %7305 = vmatpush.msra.mxu0 %v7278
          %7306 = vmatpush.msra.mxu0 %v7277
          %7307 = vmatpush.msra.mxu0 %v7276
          %7308 = vmatpush.msra.mxu0 %v7275
          %7309 = vmatpush.msra.mxu0 %v7274
          %7310 = vmatmul.f32.gmra.mxu0 %v7273
          %v7311 = vpop.f32.mrf.mxu0
          %v7312 = vadd.f32 %v7292, %v7311
          %7313 = vdwg.mxu0
          %vm7314 = vcmask 80896
          %v7315 = vsel %vm7314, %v7312, -inf
          %7316 = vmax.xlane.f32.xlu0 %v7315
          %v7317 = vpop.xlane.xlu0 %7316
          %v7318 = vsub.f32 %v7312, %v7317
          %v7319 = vmul.f32 %v7318, 1.442695
          %v7320 = vpow.pop %v7319
          %v7321 = vsel %vm7314, %v7320, 0.0
          %7322 = vadd.xlane.f32.xlu0 %v7321
          %v7323 = vpop.xlane.xlu0 %7322
          %v7324 = vlog2.pop %v7323
          %v7325 = vmul.f32 %v7324, 0.6931472
          %v7326 = vsub.f32 %v7318, %v7325
          %7327 = vst.msk [vmem:[#allocation14] sm:$0xff] %vm7314, %v7326
        $region80: #{mlp_forward.1} parent=47 // pred_fallthru
          _
        // Predicated region
        $region81: #{mlp_forward.1} parent=47 // pred_check
          %p7328 = pneg %p197
        $region82: #{mlp_forward.1} parent=47 // pred_check_branch
          %7330 = sbr.rel (%p7328) target = $region84
        $region83: #{mlp_forward.1} parent=47 // pred_region
          %7332 = vsyncadd [#allocation5], 0
          %s7334 = sshll.u32 [#allocation14], 4
          %s7335 = int_to_ptr.vmem [resolvable:$true] %s7334
          %s7336 = sshll.u32 %s7, 4
          %s7337 = int_to_ptr.hbm [resolvable:$true] %s7336
          %7339 = dma.vmem_to_hbm [thread:$0]  %s7335, 128, %s7337, [#allocation5]
        $region84: #{mlp_forward.1} parent=47 // pred_fallthru
          _
        // Predicated region
        $region85: #{mlp_forward.1} parent=47 // pred_check
          %p7340 = pneg %p197
        $region86: #{mlp_forward.1} parent=47 // pred_check_branch
          %7342 = sbr.rel (%p7340) target = $region88
        $region87: #{mlp_forward.1} parent=47 // pred_region
          %7344 = dma.done [#allocation5], 128
        $region88: #{mlp_forward.1} parent=47 // pred_fallthru
          _
      $region48: #{mlp_forward.1} parent=5 // pred_fallthru
        _
      %p7345 = scmp.le.s32.totalorder 2, %s22
      // Predicated region
      $region89: #{mlp_forward.1} parent=5 // pred_check
        %p7346 = pneg %p7345
      $region90: #{mlp_forward.1} parent=5 // pred_check_branch
        %7348 = sbr.rel (%p7346) target = $region92
      $region91: #{mlp_forward.1} parent=5 // pred_region
        %s7349 = ssub.s32 %s22, 2
      $region92: #{mlp_forward.1} parent=5 // pred_fallthru
        _
    $region6: #{mlp_forward.1} parent=1 // loop_footer
      %s26 = sadd.s32 1, %s22
    $region7: #{mlp_forward.1} parent=1 // loop_footer_branch
      %21 = sbr.rel target = $region3
    $region8: #{mlp_forward.1} parent=1 // loop_exit
      _
    %7350 = vsyncpa [#allocation4], 1
    %s7351 = scalar_lea.sflag [#allocation4], 1
    %7352 = vsyncpa %s7351, 1
    %7353 = vsyncpa [#allocation7], 1
    %s7354 = scalar_lea.sflag [#allocation7], 1
    %7355 = vsyncpa %s7354, 1
    %7356 = vsyncpa [#allocation10], 1
    %7357 = vsyncpa [#allocation13], 1
    %7358 = vsyncpa [#allocation5], 1
    %s7359 = scalar_lea.sflag [#allocation5], 1
    %7360 = vsyncpa %s7359, 1

</llo_original>
